<compile_context>
chip_gen: v5e
topology: v5e:2x2
jax: 0.10.0
libtpu: 0.0.40
codegen_flags: <defaults>
</compile_context>

<pallas_src>
import functools

import jax
import jax.numpy as jnp
from jax.experimental import pallas as pl
from jax.experimental.pallas import tpu as pltpu

CPAD = 128  # lane-dense channel padding for conv outputs / fc5


def _round_up(x, m):
    return ((x + m - 1) // m) * m


# -----------------------------------------------------------------------------
# Pallas kernels
# -----------------------------------------------------------------------------
def _matmul_bias_relu_kernel(x_ref, w_ref, b_ref, o_ref, *, apply_relu):
    acc = jnp.dot(x_ref[...], w_ref[...], preferred_element_type=jnp.float32)
    acc = acc + b_ref[...]          # (1, N) broadcasts over rows
    if apply_relu:
        acc = jnp.maximum(acc, 0.0)
    o_ref[...] = acc.astype(o_ref.dtype)


def _fc_head_kernel(x_ref, w4_ref, b4_ref, w5_ref, b5_ref, q_ref):
    # fc4 (relu) + fc5 fused on the resident tile.
    h = jnp.dot(x_ref[...], w4_ref[...], preferred_element_type=jnp.float32)
    h = jnp.maximum(h + b4_ref[...], 0.0)
    q = jnp.dot(h.astype(jnp.bfloat16), w5_ref[...],
                preferred_element_type=jnp.float32)
    q_ref[...] = q + b5_ref[...]


# -----------------------------------------------------------------------------
# Pallas wrappers
# -----------------------------------------------------------------------------
def matmul_bias_relu_pallas(x, w, b, *, relu, out_dtype, tm=256):
    """x: (M, K) bf16, w: (K, N) bf16, b: (N,) f32 -> (M, N) out_dtype."""
    M, K = x.shape
    N = w.shape[1]
    bm = min(_round_up(tm, 16), _round_up(M, 16))
    grid = (pl.cdiv(M, bm),)
    return pl.pallas_call(
        functools.partial(_matmul_bias_relu_kernel, apply_relu=relu),
        out_shape=jax.ShapeDtypeStruct((M, N), out_dtype),
        grid=grid,
        in_specs=[
            pl.BlockSpec((bm, K), lambda i: (i, 0)),   # activation tile
            pl.BlockSpec((K, N), lambda i: (0, 0)),    # full weight, resident
            pl.BlockSpec((1, N), lambda i: (0, 0)),    # bias row
        ],
        out_specs=pl.BlockSpec((bm, N), lambda i: (i, 0)),
        compiler_params=pltpu.CompilerParams(dimension_semantics=("parallel",)),
    )(x, w, b.reshape(1, N))


def fc_head_pallas(x, w4, b4, w5, b5, *, tm=256):
    """Fused fc4(relu)+fc5. x: (M, K) bf16 -> (M, N5) f32 (N5 lane-padded)."""
    M, K = x.shape
    N4 = w4.shape[1]
    N5 = w5.shape[1]
    bm = min(_round_up(tm, 16), _round_up(M, 16))
    grid = (pl.cdiv(M, bm),)
    return pl.pallas_call(
        _fc_head_kernel,
        out_shape=jax.ShapeDtypeStruct((M, N5), jnp.float32),
        grid=grid,
        in_specs=[
            pl.BlockSpec((bm, K), lambda i: (i, 0)),
            pl.BlockSpec((K, N4), lambda i: (0, 0)),
            pl.BlockSpec((1, N4), lambda i: (0, 0)),
            pl.BlockSpec((N4, N5), lambda i: (0, 0)),
            pl.BlockSpec((1, N5), lambda i: (0, 0)),
        ],
        out_specs=pl.BlockSpec((bm, N5), lambda i: (i, 0)),
        compiler_params=pltpu.CompilerParams(dimension_semantics=("parallel",)),
    )(x, w4, b4.reshape(1, N4), w5, b5.reshape(1, N5))


# -----------------------------------------------------------------------------
# Conv2d (VALID, stride s) via NHWC im2col + Pallas matmul
# -----------------------------------------------------------------------------
def _im2col_nhwc(x, kh, kw, stride):
    """x: (B, H, W, C) -> (B*OH*OW, kh*kw*C) with column order (kh, kw, c)."""
    B, H, W, C = x.shape
    OH = (H - kh) // stride + 1
    OW = (W - kw) // stride + 1
    cols = []
    for i in range(kh):
        for j in range(kw):
            cols.append(
                x[:, i:i + stride * OH:stride, j:j + stride * OW:stride, :])
    p = jnp.stack(cols, axis=3)                 # (B, OH, OW, kh*kw, C)
    return p.reshape(B * OH * OW, kh * kw * C), OH, OW


def conv2d_relu_pallas(x_nhwc, w_mat, b, *, kh, kw, stride):
    """x_nhwc: (B,H,W,C) bf16, w_mat: (kh*kw*C, CPAD) bf16 -> (B,OH,OW,CPAD)."""
    B = x_nhwc.shape[0]
    patches, OH, OW = _im2col_nhwc(x_nhwc, kh, kw, stride)
    y = matmul_bias_relu_pallas(patches, w_mat, b, relu=True,
                                out_dtype=jnp.bfloat16)
    return y.reshape(B, OH, OW, w_mat.shape[1])


# -----------------------------------------------------------------------------
# Parameters (PyTorch layout) + one-time kernel-layout preparation
# -----------------------------------------------------------------------------
def init_qcnn_params(key, n_actions, state_dim=4):
    ks = jax.random.split(key, 10)

    def winit(k, shape, fan_in):
        return jax.random.normal(k, shape, jnp.float32) / jnp.sqrt(fan_in)

    p = {}
    p["w1"] = winit(ks[0], (32, state_dim, 8, 8), state_dim * 8 * 8)
    p["b1"] = winit(ks[1], (32,), state_dim * 8 * 8)
    p["w2"] = winit(ks[2], (64, 32, 4, 4), 32 * 4 * 4)
    p["b2"] = winit(ks[3], (64,), 32 * 4 * 4)
    p["w3"] = winit(ks[4], (64, 64, 3, 3), 64 * 3 * 3)
    p["b3"] = winit(ks[5], (64,), 64 * 3 * 3)
    p["w4"] = winit(ks[6], (256, 7 * 7 * 64), 7 * 7 * 64)
    p["b4"] = winit(ks[7], (256,), 7 * 7 * 64)
    p["w5"] = winit(ks[8], (n_actions, 256), 256)
    p["b5"] = winit(ks[9], (n_actions,), 256)
    return p


def prepare_qcnn_params(p):
    """One-time reorder/pad/cast of PyTorch-layout params to kernel layout."""
    bf = jnp.bfloat16

    def conv_w(w, ic_pad):
        oc, ic, kh, kw = w.shape
        wt = jnp.transpose(w, (2, 3, 1, 0))                     # (KH,KW,IC,OC)
        wt = jnp.pad(wt, ((0, 0), (0, 0), (0, ic_pad - ic), (0, CPAD - oc)))
        return wt.reshape(kh * kw * ic_pad, CPAD).astype(bf)

    def pad_bias(b, n):
        return jnp.pad(b, (0, n - b.shape[0])).astype(jnp.float32)

    n_actions = p["w5"].shape[0]
    # fc4: PyTorch columns are (C=64,H=7,W=7); reorder to (H,W,Cpad=128).
    w4 = p["w4"].reshape(256, 64, 7, 7)
    w4 = jnp.transpose(w4, (2, 3, 1, 0))                        # (7,7,64,256)
    w4 = jnp.pad(w4, ((0, 0), (0, 0), (0, CPAD - 64), (0, 0)))  # (7,7,128,256)

    return {
        "w1": conv_w(p["w1"], p["w1"].shape[1]),   # (256, 128)
        "b1": pad_bias(p["b1"], CPAD),
        "w2": conv_w(p["w2"], CPAD),               # (2048, 128)
        "b2": pad_bias(p["b2"], CPAD),
        "w3": conv_w(p["w3"], CPAD),               # (1152, 128)
        "b3": pad_bias(p["b3"], CPAD),
        "w4": w4.reshape(7 * 7 * CPAD, 256).astype(bf),
        "b4": p["b4"].astype(jnp.float32),
        "w5": jnp.pad(p["w5"].T, ((0, 0), (0, CPAD - n_actions))).astype(bf),
        "b5": pad_bias(p["b5"], CPAD),
    }


# -----------------------------------------------------------------------------
# Forward passes
# -----------------------------------------------------------------------------
@functools.partial(jax.jit, static_argnames=("n_actions",))
def qcnn_forward_pallas(x, kp, n_actions):
    # x: (B, 4, 84, 84) NCHW f32 (PyTorch interface). Single transpose to NHWC.
    xh = jnp.transpose(x, (0, 2, 3, 1)).astype(jnp.bfloat16)
    h = conv2d_relu_pallas(xh, kp["w1"], kp["b1"], kh=8, kw=8, stride=4)  # (B,20,20,128)
    h = conv2d_relu_pallas(h, kp["w2"], kp["b2"], kh=4, kw=4, stride=2)   # (B,9,9,128)
    h = conv2d_relu_pallas(h, kp["w3"], kp["b3"], kh=3, kw=3, stride=1)   # (B,7,7,128)
    B = h.shape[0]
    h = h.reshape(B, -1)                      # (B, 7*7*128) in (H,W,Cpad) order
    q = fc_head_pallas(h, kp["w4"], kp["b4"], kp["w5"], kp["b5"])  # (B, 128)
    return q[:, :n_actions]


def qcnn_forward_ref_f32(x, p):
    """Pure f32 JAX reference mirroring the PyTorch forward."""
    def conv(h, w, b, s):
        y = jax.lax.conv_general_dilated(
            h, w, (s, s), "VALID",
            dimension_numbers=("NCHW", "OIHW", "NCHW"))
        return jax.nn.relu(y + b[None, :, None, None])

    h = conv(x, p["w1"], p["b1"], 4)
    h = conv(h, p["w2"], p["b2"], 2)
    h = conv(h, p["w3"], p["b3"], 1)
    h = h.reshape(h.shape[0], -1)
    h = jax.nn.relu(h @ p["w4"].T + p["b4"])
    return h @ p["w5"].T + p["b5"]


def qcnn_forward_ref_bf16(x, p):
    """Reference mirroring the kernel's dtype policy (bf16 inputs, f32 accum)."""
    bf = jnp.bfloat16

    def conv(h, w, b, s):
        y = jax.lax.conv_general_dilated(
            h.astype(bf), w.astype(bf), (s, s), "VALID",
            dimension_numbers=("NCHW", "OIHW", "NCHW"),
            preferred_element_type=jnp.float32)
        return jax.nn.relu(y + b[None, :, None, None]).astype(bf)

    h = conv(x, p["w1"], p["b1"], 4)
    h = conv(h, p["w2"], p["b2"], 2)
    h = conv(h, p["w3"], p["b3"], 1)
    h = h.reshape(h.shape[0], -1)
    h = jnp.dot(h, p["w4"].T.astype(bf),
                preferred_element_type=jnp.float32) + p["b4"]
    h = jax.nn.relu(h).astype(bf)
    return jnp.dot(h, p["w5"].T.astype(bf),
                   preferred_element_type=jnp.float32) + p["b5"]


if __name__ == "__main__":
    n_actions = 6
    batch = 2
    # The fc4 layer (7*7*64 inputs) pins the spatial size to 84x84 (Atari DQN).
    key = jax.random.PRNGKey(0)
    kx, kparam = jax.random.split(key)
    x = jax.random.normal(kx, (batch, 4, 84, 84), jnp.float32)
    params = init_qcnn_params(kparam, n_actions)
    kernel_params = prepare_qcnn_params(params)

    q = qcnn_forward_pallas(x, kernel_params, n_actions)
    q = jax.block_until_ready(q)

    assert q.shape == (batch, n_actions), q.shape
    assert bool(jnp.all(jnp.isfinite(q)))

    # Tight check vs. a reference with identical bf16/f32 dtype handling.
    q_ref_bf = qcnn_forward_ref_bf16(x, params)
    err_bf = float(jnp.max(jnp.abs(q - q_ref_bf)))
    assert bool(jnp.allclose(q, q_ref_bf, atol=1e-2, rtol=1e-2)), err_bf

    # Loose sanity check vs. the full-f32 PyTorch-equivalent reference.
    q_ref = qcnn_forward_ref_f32(x, params)
    err = float(jnp.max(jnp.abs(q - q_ref)))
    assert bool(jnp.allclose(q, q_ref, atol=1e-1, rtol=1e-1)), err

    print("KERNEL_OK")
</pallas_src>

<mosaic_0001>
module attributes {stable_mosaic.version = 11 : i64} {
  func.func @_matmul_bias_relu_kernel(%arg0: i32, %arg1: memref<256x256xbf16, #tpu.memory_space<vmem>>, %arg2: memref<256x128xbf16, #tpu.memory_space<vmem>>, %arg3: memref<1x128xf32, #tpu.memory_space<vmem>>, %arg4: memref<256x128xbf16, #tpu.memory_space<vmem>>) attributes {dimension_semantics = [#tpu.dimension_semantics<parallel>], iteration_bounds = array<i64: 4>, scalar_prefetch = 0 : i64, scratch_operands = 0 : i64, tpu.core_type = #tpu.core_type<tc>, window_params = [{transform_indices = @transform_0, window_bounds = array<i64: 256, 256>}, {pipeline_mode = #tpu.pipeline_mode<synchronous>, transform_indices = @transform_1, window_bounds = array<i64: 256, 128>}, {pipeline_mode = #tpu.pipeline_mode<synchronous>, transform_indices = @transform_2, window_bounds = array<i64: 1, 128>}, {transform_indices = @transform_3, window_bounds = array<i64: 256, 128>}]} {
    %c0 = arith.constant 0 : index
    %c0_0 = arith.constant 0 : index
    %0 = vector.load %arg1[%c0, %c0_0] : memref<256x256xbf16, #tpu.memory_space<vmem>>, vector<256x256xbf16>
    %c0_1 = arith.constant 0 : index
    %c0_2 = arith.constant 0 : index
    %1 = vector.load %arg2[%c0_1, %c0_2] : memref<256x128xbf16, #tpu.memory_space<vmem>>, vector<256x128xbf16>
    %cst = arith.constant dense<0.000000e+00> : vector<256x128xf32>
    %2 = tpu.matmul %0, %1, %cst {dimension_numbers = #tpu.dot_dimension_numbers<[1], [0], [0], [1], [0, 0, 1, 1], [], []>} : vector<256x256xbf16>, vector<256x128xbf16>, vector<256x128xf32> -> vector<256x128xf32>
    %c0_3 = arith.constant 0 : index
    %c0_4 = arith.constant 0 : index
    %3 = vector.load %arg3[%c0_3, %c0_4] : memref<1x128xf32, #tpu.memory_space<vmem>>, vector<1x128xf32>
    %4 = vector.broadcast %3 : vector<1x128xf32> to vector<256x128xf32>
    %5 = arith.addf %2, %4 : vector<256x128xf32>
    %cst_5 = arith.constant 0.000000e+00 : f32
    %6 = vector.broadcast %cst_5 : f32 to vector<256x128xf32>
    %7 = arith.maximumf %5, %6 : vector<256x128xf32>
    %8 = arith.truncf %7 : vector<256x128xf32> to vector<256x128xbf16>
    %c0_6 = arith.constant 0 : index
    %c0_7 = arith.constant 0 : index
    %9 = vector.load %arg4[%c0_6, %c0_7] : memref<256x128xbf16, #tpu.memory_space<vmem>>, vector<256x128xbf16>
    tpu.vector_store %arg4[%c0_6, %c0_7], %8 {strides = array<i32>} : memref<256x128xbf16, #tpu.memory_space<vmem>>, vector<256x128xbf16>,
    return
  }
  func.func @transform_0(%arg0: i32) -> (i32, i32) {
    %c0_i32 = arith.constant 0 : i32
    %c0_i32_0 = arith.constant 0 : i32
    return %arg0, %c0_i32 : i32, i32
  }
  func.func @transform_1(%arg0: i32) -> (i32, i32) {
    %c0_i32 = arith.constant 0 : i32
    %c0_i32_0 = arith.constant 0 : i32
    %c0_i32_1 = arith.constant 0 : i32
    return %c0_i32, %c0_i32_0 : i32, i32
  }
  func.func @transform_2(%arg0: i32) -> (i32, i32) {
    %c0_i32 = arith.constant 0 : i32
    %c0_i32_0 = arith.constant 0 : i32
    %c0_i32_1 = arith.constant 0 : i32
    return %c0_i32, %c0_i32_0 : i32, i32
  }
  func.func @transform_3(%arg0: i32) -> (i32, i32) {
    %c0_i32 = arith.constant 0 : i32
    %c0_i32_0 = arith.constant 0 : i32
    return %arg0, %c0_i32 : i32, i32
  }
}

module attributes {stable_mosaic.version = 11 : i64} {
  func.func @_matmul_bias_relu_kernel(%arg0: i32, %arg1: memref<176x2048xbf16, #tpu.memory_space<vmem>>, %arg2: memref<2048x128xbf16, #tpu.memory_space<vmem>>, %arg3: memref<1x128xf32, #tpu.memory_space<vmem>>, %arg4: memref<176x128xbf16, #tpu.memory_space<vmem>>) attributes {dimension_semantics = [#tpu.dimension_semantics<parallel>], iteration_bounds = array<i64: 1>, scalar_prefetch = 0 : i64, scratch_operands = 0 : i64, tpu.core_type = #tpu.core_type<tc>, window_params = [{transform_indices = @transform_0, window_bounds = array<i64: 176, 2048>}, {pipeline_mode = #tpu.pipeline_mode<synchronous>, transform_indices = @transform_1, window_bounds = array<i64: 2048, 128>}, {pipeline_mode = #tpu.pipeline_mode<synchronous>, transform_indices = @transform_2, window_bounds = array<i64: 1, 128>}, {transform_indices = @transform_3, window_bounds = array<i64: 176, 128>}]} {
    %c0 = arith.constant 0 : index
    %c0_0 = arith.constant 0 : index
    %0 = vector.load %arg1[%c0, %c0_0] : memref<176x2048xbf16, #tpu.memory_space<vmem>>, vector<176x2048xbf16>
    %c0_1 = arith.constant 0 : index
    %c0_2 = arith.constant 0 : index
    %1 = vector.load %arg2[%c0_1, %c0_2] : memref<2048x128xbf16, #tpu.memory_space<vmem>>, vector<2048x128xbf16>
    %cst = arith.constant dense<0.000000e+00> : vector<176x128xf32>
    %2 = tpu.matmul %0, %1, %cst {dimension_numbers = #tpu.dot_dimension_numbers<[1], [0], [0], [1], [0, 0, 1, 1], [], []>} : vector<176x2048xbf16>, vector<2048x128xbf16>, vector<176x128xf32> -> vector<176x128xf32>
    %c0_3 = arith.constant 0 : index
    %c0_4 = arith.constant 0 : index
    %3 = vector.load %arg3[%c0_3, %c0_4] : memref<1x128xf32, #tpu.memory_space<vmem>>, vector<1x128xf32>
    %4 = vector.broadcast %3 : vector<1x128xf32> to vector<176x128xf32>
    %5 = arith.addf %2, %4 : vector<176x128xf32>
    %cst_5 = arith.constant 0.000000e+00 : f32
    %6 = vector.broadcast %cst_5 : f32 to vector<176x128xf32>
    %7 = arith.maximumf %5, %6 : vector<176x128xf32>
    %8 = arith.truncf %7 : vector<176x128xf32> to vector<176x128xbf16>
    %c0_6 = arith.constant 0 : index
    %c0_7 = arith.constant 0 : index
    %9 = vector.load %arg4[%c0_6, %c0_7] : memref<176x128xbf16, #tpu.memory_space<vmem>>, vector<176x128xbf16>
    tpu.vector_store %arg4[%c0_6, %c0_7], %8 {strides = array<i32>} : memref<176x128xbf16, #tpu.memory_space<vmem>>, vector<176x128xbf16>,
    return
  }
  func.func @transform_0(%arg0: i32) -> (i32, i32) {
    %c0_i32 = arith.constant 0 : i32
    %c0_i32_0 = arith.constant 0 : i32
    return %arg0, %c0_i32 : i32, i32
  }
  func.func @transform_1(%arg0: i32) -> (i32, i32) {
    %c0_i32 = arith.constant 0 : i32
    %c0_i32_0 = arith.constant 0 : i32
    %c0_i32_1 = arith.constant 0 : i32
    return %c0_i32, %c0_i32_0 : i32, i32
  }
  func.func @transform_2(%arg0: i32) -> (i32, i32) {
    %c0_i32 = arith.constant 0 : i32
    %c0_i32_0 = arith.constant 0 : i32
    %c0_i32_1 = arith.constant 0 : i32
    return %c0_i32, %c0_i32_0 : i32, i32
  }
  func.func @transform_3(%arg0: i32) -> (i32, i32) {
    %c0_i32 = arith.constant 0 : i32
    %c0_i32_0 = arith.constant 0 : i32
    return %arg0, %c0_i32 : i32, i32
  }
}

module attributes {stable_mosaic.version = 11 : i64} {
  func.func @_matmul_bias_relu_kernel(%arg0: i32, %arg1: memref<112x1152xbf16, #tpu.memory_space<vmem>>, %arg2: memref<1152x128xbf16, #tpu.memory_space<vmem>>, %arg3: memref<1x128xf32, #tpu.memory_space<vmem>>, %arg4: memref<112x128xbf16, #tpu.memory_space<vmem>>) attributes {dimension_semantics = [#tpu.dimension_semantics<parallel>], iteration_bounds = array<i64: 1>, scalar_prefetch = 0 : i64, scratch_operands = 0 : i64, tpu.core_type = #tpu.core_type<tc>, window_params = [{transform_indices = @transform_0, window_bounds = array<i64: 112, 1152>}, {pipeline_mode = #tpu.pipeline_mode<synchronous>, transform_indices = @transform_1, window_bounds = array<i64: 1152, 128>}, {pipeline_mode = #tpu.pipeline_mode<synchronous>, transform_indices = @transform_2, window_bounds = array<i64: 1, 128>}, {transform_indices = @transform_3, window_bounds = array<i64: 112, 128>}]} {
    %c0 = arith.constant 0 : index
    %c0_0 = arith.constant 0 : index
    %0 = vector.load %arg1[%c0, %c0_0] : memref<112x1152xbf16, #tpu.memory_space<vmem>>, vector<112x1152xbf16>
    %c0_1 = arith.constant 0 : index
    %c0_2 = arith.constant 0 : index
    %1 = vector.load %arg2[%c0_1, %c0_2] : memref<1152x128xbf16, #tpu.memory_space<vmem>>, vector<1152x128xbf16>
    %cst = arith.constant dense<0.000000e+00> : vector<112x128xf32>
    %2 = tpu.matmul %0, %1, %cst {dimension_numbers = #tpu.dot_dimension_numbers<[1], [0], [0], [1], [0, 0, 1, 1], [], []>} : vector<112x1152xbf16>, vector<1152x128xbf16>, vector<112x128xf32> -> vector<112x128xf32>
    %c0_3 = arith.constant 0 : index
    %c0_4 = arith.constant 0 : index
    %3 = vector.load %arg3[%c0_3, %c0_4] : memref<1x128xf32, #tpu.memory_space<vmem>>, vector<1x128xf32>
    %4 = vector.broadcast %3 : vector<1x128xf32> to vector<112x128xf32>
    %5 = arith.addf %2, %4 : vector<112x128xf32>
    %cst_5 = arith.constant 0.000000e+00 : f32
    %6 = vector.broadcast %cst_5 : f32 to vector<112x128xf32>
    %7 = arith.maximumf %5, %6 : vector<112x128xf32>
    %8 = arith.truncf %7 : vector<112x128xf32> to vector<112x128xbf16>
    %c0_6 = arith.constant 0 : index
    %c0_7 = arith.constant 0 : index
    %9 = vector.load %arg4[%c0_6, %c0_7] : memref<112x128xbf16, #tpu.memory_space<vmem>>, vector<112x128xbf16>
    tpu.vector_store %arg4[%c0_6, %c0_7], %8 {strides = array<i32>} : memref<112x128xbf16, #tpu.memory_space<vmem>>, vector<112x128xbf16>,
    return
  }
  func.func @transform_0(%arg0: i32) -> (i32, i32) {
    %c0_i32 = arith.constant 0 : i32
    %c0_i32_0 = arith.constant 0 : i32
    return %arg0, %c0_i32 : i32, i32
  }
  func.func @transform_1(%arg0: i32) -> (i32, i32) {
    %c0_i32 = arith.constant 0 : i32
    %c0_i32_0 = arith.constant 0 : i32
    %c0_i32_1 = arith.constant 0 : i32
    return %c0_i32, %c0_i32_0 : i32, i32
  }
  func.func @transform_2(%arg0: i32) -> (i32, i32) {
    %c0_i32 = arith.constant 0 : i32
    %c0_i32_0 = arith.constant 0 : i32
    %c0_i32_1 = arith.constant 0 : i32
    return %c0_i32, %c0_i32_0 : i32, i32
  }
  func.func @transform_3(%arg0: i32) -> (i32, i32) {
    %c0_i32 = arith.constant 0 : i32
    %c0_i32_0 = arith.constant 0 : i32
    return %arg0, %c0_i32 : i32, i32
  }
}

module attributes {stable_mosaic.version = 11 : i64} {
  func.func @_fc_head_kernel(%arg0: i32, %arg1: memref<16x6272xbf16, #tpu.memory_space<vmem>>, %arg2: memref<6272x256xbf16, #tpu.memory_space<vmem>>, %arg3: memref<1x256xf32, #tpu.memory_space<vmem>>, %arg4: memref<256x128xbf16, #tpu.memory_space<vmem>>, %arg5: memref<1x128xf32, #tpu.memory_space<vmem>>, %arg6: memref<16x128xf32, #tpu.memory_space<vmem>>) attributes {dimension_semantics = [#tpu.dimension_semantics<parallel>], iteration_bounds = array<i64: 1>, scalar_prefetch = 0 : i64, scratch_operands = 0 : i64, tpu.core_type = #tpu.core_type<tc>, window_params = [{transform_indices = @transform_0, window_bounds = array<i64: 16, 6272>}, {pipeline_mode = #tpu.pipeline_mode<synchronous>, transform_indices = @transform_1, window_bounds = array<i64: 6272, 256>}, {pipeline_mode = #tpu.pipeline_mode<synchronous>, transform_indices = @transform_2, window_bounds = array<i64: 1, 256>}, {pipeline_mode = #tpu.pipeline_mode<synchronous>, transform_indices = @transform_3, window_bounds = array<i64: 256, 128>}, {pipeline_mode = #tpu.pipeline_mode<synchronous>, transform_indices = @transform_4, window_bounds = array<i64: 1, 128>}, {transform_indices = @transform_5, window_bounds = array<i64: 16, 128>}]} {
    %c0 = arith.constant 0 : index
    %c0_0 = arith.constant 0 : index
    %0 = vector.load %arg1[%c0, %c0_0] : memref<16x6272xbf16, #tpu.memory_space<vmem>>, vector<16x6272xbf16>
    %c0_1 = arith.constant 0 : index
    %c0_2 = arith.constant 0 : index
    %1 = vector.load %arg2[%c0_1, %c0_2] : memref<6272x256xbf16, #tpu.memory_space<vmem>>, vector<6272x256xbf16>
    %cst = arith.constant dense<0.000000e+00> : vector<16x256xf32>
    %2 = tpu.matmul %0, %1, %cst {dimension_numbers = #tpu.dot_dimension_numbers<[1], [0], [0], [1], [0, 0, 1, 1], [], []>} : vector<16x6272xbf16>, vector<6272x256xbf16>, vector<16x256xf32> -> vector<16x256xf32>
    %c0_3 = arith.constant 0 : index
    %c0_4 = arith.constant 0 : index
    %3 = vector.load %arg3[%c0_3, %c0_4] : memref<1x256xf32, #tpu.memory_space<vmem>>, vector<1x256xf32>
    %4 = vector.broadcast %3 : vector<1x256xf32> to vector<16x256xf32>
    %5 = arith.addf %2, %4 : vector<16x256xf32>
    %cst_5 = arith.constant 0.000000e+00 : f32
    %6 = vector.broadcast %cst_5 : f32 to vector<16x256xf32>
    %7 = arith.maximumf %5, %6 : vector<16x256xf32>
    %8 = arith.truncf %7 : vector<16x256xf32> to vector<16x256xbf16>
    %c0_6 = arith.constant 0 : index
    %c0_7 = arith.constant 0 : index
    %9 = vector.load %arg4[%c0_6, %c0_7] : memref<256x128xbf16, #tpu.memory_space<vmem>>, vector<256x128xbf16>
    %cst_8 = arith.constant dense<0.000000e+00> : vector<16x128xf32>
    %10 = tpu.matmul %8, %9, %cst_8 {dimension_numbers = #tpu.dot_dimension_numbers<[1], [0], [0], [1], [0, 0, 1, 1], [], []>} : vector<16x256xbf16>, vector<256x128xbf16>, vector<16x128xf32> -> vector<16x128xf32>
    %c0_9 = arith.constant 0 : index
    %c0_10 = arith.constant 0 : index
    %11 = vector.load %arg5[%c0_9, %c0_10] : memref<1x128xf32, #tpu.memory_space<vmem>>, vector<1x128xf32>
    %12 = vector.broadcast %11 : vector<1x128xf32> to vector<16x128xf32>
    %13 = arith.addf %10, %12 : vector<16x128xf32>
    %c0_11 = arith.constant 0 : index
    %c0_12 = arith.constant 0 : index
    %14 = vector.load %arg6[%c0_11, %c0_12] : memref<16x128xf32, #tpu.memory_space<vmem>>, vector<16x128xf32>
    tpu.vector_store %arg6[%c0_11, %c0_12], %13 {strides = array<i32>} : memref<16x128xf32, #tpu.memory_space<vmem>>, vector<16x128xf32>,
    return
  }
  func.func @transform_0(%arg0: i32) -> (i32, i32) {
    %c0_i32 = arith.constant 0 : i32
    %c0_i32_0 = arith.constant 0 : i32
    return %arg0, %c0_i32 : i32, i32
  }
  func.func @transform_1(%arg0: i32) -> (i32, i32) {
    %c0_i32 = arith.constant 0 : i32
    %c0_i32_0 = arith.constant 0 : i32
    %c0_i32_1 = arith.constant 0 : i32
    return %c0_i32, %c0_i32_0 : i32, i32
  }
  func.func @transform_2(%arg0: i32) -> (i32, i32) {
    %c0_i32 = arith.constant 0 : i32
    %c0_i32_0 = arith.constant 0 : i32
    %c0_i32_1 = arith.constant 0 : i32
    return %c0_i32, %c0_i32_0 : i32, i32
  }
  func.func @transform_3(%arg0: i32) -> (i32, i32) {
    %c0_i32 = arith.constant 0 : i32
    %c0_i32_0 = arith.constant 0 : i32
    %c0_i32_1 = arith.constant 0 : i32
    return %c0_i32, %c0_i32_0 : i32, i32
  }
  func.func @transform_4(%arg0: i32) -> (i32, i32) {
    %c0_i32 = arith.constant 0 : i32
    %c0_i32_0 = arith.constant 0 : i32
    %c0_i32_1 = arith.constant 0 : i32
    return %c0_i32, %c0_i32_0 : i32, i32
  }
  func.func @transform_5(%arg0: i32) -> (i32, i32) {
    %c0_i32 = arith.constant 0 : i32
    %c0_i32_0 = arith.constant 0 : i32
    return %arg0, %c0_i32 : i32, i32
  }
}

</mosaic_0001>

<llo_original>
// kernel: qcnn_forward_pallas.4
$region0: #{qcnn_forward_pallas.4}
  #allocation0 [shape = 'u32[]', space=smem, size = 0x4, offset = 0x4, fixed_abs, tag = 'smem constant byte address 0x4 - core index']
  #allocation1 [shape = 'u32[72,128]{1,0:T(1,128)}', space=vmem, size = 0x9000, scoped, tag = 'internal scratch']
  %s0 = inlined_call_operand.vmem [shape: bf16[800,256], index: 0, kind: input, shape index: {}]
  %s1 = inlined_call_operand.vmem [shape: bf16[256,128], index: 1, kind: input, shape index: {}]
  %s2 = inlined_call_operand.vmem [shape: f32[1,128], index: 2, kind: input, shape index: {}]
  %s3 = inlined_call_operand.vmem [shape: bf16[800,128], index: 3, kind: output, shape index: {}]
  %s4 = sld [smem:[#allocation0]]
  $region89: #{qcnn_forward_pallas.4} parent=0
    _
  %s6 = ssub.s32 1, %s4
  %s7 = scalar_select 0, %s6, %s4
  $region1: #{qcnn_forward_pallas.4} parent=0
    #allocation2 [shape = 'u8[131072]{0}', space=vmem, size = 0x20000, scoped, tag = 'output window, operand 0']
    loop: start=0, step=1, limit=6
    $region2: #{qcnn_forward_pallas.4} parent=1 // loop_pre_header
      _
    $region3: #{qcnn_forward_pallas.4} parent=1 // loop_header
      %s9 = sphi 0, %s13
      %p10 = scmp.ge.s32.totalorder %s9, 6
      %s19 = sphi 0, %s21
      %s22 = sphi 0, %s19
      %s23 = sphi 0, %s22
      %s39 = sphi 0, %s23
      %s43 = sphi 0, %s43
      %s45 = sphi 0, %s43
      %s46 = sphi 0, %s45
      %s60 = sphi 0, %s46
      %s64 = sphi 0, %s64
      %s66 = sphi 0, %s64
      %s67 = sphi 0, %s66
      %s81 = sphi 0, %s67
      %s87 = sphi 0, %s89
      %s90 = sphi 0, %s87
      %s91 = sphi 0, %s90
      %s107 = sphi 0, %s91
    $region4: #{qcnn_forward_pallas.4} parent=1 // loop_header_branch
      %12 = sbr.rel (%p10) target = $region8
    $region5: #{qcnn_forward_pallas.4} parent=1 // loop_body
      %s14 = ssub.s32 %s9, 1
      %s15 = ssub.s32 %s9, 2
      %s16 = sadd.s32 %s9, 1
      %s17 = ssub.s32 %s9, %s16
      %p18 = scmp.eq.s32.totalorder %s17, 0
      %s20 = sadd.s32 %s19, 1
      %s21 = scalar_select %p18, %s19, %s20
      %p24 = pneg %p18
      %p25 = scmp.eq.s32.totalorder %s9, 3
      %p26 = por %p24, %p25
      %p27 = scmp.ne.s32.totalorder %s19, %s22
      %p28 = scmp.eq.s32.totalorder %s9, 0
      %p29 = por %p27, %p28
      %p30 = scmp.ne.s32.totalorder %s19, %s22
      %p31 = scmp.eq.s32.totalorder %s14, 3
      %p32 = por %p30, %p31
      %p33 = scmp.ne.s32.totalorder %s22, %s23
      %p34 = scmp.eq.s32.totalorder %s14, 0
      %p35 = por %p33, %p34
      %p36 = scmp.ne.s32.totalorder %s22, %s23
      %p37 = scmp.eq.s32.totalorder %s15, 3
      %p38 = por %p36, %p37
      %p40 = scmp.ne.s32.totalorder %s23, %s39
      %p41 = scmp.eq.s32.totalorder %s15, 0
      %p42 = por %p40, %p41
      %s44 = sadd.s32 %s43, 1
      %p47 = scmp.eq.s32.totalorder %s9, 3
      %p48 = scmp.ne.s32.totalorder %s43, %s45
      %p49 = scmp.eq.s32.totalorder %s9, 0
      %p50 = por %p48, %p49
      %p51 = scmp.ne.s32.totalorder %s43, %s45
      %p52 = scmp.eq.s32.totalorder %s14, 3
      %p53 = por %p51, %p52
      %p54 = scmp.ne.s32.totalorder %s45, %s46
      %p55 = scmp.eq.s32.totalorder %s14, 0
      %p56 = por %p54, %p55
      %p57 = scmp.ne.s32.totalorder %s45, %s46
      %p58 = scmp.eq.s32.totalorder %s15, 3
      %p59 = por %p57, %p58
      %p61 = scmp.ne.s32.totalorder %s46, %s60
      %p62 = scmp.eq.s32.totalorder %s15, 0
      %p63 = por %p61, %p62
      %s65 = sadd.s32 %s64, 1
      %p68 = scmp.eq.s32.totalorder %s9, 3
      %p69 = scmp.ne.s32.totalorder %s64, %s66
      %p70 = scmp.eq.s32.totalorder %s9, 0
      %p71 = por %p69, %p70
      %p72 = scmp.ne.s32.totalorder %s64, %s66
      %p73 = scmp.eq.s32.totalorder %s14, 3
      %p74 = por %p72, %p73
      %p75 = scmp.ne.s32.totalorder %s66, %s67
      %p76 = scmp.eq.s32.totalorder %s14, 0
      %p77 = por %p75, %p76
      %p78 = scmp.ne.s32.totalorder %s66, %s67
      %p79 = scmp.eq.s32.totalorder %s15, 3
      %p80 = por %p78, %p79
      %p82 = scmp.ne.s32.totalorder %s67, %s81
      %p83 = scmp.eq.s32.totalorder %s15, 0
      %p84 = por %p82, %p83
      %s85 = ssub.s32 %s9, %s16
      %p86 = scmp.eq.s32.totalorder %s85, 0
      %s88 = sadd.s32 %s87, 1
      %s89 = scalar_select %p86, %s87, %s88
      %p92 = pneg %p86
      %p93 = scmp.eq.s32.totalorder %s9, 3
      %p94 = por %p92, %p93
      %p95 = scmp.ne.s32.totalorder %s87, %s90
      %p96 = scmp.eq.s32.totalorder %s9, 0
      %p97 = por %p95, %p96
      %p98 = scmp.ne.s32.totalorder %s87, %s90
      %p99 = scmp.eq.s32.totalorder %s14, 3
      %p100 = por %p98, %p99
      %p101 = scmp.ne.s32.totalorder %s90, %s91
      %p102 = scmp.eq.s32.totalorder %s14, 0
      %p103 = por %p101, %p102
      %p104 = scmp.ne.s32.totalorder %s90, %s91
      %p105 = scmp.eq.s32.totalorder %s15, 3
      %p106 = por %p104, %p105
      %p108 = scmp.ne.s32.totalorder %s91, %s107
      %p109 = scmp.eq.s32.totalorder %s15, 0
      %p110 = por %p108, %p109
      %p111 = scmp.le.s32.totalorder 1, %s9
      %p112 = scmp.lt.s32.totalorder %s9, 5
      %p113 = pnand %p111, %p112
      %p114 = pneg %p113
      // Predicated region
      $region9: #{qcnn_forward_pallas.4} parent=5 // pred_check
        _
      $region10: #{qcnn_forward_pallas.4} parent=5 // pred_check_branch
        %116 = sbr.rel (%p113) target = $region12
      $region11: #{qcnn_forward_pallas.4} parent=5 // pred_region
        %s117 = ssub.s32 %s9, 1
        // Predicated region
        $region13: #{qcnn_forward_pallas.4} parent=11 // pred_check
          %p118 = pneg %p56
        $region14: #{qcnn_forward_pallas.4} parent=11 // pred_check_branch
          %120 = sbr.rel (%p118) target = $region16
        $region15: #{qcnn_forward_pallas.4} parent=11 // pred_region
          _
        $region16: #{qcnn_forward_pallas.4} parent=11 // pred_fallthru
          _
        // Predicated region
        $region17: #{qcnn_forward_pallas.4} parent=11 // pred_check
          %p121 = pneg %p77
        $region18: #{qcnn_forward_pallas.4} parent=11 // pred_check_branch
          %123 = sbr.rel (%p121) target = $region20
        $region19: #{qcnn_forward_pallas.4} parent=11 // pred_region
          _
        $region20: #{qcnn_forward_pallas.4} parent=11 // pred_fallthru
          _
      $region12: #{qcnn_forward_pallas.4} parent=5 // pred_fallthru
        _
      %p124 = scmp.lt.s32.totalorder %s9, 4
      // Predicated region
      $region21: #{qcnn_forward_pallas.4} parent=5 // pred_check
        %p125 = pneg %p124
      $region22: #{qcnn_forward_pallas.4} parent=5 // pred_check_branch
        %127 = sbr.rel (%p125) target = $region24
      $region23: #{qcnn_forward_pallas.4} parent=5 // pred_region
        // Predicated region
        $region25: #{qcnn_forward_pallas.4} parent=23 // pred_check
          %p128 = pneg %p29
        $region26: #{qcnn_forward_pallas.4} parent=23 // pred_check_branch
          %130 = sbr.rel (%p128) target = $region28
        $region27: #{qcnn_forward_pallas.4} parent=23 // pred_region
          %s131 = smul.u32 32, %s9
          %s132 = ssub.s32 100, %s131
          %p133 = scmp.lt.s32.totalorder %s132, 32
          %s134 = scalar_select %p133, %s132, 32
          %s135 = smul.u32 4, %s134
          %s136 = smul.u32 %s135, 2
          %p137 = scmp.lt.s32.totalorder %s131, 99
          %s138 = scalar_select %p137, %s131, 99
          %s139 = smul.addr %s138, 2
          %s140 = smul.addr %s139, 4
          %s141 = scalar_lea.vmem %s0, %s140
          %s142 = smul.u32 32, %s9
          %s143 = ssub.s32 100, %s142
          %p144 = scmp.lt.s32.totalorder %s143, 32
          %s145 = scalar_select %p144, %s143, 32
          %s146 = smul.u32 4, %s145
          %s147 = smul.u32 %s146, 2
        $region28: #{qcnn_forward_pallas.4} parent=23 // pred_fallthru
          _
      $region24: #{qcnn_forward_pallas.4} parent=5 // pred_fallthru
        _
      %p148 = scmp.le.s32.totalorder 1, %s9
      %p149 = scmp.lt.s32.totalorder %s9, 5
      %p150 = pnand %p148, %p149
      %p151 = pneg %p150
      // Predicated region
      $region29: #{qcnn_forward_pallas.4} parent=5 // pred_check
        _
      $region30: #{qcnn_forward_pallas.4} parent=5 // pred_check_branch
        %153 = sbr.rel (%p150) target = $region32
      $region31: #{qcnn_forward_pallas.4} parent=5 // pred_region
        %s154 = ssub.s32 %s9, 1
        %s155 = smul.u32 32, %s14
        %s156 = ssub.s32 100, %s155
        %p157 = scmp.lt.s32.totalorder %s156, 32
        %s158 = scalar_select %p157, %s156, 32
        %s159 = smul.u32 4, %s158
        %s160 = smul.u32 %s159, 2
        %p161 = scmp.lt.s32.totalorder %s155, 99
        %s162 = scalar_select %p161, %s155, 99
        %s163 = smul.addr %s162, 2
        %s164 = smul.addr %s163, 4
        %s165 = scalar_lea.vmem %s0, %s164
        %p166 = pneg %p35
        %p167 = pneg %p32
        %p168 = pneg %p56
        %p169 = pneg %p53
        %p170 = pneg %p77
        %p171 = pneg %p74
        %p172 = pneg %p103
        %p173 = pneg %p100
        %s174 = sand.u32 %s90, 1
        %s175 = sand.u32 %s90, 1
        %s176 = smul.addr %s175, 128
        %s177 = scalar_lea.vmem [#allocation2], %s176
        %s178 = smul.u32 32, %s14
        %s179 = ssub.s32 100, %s178
        %p180 = scmp.lt.s32.totalorder %s179, 32
        %s181 = scalar_select %p180, %s179, 32
        %s182 = smul.u32 4, %s181
        %s183 = smul.u32 %s182, 2
        %p184 = scmp.lt.s32.totalorder %s178, 99
        %s185 = scalar_select %p184, %s178, 99
        %s186 = smul.addr %s185, 2
        %s187 = smul.addr %s186, 4
        %s188 = scalar_lea.vmem %s0, %s187
        %s189 = smul.u32 32, %s14
        %s190 = ssub.s32 100, %s189
        %p191 = scmp.lt.s32.totalorder %s190, 32
        %s192 = scalar_select %p191, %s190, 32
        %s193 = smul.u32 4, %s192
        %s194 = smul.u32 %s193, 2
        %s195 = smul.u32 32, %s14
        %s196 = ssub.s32 100, %s195
        %p197 = scmp.lt.s32.totalorder %s196, 32
        %s198 = scalar_select %p197, %s196, 32
        %s199 = smul.u32 4, %s198
        %v200 = vld [vmem:[%s188] sm:$0xff]
        %v201 = vld [vmem:[%s188 + $0x8] sm:$0xff]
        %v202 = vld [vmem:[%s188 + $0x10] sm:$0xff]
        %v203 = vld [vmem:[%s188 + $0x18] sm:$0xff]
        %v204 = vld [vmem:[%s188 + $0x20] sm:$0xff]
        %v205 = vld [vmem:[%s188 + $0x28] sm:$0xff]
        %v206 = vld [vmem:[%s188 + $0x30] sm:$0xff]
        %v207 = vld [vmem:[%s188 + $0x38] sm:$0xff]
        %v208 = vld [vmem:[%s188 + $0x40] sm:$0xff]
        %v209 = vld [vmem:[%s188 + $0x48] sm:$0xff]
        %v210 = vld [vmem:[%s188 + $0x50] sm:$0xff]
        %v211 = vld [vmem:[%s188 + $0x58] sm:$0xff]
        %v212 = vld [vmem:[%s188 + $0x60] sm:$0xff]
        %v213 = vld [vmem:[%s188 + $0x68] sm:$0xff]
        %v214 = vld [vmem:[%s188 + $0x70] sm:$0xff]
        %v215 = vld [vmem:[%s188 + $0x78] sm:$0xff]
        %v216 = vld [vmem:[%s188 + $0x80] sm:$0xff]
        %v217 = vld [vmem:[%s188 + $0x88] sm:$0xff]
        %v218 = vld [vmem:[%s188 + $0x90] sm:$0xff]
        %v219 = vld [vmem:[%s188 + $0x98] sm:$0xff]
        %v220 = vld [vmem:[%s188 + $0xa0] sm:$0xff]
        %v221 = vld [vmem:[%s188 + $0xa8] sm:$0xff]
        %v222 = vld [vmem:[%s188 + $0xb0] sm:$0xff]
        %v223 = vld [vmem:[%s188 + $0xb8] sm:$0xff]
        %v224 = vld [vmem:[%s188 + $0xc0] sm:$0xff]
        %v225 = vld [vmem:[%s188 + $0xc8] sm:$0xff]
        %v226 = vld [vmem:[%s188 + $0xd0] sm:$0xff]
        %v227 = vld [vmem:[%s188 + $0xd8] sm:$0xff]
        %v228 = vld [vmem:[%s188 + $0xe0] sm:$0xff]
        %v229 = vld [vmem:[%s188 + $0xe8] sm:$0xff]
        %v230 = vld [vmem:[%s188 + $0xf0] sm:$0xff]
        %v231 = vld [vmem:[%s188 + $0xf8] sm:$0xff]
        %v232 = vld [vmem:[%s1] sm:$0xf]
        %v233 = vld [vmem:[%s1 + $0x4] sm:$0xf]
        %v234 = vld [vmem:[%s1 + $0x8] sm:$0xf]
        %v235 = vld [vmem:[%s1 + $0xc] sm:$0xf]
        %v236 = vld [vmem:[%s1 + $0x10] sm:$0xf]
        %v237 = vld [vmem:[%s1 + $0x14] sm:$0xf]
        %v238 = vld [vmem:[%s1 + $0x18] sm:$0xf]
        %v239 = vld [vmem:[%s1 + $0x1c] sm:$0xf]
        %v240 = vld [vmem:[%s1 + $0x20] sm:$0xf]
        %v241 = vld [vmem:[%s1 + $0x24] sm:$0xf]
        %v242 = vld [vmem:[%s1 + $0x28] sm:$0xf]
        %v243 = vld [vmem:[%s1 + $0x2c] sm:$0xf]
        %v244 = vld [vmem:[%s1 + $0x30] sm:$0xf]
        %v245 = vld [vmem:[%s1 + $0x34] sm:$0xf]
        %v246 = vld [vmem:[%s1 + $0x38] sm:$0xf]
        %v247 = vld [vmem:[%s1 + $0x3c] sm:$0xf]
        %v248 = vld [vmem:[%s1 + $0x40] sm:$0xf]
        %v249 = vld [vmem:[%s1 + $0x44] sm:$0xf]
        %v250 = vld [vmem:[%s1 + $0x48] sm:$0xf]
        %v251 = vld [vmem:[%s1 + $0x4c] sm:$0xf]
        %v252 = vld [vmem:[%s1 + $0x50] sm:$0xf]
        %v253 = vld [vmem:[%s1 + $0x54] sm:$0xf]
        %v254 = vld [vmem:[%s1 + $0x58] sm:$0xf]
        %v255 = vld [vmem:[%s1 + $0x5c] sm:$0xf]
        %v256 = vld [vmem:[%s1 + $0x60] sm:$0xf]
        %v257 = vld [vmem:[%s1 + $0x64] sm:$0xf]
        %v258 = vld [vmem:[%s1 + $0x68] sm:$0xf]
        %v259 = vld [vmem:[%s1 + $0x6c] sm:$0xf]
        %v260 = vld [vmem:[%s1 + $0x70] sm:$0xf]
        %v261 = vld [vmem:[%s1 + $0x74] sm:$0xf]
        %v262 = vld [vmem:[%s1 + $0x78] sm:$0xf]
        %v263 = vld [vmem:[%s1 + $0x7c] sm:$0xf]
        %v264 = vld [vmem:[%s2] sm:$0x1]
        %v266 = vperm.slane %v264, 0
        %v300 = vunpack.c.l.b16 %v200
        %v301 = vunpack.c.h.b16 %v200
        %v302 = vunpack.c.l.b16 %v201
        %v303 = vunpack.c.h.b16 %v201
        %v304 = vunpack.c.l.b16 %v202
        %v305 = vunpack.c.h.b16 %v202
        %v306 = vunpack.c.l.b16 %v203
        %v307 = vunpack.c.h.b16 %v203
        %v308 = vunpack.c.l.b16 %v204
        %v309 = vunpack.c.h.b16 %v204
        %v310 = vunpack.c.l.b16 %v205
        %v311 = vunpack.c.h.b16 %v205
        %v312 = vunpack.c.l.b16 %v206
        %v313 = vunpack.c.h.b16 %v206
        %v314 = vunpack.c.l.b16 %v207
        %v315 = vunpack.c.h.b16 %v207
        %v316 = vunpack.c.l.b16 %v208
        %v317 = vunpack.c.h.b16 %v208
        %v318 = vunpack.c.l.b16 %v209
        %v319 = vunpack.c.h.b16 %v209
        %v320 = vunpack.c.l.b16 %v210
        %v321 = vunpack.c.h.b16 %v210
        %v322 = vunpack.c.l.b16 %v211
        %v323 = vunpack.c.h.b16 %v211
        %v324 = vunpack.c.l.b16 %v212
        %v325 = vunpack.c.h.b16 %v212
        %v326 = vunpack.c.l.b16 %v213
        %v327 = vunpack.c.h.b16 %v213
        %v328 = vunpack.c.l.b16 %v214
        %v329 = vunpack.c.h.b16 %v214
        %v330 = vunpack.c.l.b16 %v215
        %v331 = vunpack.c.h.b16 %v215
        %v332 = vunpack.c.l.b16 %v216
        %v333 = vunpack.c.h.b16 %v216
        %v334 = vunpack.c.l.b16 %v217
        %v335 = vunpack.c.h.b16 %v217
        %v336 = vunpack.c.l.b16 %v218
        %v337 = vunpack.c.h.b16 %v218
        %v338 = vunpack.c.l.b16 %v219
        %v339 = vunpack.c.h.b16 %v219
        %v340 = vunpack.c.l.b16 %v220
        %v341 = vunpack.c.h.b16 %v220
        %v342 = vunpack.c.l.b16 %v221
        %v343 = vunpack.c.h.b16 %v221
        %v344 = vunpack.c.l.b16 %v222
        %v345 = vunpack.c.h.b16 %v222
        %v346 = vunpack.c.l.b16 %v223
        %v347 = vunpack.c.h.b16 %v223
        %v348 = vunpack.c.l.b16 %v224
        %v349 = vunpack.c.h.b16 %v224
        %v350 = vunpack.c.l.b16 %v225
        %v351 = vunpack.c.h.b16 %v225
        %v352 = vunpack.c.l.b16 %v226
        %v353 = vunpack.c.h.b16 %v226
        %v354 = vunpack.c.l.b16 %v227
        %v355 = vunpack.c.h.b16 %v227
        %v356 = vunpack.c.l.b16 %v228
        %v357 = vunpack.c.h.b16 %v228
        %v358 = vunpack.c.l.b16 %v229
        %v359 = vunpack.c.h.b16 %v229
        %v360 = vunpack.c.l.b16 %v230
        %v361 = vunpack.c.h.b16 %v230
        %v362 = vunpack.c.l.b16 %v231
        %v363 = vunpack.c.h.b16 %v231
        %v364 = vpack.c.b16 %v302, %v300
        %v365 = vpack.c.b16 %v303, %v301
        %v366 = vpack.c.b16 %v306, %v304
        %v367 = vpack.c.b16 %v307, %v305
        %v368 = vpack.c.b16 %v310, %v308
        %v369 = vpack.c.b16 %v311, %v309
        %v370 = vpack.c.b16 %v314, %v312
        %v371 = vpack.c.b16 %v315, %v313
        %v372 = vpack.c.b16 %v318, %v316
        %v373 = vpack.c.b16 %v319, %v317
        %v374 = vpack.c.b16 %v322, %v320
        %v375 = vpack.c.b16 %v323, %v321
        %v376 = vpack.c.b16 %v326, %v324
        %v377 = vpack.c.b16 %v327, %v325
        %v378 = vpack.c.b16 %v330, %v328
        %v379 = vpack.c.b16 %v331, %v329
        %v380 = vpack.c.b16 %v334, %v332
        %v381 = vpack.c.b16 %v335, %v333
        %v382 = vpack.c.b16 %v338, %v336
        %v383 = vpack.c.b16 %v339, %v337
        %v384 = vpack.c.b16 %v342, %v340
        %v385 = vpack.c.b16 %v343, %v341
        %v386 = vpack.c.b16 %v346, %v344
        %v387 = vpack.c.b16 %v347, %v345
        %v388 = vpack.c.b16 %v350, %v348
        %v389 = vpack.c.b16 %v351, %v349
        %v390 = vpack.c.b16 %v354, %v352
        %v391 = vpack.c.b16 %v355, %v353
        %v392 = vpack.c.b16 %v358, %v356
        %v393 = vpack.c.b16 %v359, %v357
        %v394 = vpack.c.b16 %v362, %v360
        %v395 = vpack.c.b16 %v363, %v361
        %v460 = vunpack.c.l.b16 %v232
        %v461 = vunpack.c.l.b16 %v233
        %v462 = vunpack.c.l.b16 %v234
        %v463 = vunpack.c.l.b16 %v235
        %v464 = vunpack.c.l.b16 %v236
        %v465 = vunpack.c.l.b16 %v237
        %v466 = vunpack.c.l.b16 %v238
        %v467 = vunpack.c.l.b16 %v239
        %v468 = vunpack.c.l.b16 %v240
        %v469 = vunpack.c.l.b16 %v241
        %v470 = vunpack.c.l.b16 %v242
        %v471 = vunpack.c.l.b16 %v243
        %v472 = vunpack.c.l.b16 %v244
        %v473 = vunpack.c.l.b16 %v245
        %v474 = vunpack.c.l.b16 %v246
        %v475 = vunpack.c.l.b16 %v247
        %v476 = vunpack.c.l.b16 %v248
        %v477 = vunpack.c.l.b16 %v249
        %v478 = vunpack.c.l.b16 %v250
        %v479 = vunpack.c.l.b16 %v251
        %v480 = vunpack.c.l.b16 %v252
        %v481 = vunpack.c.l.b16 %v253
        %v482 = vunpack.c.l.b16 %v254
        %v483 = vunpack.c.l.b16 %v255
        %v484 = vunpack.c.l.b16 %v256
        %v485 = vunpack.c.l.b16 %v257
        %v486 = vunpack.c.l.b16 %v258
        %v487 = vunpack.c.l.b16 %v259
        %v488 = vunpack.c.l.b16 %v260
        %v489 = vunpack.c.l.b16 %v261
        %v490 = vunpack.c.l.b16 %v262
        %v491 = vunpack.c.l.b16 %v263
        %v492 = vpack.c.b16 %v461, %v460
        %v493 = vpack.c.b16 %v463, %v462
        %v494 = vpack.c.b16 %v465, %v464
        %v495 = vpack.c.b16 %v467, %v466
        %v496 = vpack.c.b16 %v469, %v468
        %v497 = vpack.c.b16 %v471, %v470
        %v498 = vpack.c.b16 %v473, %v472
        %v499 = vpack.c.b16 %v475, %v474
        %v500 = vpack.c.b16 %v477, %v476
        %v501 = vpack.c.b16 %v479, %v478
        %v502 = vpack.c.b16 %v481, %v480
        %v503 = vpack.c.b16 %v483, %v482
        %v504 = vpack.c.b16 %v485, %v484
        %v505 = vpack.c.b16 %v487, %v486
        %v506 = vpack.c.b16 %v489, %v488
        %v507 = vpack.c.b16 %v491, %v490
        %524 = vmatpush.bf16.msra.mxu0 %v499
        %525 = vmatpush.bf16.msra.mxu0 %v498
        %526 = vmatpush.bf16.msra.mxu0 %v497
        %527 = vmatpush.bf16.msra.mxu0 %v496
        %528 = vmatpush.bf16.msra.mxu0 %v495
        %529 = vmatpush.bf16.msra.mxu0 %v494
        %530 = vmatpush.bf16.msra.mxu0 %v493
        %531 = vmatpush.bf16.msra.mxu0 %v492
        %532 = vmatmul.bf16.gmra.mxu0 %v364
        %v533 = vpop.f32.mrf.mxu0
        %v534 = vadd.f32 %v266, %v533
        %v535 = vpop.f32.mrf.mxu0
        %v536 = vadd.f32 %v266, %v535
        %537 = vmatmul.bf16.gmra.mxu0 %v366
        %v538 = vpop.f32.mrf.mxu0
        %v539 = vadd.f32 %v266, %v538
        %v540 = vpop.f32.mrf.mxu0
        %v541 = vadd.f32 %v266, %v540
        %542 = vmatmul.bf16.gmra.mxu0 %v368
        %v543 = vpop.f32.mrf.mxu0
        %v544 = vadd.f32 %v266, %v543
        %v545 = vpop.f32.mrf.mxu0
        %v546 = vadd.f32 %v266, %v545
        %547 = vmatmul.bf16.gmra.mxu0 %v370
        %v548 = vpop.f32.mrf.mxu0
        %v549 = vadd.f32 %v266, %v548
        %v550 = vpop.f32.mrf.mxu0
        %v551 = vadd.f32 %v266, %v550
        %552 = vmatmul.bf16.gmra.mxu0 %v372
        %v553 = vpop.f32.mrf.mxu0
        %v554 = vadd.f32 %v266, %v553
        %v555 = vpop.f32.mrf.mxu0
        %v556 = vadd.f32 %v266, %v555
        %557 = vmatmul.bf16.gmra.mxu0 %v374
        %v558 = vpop.f32.mrf.mxu0
        %v559 = vadd.f32 %v266, %v558
        %v560 = vpop.f32.mrf.mxu0
        %v561 = vadd.f32 %v266, %v560
        %562 = vmatmul.bf16.gmra.mxu0 %v376
        %v563 = vpop.f32.mrf.mxu0
        %v564 = vadd.f32 %v266, %v563
        %v565 = vpop.f32.mrf.mxu0
        %v566 = vadd.f32 %v266, %v565
        %567 = vmatmul.bf16.gmra.mxu0 %v378
        %v568 = vpop.f32.mrf.mxu0
        %v569 = vadd.f32 %v266, %v568
        %v570 = vpop.f32.mrf.mxu0
        %v571 = vadd.f32 %v266, %v570
        %572 = vmatmul.bf16.gmra.mxu0 %v380
        %v573 = vpop.f32.mrf.mxu0
        %v574 = vadd.f32 %v266, %v573
        %v575 = vpop.f32.mrf.mxu0
        %v576 = vadd.f32 %v266, %v575
        %577 = vmatmul.bf16.gmra.mxu0 %v382
        %v578 = vpop.f32.mrf.mxu0
        %v579 = vadd.f32 %v266, %v578
        %v580 = vpop.f32.mrf.mxu0
        %v581 = vadd.f32 %v266, %v580
        %582 = vmatmul.bf16.gmra.mxu0 %v384
        %v583 = vpop.f32.mrf.mxu0
        %v584 = vadd.f32 %v266, %v583
        %v585 = vpop.f32.mrf.mxu0
        %v586 = vadd.f32 %v266, %v585
        %587 = vmatmul.bf16.gmra.mxu0 %v386
        %v588 = vpop.f32.mrf.mxu0
        %v589 = vadd.f32 %v266, %v588
        %v590 = vpop.f32.mrf.mxu0
        %v591 = vadd.f32 %v266, %v590
        %592 = vmatmul.bf16.gmra.mxu0 %v388
        %v593 = vpop.f32.mrf.mxu0
        %v594 = vadd.f32 %v266, %v593
        %v595 = vpop.f32.mrf.mxu0
        %v596 = vadd.f32 %v266, %v595
        %597 = vmatmul.bf16.gmra.mxu0 %v390
        %v598 = vpop.f32.mrf.mxu0
        %v599 = vadd.f32 %v266, %v598
        %v600 = vpop.f32.mrf.mxu0
        %v601 = vadd.f32 %v266, %v600
        %602 = vmatmul.bf16.gmra.mxu0 %v392
        %v603 = vpop.f32.mrf.mxu0
        %v604 = vadd.f32 %v266, %v603
        %v605 = vpop.f32.mrf.mxu0
        %v606 = vadd.f32 %v266, %v605
        %607 = vmatmul.bf16.gmra.mxu0 %v394
        %v608 = vpop.f32.mrf.mxu0
        %v609 = vadd.f32 %v266, %v608
        %v610 = vpop.f32.mrf.mxu0
        %v611 = vadd.f32 %v266, %v610
        %612 = vdwg.mxu0
        %613 = vmatpush.bf16.msra.mxu0 %v507
        %614 = vmatpush.bf16.msra.mxu0 %v506
        %615 = vmatpush.bf16.msra.mxu0 %v505
        %616 = vmatpush.bf16.msra.mxu0 %v504
        %617 = vmatpush.bf16.msra.mxu0 %v503
        %618 = vmatpush.bf16.msra.mxu0 %v502
        %619 = vmatpush.bf16.msra.mxu0 %v501
        %620 = vmatpush.bf16.msra.mxu0 %v500
        %621 = vmatmul.bf16.gmra.mxu0 %v365
        %v622 = vpop.f32.mrf.mxu0
        %v623 = vadd.f32 %v534, %v622
        %v624 = vpop.f32.mrf.mxu0
        %v625 = vadd.f32 %v536, %v624
        %626 = vmatmul.bf16.gmra.mxu0 %v367
        %v627 = vpop.f32.mrf.mxu0
        %v628 = vadd.f32 %v539, %v627
        %v629 = vpop.f32.mrf.mxu0
        %v630 = vadd.f32 %v541, %v629
        %631 = vmatmul.bf16.gmra.mxu0 %v369
        %v632 = vpop.f32.mrf.mxu0
        %v633 = vadd.f32 %v544, %v632
        %v634 = vpop.f32.mrf.mxu0
        %v635 = vadd.f32 %v546, %v634
        %636 = vmatmul.bf16.gmra.mxu0 %v371
        %v637 = vpop.f32.mrf.mxu0
        %v638 = vadd.f32 %v549, %v637
        %v639 = vpop.f32.mrf.mxu0
        %v640 = vadd.f32 %v551, %v639
        %641 = vmatmul.bf16.gmra.mxu0 %v373
        %v642 = vpop.f32.mrf.mxu0
        %v643 = vadd.f32 %v554, %v642
        %v644 = vpop.f32.mrf.mxu0
        %v645 = vadd.f32 %v556, %v644
        %646 = vmatmul.bf16.gmra.mxu0 %v375
        %v647 = vpop.f32.mrf.mxu0
        %v648 = vadd.f32 %v559, %v647
        %v649 = vpop.f32.mrf.mxu0
        %v650 = vadd.f32 %v561, %v649
        %651 = vmatmul.bf16.gmra.mxu0 %v377
        %v652 = vpop.f32.mrf.mxu0
        %v653 = vadd.f32 %v564, %v652
        %v654 = vpop.f32.mrf.mxu0
        %v655 = vadd.f32 %v566, %v654
        %656 = vmatmul.bf16.gmra.mxu0 %v379
        %v657 = vpop.f32.mrf.mxu0
        %v658 = vadd.f32 %v569, %v657
        %v659 = vpop.f32.mrf.mxu0
        %v660 = vadd.f32 %v571, %v659
        %661 = vmatmul.bf16.gmra.mxu0 %v381
        %v662 = vpop.f32.mrf.mxu0
        %v663 = vadd.f32 %v574, %v662
        %v664 = vpop.f32.mrf.mxu0
        %v665 = vadd.f32 %v576, %v664
        %666 = vmatmul.bf16.gmra.mxu0 %v383
        %v667 = vpop.f32.mrf.mxu0
        %v668 = vadd.f32 %v579, %v667
        %v669 = vpop.f32.mrf.mxu0
        %v670 = vadd.f32 %v581, %v669
        %671 = vmatmul.bf16.gmra.mxu0 %v385
        %v672 = vpop.f32.mrf.mxu0
        %v673 = vadd.f32 %v584, %v672
        %v674 = vpop.f32.mrf.mxu0
        %v675 = vadd.f32 %v586, %v674
        %676 = vmatmul.bf16.gmra.mxu0 %v387
        %v677 = vpop.f32.mrf.mxu0
        %v678 = vadd.f32 %v589, %v677
        %v679 = vpop.f32.mrf.mxu0
        %v680 = vadd.f32 %v591, %v679
        %681 = vmatmul.bf16.gmra.mxu0 %v389
        %v682 = vpop.f32.mrf.mxu0
        %v683 = vadd.f32 %v594, %v682
        %v684 = vpop.f32.mrf.mxu0
        %v685 = vadd.f32 %v596, %v684
        %686 = vmatmul.bf16.gmra.mxu0 %v391
        %v687 = vpop.f32.mrf.mxu0
        %v688 = vadd.f32 %v599, %v687
        %v689 = vpop.f32.mrf.mxu0
        %v690 = vadd.f32 %v601, %v689
        %691 = vmatmul.bf16.gmra.mxu0 %v393
        %v692 = vpop.f32.mrf.mxu0
        %v693 = vadd.f32 %v604, %v692
        %v694 = vpop.f32.mrf.mxu0
        %v695 = vadd.f32 %v606, %v694
        %696 = vmatmul.bf16.gmra.mxu0 %v395
        %v697 = vpop.f32.mrf.mxu0
        %v698 = vadd.f32 %v609, %v697
        %v699 = vpop.f32.mrf.mxu0
        %v700 = vadd.f32 %v611, %v699
        %701 = vdwg.mxu0
        %v702 = vmax.f32 %v623, 0.0
        %v703 = vmax.f32 %v625, 0.0
        %v704 = vmax.f32 %v628, 0.0
        %v705 = vmax.f32 %v630, 0.0
        %v706 = vmax.f32 %v633, 0.0
        %v707 = vmax.f32 %v635, 0.0
        %v708 = vmax.f32 %v638, 0.0
        %v709 = vmax.f32 %v640, 0.0
        %v710 = vmax.f32 %v643, 0.0
        %v711 = vmax.f32 %v645, 0.0
        %v712 = vmax.f32 %v648, 0.0
        %v713 = vmax.f32 %v650, 0.0
        %v714 = vmax.f32 %v653, 0.0
        %v715 = vmax.f32 %v655, 0.0
        %v716 = vmax.f32 %v658, 0.0
        %v717 = vmax.f32 %v660, 0.0
        %v718 = vmax.f32 %v663, 0.0
        %v719 = vmax.f32 %v665, 0.0
        %v720 = vmax.f32 %v668, 0.0
        %v721 = vmax.f32 %v670, 0.0
        %v722 = vmax.f32 %v673, 0.0
        %v723 = vmax.f32 %v675, 0.0
        %v724 = vmax.f32 %v678, 0.0
        %v725 = vmax.f32 %v680, 0.0
        %v726 = vmax.f32 %v683, 0.0
        %v727 = vmax.f32 %v685, 0.0
        %v728 = vmax.f32 %v688, 0.0
        %v729 = vmax.f32 %v690, 0.0
        %v730 = vmax.f32 %v693, 0.0
        %v731 = vmax.f32 %v695, 0.0
        %v732 = vmax.f32 %v698, 0.0
        %v733 = vmax.f32 %v700, 0.0
        %v734 = vpack.c.bf16 %v702, %v702
        %v735 = vpack.c.bf16 %v703, %v703
        %v736 = vpack.c.bf16 %v704, %v704
        %v737 = vpack.c.bf16 %v705, %v705
        %v738 = vpack.c.bf16 %v706, %v706
        %v739 = vpack.c.bf16 %v707, %v707
        %v740 = vpack.c.bf16 %v708, %v708
        %v741 = vpack.c.bf16 %v709, %v709
        %v742 = vpack.c.bf16 %v710, %v710
        %v743 = vpack.c.bf16 %v711, %v711
        %v744 = vpack.c.bf16 %v712, %v712
        %v745 = vpack.c.bf16 %v713, %v713
        %v746 = vpack.c.bf16 %v714, %v714
        %v747 = vpack.c.bf16 %v715, %v715
        %v748 = vpack.c.bf16 %v716, %v716
        %v749 = vpack.c.bf16 %v717, %v717
        %v750 = vpack.c.bf16 %v718, %v718
        %v751 = vpack.c.bf16 %v719, %v719
        %v752 = vpack.c.bf16 %v720, %v720
        %v753 = vpack.c.bf16 %v721, %v721
        %v754 = vpack.c.bf16 %v722, %v722
        %v755 = vpack.c.bf16 %v723, %v723
        %v756 = vpack.c.bf16 %v724, %v724
        %v757 = vpack.c.bf16 %v725, %v725
        %v758 = vpack.c.bf16 %v726, %v726
        %v759 = vpack.c.bf16 %v727, %v727
        %v760 = vpack.c.bf16 %v728, %v728
        %v761 = vpack.c.bf16 %v729, %v729
        %v762 = vpack.c.bf16 %v730, %v730
        %v763 = vpack.c.bf16 %v731, %v731
        %v764 = vpack.c.bf16 %v732, %v732
        %v765 = vpack.c.bf16 %v733, %v733
        %766 = vst [vmem:[%s177] sm:$0xf] %v734
        %767 = vst [vmem:[%s177 + $0x4] sm:$0xf] %v735
        %768 = vst [vmem:[%s177 + $0x8] sm:$0xf] %v736
        %769 = vst [vmem:[%s177 + $0xc] sm:$0xf] %v737
        %770 = vst [vmem:[%s177 + $0x10] sm:$0xf] %v738
        %771 = vst [vmem:[%s177 + $0x14] sm:$0xf] %v739
        %772 = vst [vmem:[%s177 + $0x18] sm:$0xf] %v740
        %773 = vst [vmem:[%s177 + $0x1c] sm:$0xf] %v741
        %774 = vst [vmem:[%s177 + $0x20] sm:$0xf] %v742
        %775 = vst [vmem:[%s177 + $0x24] sm:$0xf] %v743
        %776 = vst [vmem:[%s177 + $0x28] sm:$0xf] %v744
        %777 = vst [vmem:[%s177 + $0x2c] sm:$0xf] %v745
        %778 = vst [vmem:[%s177 + $0x30] sm:$0xf] %v746
        %779 = vst [vmem:[%s177 + $0x34] sm:$0xf] %v747
        %780 = vst [vmem:[%s177 + $0x38] sm:$0xf] %v748
        %781 = vst [vmem:[%s177 + $0x3c] sm:$0xf] %v749
        %782 = vst [vmem:[%s177 + $0x40] sm:$0xf] %v750
        %783 = vst [vmem:[%s177 + $0x44] sm:$0xf] %v751
        %784 = vst [vmem:[%s177 + $0x48] sm:$0xf] %v752
        %785 = vst [vmem:[%s177 + $0x4c] sm:$0xf] %v753
        %786 = vst [vmem:[%s177 + $0x50] sm:$0xf] %v754
        %787 = vst [vmem:[%s177 + $0x54] sm:$0xf] %v755
        %788 = vst [vmem:[%s177 + $0x58] sm:$0xf] %v756
        %789 = vst [vmem:[%s177 + $0x5c] sm:$0xf] %v757
        %790 = vst [vmem:[%s177 + $0x60] sm:$0xf] %v758
        %791 = vst [vmem:[%s177 + $0x64] sm:$0xf] %v759
        %792 = vst [vmem:[%s177 + $0x68] sm:$0xf] %v760
        %793 = vst [vmem:[%s177 + $0x6c] sm:$0xf] %v761
        %794 = vst [vmem:[%s177 + $0x70] sm:$0xf] %v762
        %795 = vst [vmem:[%s177 + $0x74] sm:$0xf] %v763
        %796 = vst [vmem:[%s177 + $0x78] sm:$0xf] %v764
        %797 = vst [vmem:[%s177 + $0x7c] sm:$0xf] %v765
        %s798 = sand.u32 %s90, 1
        %s799 = sand.u32 %s90, 1
        %s800 = smul.addr %s799, 128
        %s801 = scalar_lea.vmem [#allocation2], %s800
        // Predicated region
        $region33: #{qcnn_forward_pallas.4} parent=31 // pred_check
          %p802 = pneg %p100
        $region34: #{qcnn_forward_pallas.4} parent=31 // pred_check_branch
          %804 = sbr.rel (%p802) target = $region36
        $region35: #{qcnn_forward_pallas.4} parent=31 // pred_region
          %s805 = smul.u32 32, %s14
          %s806 = ssub.s32 100, %s805
          %p807 = scmp.lt.s32.totalorder %s806, 32
          %s808 = scalar_select %p807, %s806, 32
          %s809 = smul.u32 4, %s808
          %p810 = scmp.ne.s32.totalorder 0, %s809
          %s811 = smul.addr %s805, 4
          %s812 = scalar_lea.vmem %s3, %s811
          // Predicated region
          $region37: #{qcnn_forward_pallas.4} parent=35 // pred_check
            %p813 = pneg %p810
          $region38: #{qcnn_forward_pallas.4} parent=35 // pred_check_branch
            %815 = sbr.rel (%p813) target = $region40
          $region39: #{qcnn_forward_pallas.4} parent=35 // pred_region
            // Predicated region
            $region41: #{qcnn_forward_pallas.4} parent=39 // pred_check
              _
            $region42: #{qcnn_forward_pallas.4} parent=39 // pred_check_branch
              %817 = sbr.rel target = $region44
            $region43: #{qcnn_forward_pallas.4} parent=39 // pred_region
              // Predicated region
              $region63: #{qcnn_forward_pallas.4} parent=43 // pred_check
                _
              $region64: #{qcnn_forward_pallas.4} parent=43 // pred_check_branch
                %929 = sbr.rel (0) target = $region66
              $region65: #{qcnn_forward_pallas.4} parent=43 // pred_region
                %s931 = ssub.s32 16, 1
                %s932 = sshrl.u32 %s808, 5
                // While loop
                $region67: #{qcnn_forward_pallas.4} parent=65 // loop_pre_header
                  _
                $region68: #{qcnn_forward_pallas.4} parent=65 // loop_header
                  %s934 = sphi 0, %s936
                  %p935 = scmp.ge.s32.totalorder %s934, %s932
                  %s939 = sphi 0, %s1008
                  %s940 = sphi %s801, %s1011
                  %s941 = sphi %s812, %s1012
                $region69: #{qcnn_forward_pallas.4} parent=65 // loop_header_branch
                  %938 = sbr.rel (%p935) target = $region73
                $region70: #{qcnn_forward_pallas.4} parent=65 // loop_body
                  %v942 = vld [vmem:[%s940] sm:%s931]
                  %943 = vst [vmem:[%s941] sm:%s931] %v942
                  %v944 = vld [vmem:[%s940 + $0x4] sm:%s931]
                  %945 = vst [vmem:[%s941 + $0x4] sm:%s931] %v944
                  %v946 = vld [vmem:[%s940 + $0x8] sm:%s931]
                  %947 = vst [vmem:[%s941 + $0x8] sm:%s931] %v946
                  %v948 = vld [vmem:[%s940 + $0xc] sm:%s931]
                  %949 = vst [vmem:[%s941 + $0xc] sm:%s931] %v948
                  %v950 = vld [vmem:[%s940 + $0x10] sm:%s931]
                  %951 = vst [vmem:[%s941 + $0x10] sm:%s931] %v950
                  %v952 = vld [vmem:[%s940 + $0x14] sm:%s931]
                  %953 = vst [vmem:[%s941 + $0x14] sm:%s931] %v952
                  %v954 = vld [vmem:[%s940 + $0x18] sm:%s931]
                  %955 = vst [vmem:[%s941 + $0x18] sm:%s931] %v954
                  %v956 = vld [vmem:[%s940 + $0x1c] sm:%s931]
                  %957 = vst [vmem:[%s941 + $0x1c] sm:%s931] %v956
                  %v958 = vld [vmem:[%s940 + $0x20] sm:%s931]
                  %959 = vst [vmem:[%s941 + $0x20] sm:%s931] %v958
                  %v960 = vld [vmem:[%s940 + $0x24] sm:%s931]
                  %961 = vst [vmem:[%s941 + $0x24] sm:%s931] %v960
                  %v962 = vld [vmem:[%s940 + $0x28] sm:%s931]
                  %963 = vst [vmem:[%s941 + $0x28] sm:%s931] %v962
                  %v964 = vld [vmem:[%s940 + $0x2c] sm:%s931]
                  %965 = vst [vmem:[%s941 + $0x2c] sm:%s931] %v964
                  %v966 = vld [vmem:[%s940 + $0x30] sm:%s931]
                  %967 = vst [vmem:[%s941 + $0x30] sm:%s931] %v966
                  %v968 = vld [vmem:[%s940 + $0x34] sm:%s931]
                  %969 = vst [vmem:[%s941 + $0x34] sm:%s931] %v968
                  %v970 = vld [vmem:[%s940 + $0x38] sm:%s931]
                  %971 = vst [vmem:[%s941 + $0x38] sm:%s931] %v970
                  %v972 = vld [vmem:[%s940 + $0x3c] sm:%s931]
                  %973 = vst [vmem:[%s941 + $0x3c] sm:%s931] %v972
                  %v974 = vld [vmem:[%s940 + $0x40] sm:%s931]
                  %975 = vst [vmem:[%s941 + $0x40] sm:%s931] %v974
                  %v976 = vld [vmem:[%s940 + $0x44] sm:%s931]
                  %977 = vst [vmem:[%s941 + $0x44] sm:%s931] %v976
                  %v978 = vld [vmem:[%s940 + $0x48] sm:%s931]
                  %979 = vst [vmem:[%s941 + $0x48] sm:%s931] %v978
                  %v980 = vld [vmem:[%s940 + $0x4c] sm:%s931]
                  %981 = vst [vmem:[%s941 + $0x4c] sm:%s931] %v980
                  %v982 = vld [vmem:[%s940 + $0x50] sm:%s931]
                  %983 = vst [vmem:[%s941 + $0x50] sm:%s931] %v982
                  %v984 = vld [vmem:[%s940 + $0x54] sm:%s931]
                  %985 = vst [vmem:[%s941 + $0x54] sm:%s931] %v984
                  %v986 = vld [vmem:[%s940 + $0x58] sm:%s931]
                  %987 = vst [vmem:[%s941 + $0x58] sm:%s931] %v986
                  %v988 = vld [vmem:[%s940 + $0x5c] sm:%s931]
                  %989 = vst [vmem:[%s941 + $0x5c] sm:%s931] %v988
                  %v990 = vld [vmem:[%s940 + $0x60] sm:%s931]
                  %991 = vst [vmem:[%s941 + $0x60] sm:%s931] %v990
                  %v992 = vld [vmem:[%s940 + $0x64] sm:%s931]
                  %993 = vst [vmem:[%s941 + $0x64] sm:%s931] %v992
                  %v994 = vld [vmem:[%s940 + $0x68] sm:%s931]
                  %995 = vst [vmem:[%s941 + $0x68] sm:%s931] %v994
                  %v996 = vld [vmem:[%s940 + $0x6c] sm:%s931]
                  %997 = vst [vmem:[%s941 + $0x6c] sm:%s931] %v996
                  %v998 = vld [vmem:[%s940 + $0x70] sm:%s931]
                  %999 = vst [vmem:[%s941 + $0x70] sm:%s931] %v998
                  %v1000 = vld [vmem:[%s940 + $0x74] sm:%s931]
                  %1001 = vst [vmem:[%s941 + $0x74] sm:%s931] %v1000
                  %v1002 = vld [vmem:[%s940 + $0x78] sm:%s931]
                  %1003 = vst [vmem:[%s941 + $0x78] sm:%s931] %v1002
                  %v1004 = vld [vmem:[%s940 + $0x7c] sm:%s931]
                  %1005 = vst [vmem:[%s941 + $0x7c] sm:%s931] %v1004
                  %s1006 = sadd.s32 1, %s939
                  %p1007 = scmp.ge.s32.totalorder %s1006, %s932
                  %s1008 = scalar_select %p1007, 0, %s1006
                  %s1009 = smul.u32 %s1008, 128
                  %s1010 = smul.u32 %s1008, 128
                  %s1011 = scalar_lea.vmem %s801, %s1009 [#allocation2]
                  %s1012 = scalar_lea.vmem %s812, %s1010
                $region71: #{qcnn_forward_pallas.4} parent=65 // loop_footer
                  %s936 = sadd.s32 %s934, 1
                $region72: #{qcnn_forward_pallas.4} parent=65 // loop_footer_branch
                  %933 = sbr.rel target = $region68
                $region73: #{qcnn_forward_pallas.4} parent=65 // loop_exit
                  _
                %s1013 = sshrl.u32 %s808, 5
                %s1014 = sand.u32 %s808, 31
                %s1015 = smul.u32 %s1013, 32
                %s1016 = smul.u32 4, %s1015
                %s1017 = scalar_lea.vmem %s801, %s1016 [#allocation2]
                %s1018 = smul.u32 4, %s1015
                %s1019 = scalar_lea.vmem %s812, %s1018
                // While loop
                $region74: #{qcnn_forward_pallas.4} parent=65 // loop_pre_header
                  _
                $region75: #{qcnn_forward_pallas.4} parent=65 // loop_header
                  %s1021 = sphi 0, %s1023
                  %p1022 = scmp.ge.s32.totalorder %s1021, %s1014
                  %s1026 = sphi 0, %s1033
                  %s1027 = sphi %s1017, %s1036
                  %s1028 = sphi %s1019, %s1037
                $region76: #{qcnn_forward_pallas.4} parent=65 // loop_header_branch
                  %1025 = sbr.rel (%p1022) target = $region80
                $region77: #{qcnn_forward_pallas.4} parent=65 // loop_body
                  %v1029 = vld [vmem:[%s1027] sm:%s931]
                  %1030 = vst [vmem:[%s1028] sm:%s931] %v1029
                  %s1031 = sadd.s32 1, %s1026
                  %p1032 = scmp.ge.s32.totalorder %s1031, %s1014
                  %s1033 = scalar_select %p1032, 0, %s1031
                  %s1034 = smul.u32 %s1033, 4
                  %s1035 = smul.u32 %s1033, 4
                  %s1036 = scalar_lea.vmem %s1017, %s1034 [#allocation2]
                  %s1037 = scalar_lea.vmem %s1019, %s1035
                $region78: #{qcnn_forward_pallas.4} parent=65 // loop_footer
                  %s1023 = sadd.s32 %s1021, 1
                $region79: #{qcnn_forward_pallas.4} parent=65 // loop_footer_branch
                  %1020 = sbr.rel target = $region75
                $region80: #{qcnn_forward_pallas.4} parent=65 // loop_exit
                  _
              $region66: #{qcnn_forward_pallas.4} parent=43 // pred_fallthru
                _
            $region44: #{qcnn_forward_pallas.4} parent=39 // pred_fallthru
              _
            // Predicated region
            $region45: #{qcnn_forward_pallas.4} parent=39 // pred_check
              _
            $region46: #{qcnn_forward_pallas.4} parent=39 // pred_check_branch
              %819 = sbr.rel (0) target = $region48
            $region47: #{qcnn_forward_pallas.4} parent=39 // pred_region
              %s821 = ssub.s32 16, 1
              %s822 = sshrl.u32 %s808, 5
              // While loop
              $region49: #{qcnn_forward_pallas.4} parent=47 // loop_pre_header
                _
              $region50: #{qcnn_forward_pallas.4} parent=47 // loop_header
                %s824 = sphi 0, %s826
                %p825 = scmp.ge.s32.totalorder %s824, %s822
                %s829 = sphi 0, %s898
                %s830 = sphi %s801, %s901
                %s831 = sphi %s812, %s902
              $region51: #{qcnn_forward_pallas.4} parent=47 // loop_header_branch
                %828 = sbr.rel (%p825) target = $region55
              $region52: #{qcnn_forward_pallas.4} parent=47 // loop_body
                %v832 = vld [vmem:[%s830] sm:%s821]
                %833 = vst [vmem:[%s831] sm:%s821] %v832
                %v834 = vld [vmem:[%s830 + $0x4] sm:%s821]
                %835 = vst [vmem:[%s831 + $0x4] sm:%s821] %v834
                %v836 = vld [vmem:[%s830 + $0x8] sm:%s821]
                %837 = vst [vmem:[%s831 + $0x8] sm:%s821] %v836
                %v838 = vld [vmem:[%s830 + $0xc] sm:%s821]
                %839 = vst [vmem:[%s831 + $0xc] sm:%s821] %v838
                %v840 = vld [vmem:[%s830 + $0x10] sm:%s821]
                %841 = vst [vmem:[%s831 + $0x10] sm:%s821] %v840
                %v842 = vld [vmem:[%s830 + $0x14] sm:%s821]
                %843 = vst [vmem:[%s831 + $0x14] sm:%s821] %v842
                %v844 = vld [vmem:[%s830 + $0x18] sm:%s821]
                %845 = vst [vmem:[%s831 + $0x18] sm:%s821] %v844
                %v846 = vld [vmem:[%s830 + $0x1c] sm:%s821]
                %847 = vst [vmem:[%s831 + $0x1c] sm:%s821] %v846
                %v848 = vld [vmem:[%s830 + $0x20] sm:%s821]
                %849 = vst [vmem:[%s831 + $0x20] sm:%s821] %v848
                %v850 = vld [vmem:[%s830 + $0x24] sm:%s821]
                %851 = vst [vmem:[%s831 + $0x24] sm:%s821] %v850
                %v852 = vld [vmem:[%s830 + $0x28] sm:%s821]
                %853 = vst [vmem:[%s831 + $0x28] sm:%s821] %v852
                %v854 = vld [vmem:[%s830 + $0x2c] sm:%s821]
                %855 = vst [vmem:[%s831 + $0x2c] sm:%s821] %v854
                %v856 = vld [vmem:[%s830 + $0x30] sm:%s821]
                %857 = vst [vmem:[%s831 + $0x30] sm:%s821] %v856
                %v858 = vld [vmem:[%s830 + $0x34] sm:%s821]
                %859 = vst [vmem:[%s831 + $0x34] sm:%s821] %v858
                %v860 = vld [vmem:[%s830 + $0x38] sm:%s821]
                %861 = vst [vmem:[%s831 + $0x38] sm:%s821] %v860
                %v862 = vld [vmem:[%s830 + $0x3c] sm:%s821]
                %863 = vst [vmem:[%s831 + $0x3c] sm:%s821] %v862
                %v864 = vld [vmem:[%s830 + $0x40] sm:%s821]
                %865 = vst [vmem:[%s831 + $0x40] sm:%s821] %v864
                %v866 = vld [vmem:[%s830 + $0x44] sm:%s821]
                %867 = vst [vmem:[%s831 + $0x44] sm:%s821] %v866
                %v868 = vld [vmem:[%s830 + $0x48] sm:%s821]
                %869 = vst [vmem:[%s831 + $0x48] sm:%s821] %v868
                %v870 = vld [vmem:[%s830 + $0x4c] sm:%s821]
                %871 = vst [vmem:[%s831 + $0x4c] sm:%s821] %v870
                %v872 = vld [vmem:[%s830 + $0x50] sm:%s821]
                %873 = vst [vmem:[%s831 + $0x50] sm:%s821] %v872
                %v874 = vld [vmem:[%s830 + $0x54] sm:%s821]
                %875 = vst [vmem:[%s831 + $0x54] sm:%s821] %v874
                %v876 = vld [vmem:[%s830 + $0x58] sm:%s821]
                %877 = vst [vmem:[%s831 + $0x58] sm:%s821] %v876
                %v878 = vld [vmem:[%s830 + $0x5c] sm:%s821]
                %879 = vst [vmem:[%s831 + $0x5c] sm:%s821] %v878
                %v880 = vld [vmem:[%s830 + $0x60] sm:%s821]
                %881 = vst [vmem:[%s831 + $0x60] sm:%s821] %v880
                %v882 = vld [vmem:[%s830 + $0x64] sm:%s821]
                %883 = vst [vmem:[%s831 + $0x64] sm:%s821] %v882
                %v884 = vld [vmem:[%s830 + $0x68] sm:%s821]
                %885 = vst [vmem:[%s831 + $0x68] sm:%s821] %v884
                %v886 = vld [vmem:[%s830 + $0x6c] sm:%s821]
                %887 = vst [vmem:[%s831 + $0x6c] sm:%s821] %v886
                %v888 = vld [vmem:[%s830 + $0x70] sm:%s821]
                %889 = vst [vmem:[%s831 + $0x70] sm:%s821] %v888
                %v890 = vld [vmem:[%s830 + $0x74] sm:%s821]
                %891 = vst [vmem:[%s831 + $0x74] sm:%s821] %v890
                %v892 = vld [vmem:[%s830 + $0x78] sm:%s821]
                %893 = vst [vmem:[%s831 + $0x78] sm:%s821] %v892
                %v894 = vld [vmem:[%s830 + $0x7c] sm:%s821]
                %895 = vst [vmem:[%s831 + $0x7c] sm:%s821] %v894
                %s896 = sadd.s32 1, %s829
                %p897 = scmp.ge.s32.totalorder %s896, %s822
                %s898 = scalar_select %p897, 0, %s896
                %s899 = smul.u32 %s898, 128
                %s900 = smul.u32 %s898, 128
                %s901 = scalar_lea.vmem %s801, %s899 [#allocation2]
                %s902 = scalar_lea.vmem %s812, %s900
              $region53: #{qcnn_forward_pallas.4} parent=47 // loop_footer
                %s826 = sadd.s32 %s824, 1
              $region54: #{qcnn_forward_pallas.4} parent=47 // loop_footer_branch
                %823 = sbr.rel target = $region50
              $region55: #{qcnn_forward_pallas.4} parent=47 // loop_exit
                _
              %s903 = sshrl.u32 %s808, 5
              %s904 = sand.u32 %s808, 31
              %s905 = smul.u32 %s903, 32
              %s906 = smul.u32 4, %s905
              %s907 = scalar_lea.vmem %s801, %s906 [#allocation2]
              %s908 = smul.u32 4, %s905
              %s909 = scalar_lea.vmem %s812, %s908
              // While loop
              $region56: #{qcnn_forward_pallas.4} parent=47 // loop_pre_header
                _
              $region57: #{qcnn_forward_pallas.4} parent=47 // loop_header
                %s911 = sphi 0, %s913
                %p912 = scmp.ge.s32.totalorder %s911, %s904
                %s916 = sphi 0, %s923
                %s917 = sphi %s907, %s926
                %s918 = sphi %s909, %s927
              $region58: #{qcnn_forward_pallas.4} parent=47 // loop_header_branch
                %915 = sbr.rel (%p912) target = $region62
              $region59: #{qcnn_forward_pallas.4} parent=47 // loop_body
                %v919 = vld [vmem:[%s917] sm:%s821]
                %920 = vst [vmem:[%s918] sm:%s821] %v919
                %s921 = sadd.s32 1, %s916
                %p922 = scmp.ge.s32.totalorder %s921, %s904
                %s923 = scalar_select %p922, 0, %s921
                %s924 = smul.u32 %s923, 4
                %s925 = smul.u32 %s923, 4
                %s926 = scalar_lea.vmem %s907, %s924 [#allocation2]
                %s927 = scalar_lea.vmem %s909, %s925
              $region60: #{qcnn_forward_pallas.4} parent=47 // loop_footer
                %s913 = sadd.s32 %s911, 1
              $region61: #{qcnn_forward_pallas.4} parent=47 // loop_footer_branch
                %910 = sbr.rel target = $region57
              $region62: #{qcnn_forward_pallas.4} parent=47 // loop_exit
                _
            $region48: #{qcnn_forward_pallas.4} parent=39 // pred_fallthru
              _
          $region40: #{qcnn_forward_pallas.4} parent=35 // pred_fallthru
            _
          %1038 = vnop
        $region36: #{qcnn_forward_pallas.4} parent=31 // pred_fallthru
          _
      $region32: #{qcnn_forward_pallas.4} parent=5 // pred_fallthru
        _
      %p1039 = scmp.le.s32.totalorder 2, %s9
      // Predicated region
      $region81: #{qcnn_forward_pallas.4} parent=5 // pred_check
        %p1040 = pneg %p1039
      $region82: #{qcnn_forward_pallas.4} parent=5 // pred_check_branch
        %1042 = sbr.rel (%p1040) target = $region84
      $region83: #{qcnn_forward_pallas.4} parent=5 // pred_region
        %s1043 = ssub.s32 %s9, 2
        // Predicated region
        $region85: #{qcnn_forward_pallas.4} parent=83 // pred_check
          %p1044 = pneg %p106
        $region86: #{qcnn_forward_pallas.4} parent=83 // pred_check_branch
          %1046 = sbr.rel (%p1044) target = $region88
        $region87: #{qcnn_forward_pallas.4} parent=83 // pred_region
          %s1047 = sand.u32 %s91, 1
          %s1048 = sand.u32 %s91, 1
          %s1049 = smul.addr %s1048, 128
          %s1050 = scalar_lea.vmem [#allocation2], %s1049
        $region88: #{qcnn_forward_pallas.4} parent=83 // pred_fallthru
          _
      $region84: #{qcnn_forward_pallas.4} parent=5 // pred_fallthru
        _
    $region6: #{qcnn_forward_pallas.4} parent=1 // loop_footer
      %s13 = sadd.s32 1, %s9
    $region7: #{qcnn_forward_pallas.4} parent=1 // loop_footer_branch
      %8 = sbr.rel target = $region3
    $region8: #{qcnn_forward_pallas.4} parent=1 // loop_exit
      _

// kernel: qcnn_forward_pallas.5
$region0: #{qcnn_forward_pallas.5}
  #allocation0 [shape = 'u32[]', space=smem, size = 0x4, offset = 0x4, fixed_abs, tag = 'smem constant byte address 0x4 - core index']
  #allocation1 [shape = 'u32[72,128]{1,0:T(1,128)}', space=vmem, size = 0x9000, scoped, tag = 'internal scratch']
  %s0 = inlined_call_operand.vmem [shape: bf16[162,2048], index: 0, kind: input, shape index: {}]
  %s1 = inlined_call_operand.vmem [shape: bf16[2048,128], index: 1, kind: input, shape index: {}]
  %s2 = inlined_call_operand.vmem [shape: f32[1,128], index: 2, kind: input, shape index: {}]
  %s3 = inlined_call_operand.vmem [shape: bf16[162,128], index: 3, kind: output, shape index: {}]
  %s4 = sld [smem:[#allocation0]]
  $region59: #{qcnn_forward_pallas.5} parent=0
    _
  %s6 = ssub.s32 1, %s4
  %s7 = scalar_select 0, %s6, %s4
  $region1: #{qcnn_forward_pallas.5} parent=0
    #allocation2 [shape = 'u8[45056]{0}', space=vmem, size = 0xb000, scoped, tag = 'output window, operand 0, single buffered']
    // Predicated region
    $region2: #{qcnn_forward_pallas.5} parent=1 // pred_check
      _
    $region3: #{qcnn_forward_pallas.5} parent=1 // pred_check_branch
      %9 = sbr.rel (0) target = $region5
    $region4: #{qcnn_forward_pallas.5} parent=1 // pred_region
      _
    $region5: #{qcnn_forward_pallas.5} parent=1 // pred_fallthru
      _
    // Predicated region
    $region6: #{qcnn_forward_pallas.5} parent=1 // pred_check
      _
    $region7: #{qcnn_forward_pallas.5} parent=1 // pred_check_branch
      %11 = sbr.rel (0) target = $region9
    $region8: #{qcnn_forward_pallas.5} parent=1 // pred_region
      _
    $region9: #{qcnn_forward_pallas.5} parent=1 // pred_fallthru
      _
    // Predicated region
    $region10: #{qcnn_forward_pallas.5} parent=1 // pred_check
      _
    $region11: #{qcnn_forward_pallas.5} parent=1 // pred_check_branch
      %13 = sbr.rel (0) target = $region13
    $region12: #{qcnn_forward_pallas.5} parent=1 // pred_region
      _
    $region13: #{qcnn_forward_pallas.5} parent=1 // pred_fallthru
      _
    %v14 = vld [vmem:[%s0] sm:$0xff]
    %v15 = vld [vmem:[%s0 + $0x8] sm:$0xff]
    %v16 = vld [vmem:[%s0 + $0x10] sm:$0xff]
    %v17 = vld [vmem:[%s0 + $0x18] sm:$0xff]
    %v18 = vld [vmem:[%s0 + $0x20] sm:$0xff]
    %v19 = vld [vmem:[%s0 + $0x28] sm:$0xff]
    %v20 = vld [vmem:[%s0 + $0x30] sm:$0xff]
    %v21 = vld [vmem:[%s0 + $0x38] sm:$0xff]
    %v22 = vld [vmem:[%s0 + $0x40] sm:$0xff]
    %v23 = vld [vmem:[%s0 + $0x48] sm:$0xff]
    %v24 = vld [vmem:[%s0 + $0x50] sm:$0xff]
    %v25 = vld [vmem:[%s0 + $0x58] sm:$0xff]
    %v26 = vld [vmem:[%s0 + $0x60] sm:$0xff]
    %v27 = vld [vmem:[%s0 + $0x68] sm:$0xff]
    %v28 = vld [vmem:[%s0 + $0x70] sm:$0xff]
    %v29 = vld [vmem:[%s0 + $0x78] sm:$0xff]
    %v30 = vld [vmem:[%s0 + $0x80] sm:$0xff]
    %v31 = vld [vmem:[%s0 + $0x88] sm:$0xff]
    %v32 = vld [vmem:[%s0 + $0x90] sm:$0xff]
    %v33 = vld [vmem:[%s0 + $0x98] sm:$0xff]
    %v34 = vld [vmem:[%s0 + $0xa0] sm:$0xff]
    %v35 = vld [vmem:[%s0 + $0xa8] sm:$0xff]
    %v36 = vld [vmem:[%s0 + $0xb0] sm:$0xff]
    %v37 = vld [vmem:[%s0 + $0xb8] sm:$0xff]
    %v38 = vld [vmem:[%s0 + $0xc0] sm:$0xff]
    %v39 = vld [vmem:[%s0 + $0xc8] sm:$0xff]
    %v40 = vld [vmem:[%s0 + $0xd0] sm:$0xff]
    %v41 = vld [vmem:[%s0 + $0xd8] sm:$0xff]
    %v42 = vld [vmem:[%s0 + $0xe0] sm:$0xff]
    %v43 = vld [vmem:[%s0 + $0xe8] sm:$0xff]
    %v44 = vld [vmem:[%s0 + $0xf0] sm:$0xff]
    %v45 = vld [vmem:[%s0 + $0xf8] sm:$0xff]
    %v46 = vld [vmem:[%s0 + $0x100] sm:$0xff]
    %v47 = vld [vmem:[%s0 + $0x108] sm:$0xff]
    %v48 = vld [vmem:[%s0 + $0x110] sm:$0xff]
    %v49 = vld [vmem:[%s0 + $0x118] sm:$0xff]
    %v50 = vld [vmem:[%s0 + $0x120] sm:$0xff]
    %v51 = vld [vmem:[%s0 + $0x128] sm:$0xff]
    %v52 = vld [vmem:[%s0 + $0x130] sm:$0xff]
    %v53 = vld [vmem:[%s0 + $0x138] sm:$0xff]
    %v54 = vld [vmem:[%s0 + $0x140] sm:$0xff]
    %v55 = vld [vmem:[%s0 + $0x148] sm:$0xff]
    %v56 = vld [vmem:[%s0 + $0x150] sm:$0xff]
    %v57 = vld [vmem:[%s0 + $0x158] sm:$0xff]
    %v58 = vld [vmem:[%s0 + $0x160] sm:$0xff]
    %v59 = vld [vmem:[%s0 + $0x168] sm:$0xff]
    %v60 = vld [vmem:[%s0 + $0x170] sm:$0xff]
    %v61 = vld [vmem:[%s0 + $0x178] sm:$0xff]
    %v62 = vld [vmem:[%s0 + $0x180] sm:$0xff]
    %v63 = vld [vmem:[%s0 + $0x188] sm:$0xff]
    %v64 = vld [vmem:[%s0 + $0x190] sm:$0xff]
    %v65 = vld [vmem:[%s0 + $0x198] sm:$0xff]
    %v66 = vld [vmem:[%s0 + $0x1a0] sm:$0xff]
    %v67 = vld [vmem:[%s0 + $0x1a8] sm:$0xff]
    %v68 = vld [vmem:[%s0 + $0x1b0] sm:$0xff]
    %v69 = vld [vmem:[%s0 + $0x1b8] sm:$0xff]
    %v70 = vld [vmem:[%s0 + $0x1c0] sm:$0xff]
    %v71 = vld [vmem:[%s0 + $0x1c8] sm:$0xff]
    %v72 = vld [vmem:[%s0 + $0x1d0] sm:$0xff]
    %v73 = vld [vmem:[%s0 + $0x1d8] sm:$0xff]
    %v74 = vld [vmem:[%s0 + $0x1e0] sm:$0xff]
    %v75 = vld [vmem:[%s0 + $0x1e8] sm:$0xff]
    %v76 = vld [vmem:[%s0 + $0x1f0] sm:$0xff]
    %v77 = vld [vmem:[%s0 + $0x1f8] sm:$0xff]
    %v78 = vld [vmem:[%s0 + $0x200] sm:$0xff]
    %v79 = vld [vmem:[%s0 + $0x208] sm:$0xff]
    %v80 = vld [vmem:[%s0 + $0x210] sm:$0xff]
    %v81 = vld [vmem:[%s0 + $0x218] sm:$0xff]
    %v82 = vld [vmem:[%s0 + $0x220] sm:$0xff]
    %v83 = vld [vmem:[%s0 + $0x228] sm:$0xff]
    %v84 = vld [vmem:[%s0 + $0x230] sm:$0xff]
    %v85 = vld [vmem:[%s0 + $0x238] sm:$0xff]
    %v86 = vld [vmem:[%s0 + $0x240] sm:$0xff]
    %v87 = vld [vmem:[%s0 + $0x248] sm:$0xff]
    %v88 = vld [vmem:[%s0 + $0x250] sm:$0xff]
    %v89 = vld [vmem:[%s0 + $0x258] sm:$0xff]
    %v90 = vld [vmem:[%s0 + $0x260] sm:$0xff]
    %v91 = vld [vmem:[%s0 + $0x268] sm:$0xff]
    %v92 = vld [vmem:[%s0 + $0x270] sm:$0xff]
    %v93 = vld [vmem:[%s0 + $0x278] sm:$0xff]
    %v94 = vld [vmem:[%s0 + $0x280] sm:$0xff]
    %v95 = vld [vmem:[%s0 + $0x288] sm:$0xff]
    %v96 = vld [vmem:[%s0 + $0x290] sm:$0xff]
    %v97 = vld [vmem:[%s0 + $0x298] sm:$0xff]
    %v98 = vld [vmem:[%s0 + $0x2a0] sm:$0xff]
    %v99 = vld [vmem:[%s0 + $0x2a8] sm:$0xff]
    %v100 = vld [vmem:[%s0 + $0x2b0] sm:$0xff]
    %v101 = vld [vmem:[%s0 + $0x2b8] sm:$0xff]
    %v102 = vld [vmem:[%s0 + $0x2c0] sm:$0xff]
    %v103 = vld [vmem:[%s0 + $0x2c8] sm:$0xff]
    %v104 = vld [vmem:[%s0 + $0x2d0] sm:$0xff]
    %v105 = vld [vmem:[%s0 + $0x2d8] sm:$0xff]
    %v106 = vld [vmem:[%s0 + $0x2e0] sm:$0xff]
    %v107 = vld [vmem:[%s0 + $0x2e8] sm:$0xff]
    %v108 = vld [vmem:[%s0 + $0x2f0] sm:$0xff]
    %v109 = vld [vmem:[%s0 + $0x2f8] sm:$0xff]
    %v110 = vld [vmem:[%s0 + $0x300] sm:$0xff]
    %v111 = vld [vmem:[%s0 + $0x308] sm:$0xff]
    %v112 = vld [vmem:[%s0 + $0x310] sm:$0xff]
    %v113 = vld [vmem:[%s0 + $0x318] sm:$0xff]
    %v114 = vld [vmem:[%s0 + $0x320] sm:$0xff]
    %v115 = vld [vmem:[%s0 + $0x328] sm:$0xff]
    %v116 = vld [vmem:[%s0 + $0x330] sm:$0xff]
    %v117 = vld [vmem:[%s0 + $0x338] sm:$0xff]
    %v118 = vld [vmem:[%s0 + $0x340] sm:$0xff]
    %v119 = vld [vmem:[%s0 + $0x348] sm:$0xff]
    %v120 = vld [vmem:[%s0 + $0x350] sm:$0xff]
    %v121 = vld [vmem:[%s0 + $0x358] sm:$0xff]
    %v122 = vld [vmem:[%s0 + $0x360] sm:$0xff]
    %v123 = vld [vmem:[%s0 + $0x368] sm:$0xff]
    %v124 = vld [vmem:[%s0 + $0x370] sm:$0xff]
    %v125 = vld [vmem:[%s0 + $0x378] sm:$0xff]
    %v126 = vld [vmem:[%s0 + $0x380] sm:$0xff]
    %v127 = vld [vmem:[%s0 + $0x388] sm:$0xff]
    %v128 = vld [vmem:[%s0 + $0x390] sm:$0xff]
    %v129 = vld [vmem:[%s0 + $0x398] sm:$0xff]
    %v130 = vld [vmem:[%s0 + $0x3a0] sm:$0xff]
    %v131 = vld [vmem:[%s0 + $0x3a8] sm:$0xff]
    %v132 = vld [vmem:[%s0 + $0x3b0] sm:$0xff]
    %v133 = vld [vmem:[%s0 + $0x3b8] sm:$0xff]
    %v134 = vld [vmem:[%s0 + $0x3c0] sm:$0xff]
    %v135 = vld [vmem:[%s0 + $0x3c8] sm:$0xff]
    %v136 = vld [vmem:[%s0 + $0x3d0] sm:$0xff]
    %v137 = vld [vmem:[%s0 + $0x3d8] sm:$0xff]
    %v138 = vld [vmem:[%s0 + $0x3e0] sm:$0xff]
    %v139 = vld [vmem:[%s0 + $0x3e8] sm:$0xff]
    %v140 = vld [vmem:[%s0 + $0x3f0] sm:$0xff]
    %v141 = vld [vmem:[%s0 + $0x3f8] sm:$0xff]
    %v142 = vld [vmem:[%s0 + $0x400] sm:$0xff]
    %v143 = vld [vmem:[%s0 + $0x408] sm:$0xff]
    %v144 = vld [vmem:[%s0 + $0x410] sm:$0xff]
    %v145 = vld [vmem:[%s0 + $0x418] sm:$0xff]
    %v146 = vld [vmem:[%s0 + $0x420] sm:$0xff]
    %v147 = vld [vmem:[%s0 + $0x428] sm:$0xff]
    %v148 = vld [vmem:[%s0 + $0x430] sm:$0xff]
    %v149 = vld [vmem:[%s0 + $0x438] sm:$0xff]
    %v150 = vld [vmem:[%s0 + $0x440] sm:$0xff]
    %v151 = vld [vmem:[%s0 + $0x448] sm:$0xff]
    %v152 = vld [vmem:[%s0 + $0x450] sm:$0xff]
    %v153 = vld [vmem:[%s0 + $0x458] sm:$0xff]
    %v154 = vld [vmem:[%s0 + $0x460] sm:$0xff]
    %v155 = vld [vmem:[%s0 + $0x468] sm:$0xff]
    %v156 = vld [vmem:[%s0 + $0x470] sm:$0xff]
    %v157 = vld [vmem:[%s0 + $0x478] sm:$0xff]
    %v158 = vld [vmem:[%s0 + $0x480] sm:$0xff]
    %v159 = vld [vmem:[%s0 + $0x488] sm:$0xff]
    %v160 = vld [vmem:[%s0 + $0x490] sm:$0xff]
    %v161 = vld [vmem:[%s0 + $0x498] sm:$0xff]
    %v162 = vld [vmem:[%s0 + $0x4a0] sm:$0xff]
    %v163 = vld [vmem:[%s0 + $0x4a8] sm:$0xff]
    %v164 = vld [vmem:[%s0 + $0x4b0] sm:$0xff]
    %v165 = vld [vmem:[%s0 + $0x4b8] sm:$0xff]
    %v166 = vld [vmem:[%s0 + $0x4c0] sm:$0xff]
    %v167 = vld [vmem:[%s0 + $0x4c8] sm:$0xff]
    %v168 = vld [vmem:[%s0 + $0x4d0] sm:$0xff]
    %v169 = vld [vmem:[%s0 + $0x4d8] sm:$0xff]
    %v170 = vld [vmem:[%s0 + $0x4e0] sm:$0xff]
    %v171 = vld [vmem:[%s0 + $0x4e8] sm:$0xff]
    %v172 = vld [vmem:[%s0 + $0x4f0] sm:$0xff]
    %v173 = vld [vmem:[%s0 + $0x4f8] sm:$0xff]
    %v174 = vld [vmem:[%s0 + $0x500] sm:$0xff]
    %v175 = vld [vmem:[%s0 + $0x508] sm:$0xff]
    %v176 = vld [vmem:[%s0 + $0x510] sm:$0xff]
    %v177 = vld [vmem:[%s0 + $0x518] sm:$0xff]
    %v178 = vld [vmem:[%s0 + $0x520] sm:$0xff]
    %v179 = vld [vmem:[%s0 + $0x528] sm:$0xff]
    %v180 = vld [vmem:[%s0 + $0x530] sm:$0xff]
    %v181 = vld [vmem:[%s0 + $0x538] sm:$0xff]
    %v182 = vld [vmem:[%s0 + $0x540] sm:$0xff]
    %v183 = vld [vmem:[%s0 + $0x548] sm:$0xff]
    %v184 = vld [vmem:[%s0 + $0x550] sm:$0xff]
    %v185 = vld [vmem:[%s0 + $0x558] sm:$0xff]
    %v186 = vld [vmem:[%s0 + $0x560] sm:$0xff]
    %v187 = vld [vmem:[%s0 + $0x568] sm:$0xff]
    %v188 = vld [vmem:[%s0 + $0x570] sm:$0xff]
    %v189 = vld [vmem:[%s0 + $0x578] sm:$0xff]
    %v190 = vld [vmem:[%s1] sm:$0xf]
    %v191 = vld [vmem:[%s1 + $0x4] sm:$0xf]
    %v192 = vld [vmem:[%s1 + $0x8] sm:$0xf]
    %v193 = vld [vmem:[%s1 + $0xc] sm:$0xf]
    %v194 = vld [vmem:[%s1 + $0x10] sm:$0xf]
    %v195 = vld [vmem:[%s1 + $0x14] sm:$0xf]
    %v196 = vld [vmem:[%s1 + $0x18] sm:$0xf]
    %v197 = vld [vmem:[%s1 + $0x1c] sm:$0xf]
    %v198 = vld [vmem:[%s1 + $0x20] sm:$0xf]
    %v199 = vld [vmem:[%s1 + $0x24] sm:$0xf]
    %v200 = vld [vmem:[%s1 + $0x28] sm:$0xf]
    %v201 = vld [vmem:[%s1 + $0x2c] sm:$0xf]
    %v202 = vld [vmem:[%s1 + $0x30] sm:$0xf]
    %v203 = vld [vmem:[%s1 + $0x34] sm:$0xf]
    %v204 = vld [vmem:[%s1 + $0x38] sm:$0xf]
    %v205 = vld [vmem:[%s1 + $0x3c] sm:$0xf]
    %v206 = vld [vmem:[%s1 + $0x40] sm:$0xf]
    %v207 = vld [vmem:[%s1 + $0x44] sm:$0xf]
    %v208 = vld [vmem:[%s1 + $0x48] sm:$0xf]
    %v209 = vld [vmem:[%s1 + $0x4c] sm:$0xf]
    %v210 = vld [vmem:[%s1 + $0x50] sm:$0xf]
    %v211 = vld [vmem:[%s1 + $0x54] sm:$0xf]
    %v212 = vld [vmem:[%s1 + $0x58] sm:$0xf]
    %v213 = vld [vmem:[%s1 + $0x5c] sm:$0xf]
    %v214 = vld [vmem:[%s1 + $0x60] sm:$0xf]
    %v215 = vld [vmem:[%s1 + $0x64] sm:$0xf]
    %v216 = vld [vmem:[%s1 + $0x68] sm:$0xf]
    %v217 = vld [vmem:[%s1 + $0x6c] sm:$0xf]
    %v218 = vld [vmem:[%s1 + $0x70] sm:$0xf]
    %v219 = vld [vmem:[%s1 + $0x74] sm:$0xf]
    %v220 = vld [vmem:[%s1 + $0x78] sm:$0xf]
    %v221 = vld [vmem:[%s1 + $0x7c] sm:$0xf]
    %v222 = vld [vmem:[%s1 + $0x80] sm:$0xf]
    %v223 = vld [vmem:[%s1 + $0x84] sm:$0xf]
    %v224 = vld [vmem:[%s1 + $0x88] sm:$0xf]
    %v225 = vld [vmem:[%s1 + $0x8c] sm:$0xf]
    %v226 = vld [vmem:[%s1 + $0x90] sm:$0xf]
    %v227 = vld [vmem:[%s1 + $0x94] sm:$0xf]
    %v228 = vld [vmem:[%s1 + $0x98] sm:$0xf]
    %v229 = vld [vmem:[%s1 + $0x9c] sm:$0xf]
    %v230 = vld [vmem:[%s1 + $0xa0] sm:$0xf]
    %v231 = vld [vmem:[%s1 + $0xa4] sm:$0xf]
    %v232 = vld [vmem:[%s1 + $0xa8] sm:$0xf]
    %v233 = vld [vmem:[%s1 + $0xac] sm:$0xf]
    %v234 = vld [vmem:[%s1 + $0xb0] sm:$0xf]
    %v235 = vld [vmem:[%s1 + $0xb4] sm:$0xf]
    %v236 = vld [vmem:[%s1 + $0xb8] sm:$0xf]
    %v237 = vld [vmem:[%s1 + $0xbc] sm:$0xf]
    %v238 = vld [vmem:[%s1 + $0xc0] sm:$0xf]
    %v239 = vld [vmem:[%s1 + $0xc4] sm:$0xf]
    %v240 = vld [vmem:[%s1 + $0xc8] sm:$0xf]
    %v241 = vld [vmem:[%s1 + $0xcc] sm:$0xf]
    %v242 = vld [vmem:[%s1 + $0xd0] sm:$0xf]
    %v243 = vld [vmem:[%s1 + $0xd4] sm:$0xf]
    %v244 = vld [vmem:[%s1 + $0xd8] sm:$0xf]
    %v245 = vld [vmem:[%s1 + $0xdc] sm:$0xf]
    %v246 = vld [vmem:[%s1 + $0xe0] sm:$0xf]
    %v247 = vld [vmem:[%s1 + $0xe4] sm:$0xf]
    %v248 = vld [vmem:[%s1 + $0xe8] sm:$0xf]
    %v249 = vld [vmem:[%s1 + $0xec] sm:$0xf]
    %v250 = vld [vmem:[%s1 + $0xf0] sm:$0xf]
    %v251 = vld [vmem:[%s1 + $0xf4] sm:$0xf]
    %v252 = vld [vmem:[%s1 + $0xf8] sm:$0xf]
    %v253 = vld [vmem:[%s1 + $0xfc] sm:$0xf]
    %v254 = vld [vmem:[%s1 + $0x100] sm:$0xf]
    %v255 = vld [vmem:[%s1 + $0x104] sm:$0xf]
    %v256 = vld [vmem:[%s1 + $0x108] sm:$0xf]
    %v257 = vld [vmem:[%s1 + $0x10c] sm:$0xf]
    %v258 = vld [vmem:[%s1 + $0x110] sm:$0xf]
    %v259 = vld [vmem:[%s1 + $0x114] sm:$0xf]
    %v260 = vld [vmem:[%s1 + $0x118] sm:$0xf]
    %v261 = vld [vmem:[%s1 + $0x11c] sm:$0xf]
    %v262 = vld [vmem:[%s1 + $0x120] sm:$0xf]
    %v263 = vld [vmem:[%s1 + $0x124] sm:$0xf]
    %v264 = vld [vmem:[%s1 + $0x128] sm:$0xf]
    %v265 = vld [vmem:[%s1 + $0x12c] sm:$0xf]
    %v266 = vld [vmem:[%s1 + $0x130] sm:$0xf]
    %v267 = vld [vmem:[%s1 + $0x134] sm:$0xf]
    %v268 = vld [vmem:[%s1 + $0x138] sm:$0xf]
    %v269 = vld [vmem:[%s1 + $0x13c] sm:$0xf]
    %v270 = vld [vmem:[%s1 + $0x140] sm:$0xf]
    %v271 = vld [vmem:[%s1 + $0x144] sm:$0xf]
    %v272 = vld [vmem:[%s1 + $0x148] sm:$0xf]
    %v273 = vld [vmem:[%s1 + $0x14c] sm:$0xf]
    %v274 = vld [vmem:[%s1 + $0x150] sm:$0xf]
    %v275 = vld [vmem:[%s1 + $0x154] sm:$0xf]
    %v276 = vld [vmem:[%s1 + $0x158] sm:$0xf]
    %v277 = vld [vmem:[%s1 + $0x15c] sm:$0xf]
    %v278 = vld [vmem:[%s1 + $0x160] sm:$0xf]
    %v279 = vld [vmem:[%s1 + $0x164] sm:$0xf]
    %v280 = vld [vmem:[%s1 + $0x168] sm:$0xf]
    %v281 = vld [vmem:[%s1 + $0x16c] sm:$0xf]
    %v282 = vld [vmem:[%s1 + $0x170] sm:$0xf]
    %v283 = vld [vmem:[%s1 + $0x174] sm:$0xf]
    %v284 = vld [vmem:[%s1 + $0x178] sm:$0xf]
    %v285 = vld [vmem:[%s1 + $0x17c] sm:$0xf]
    %v286 = vld [vmem:[%s1 + $0x180] sm:$0xf]
    %v287 = vld [vmem:[%s1 + $0x184] sm:$0xf]
    %v288 = vld [vmem:[%s1 + $0x188] sm:$0xf]
    %v289 = vld [vmem:[%s1 + $0x18c] sm:$0xf]
    %v290 = vld [vmem:[%s1 + $0x190] sm:$0xf]
    %v291 = vld [vmem:[%s1 + $0x194] sm:$0xf]
    %v292 = vld [vmem:[%s1 + $0x198] sm:$0xf]
    %v293 = vld [vmem:[%s1 + $0x19c] sm:$0xf]
    %v294 = vld [vmem:[%s1 + $0x1a0] sm:$0xf]
    %v295 = vld [vmem:[%s1 + $0x1a4] sm:$0xf]
    %v296 = vld [vmem:[%s1 + $0x1a8] sm:$0xf]
    %v297 = vld [vmem:[%s1 + $0x1ac] sm:$0xf]
    %v298 = vld [vmem:[%s1 + $0x1b0] sm:$0xf]
    %v299 = vld [vmem:[%s1 + $0x1b4] sm:$0xf]
    %v300 = vld [vmem:[%s1 + $0x1b8] sm:$0xf]
    %v301 = vld [vmem:[%s1 + $0x1bc] sm:$0xf]
    %v302 = vld [vmem:[%s1 + $0x1c0] sm:$0xf]
    %v303 = vld [vmem:[%s1 + $0x1c4] sm:$0xf]
    %v304 = vld [vmem:[%s1 + $0x1c8] sm:$0xf]
    %v305 = vld [vmem:[%s1 + $0x1cc] sm:$0xf]
    %v306 = vld [vmem:[%s1 + $0x1d0] sm:$0xf]
    %v307 = vld [vmem:[%s1 + $0x1d4] sm:$0xf]
    %v308 = vld [vmem:[%s1 + $0x1d8] sm:$0xf]
    %v309 = vld [vmem:[%s1 + $0x1dc] sm:$0xf]
    %v310 = vld [vmem:[%s1 + $0x1e0] sm:$0xf]
    %v311 = vld [vmem:[%s1 + $0x1e4] sm:$0xf]
    %v312 = vld [vmem:[%s1 + $0x1e8] sm:$0xf]
    %v313 = vld [vmem:[%s1 + $0x1ec] sm:$0xf]
    %v314 = vld [vmem:[%s1 + $0x1f0] sm:$0xf]
    %v315 = vld [vmem:[%s1 + $0x1f4] sm:$0xf]
    %v316 = vld [vmem:[%s1 + $0x1f8] sm:$0xf]
    %v317 = vld [vmem:[%s1 + $0x1fc] sm:$0xf]
    %v318 = vld [vmem:[%s1 + $0x200] sm:$0xf]
    %v319 = vld [vmem:[%s1 + $0x204] sm:$0xf]
    %v320 = vld [vmem:[%s1 + $0x208] sm:$0xf]
    %v321 = vld [vmem:[%s1 + $0x20c] sm:$0xf]
    %v322 = vld [vmem:[%s1 + $0x210] sm:$0xf]
    %v323 = vld [vmem:[%s1 + $0x214] sm:$0xf]
    %v324 = vld [vmem:[%s1 + $0x218] sm:$0xf]
    %v325 = vld [vmem:[%s1 + $0x21c] sm:$0xf]
    %v326 = vld [vmem:[%s1 + $0x220] sm:$0xf]
    %v327 = vld [vmem:[%s1 + $0x224] sm:$0xf]
    %v328 = vld [vmem:[%s1 + $0x228] sm:$0xf]
    %v329 = vld [vmem:[%s1 + $0x22c] sm:$0xf]
    %v330 = vld [vmem:[%s1 + $0x230] sm:$0xf]
    %v331 = vld [vmem:[%s1 + $0x234] sm:$0xf]
    %v332 = vld [vmem:[%s1 + $0x238] sm:$0xf]
    %v333 = vld [vmem:[%s1 + $0x23c] sm:$0xf]
    %v334 = vld [vmem:[%s1 + $0x240] sm:$0xf]
    %v335 = vld [vmem:[%s1 + $0x244] sm:$0xf]
    %v336 = vld [vmem:[%s1 + $0x248] sm:$0xf]
    %v337 = vld [vmem:[%s1 + $0x24c] sm:$0xf]
    %v338 = vld [vmem:[%s1 + $0x250] sm:$0xf]
    %v339 = vld [vmem:[%s1 + $0x254] sm:$0xf]
    %v340 = vld [vmem:[%s1 + $0x258] sm:$0xf]
    %v341 = vld [vmem:[%s1 + $0x25c] sm:$0xf]
    %v342 = vld [vmem:[%s1 + $0x260] sm:$0xf]
    %v343 = vld [vmem:[%s1 + $0x264] sm:$0xf]
    %v344 = vld [vmem:[%s1 + $0x268] sm:$0xf]
    %v345 = vld [vmem:[%s1 + $0x26c] sm:$0xf]
    %v346 = vld [vmem:[%s1 + $0x270] sm:$0xf]
    %v347 = vld [vmem:[%s1 + $0x274] sm:$0xf]
    %v348 = vld [vmem:[%s1 + $0x278] sm:$0xf]
    %v349 = vld [vmem:[%s1 + $0x27c] sm:$0xf]
    %v350 = vld [vmem:[%s1 + $0x280] sm:$0xf]
    %v351 = vld [vmem:[%s1 + $0x284] sm:$0xf]
    %v352 = vld [vmem:[%s1 + $0x288] sm:$0xf]
    %v353 = vld [vmem:[%s1 + $0x28c] sm:$0xf]
    %v354 = vld [vmem:[%s1 + $0x290] sm:$0xf]
    %v355 = vld [vmem:[%s1 + $0x294] sm:$0xf]
    %v356 = vld [vmem:[%s1 + $0x298] sm:$0xf]
    %v357 = vld [vmem:[%s1 + $0x29c] sm:$0xf]
    %v358 = vld [vmem:[%s1 + $0x2a0] sm:$0xf]
    %v359 = vld [vmem:[%s1 + $0x2a4] sm:$0xf]
    %v360 = vld [vmem:[%s1 + $0x2a8] sm:$0xf]
    %v361 = vld [vmem:[%s1 + $0x2ac] sm:$0xf]
    %v362 = vld [vmem:[%s1 + $0x2b0] sm:$0xf]
    %v363 = vld [vmem:[%s1 + $0x2b4] sm:$0xf]
    %v364 = vld [vmem:[%s1 + $0x2b8] sm:$0xf]
    %v365 = vld [vmem:[%s1 + $0x2bc] sm:$0xf]
    %v366 = vld [vmem:[%s1 + $0x2c0] sm:$0xf]
    %v367 = vld [vmem:[%s1 + $0x2c4] sm:$0xf]
    %v368 = vld [vmem:[%s1 + $0x2c8] sm:$0xf]
    %v369 = vld [vmem:[%s1 + $0x2cc] sm:$0xf]
    %v370 = vld [vmem:[%s1 + $0x2d0] sm:$0xf]
    %v371 = vld [vmem:[%s1 + $0x2d4] sm:$0xf]
    %v372 = vld [vmem:[%s1 + $0x2d8] sm:$0xf]
    %v373 = vld [vmem:[%s1 + $0x2dc] sm:$0xf]
    %v374 = vld [vmem:[%s1 + $0x2e0] sm:$0xf]
    %v375 = vld [vmem:[%s1 + $0x2e4] sm:$0xf]
    %v376 = vld [vmem:[%s1 + $0x2e8] sm:$0xf]
    %v377 = vld [vmem:[%s1 + $0x2ec] sm:$0xf]
    %v378 = vld [vmem:[%s1 + $0x2f0] sm:$0xf]
    %v379 = vld [vmem:[%s1 + $0x2f4] sm:$0xf]
    %v380 = vld [vmem:[%s1 + $0x2f8] sm:$0xf]
    %v381 = vld [vmem:[%s1 + $0x2fc] sm:$0xf]
    %v382 = vld [vmem:[%s1 + $0x300] sm:$0xf]
    %v383 = vld [vmem:[%s1 + $0x304] sm:$0xf]
    %v384 = vld [vmem:[%s1 + $0x308] sm:$0xf]
    %v385 = vld [vmem:[%s1 + $0x30c] sm:$0xf]
    %v386 = vld [vmem:[%s1 + $0x310] sm:$0xf]
    %v387 = vld [vmem:[%s1 + $0x314] sm:$0xf]
    %v388 = vld [vmem:[%s1 + $0x318] sm:$0xf]
    %v389 = vld [vmem:[%s1 + $0x31c] sm:$0xf]
    %v390 = vld [vmem:[%s1 + $0x320] sm:$0xf]
    %v391 = vld [vmem:[%s1 + $0x324] sm:$0xf]
    %v392 = vld [vmem:[%s1 + $0x328] sm:$0xf]
    %v393 = vld [vmem:[%s1 + $0x32c] sm:$0xf]
    %v394 = vld [vmem:[%s1 + $0x330] sm:$0xf]
    %v395 = vld [vmem:[%s1 + $0x334] sm:$0xf]
    %v396 = vld [vmem:[%s1 + $0x338] sm:$0xf]
    %v397 = vld [vmem:[%s1 + $0x33c] sm:$0xf]
    %v398 = vld [vmem:[%s1 + $0x340] sm:$0xf]
    %v399 = vld [vmem:[%s1 + $0x344] sm:$0xf]
    %v400 = vld [vmem:[%s1 + $0x348] sm:$0xf]
    %v401 = vld [vmem:[%s1 + $0x34c] sm:$0xf]
    %v402 = vld [vmem:[%s1 + $0x350] sm:$0xf]
    %v403 = vld [vmem:[%s1 + $0x354] sm:$0xf]
    %v404 = vld [vmem:[%s1 + $0x358] sm:$0xf]
    %v405 = vld [vmem:[%s1 + $0x35c] sm:$0xf]
    %v406 = vld [vmem:[%s1 + $0x360] sm:$0xf]
    %v407 = vld [vmem:[%s1 + $0x364] sm:$0xf]
    %v408 = vld [vmem:[%s1 + $0x368] sm:$0xf]
    %v409 = vld [vmem:[%s1 + $0x36c] sm:$0xf]
    %v410 = vld [vmem:[%s1 + $0x370] sm:$0xf]
    %v411 = vld [vmem:[%s1 + $0x374] sm:$0xf]
    %v412 = vld [vmem:[%s1 + $0x378] sm:$0xf]
    %v413 = vld [vmem:[%s1 + $0x37c] sm:$0xf]
    %v414 = vld [vmem:[%s1 + $0x380] sm:$0xf]
    %v415 = vld [vmem:[%s1 + $0x384] sm:$0xf]
    %v416 = vld [vmem:[%s1 + $0x388] sm:$0xf]
    %v417 = vld [vmem:[%s1 + $0x38c] sm:$0xf]
    %v418 = vld [vmem:[%s1 + $0x390] sm:$0xf]
    %v419 = vld [vmem:[%s1 + $0x394] sm:$0xf]
    %v420 = vld [vmem:[%s1 + $0x398] sm:$0xf]
    %v421 = vld [vmem:[%s1 + $0x39c] sm:$0xf]
    %v422 = vld [vmem:[%s1 + $0x3a0] sm:$0xf]
    %v423 = vld [vmem:[%s1 + $0x3a4] sm:$0xf]
    %v424 = vld [vmem:[%s1 + $0x3a8] sm:$0xf]
    %v425 = vld [vmem:[%s1 + $0x3ac] sm:$0xf]
    %v426 = vld [vmem:[%s1 + $0x3b0] sm:$0xf]
    %v427 = vld [vmem:[%s1 + $0x3b4] sm:$0xf]
    %v428 = vld [vmem:[%s1 + $0x3b8] sm:$0xf]
    %v429 = vld [vmem:[%s1 + $0x3bc] sm:$0xf]
    %v430 = vld [vmem:[%s1 + $0x3c0] sm:$0xf]
    %v431 = vld [vmem:[%s1 + $0x3c4] sm:$0xf]
    %v432 = vld [vmem:[%s1 + $0x3c8] sm:$0xf]
    %v433 = vld [vmem:[%s1 + $0x3cc] sm:$0xf]
    %v434 = vld [vmem:[%s1 + $0x3d0] sm:$0xf]
    %v435 = vld [vmem:[%s1 + $0x3d4] sm:$0xf]
    %v436 = vld [vmem:[%s1 + $0x3d8] sm:$0xf]
    %v437 = vld [vmem:[%s1 + $0x3dc] sm:$0xf]
    %v438 = vld [vmem:[%s1 + $0x3e0] sm:$0xf]
    %v439 = vld [vmem:[%s1 + $0x3e4] sm:$0xf]
    %v440 = vld [vmem:[%s1 + $0x3e8] sm:$0xf]
    %v441 = vld [vmem:[%s1 + $0x3ec] sm:$0xf]
    %v442 = vld [vmem:[%s1 + $0x3f0] sm:$0xf]
    %v443 = vld [vmem:[%s1 + $0x3f4] sm:$0xf]
    %v444 = vld [vmem:[%s1 + $0x3f8] sm:$0xf]
    %v445 = vld [vmem:[%s1 + $0x3fc] sm:$0xf]
    %v446 = vld [vmem:[%s2] sm:$0x1]
    %v448 = vperm.slane %v446, 0
    %v626 = vunpack.c.l.b16 %v14
    %v627 = vunpack.c.h.b16 %v14
    %v628 = vunpack.c.l.b16 %v15
    %v629 = vunpack.c.h.b16 %v15
    %v630 = vunpack.c.l.b16 %v16
    %v631 = vunpack.c.h.b16 %v16
    %v632 = vunpack.c.l.b16 %v17
    %v633 = vunpack.c.h.b16 %v17
    %v634 = vunpack.c.l.b16 %v18
    %v635 = vunpack.c.h.b16 %v18
    %v636 = vunpack.c.l.b16 %v19
    %v637 = vunpack.c.h.b16 %v19
    %v638 = vunpack.c.l.b16 %v20
    %v639 = vunpack.c.h.b16 %v20
    %v640 = vunpack.c.l.b16 %v21
    %v641 = vunpack.c.h.b16 %v21
    %v642 = vunpack.c.l.b16 %v22
    %v643 = vunpack.c.h.b16 %v22
    %v644 = vunpack.c.l.b16 %v23
    %v645 = vunpack.c.h.b16 %v23
    %v646 = vunpack.c.l.b16 %v24
    %v647 = vunpack.c.h.b16 %v24
    %v648 = vunpack.c.l.b16 %v25
    %v649 = vunpack.c.h.b16 %v25
    %v650 = vunpack.c.l.b16 %v26
    %v651 = vunpack.c.h.b16 %v26
    %v652 = vunpack.c.l.b16 %v27
    %v653 = vunpack.c.h.b16 %v27
    %v654 = vunpack.c.l.b16 %v28
    %v655 = vunpack.c.h.b16 %v28
    %v656 = vunpack.c.l.b16 %v29
    %v657 = vunpack.c.h.b16 %v29
    %v658 = vunpack.c.l.b16 %v30
    %v659 = vunpack.c.h.b16 %v30
    %v660 = vunpack.c.l.b16 %v31
    %v661 = vunpack.c.h.b16 %v31
    %v662 = vunpack.c.l.b16 %v32
    %v663 = vunpack.c.h.b16 %v32
    %v664 = vunpack.c.l.b16 %v33
    %v665 = vunpack.c.h.b16 %v33
    %v666 = vunpack.c.l.b16 %v34
    %v667 = vunpack.c.h.b16 %v34
    %v668 = vunpack.c.l.b16 %v35
    %v669 = vunpack.c.h.b16 %v35
    %v670 = vunpack.c.l.b16 %v36
    %v671 = vunpack.c.h.b16 %v36
    %v672 = vunpack.c.l.b16 %v37
    %v673 = vunpack.c.h.b16 %v37
    %v674 = vunpack.c.l.b16 %v38
    %v675 = vunpack.c.h.b16 %v38
    %v676 = vunpack.c.l.b16 %v39
    %v677 = vunpack.c.h.b16 %v39
    %v678 = vunpack.c.l.b16 %v40
    %v679 = vunpack.c.h.b16 %v40
    %v680 = vunpack.c.l.b16 %v41
    %v681 = vunpack.c.h.b16 %v41
    %v682 = vunpack.c.l.b16 %v42
    %v683 = vunpack.c.h.b16 %v42
    %v684 = vunpack.c.l.b16 %v43
    %v685 = vunpack.c.h.b16 %v43
    %v686 = vunpack.c.l.b16 %v44
    %v687 = vunpack.c.h.b16 %v44
    %v688 = vunpack.c.l.b16 %v45
    %v689 = vunpack.c.h.b16 %v45
    %v690 = vunpack.c.l.b16 %v46
    %v691 = vunpack.c.h.b16 %v46
    %v692 = vunpack.c.l.b16 %v47
    %v693 = vunpack.c.h.b16 %v47
    %v694 = vunpack.c.l.b16 %v48
    %v695 = vunpack.c.h.b16 %v48
    %v696 = vunpack.c.l.b16 %v49
    %v697 = vunpack.c.h.b16 %v49
    %v698 = vunpack.c.l.b16 %v50
    %v699 = vunpack.c.h.b16 %v50
    %v700 = vunpack.c.l.b16 %v51
    %v701 = vunpack.c.h.b16 %v51
    %v702 = vunpack.c.l.b16 %v52
    %v703 = vunpack.c.h.b16 %v52
    %v704 = vunpack.c.l.b16 %v53
    %v705 = vunpack.c.h.b16 %v53
    %v706 = vunpack.c.l.b16 %v54
    %v707 = vunpack.c.h.b16 %v54
    %v708 = vunpack.c.l.b16 %v55
    %v709 = vunpack.c.h.b16 %v55
    %v710 = vunpack.c.l.b16 %v56
    %v711 = vunpack.c.h.b16 %v56
    %v712 = vunpack.c.l.b16 %v57
    %v713 = vunpack.c.h.b16 %v57
    %v714 = vunpack.c.l.b16 %v58
    %v715 = vunpack.c.h.b16 %v58
    %v716 = vunpack.c.l.b16 %v59
    %v717 = vunpack.c.h.b16 %v59
    %v718 = vunpack.c.l.b16 %v60
    %v719 = vunpack.c.h.b16 %v60
    %v720 = vunpack.c.l.b16 %v61
    %v721 = vunpack.c.h.b16 %v61
    %v722 = vunpack.c.l.b16 %v62
    %v723 = vunpack.c.h.b16 %v62
    %v724 = vunpack.c.l.b16 %v63
    %v725 = vunpack.c.h.b16 %v63
    %v726 = vunpack.c.l.b16 %v64
    %v727 = vunpack.c.h.b16 %v64
    %v728 = vunpack.c.l.b16 %v65
    %v729 = vunpack.c.h.b16 %v65
    %v730 = vunpack.c.l.b16 %v66
    %v731 = vunpack.c.h.b16 %v66
    %v732 = vunpack.c.l.b16 %v67
    %v733 = vunpack.c.h.b16 %v67
    %v734 = vunpack.c.l.b16 %v68
    %v735 = vunpack.c.h.b16 %v68
    %v736 = vunpack.c.l.b16 %v69
    %v737 = vunpack.c.h.b16 %v69
    %v738 = vunpack.c.l.b16 %v70
    %v739 = vunpack.c.h.b16 %v70
    %v740 = vunpack.c.l.b16 %v71
    %v741 = vunpack.c.h.b16 %v71
    %v742 = vunpack.c.l.b16 %v72
    %v743 = vunpack.c.h.b16 %v72
    %v744 = vunpack.c.l.b16 %v73
    %v745 = vunpack.c.h.b16 %v73
    %v746 = vunpack.c.l.b16 %v74
    %v747 = vunpack.c.h.b16 %v74
    %v748 = vunpack.c.l.b16 %v75
    %v749 = vunpack.c.h.b16 %v75
    %v750 = vunpack.c.l.b16 %v76
    %v751 = vunpack.c.h.b16 %v76
    %v752 = vunpack.c.l.b16 %v77
    %v753 = vunpack.c.h.b16 %v77
    %v754 = vunpack.c.l.b16 %v78
    %v755 = vunpack.c.h.b16 %v78
    %v756 = vunpack.c.l.b16 %v79
    %v757 = vunpack.c.h.b16 %v79
    %v758 = vunpack.c.l.b16 %v80
    %v759 = vunpack.c.h.b16 %v80
    %v760 = vunpack.c.l.b16 %v81
    %v761 = vunpack.c.h.b16 %v81
    %v762 = vunpack.c.l.b16 %v82
    %v763 = vunpack.c.h.b16 %v82
    %v764 = vunpack.c.l.b16 %v83
    %v765 = vunpack.c.h.b16 %v83
    %v766 = vunpack.c.l.b16 %v84
    %v767 = vunpack.c.h.b16 %v84
    %v768 = vunpack.c.l.b16 %v85
    %v769 = vunpack.c.h.b16 %v85
    %v770 = vunpack.c.l.b16 %v86
    %v771 = vunpack.c.h.b16 %v86
    %v772 = vunpack.c.l.b16 %v87
    %v773 = vunpack.c.h.b16 %v87
    %v774 = vunpack.c.l.b16 %v88
    %v775 = vunpack.c.h.b16 %v88
    %v776 = vunpack.c.l.b16 %v89
    %v777 = vunpack.c.h.b16 %v89
    %v778 = vunpack.c.l.b16 %v90
    %v779 = vunpack.c.h.b16 %v90
    %v780 = vunpack.c.l.b16 %v91
    %v781 = vunpack.c.h.b16 %v91
    %v782 = vunpack.c.l.b16 %v92
    %v783 = vunpack.c.h.b16 %v92
    %v784 = vunpack.c.l.b16 %v93
    %v785 = vunpack.c.h.b16 %v93
    %v786 = vunpack.c.l.b16 %v94
    %v787 = vunpack.c.h.b16 %v94
    %v788 = vunpack.c.l.b16 %v95
    %v789 = vunpack.c.h.b16 %v95
    %v790 = vunpack.c.l.b16 %v96
    %v791 = vunpack.c.h.b16 %v96
    %v792 = vunpack.c.l.b16 %v97
    %v793 = vunpack.c.h.b16 %v97
    %v794 = vunpack.c.l.b16 %v98
    %v795 = vunpack.c.h.b16 %v98
    %v796 = vunpack.c.l.b16 %v99
    %v797 = vunpack.c.h.b16 %v99
    %v798 = vunpack.c.l.b16 %v100
    %v799 = vunpack.c.h.b16 %v100
    %v800 = vunpack.c.l.b16 %v101
    %v801 = vunpack.c.h.b16 %v101
    %v802 = vunpack.c.l.b16 %v102
    %v803 = vunpack.c.h.b16 %v102
    %v804 = vunpack.c.l.b16 %v103
    %v805 = vunpack.c.h.b16 %v103
    %v806 = vunpack.c.l.b16 %v104
    %v807 = vunpack.c.h.b16 %v104
    %v808 = vunpack.c.l.b16 %v105
    %v809 = vunpack.c.h.b16 %v105
    %v810 = vunpack.c.l.b16 %v106
    %v811 = vunpack.c.h.b16 %v106
    %v812 = vunpack.c.l.b16 %v107
    %v813 = vunpack.c.h.b16 %v107
    %v814 = vunpack.c.l.b16 %v108
    %v815 = vunpack.c.h.b16 %v108
    %v816 = vunpack.c.l.b16 %v109
    %v817 = vunpack.c.h.b16 %v109
    %v818 = vunpack.c.l.b16 %v110
    %v819 = vunpack.c.h.b16 %v110
    %v820 = vunpack.c.l.b16 %v111
    %v821 = vunpack.c.h.b16 %v111
    %v822 = vunpack.c.l.b16 %v112
    %v823 = vunpack.c.h.b16 %v112
    %v824 = vunpack.c.l.b16 %v113
    %v825 = vunpack.c.h.b16 %v113
    %v826 = vunpack.c.l.b16 %v114
    %v827 = vunpack.c.h.b16 %v114
    %v828 = vunpack.c.l.b16 %v115
    %v829 = vunpack.c.h.b16 %v115
    %v830 = vunpack.c.l.b16 %v116
    %v831 = vunpack.c.h.b16 %v116
    %v832 = vunpack.c.l.b16 %v117
    %v833 = vunpack.c.h.b16 %v117
    %v834 = vunpack.c.l.b16 %v118
    %v835 = vunpack.c.h.b16 %v118
    %v836 = vunpack.c.l.b16 %v119
    %v837 = vunpack.c.h.b16 %v119
    %v838 = vunpack.c.l.b16 %v120
    %v839 = vunpack.c.h.b16 %v120
    %v840 = vunpack.c.l.b16 %v121
    %v841 = vunpack.c.h.b16 %v121
    %v842 = vunpack.c.l.b16 %v122
    %v843 = vunpack.c.h.b16 %v122
    %v844 = vunpack.c.l.b16 %v123
    %v845 = vunpack.c.h.b16 %v123
    %v846 = vunpack.c.l.b16 %v124
    %v847 = vunpack.c.h.b16 %v124
    %v848 = vunpack.c.l.b16 %v125
    %v849 = vunpack.c.h.b16 %v125
    %v850 = vunpack.c.l.b16 %v126
    %v851 = vunpack.c.h.b16 %v126
    %v852 = vunpack.c.l.b16 %v127
    %v853 = vunpack.c.h.b16 %v127
    %v854 = vunpack.c.l.b16 %v128
    %v855 = vunpack.c.h.b16 %v128
    %v856 = vunpack.c.l.b16 %v129
    %v857 = vunpack.c.h.b16 %v129
    %v858 = vunpack.c.l.b16 %v130
    %v859 = vunpack.c.h.b16 %v130
    %v860 = vunpack.c.l.b16 %v131
    %v861 = vunpack.c.h.b16 %v131
    %v862 = vunpack.c.l.b16 %v132
    %v863 = vunpack.c.h.b16 %v132
    %v864 = vunpack.c.l.b16 %v133
    %v865 = vunpack.c.h.b16 %v133
    %v866 = vunpack.c.l.b16 %v134
    %v867 = vunpack.c.h.b16 %v134
    %v868 = vunpack.c.l.b16 %v135
    %v869 = vunpack.c.h.b16 %v135
    %v870 = vunpack.c.l.b16 %v136
    %v871 = vunpack.c.h.b16 %v136
    %v872 = vunpack.c.l.b16 %v137
    %v873 = vunpack.c.h.b16 %v137
    %v874 = vunpack.c.l.b16 %v138
    %v875 = vunpack.c.h.b16 %v138
    %v876 = vunpack.c.l.b16 %v139
    %v877 = vunpack.c.h.b16 %v139
    %v878 = vunpack.c.l.b16 %v140
    %v879 = vunpack.c.h.b16 %v140
    %v880 = vunpack.c.l.b16 %v141
    %v881 = vunpack.c.h.b16 %v141
    %v882 = vunpack.c.l.b16 %v142
    %v883 = vunpack.c.h.b16 %v142
    %v884 = vunpack.c.l.b16 %v143
    %v885 = vunpack.c.h.b16 %v143
    %v886 = vunpack.c.l.b16 %v144
    %v887 = vunpack.c.h.b16 %v144
    %v888 = vunpack.c.l.b16 %v145
    %v889 = vunpack.c.h.b16 %v145
    %v890 = vunpack.c.l.b16 %v146
    %v891 = vunpack.c.h.b16 %v146
    %v892 = vunpack.c.l.b16 %v147
    %v893 = vunpack.c.h.b16 %v147
    %v894 = vunpack.c.l.b16 %v148
    %v895 = vunpack.c.h.b16 %v148
    %v896 = vunpack.c.l.b16 %v149
    %v897 = vunpack.c.h.b16 %v149
    %v898 = vunpack.c.l.b16 %v150
    %v899 = vunpack.c.h.b16 %v150
    %v900 = vunpack.c.l.b16 %v151
    %v901 = vunpack.c.h.b16 %v151
    %v902 = vunpack.c.l.b16 %v152
    %v903 = vunpack.c.h.b16 %v152
    %v904 = vunpack.c.l.b16 %v153
    %v905 = vunpack.c.h.b16 %v153
    %v906 = vunpack.c.l.b16 %v154
    %v907 = vunpack.c.h.b16 %v154
    %v908 = vunpack.c.l.b16 %v155
    %v909 = vunpack.c.h.b16 %v155
    %v910 = vunpack.c.l.b16 %v156
    %v911 = vunpack.c.h.b16 %v156
    %v912 = vunpack.c.l.b16 %v157
    %v913 = vunpack.c.h.b16 %v157
    %v914 = vunpack.c.l.b16 %v158
    %v915 = vunpack.c.h.b16 %v158
    %v916 = vunpack.c.l.b16 %v159
    %v917 = vunpack.c.h.b16 %v159
    %v918 = vunpack.c.l.b16 %v160
    %v919 = vunpack.c.h.b16 %v160
    %v920 = vunpack.c.l.b16 %v161
    %v921 = vunpack.c.h.b16 %v161
    %v922 = vunpack.c.l.b16 %v162
    %v923 = vunpack.c.h.b16 %v162
    %v924 = vunpack.c.l.b16 %v163
    %v925 = vunpack.c.h.b16 %v163
    %v926 = vunpack.c.l.b16 %v164
    %v927 = vunpack.c.h.b16 %v164
    %v928 = vunpack.c.l.b16 %v165
    %v929 = vunpack.c.h.b16 %v165
    %v930 = vunpack.c.l.b16 %v166
    %v931 = vunpack.c.h.b16 %v166
    %v932 = vunpack.c.l.b16 %v167
    %v933 = vunpack.c.h.b16 %v167
    %v934 = vunpack.c.l.b16 %v168
    %v935 = vunpack.c.h.b16 %v168
    %v936 = vunpack.c.l.b16 %v169
    %v937 = vunpack.c.h.b16 %v169
    %v938 = vunpack.c.l.b16 %v170
    %v939 = vunpack.c.h.b16 %v170
    %v940 = vunpack.c.l.b16 %v171
    %v941 = vunpack.c.h.b16 %v171
    %v942 = vunpack.c.l.b16 %v172
    %v943 = vunpack.c.h.b16 %v172
    %v944 = vunpack.c.l.b16 %v173
    %v945 = vunpack.c.h.b16 %v173
    %v946 = vunpack.c.l.b16 %v174
    %v947 = vunpack.c.h.b16 %v174
    %v948 = vunpack.c.l.b16 %v175
    %v949 = vunpack.c.h.b16 %v175
    %v950 = vunpack.c.l.b16 %v176
    %v951 = vunpack.c.h.b16 %v176
    %v952 = vunpack.c.l.b16 %v177
    %v953 = vunpack.c.h.b16 %v177
    %v954 = vunpack.c.l.b16 %v178
    %v955 = vunpack.c.h.b16 %v178
    %v956 = vunpack.c.l.b16 %v179
    %v957 = vunpack.c.h.b16 %v179
    %v958 = vunpack.c.l.b16 %v180
    %v959 = vunpack.c.h.b16 %v180
    %v960 = vunpack.c.l.b16 %v181
    %v961 = vunpack.c.h.b16 %v181
    %v962 = vunpack.c.l.b16 %v182
    %v963 = vunpack.c.h.b16 %v182
    %v964 = vunpack.c.l.b16 %v183
    %v965 = vunpack.c.h.b16 %v183
    %v966 = vunpack.c.l.b16 %v184
    %v967 = vunpack.c.h.b16 %v184
    %v968 = vunpack.c.l.b16 %v185
    %v969 = vunpack.c.h.b16 %v185
    %v970 = vunpack.c.l.b16 %v186
    %v971 = vunpack.c.h.b16 %v186
    %v972 = vunpack.c.l.b16 %v187
    %v973 = vunpack.c.h.b16 %v187
    %v974 = vunpack.c.l.b16 %v188
    %v975 = vunpack.c.h.b16 %v188
    %v976 = vunpack.c.l.b16 %v189
    %v977 = vunpack.c.h.b16 %v189
    %v978 = vpack.c.b16 %v642, %v626
    %v979 = vpack.c.b16 %v643, %v627
    %v980 = vpack.c.b16 %v644, %v628
    %v981 = vpack.c.b16 %v645, %v629
    %v982 = vpack.c.b16 %v646, %v630
    %v983 = vpack.c.b16 %v647, %v631
    %v984 = vpack.c.b16 %v648, %v632
    %v985 = vpack.c.b16 %v649, %v633
    %v986 = vpack.c.b16 %v650, %v634
    %v987 = vpack.c.b16 %v651, %v635
    %v988 = vpack.c.b16 %v652, %v636
    %v989 = vpack.c.b16 %v653, %v637
    %v990 = vpack.c.b16 %v654, %v638
    %v991 = vpack.c.b16 %v655, %v639
    %v992 = vpack.c.b16 %v656, %v640
    %v993 = vpack.c.b16 %v657, %v641
    %v994 = vpack.c.b16 %v674, %v658
    %v995 = vpack.c.b16 %v675, %v659
    %v996 = vpack.c.b16 %v676, %v660
    %v997 = vpack.c.b16 %v677, %v661
    %v998 = vpack.c.b16 %v678, %v662
    %v999 = vpack.c.b16 %v679, %v663
    %v1000 = vpack.c.b16 %v680, %v664
    %v1001 = vpack.c.b16 %v681, %v665
    %v1002 = vpack.c.b16 %v682, %v666
    %v1003 = vpack.c.b16 %v683, %v667
    %v1004 = vpack.c.b16 %v684, %v668
    %v1005 = vpack.c.b16 %v685, %v669
    %v1006 = vpack.c.b16 %v686, %v670
    %v1007 = vpack.c.b16 %v687, %v671
    %v1008 = vpack.c.b16 %v688, %v672
    %v1009 = vpack.c.b16 %v689, %v673
    %v1010 = vpack.c.b16 %v706, %v690
    %v1011 = vpack.c.b16 %v707, %v691
    %v1012 = vpack.c.b16 %v708, %v692
    %v1013 = vpack.c.b16 %v709, %v693
    %v1014 = vpack.c.b16 %v710, %v694
    %v1015 = vpack.c.b16 %v711, %v695
    %v1016 = vpack.c.b16 %v712, %v696
    %v1017 = vpack.c.b16 %v713, %v697
    %v1018 = vpack.c.b16 %v714, %v698
    %v1019 = vpack.c.b16 %v715, %v699
    %v1020 = vpack.c.b16 %v716, %v700
    %v1021 = vpack.c.b16 %v717, %v701
    %v1022 = vpack.c.b16 %v718, %v702
    %v1023 = vpack.c.b16 %v719, %v703
    %v1024 = vpack.c.b16 %v720, %v704
    %v1025 = vpack.c.b16 %v721, %v705
    %v1026 = vpack.c.b16 %v738, %v722
    %v1027 = vpack.c.b16 %v739, %v723
    %v1028 = vpack.c.b16 %v740, %v724
    %v1029 = vpack.c.b16 %v741, %v725
    %v1030 = vpack.c.b16 %v742, %v726
    %v1031 = vpack.c.b16 %v743, %v727
    %v1032 = vpack.c.b16 %v744, %v728
    %v1033 = vpack.c.b16 %v745, %v729
    %v1034 = vpack.c.b16 %v746, %v730
    %v1035 = vpack.c.b16 %v747, %v731
    %v1036 = vpack.c.b16 %v748, %v732
    %v1037 = vpack.c.b16 %v749, %v733
    %v1038 = vpack.c.b16 %v750, %v734
    %v1039 = vpack.c.b16 %v751, %v735
    %v1040 = vpack.c.b16 %v752, %v736
    %v1041 = vpack.c.b16 %v753, %v737
    %v1042 = vpack.c.b16 %v770, %v754
    %v1043 = vpack.c.b16 %v771, %v755
    %v1044 = vpack.c.b16 %v772, %v756
    %v1045 = vpack.c.b16 %v773, %v757
    %v1046 = vpack.c.b16 %v774, %v758
    %v1047 = vpack.c.b16 %v775, %v759
    %v1048 = vpack.c.b16 %v776, %v760
    %v1049 = vpack.c.b16 %v777, %v761
    %v1050 = vpack.c.b16 %v778, %v762
    %v1051 = vpack.c.b16 %v779, %v763
    %v1052 = vpack.c.b16 %v780, %v764
    %v1053 = vpack.c.b16 %v781, %v765
    %v1054 = vpack.c.b16 %v782, %v766
    %v1055 = vpack.c.b16 %v783, %v767
    %v1056 = vpack.c.b16 %v784, %v768
    %v1057 = vpack.c.b16 %v785, %v769
    %v1058 = vpack.c.b16 %v802, %v786
    %v1059 = vpack.c.b16 %v803, %v787
    %v1060 = vpack.c.b16 %v804, %v788
    %v1061 = vpack.c.b16 %v805, %v789
    %v1062 = vpack.c.b16 %v806, %v790
    %v1063 = vpack.c.b16 %v807, %v791
    %v1064 = vpack.c.b16 %v808, %v792
    %v1065 = vpack.c.b16 %v809, %v793
    %v1066 = vpack.c.b16 %v810, %v794
    %v1067 = vpack.c.b16 %v811, %v795
    %v1068 = vpack.c.b16 %v812, %v796
    %v1069 = vpack.c.b16 %v813, %v797
    %v1070 = vpack.c.b16 %v814, %v798
    %v1071 = vpack.c.b16 %v815, %v799
    %v1072 = vpack.c.b16 %v816, %v800
    %v1073 = vpack.c.b16 %v817, %v801
    %v1074 = vpack.c.b16 %v834, %v818
    %v1075 = vpack.c.b16 %v835, %v819
    %v1076 = vpack.c.b16 %v836, %v820
    %v1077 = vpack.c.b16 %v837, %v821
    %v1078 = vpack.c.b16 %v838, %v822
    %v1079 = vpack.c.b16 %v839, %v823
    %v1080 = vpack.c.b16 %v840, %v824
    %v1081 = vpack.c.b16 %v841, %v825
    %v1082 = vpack.c.b16 %v842, %v826
    %v1083 = vpack.c.b16 %v843, %v827
    %v1084 = vpack.c.b16 %v844, %v828
    %v1085 = vpack.c.b16 %v845, %v829
    %v1086 = vpack.c.b16 %v846, %v830
    %v1087 = vpack.c.b16 %v847, %v831
    %v1088 = vpack.c.b16 %v848, %v832
    %v1089 = vpack.c.b16 %v849, %v833
    %v1090 = vpack.c.b16 %v866, %v850
    %v1091 = vpack.c.b16 %v867, %v851
    %v1092 = vpack.c.b16 %v868, %v852
    %v1093 = vpack.c.b16 %v869, %v853
    %v1094 = vpack.c.b16 %v870, %v854
    %v1095 = vpack.c.b16 %v871, %v855
    %v1096 = vpack.c.b16 %v872, %v856
    %v1097 = vpack.c.b16 %v873, %v857
    %v1098 = vpack.c.b16 %v874, %v858
    %v1099 = vpack.c.b16 %v875, %v859
    %v1100 = vpack.c.b16 %v876, %v860
    %v1101 = vpack.c.b16 %v877, %v861
    %v1102 = vpack.c.b16 %v878, %v862
    %v1103 = vpack.c.b16 %v879, %v863
    %v1104 = vpack.c.b16 %v880, %v864
    %v1105 = vpack.c.b16 %v881, %v865
    %v1106 = vpack.c.b16 %v898, %v882
    %v1107 = vpack.c.b16 %v899, %v883
    %v1108 = vpack.c.b16 %v900, %v884
    %v1109 = vpack.c.b16 %v901, %v885
    %v1110 = vpack.c.b16 %v902, %v886
    %v1111 = vpack.c.b16 %v903, %v887
    %v1112 = vpack.c.b16 %v904, %v888
    %v1113 = vpack.c.b16 %v905, %v889
    %v1114 = vpack.c.b16 %v906, %v890
    %v1115 = vpack.c.b16 %v907, %v891
    %v1116 = vpack.c.b16 %v908, %v892
    %v1117 = vpack.c.b16 %v909, %v893
    %v1118 = vpack.c.b16 %v910, %v894
    %v1119 = vpack.c.b16 %v911, %v895
    %v1120 = vpack.c.b16 %v912, %v896
    %v1121 = vpack.c.b16 %v913, %v897
    %v1122 = vpack.c.b16 %v930, %v914
    %v1123 = vpack.c.b16 %v931, %v915
    %v1124 = vpack.c.b16 %v932, %v916
    %v1125 = vpack.c.b16 %v933, %v917
    %v1126 = vpack.c.b16 %v934, %v918
    %v1127 = vpack.c.b16 %v935, %v919
    %v1128 = vpack.c.b16 %v936, %v920
    %v1129 = vpack.c.b16 %v937, %v921
    %v1130 = vpack.c.b16 %v938, %v922
    %v1131 = vpack.c.b16 %v939, %v923
    %v1132 = vpack.c.b16 %v940, %v924
    %v1133 = vpack.c.b16 %v941, %v925
    %v1134 = vpack.c.b16 %v942, %v926
    %v1135 = vpack.c.b16 %v943, %v927
    %v1136 = vpack.c.b16 %v944, %v928
    %v1137 = vpack.c.b16 %v945, %v929
    %v1138 = vpack.c.b16 %v962, %v946
    %v1139 = vpack.c.b16 %v963, %v947
    %v1140 = vpack.c.b16 %v964, %v948
    %v1141 = vpack.c.b16 %v965, %v949
    %v1142 = vpack.c.b16 %v966, %v950
    %v1143 = vpack.c.b16 %v967, %v951
    %v1144 = vpack.c.b16 %v968, %v952
    %v1145 = vpack.c.b16 %v969, %v953
    %v1146 = vpack.c.b16 %v970, %v954
    %v1147 = vpack.c.b16 %v971, %v955
    %v1148 = vpack.c.b16 %v972, %v956
    %v1149 = vpack.c.b16 %v973, %v957
    %v1150 = vpack.c.b16 %v974, %v958
    %v1151 = vpack.c.b16 %v975, %v959
    %v1152 = vpack.c.b16 %v976, %v960
    %v1153 = vpack.c.b16 %v977, %v961
    %v1586 = vunpack.c.l.b16 %v190
    %v1587 = vunpack.c.l.b16 %v191
    %v1588 = vunpack.c.l.b16 %v192
    %v1589 = vunpack.c.l.b16 %v193
    %v1590 = vunpack.c.l.b16 %v194
    %v1591 = vunpack.c.l.b16 %v195
    %v1592 = vunpack.c.l.b16 %v196
    %v1593 = vunpack.c.l.b16 %v197
    %v1594 = vunpack.c.l.b16 %v198
    %v1595 = vunpack.c.l.b16 %v199
    %v1596 = vunpack.c.l.b16 %v200
    %v1597 = vunpack.c.l.b16 %v201
    %v1598 = vunpack.c.l.b16 %v202
    %v1599 = vunpack.c.l.b16 %v203
    %v1600 = vunpack.c.l.b16 %v204
    %v1601 = vunpack.c.l.b16 %v205
    %v1602 = vunpack.c.l.b16 %v206
    %v1603 = vunpack.c.l.b16 %v207
    %v1604 = vunpack.c.l.b16 %v208
    %v1605 = vunpack.c.l.b16 %v209
    %v1606 = vunpack.c.l.b16 %v210
    %v1607 = vunpack.c.l.b16 %v211
    %v1608 = vunpack.c.l.b16 %v212
    %v1609 = vunpack.c.l.b16 %v213
    %v1610 = vunpack.c.l.b16 %v214
    %v1611 = vunpack.c.l.b16 %v215
    %v1612 = vunpack.c.l.b16 %v216
    %v1613 = vunpack.c.l.b16 %v217
    %v1614 = vunpack.c.l.b16 %v218
    %v1615 = vunpack.c.l.b16 %v219
    %v1616 = vunpack.c.l.b16 %v220
    %v1617 = vunpack.c.l.b16 %v221
    %v1618 = vunpack.c.l.b16 %v222
    %v1619 = vunpack.c.l.b16 %v223
    %v1620 = vunpack.c.l.b16 %v224
    %v1621 = vunpack.c.l.b16 %v225
    %v1622 = vunpack.c.l.b16 %v226
    %v1623 = vunpack.c.l.b16 %v227
    %v1624 = vunpack.c.l.b16 %v228
    %v1625 = vunpack.c.l.b16 %v229
    %v1626 = vunpack.c.l.b16 %v230
    %v1627 = vunpack.c.l.b16 %v231
    %v1628 = vunpack.c.l.b16 %v232
    %v1629 = vunpack.c.l.b16 %v233
    %v1630 = vunpack.c.l.b16 %v234
    %v1631 = vunpack.c.l.b16 %v235
    %v1632 = vunpack.c.l.b16 %v236
    %v1633 = vunpack.c.l.b16 %v237
    %v1634 = vunpack.c.l.b16 %v238
    %v1635 = vunpack.c.l.b16 %v239
    %v1636 = vunpack.c.l.b16 %v240
    %v1637 = vunpack.c.l.b16 %v241
    %v1638 = vunpack.c.l.b16 %v242
    %v1639 = vunpack.c.l.b16 %v243
    %v1640 = vunpack.c.l.b16 %v244
    %v1641 = vunpack.c.l.b16 %v245
    %v1642 = vunpack.c.l.b16 %v246
    %v1643 = vunpack.c.l.b16 %v247
    %v1644 = vunpack.c.l.b16 %v248
    %v1645 = vunpack.c.l.b16 %v249
    %v1646 = vunpack.c.l.b16 %v250
    %v1647 = vunpack.c.l.b16 %v251
    %v1648 = vunpack.c.l.b16 %v252
    %v1649 = vunpack.c.l.b16 %v253
    %v1650 = vunpack.c.l.b16 %v254
    %v1651 = vunpack.c.l.b16 %v255
    %v1652 = vunpack.c.l.b16 %v256
    %v1653 = vunpack.c.l.b16 %v257
    %v1654 = vunpack.c.l.b16 %v258
    %v1655 = vunpack.c.l.b16 %v259
    %v1656 = vunpack.c.l.b16 %v260
    %v1657 = vunpack.c.l.b16 %v261
    %v1658 = vunpack.c.l.b16 %v262
    %v1659 = vunpack.c.l.b16 %v263
    %v1660 = vunpack.c.l.b16 %v264
    %v1661 = vunpack.c.l.b16 %v265
    %v1662 = vunpack.c.l.b16 %v266
    %v1663 = vunpack.c.l.b16 %v267
    %v1664 = vunpack.c.l.b16 %v268
    %v1665 = vunpack.c.l.b16 %v269
    %v1666 = vunpack.c.l.b16 %v270
    %v1667 = vunpack.c.l.b16 %v271
    %v1668 = vunpack.c.l.b16 %v272
    %v1669 = vunpack.c.l.b16 %v273
    %v1670 = vunpack.c.l.b16 %v274
    %v1671 = vunpack.c.l.b16 %v275
    %v1672 = vunpack.c.l.b16 %v276
    %v1673 = vunpack.c.l.b16 %v277
    %v1674 = vunpack.c.l.b16 %v278
    %v1675 = vunpack.c.l.b16 %v279
    %v1676 = vunpack.c.l.b16 %v280
    %v1677 = vunpack.c.l.b16 %v281
    %v1678 = vunpack.c.l.b16 %v282
    %v1679 = vunpack.c.l.b16 %v283
    %v1680 = vunpack.c.l.b16 %v284
    %v1681 = vunpack.c.l.b16 %v285
    %v1682 = vunpack.c.l.b16 %v286
    %v1683 = vunpack.c.l.b16 %v287
    %v1684 = vunpack.c.l.b16 %v288
    %v1685 = vunpack.c.l.b16 %v289
    %v1686 = vunpack.c.l.b16 %v290
    %v1687 = vunpack.c.l.b16 %v291
    %v1688 = vunpack.c.l.b16 %v292
    %v1689 = vunpack.c.l.b16 %v293
    %v1690 = vunpack.c.l.b16 %v294
    %v1691 = vunpack.c.l.b16 %v295
    %v1692 = vunpack.c.l.b16 %v296
    %v1693 = vunpack.c.l.b16 %v297
    %v1694 = vunpack.c.l.b16 %v298
    %v1695 = vunpack.c.l.b16 %v299
    %v1696 = vunpack.c.l.b16 %v300
    %v1697 = vunpack.c.l.b16 %v301
    %v1698 = vunpack.c.l.b16 %v302
    %v1699 = vunpack.c.l.b16 %v303
    %v1700 = vunpack.c.l.b16 %v304
    %v1701 = vunpack.c.l.b16 %v305
    %v1702 = vunpack.c.l.b16 %v306
    %v1703 = vunpack.c.l.b16 %v307
    %v1704 = vunpack.c.l.b16 %v308
    %v1705 = vunpack.c.l.b16 %v309
    %v1706 = vunpack.c.l.b16 %v310
    %v1707 = vunpack.c.l.b16 %v311
    %v1708 = vunpack.c.l.b16 %v312
    %v1709 = vunpack.c.l.b16 %v313
    %v1710 = vunpack.c.l.b16 %v314
    %v1711 = vunpack.c.l.b16 %v315
    %v1712 = vunpack.c.l.b16 %v316
    %v1713 = vunpack.c.l.b16 %v317
    %v1714 = vunpack.c.l.b16 %v318
    %v1715 = vunpack.c.l.b16 %v319
    %v1716 = vunpack.c.l.b16 %v320
    %v1717 = vunpack.c.l.b16 %v321
    %v1718 = vunpack.c.l.b16 %v322
    %v1719 = vunpack.c.l.b16 %v323
    %v1720 = vunpack.c.l.b16 %v324
    %v1721 = vunpack.c.l.b16 %v325
    %v1722 = vunpack.c.l.b16 %v326
    %v1723 = vunpack.c.l.b16 %v327
    %v1724 = vunpack.c.l.b16 %v328
    %v1725 = vunpack.c.l.b16 %v329
    %v1726 = vunpack.c.l.b16 %v330
    %v1727 = vunpack.c.l.b16 %v331
    %v1728 = vunpack.c.l.b16 %v332
    %v1729 = vunpack.c.l.b16 %v333
    %v1730 = vunpack.c.l.b16 %v334
    %v1731 = vunpack.c.l.b16 %v335
    %v1732 = vunpack.c.l.b16 %v336
    %v1733 = vunpack.c.l.b16 %v337
    %v1734 = vunpack.c.l.b16 %v338
    %v1735 = vunpack.c.l.b16 %v339
    %v1736 = vunpack.c.l.b16 %v340
    %v1737 = vunpack.c.l.b16 %v341
    %v1738 = vunpack.c.l.b16 %v342
    %v1739 = vunpack.c.l.b16 %v343
    %v1740 = vunpack.c.l.b16 %v344
    %v1741 = vunpack.c.l.b16 %v345
    %v1742 = vunpack.c.l.b16 %v346
    %v1743 = vunpack.c.l.b16 %v347
    %v1744 = vunpack.c.l.b16 %v348
    %v1745 = vunpack.c.l.b16 %v349
    %v1746 = vunpack.c.l.b16 %v350
    %v1747 = vunpack.c.l.b16 %v351
    %v1748 = vunpack.c.l.b16 %v352
    %v1749 = vunpack.c.l.b16 %v353
    %v1750 = vunpack.c.l.b16 %v354
    %v1751 = vunpack.c.l.b16 %v355
    %v1752 = vunpack.c.l.b16 %v356
    %v1753 = vunpack.c.l.b16 %v357
    %v1754 = vunpack.c.l.b16 %v358
    %v1755 = vunpack.c.l.b16 %v359
    %v1756 = vunpack.c.l.b16 %v360
    %v1757 = vunpack.c.l.b16 %v361
    %v1758 = vunpack.c.l.b16 %v362
    %v1759 = vunpack.c.l.b16 %v363
    %v1760 = vunpack.c.l.b16 %v364
    %v1761 = vunpack.c.l.b16 %v365
    %v1762 = vunpack.c.l.b16 %v366
    %v1763 = vunpack.c.l.b16 %v367
    %v1764 = vunpack.c.l.b16 %v368
    %v1765 = vunpack.c.l.b16 %v369
    %v1766 = vunpack.c.l.b16 %v370
    %v1767 = vunpack.c.l.b16 %v371
    %v1768 = vunpack.c.l.b16 %v372
    %v1769 = vunpack.c.l.b16 %v373
    %v1770 = vunpack.c.l.b16 %v374
    %v1771 = vunpack.c.l.b16 %v375
    %v1772 = vunpack.c.l.b16 %v376
    %v1773 = vunpack.c.l.b16 %v377
    %v1774 = vunpack.c.l.b16 %v378
    %v1775 = vunpack.c.l.b16 %v379
    %v1776 = vunpack.c.l.b16 %v380
    %v1777 = vunpack.c.l.b16 %v381
    %v1778 = vunpack.c.l.b16 %v382
    %v1779 = vunpack.c.l.b16 %v383
    %v1780 = vunpack.c.l.b16 %v384
    %v1781 = vunpack.c.l.b16 %v385
    %v1782 = vunpack.c.l.b16 %v386
    %v1783 = vunpack.c.l.b16 %v387
    %v1784 = vunpack.c.l.b16 %v388
    %v1785 = vunpack.c.l.b16 %v389
    %v1786 = vunpack.c.l.b16 %v390
    %v1787 = vunpack.c.l.b16 %v391
    %v1788 = vunpack.c.l.b16 %v392
    %v1789 = vunpack.c.l.b16 %v393
    %v1790 = vunpack.c.l.b16 %v394
    %v1791 = vunpack.c.l.b16 %v395
    %v1792 = vunpack.c.l.b16 %v396
    %v1793 = vunpack.c.l.b16 %v397
    %v1794 = vunpack.c.l.b16 %v398
    %v1795 = vunpack.c.l.b16 %v399
    %v1796 = vunpack.c.l.b16 %v400
    %v1797 = vunpack.c.l.b16 %v401
    %v1798 = vunpack.c.l.b16 %v402
    %v1799 = vunpack.c.l.b16 %v403
    %v1800 = vunpack.c.l.b16 %v404
    %v1801 = vunpack.c.l.b16 %v405
    %v1802 = vunpack.c.l.b16 %v406
    %v1803 = vunpack.c.l.b16 %v407
    %v1804 = vunpack.c.l.b16 %v408
    %v1805 = vunpack.c.l.b16 %v409
    %v1806 = vunpack.c.l.b16 %v410
    %v1807 = vunpack.c.l.b16 %v411
    %v1808 = vunpack.c.l.b16 %v412
    %v1809 = vunpack.c.l.b16 %v413
    %v1810 = vunpack.c.l.b16 %v414
    %v1811 = vunpack.c.l.b16 %v415
    %v1812 = vunpack.c.l.b16 %v416
    %v1813 = vunpack.c.l.b16 %v417
    %v1814 = vunpack.c.l.b16 %v418
    %v1815 = vunpack.c.l.b16 %v419
    %v1816 = vunpack.c.l.b16 %v420
    %v1817 = vunpack.c.l.b16 %v421
    %v1818 = vunpack.c.l.b16 %v422
    %v1819 = vunpack.c.l.b16 %v423
    %v1820 = vunpack.c.l.b16 %v424
    %v1821 = vunpack.c.l.b16 %v425
    %v1822 = vunpack.c.l.b16 %v426
    %v1823 = vunpack.c.l.b16 %v427
    %v1824 = vunpack.c.l.b16 %v428
    %v1825 = vunpack.c.l.b16 %v429
    %v1826 = vunpack.c.l.b16 %v430
    %v1827 = vunpack.c.l.b16 %v431
    %v1828 = vunpack.c.l.b16 %v432
    %v1829 = vunpack.c.l.b16 %v433
    %v1830 = vunpack.c.l.b16 %v434
    %v1831 = vunpack.c.l.b16 %v435
    %v1832 = vunpack.c.l.b16 %v436
    %v1833 = vunpack.c.l.b16 %v437
    %v1834 = vunpack.c.l.b16 %v438
    %v1835 = vunpack.c.l.b16 %v439
    %v1836 = vunpack.c.l.b16 %v440
    %v1837 = vunpack.c.l.b16 %v441
    %v1838 = vunpack.c.l.b16 %v442
    %v1839 = vunpack.c.l.b16 %v443
    %v1840 = vunpack.c.l.b16 %v444
    %v1841 = vunpack.c.l.b16 %v445
    %v1842 = vpack.c.b16 %v1587, %v1586
    %v1843 = vpack.c.b16 %v1589, %v1588
    %v1844 = vpack.c.b16 %v1591, %v1590
    %v1845 = vpack.c.b16 %v1593, %v1592
    %v1846 = vpack.c.b16 %v1595, %v1594
    %v1847 = vpack.c.b16 %v1597, %v1596
    %v1848 = vpack.c.b16 %v1599, %v1598
    %v1849 = vpack.c.b16 %v1601, %v1600
    %v1850 = vpack.c.b16 %v1603, %v1602
    %v1851 = vpack.c.b16 %v1605, %v1604
    %v1852 = vpack.c.b16 %v1607, %v1606
    %v1853 = vpack.c.b16 %v1609, %v1608
    %v1854 = vpack.c.b16 %v1611, %v1610
    %v1855 = vpack.c.b16 %v1613, %v1612
    %v1856 = vpack.c.b16 %v1615, %v1614
    %v1857 = vpack.c.b16 %v1617, %v1616
    %v1858 = vpack.c.b16 %v1619, %v1618
    %v1859 = vpack.c.b16 %v1621, %v1620
    %v1860 = vpack.c.b16 %v1623, %v1622
    %v1861 = vpack.c.b16 %v1625, %v1624
    %v1862 = vpack.c.b16 %v1627, %v1626
    %v1863 = vpack.c.b16 %v1629, %v1628
    %v1864 = vpack.c.b16 %v1631, %v1630
    %v1865 = vpack.c.b16 %v1633, %v1632
    %v1866 = vpack.c.b16 %v1635, %v1634
    %v1867 = vpack.c.b16 %v1637, %v1636
    %v1868 = vpack.c.b16 %v1639, %v1638
    %v1869 = vpack.c.b16 %v1641, %v1640
    %v1870 = vpack.c.b16 %v1643, %v1642
    %v1871 = vpack.c.b16 %v1645, %v1644
    %v1872 = vpack.c.b16 %v1647, %v1646
    %v1873 = vpack.c.b16 %v1649, %v1648
    %v1874 = vpack.c.b16 %v1651, %v1650
    %v1875 = vpack.c.b16 %v1653, %v1652
    %v1876 = vpack.c.b16 %v1655, %v1654
    %v1877 = vpack.c.b16 %v1657, %v1656
    %v1878 = vpack.c.b16 %v1659, %v1658
    %v1879 = vpack.c.b16 %v1661, %v1660
    %v1880 = vpack.c.b16 %v1663, %v1662
    %v1881 = vpack.c.b16 %v1665, %v1664
    %v1882 = vpack.c.b16 %v1667, %v1666
    %v1883 = vpack.c.b16 %v1669, %v1668
    %v1884 = vpack.c.b16 %v1671, %v1670
    %v1885 = vpack.c.b16 %v1673, %v1672
    %v1886 = vpack.c.b16 %v1675, %v1674
    %v1887 = vpack.c.b16 %v1677, %v1676
    %v1888 = vpack.c.b16 %v1679, %v1678
    %v1889 = vpack.c.b16 %v1681, %v1680
    %v1890 = vpack.c.b16 %v1683, %v1682
    %v1891 = vpack.c.b16 %v1685, %v1684
    %v1892 = vpack.c.b16 %v1687, %v1686
    %v1893 = vpack.c.b16 %v1689, %v1688
    %v1894 = vpack.c.b16 %v1691, %v1690
    %v1895 = vpack.c.b16 %v1693, %v1692
    %v1896 = vpack.c.b16 %v1695, %v1694
    %v1897 = vpack.c.b16 %v1697, %v1696
    %v1898 = vpack.c.b16 %v1699, %v1698
    %v1899 = vpack.c.b16 %v1701, %v1700
    %v1900 = vpack.c.b16 %v1703, %v1702
    %v1901 = vpack.c.b16 %v1705, %v1704
    %v1902 = vpack.c.b16 %v1707, %v1706
    %v1903 = vpack.c.b16 %v1709, %v1708
    %v1904 = vpack.c.b16 %v1711, %v1710
    %v1905 = vpack.c.b16 %v1713, %v1712
    %v1906 = vpack.c.b16 %v1715, %v1714
    %v1907 = vpack.c.b16 %v1717, %v1716
    %v1908 = vpack.c.b16 %v1719, %v1718
    %v1909 = vpack.c.b16 %v1721, %v1720
    %v1910 = vpack.c.b16 %v1723, %v1722
    %v1911 = vpack.c.b16 %v1725, %v1724
    %v1912 = vpack.c.b16 %v1727, %v1726
    %v1913 = vpack.c.b16 %v1729, %v1728
    %v1914 = vpack.c.b16 %v1731, %v1730
    %v1915 = vpack.c.b16 %v1733, %v1732
    %v1916 = vpack.c.b16 %v1735, %v1734
    %v1917 = vpack.c.b16 %v1737, %v1736
    %v1918 = vpack.c.b16 %v1739, %v1738
    %v1919 = vpack.c.b16 %v1741, %v1740
    %v1920 = vpack.c.b16 %v1743, %v1742
    %v1921 = vpack.c.b16 %v1745, %v1744
    %v1922 = vpack.c.b16 %v1747, %v1746
    %v1923 = vpack.c.b16 %v1749, %v1748
    %v1924 = vpack.c.b16 %v1751, %v1750
    %v1925 = vpack.c.b16 %v1753, %v1752
    %v1926 = vpack.c.b16 %v1755, %v1754
    %v1927 = vpack.c.b16 %v1757, %v1756
    %v1928 = vpack.c.b16 %v1759, %v1758
    %v1929 = vpack.c.b16 %v1761, %v1760
    %v1930 = vpack.c.b16 %v1763, %v1762
    %v1931 = vpack.c.b16 %v1765, %v1764
    %v1932 = vpack.c.b16 %v1767, %v1766
    %v1933 = vpack.c.b16 %v1769, %v1768
    %v1934 = vpack.c.b16 %v1771, %v1770
    %v1935 = vpack.c.b16 %v1773, %v1772
    %v1936 = vpack.c.b16 %v1775, %v1774
    %v1937 = vpack.c.b16 %v1777, %v1776
    %v1938 = vpack.c.b16 %v1779, %v1778
    %v1939 = vpack.c.b16 %v1781, %v1780
    %v1940 = vpack.c.b16 %v1783, %v1782
    %v1941 = vpack.c.b16 %v1785, %v1784
    %v1942 = vpack.c.b16 %v1787, %v1786
    %v1943 = vpack.c.b16 %v1789, %v1788
    %v1944 = vpack.c.b16 %v1791, %v1790
    %v1945 = vpack.c.b16 %v1793, %v1792
    %v1946 = vpack.c.b16 %v1795, %v1794
    %v1947 = vpack.c.b16 %v1797, %v1796
    %v1948 = vpack.c.b16 %v1799, %v1798
    %v1949 = vpack.c.b16 %v1801, %v1800
    %v1950 = vpack.c.b16 %v1803, %v1802
    %v1951 = vpack.c.b16 %v1805, %v1804
    %v1952 = vpack.c.b16 %v1807, %v1806
    %v1953 = vpack.c.b16 %v1809, %v1808
    %v1954 = vpack.c.b16 %v1811, %v1810
    %v1955 = vpack.c.b16 %v1813, %v1812
    %v1956 = vpack.c.b16 %v1815, %v1814
    %v1957 = vpack.c.b16 %v1817, %v1816
    %v1958 = vpack.c.b16 %v1819, %v1818
    %v1959 = vpack.c.b16 %v1821, %v1820
    %v1960 = vpack.c.b16 %v1823, %v1822
    %v1961 = vpack.c.b16 %v1825, %v1824
    %v1962 = vpack.c.b16 %v1827, %v1826
    %v1963 = vpack.c.b16 %v1829, %v1828
    %v1964 = vpack.c.b16 %v1831, %v1830
    %v1965 = vpack.c.b16 %v1833, %v1832
    %v1966 = vpack.c.b16 %v1835, %v1834
    %v1967 = vpack.c.b16 %v1837, %v1836
    %v1968 = vpack.c.b16 %v1839, %v1838
    %v1969 = vpack.c.b16 %v1841, %v1840
    %2098 = vmatpush.bf16.msra.mxu0 %v1849
    %2099 = vmatpush.bf16.msra.mxu0 %v1848
    %2100 = vmatpush.bf16.msra.mxu0 %v1847
    %2101 = vmatpush.bf16.msra.mxu0 %v1846
    %2102 = vmatpush.bf16.msra.mxu0 %v1845
    %2103 = vmatpush.bf16.msra.mxu0 %v1844
    %2104 = vmatpush.bf16.msra.mxu0 %v1843
    %2105 = vmatpush.bf16.msra.mxu0 %v1842
    %2106 = vmatmul.bf16.gmra.mxu0 %v978
    %v2107 = vpop.f32.mrf.mxu0
    %v2108 = vadd.f32 %v448, %v2107
    %v2109 = vpop.f32.mrf.mxu0
    %v2110 = vadd.f32 %v448, %v2109
    %2111 = vmatmul.bf16.gmra.mxu0 %v994
    %v2112 = vpop.f32.mrf.mxu0
    %v2113 = vadd.f32 %v448, %v2112
    %v2114 = vpop.f32.mrf.mxu0
    %v2115 = vadd.f32 %v448, %v2114
    %2116 = vmatmul.bf16.gmra.mxu0 %v1010
    %v2117 = vpop.f32.mrf.mxu0
    %v2118 = vadd.f32 %v448, %v2117
    %v2119 = vpop.f32.mrf.mxu0
    %v2120 = vadd.f32 %v448, %v2119
    %2121 = vmatmul.bf16.gmra.mxu0 %v1026
    %v2122 = vpop.f32.mrf.mxu0
    %v2123 = vadd.f32 %v448, %v2122
    %v2124 = vpop.f32.mrf.mxu0
    %v2125 = vadd.f32 %v448, %v2124
    %2126 = vmatmul.bf16.gmra.mxu0 %v1042
    %v2127 = vpop.f32.mrf.mxu0
    %v2128 = vadd.f32 %v448, %v2127
    %v2129 = vpop.f32.mrf.mxu0
    %v2130 = vadd.f32 %v448, %v2129
    %2131 = vmatmul.bf16.gmra.mxu0 %v1058
    %v2132 = vpop.f32.mrf.mxu0
    %v2133 = vadd.f32 %v448, %v2132
    %v2134 = vpop.f32.mrf.mxu0
    %v2135 = vadd.f32 %v448, %v2134
    %2136 = vmatmul.bf16.gmra.mxu0 %v1074
    %v2137 = vpop.f32.mrf.mxu0
    %v2138 = vadd.f32 %v448, %v2137
    %v2139 = vpop.f32.mrf.mxu0
    %v2140 = vadd.f32 %v448, %v2139
    %2141 = vmatmul.bf16.gmra.mxu0 %v1090
    %v2142 = vpop.f32.mrf.mxu0
    %v2143 = vadd.f32 %v448, %v2142
    %v2144 = vpop.f32.mrf.mxu0
    %v2145 = vadd.f32 %v448, %v2144
    %2146 = vmatmul.bf16.gmra.mxu0 %v1106
    %v2147 = vpop.f32.mrf.mxu0
    %v2148 = vadd.f32 %v448, %v2147
    %v2149 = vpop.f32.mrf.mxu0
    %v2150 = vadd.f32 %v448, %v2149
    %2151 = vmatmul.bf16.gmra.mxu0 %v1122
    %v2152 = vpop.f32.mrf.mxu0
    %v2153 = vadd.f32 %v448, %v2152
    %v2154 = vpop.f32.mrf.mxu0
    %v2155 = vadd.f32 %v448, %v2154
    %2156 = vmatmul.bf16.gmra.mxu0 %v1138
    %v2157 = vpop.f32.mrf.mxu0
    %v2158 = vadd.f32 %v448, %v2157
    %v2159 = vpop.f32.mrf.mxu0
    %v2160 = vadd.f32 %v448, %v2159
    %2161 = vdwg.mxu0
    %2162 = vmatpush.bf16.msra.mxu0 %v1857
    %2163 = vmatpush.bf16.msra.mxu0 %v1856
    %2164 = vmatpush.bf16.msra.mxu0 %v1855
    %2165 = vmatpush.bf16.msra.mxu0 %v1854
    %2166 = vmatpush.bf16.msra.mxu0 %v1853
    %2167 = vmatpush.bf16.msra.mxu0 %v1852
    %2168 = vmatpush.bf16.msra.mxu0 %v1851
    %2169 = vmatpush.bf16.msra.mxu0 %v1850
    %2170 = vmatmul.bf16.gmra.mxu0 %v979
    %v2171 = vpop.f32.mrf.mxu0
    %v2172 = vadd.f32 %v2108, %v2171
    %v2173 = vpop.f32.mrf.mxu0
    %v2174 = vadd.f32 %v2110, %v2173
    %2175 = vmatmul.bf16.gmra.mxu0 %v995
    %v2176 = vpop.f32.mrf.mxu0
    %v2177 = vadd.f32 %v2113, %v2176
    %v2178 = vpop.f32.mrf.mxu0
    %v2179 = vadd.f32 %v2115, %v2178
    %2180 = vmatmul.bf16.gmra.mxu0 %v1011
    %v2181 = vpop.f32.mrf.mxu0
    %v2182 = vadd.f32 %v2118, %v2181
    %v2183 = vpop.f32.mrf.mxu0
    %v2184 = vadd.f32 %v2120, %v2183
    %2185 = vmatmul.bf16.gmra.mxu0 %v1027
    %v2186 = vpop.f32.mrf.mxu0
    %v2187 = vadd.f32 %v2123, %v2186
    %v2188 = vpop.f32.mrf.mxu0
    %v2189 = vadd.f32 %v2125, %v2188
    %2190 = vmatmul.bf16.gmra.mxu0 %v1043
    %v2191 = vpop.f32.mrf.mxu0
    %v2192 = vadd.f32 %v2128, %v2191
    %v2193 = vpop.f32.mrf.mxu0
    %v2194 = vadd.f32 %v2130, %v2193
    %2195 = vmatmul.bf16.gmra.mxu0 %v1059
    %v2196 = vpop.f32.mrf.mxu0
    %v2197 = vadd.f32 %v2133, %v2196
    %v2198 = vpop.f32.mrf.mxu0
    %v2199 = vadd.f32 %v2135, %v2198
    %2200 = vmatmul.bf16.gmra.mxu0 %v1075
    %v2201 = vpop.f32.mrf.mxu0
    %v2202 = vadd.f32 %v2138, %v2201
    %v2203 = vpop.f32.mrf.mxu0
    %v2204 = vadd.f32 %v2140, %v2203
    %2205 = vmatmul.bf16.gmra.mxu0 %v1091
    %v2206 = vpop.f32.mrf.mxu0
    %v2207 = vadd.f32 %v2143, %v2206
    %v2208 = vpop.f32.mrf.mxu0
    %v2209 = vadd.f32 %v2145, %v2208
    %2210 = vmatmul.bf16.gmra.mxu0 %v1107
    %v2211 = vpop.f32.mrf.mxu0
    %v2212 = vadd.f32 %v2148, %v2211
    %v2213 = vpop.f32.mrf.mxu0
    %v2214 = vadd.f32 %v2150, %v2213
    %2215 = vmatmul.bf16.gmra.mxu0 %v1123
    %v2216 = vpop.f32.mrf.mxu0
    %v2217 = vadd.f32 %v2153, %v2216
    %v2218 = vpop.f32.mrf.mxu0
    %v2219 = vadd.f32 %v2155, %v2218
    %2220 = vmatmul.bf16.gmra.mxu0 %v1139
    %v2221 = vpop.f32.mrf.mxu0
    %v2222 = vadd.f32 %v2158, %v2221
    %v2223 = vpop.f32.mrf.mxu0
    %v2224 = vadd.f32 %v2160, %v2223
    %2225 = vdwg.mxu0
    %2226 = vmatpush.bf16.msra.mxu0 %v1865
    %2227 = vmatpush.bf16.msra.mxu0 %v1864
    %2228 = vmatpush.bf16.msra.mxu0 %v1863
    %2229 = vmatpush.bf16.msra.mxu0 %v1862
    %2230 = vmatpush.bf16.msra.mxu0 %v1861
    %2231 = vmatpush.bf16.msra.mxu0 %v1860
    %2232 = vmatpush.bf16.msra.mxu0 %v1859
    %2233 = vmatpush.bf16.msra.mxu0 %v1858
    %2234 = vmatmul.bf16.gmra.mxu0 %v980
    %v2235 = vpop.f32.mrf.mxu0
    %v2236 = vadd.f32 %v2172, %v2235
    %v2237 = vpop.f32.mrf.mxu0
    %v2238 = vadd.f32 %v2174, %v2237
    %2239 = vmatmul.bf16.gmra.mxu0 %v996
    %v2240 = vpop.f32.mrf.mxu0
    %v2241 = vadd.f32 %v2177, %v2240
    %v2242 = vpop.f32.mrf.mxu0
    %v2243 = vadd.f32 %v2179, %v2242
    %2244 = vmatmul.bf16.gmra.mxu0 %v1012
    %v2245 = vpop.f32.mrf.mxu0
    %v2246 = vadd.f32 %v2182, %v2245
    %v2247 = vpop.f32.mrf.mxu0
    %v2248 = vadd.f32 %v2184, %v2247
    %2249 = vmatmul.bf16.gmra.mxu0 %v1028
    %v2250 = vpop.f32.mrf.mxu0
    %v2251 = vadd.f32 %v2187, %v2250
    %v2252 = vpop.f32.mrf.mxu0
    %v2253 = vadd.f32 %v2189, %v2252
    %2254 = vmatmul.bf16.gmra.mxu0 %v1044
    %v2255 = vpop.f32.mrf.mxu0
    %v2256 = vadd.f32 %v2192, %v2255
    %v2257 = vpop.f32.mrf.mxu0
    %v2258 = vadd.f32 %v2194, %v2257
    %2259 = vmatmul.bf16.gmra.mxu0 %v1060
    %v2260 = vpop.f32.mrf.mxu0
    %v2261 = vadd.f32 %v2197, %v2260
    %v2262 = vpop.f32.mrf.mxu0
    %v2263 = vadd.f32 %v2199, %v2262
    %2264 = vmatmul.bf16.gmra.mxu0 %v1076
    %v2265 = vpop.f32.mrf.mxu0
    %v2266 = vadd.f32 %v2202, %v2265
    %v2267 = vpop.f32.mrf.mxu0
    %v2268 = vadd.f32 %v2204, %v2267
    %2269 = vmatmul.bf16.gmra.mxu0 %v1092
    %v2270 = vpop.f32.mrf.mxu0
    %v2271 = vadd.f32 %v2207, %v2270
    %v2272 = vpop.f32.mrf.mxu0
    %v2273 = vadd.f32 %v2209, %v2272
    %2274 = vmatmul.bf16.gmra.mxu0 %v1108
    %v2275 = vpop.f32.mrf.mxu0
    %v2276 = vadd.f32 %v2212, %v2275
    %v2277 = vpop.f32.mrf.mxu0
    %v2278 = vadd.f32 %v2214, %v2277
    %2279 = vmatmul.bf16.gmra.mxu0 %v1124
    %v2280 = vpop.f32.mrf.mxu0
    %v2281 = vadd.f32 %v2217, %v2280
    %v2282 = vpop.f32.mrf.mxu0
    %v2283 = vadd.f32 %v2219, %v2282
    %2284 = vmatmul.bf16.gmra.mxu0 %v1140
    %v2285 = vpop.f32.mrf.mxu0
    %v2286 = vadd.f32 %v2222, %v2285
    %v2287 = vpop.f32.mrf.mxu0
    %v2288 = vadd.f32 %v2224, %v2287
    %2289 = vdwg.mxu0
    %2290 = vmatpush.bf16.msra.mxu0 %v1873
    %2291 = vmatpush.bf16.msra.mxu0 %v1872
    %2292 = vmatpush.bf16.msra.mxu0 %v1871
    %2293 = vmatpush.bf16.msra.mxu0 %v1870
    %2294 = vmatpush.bf16.msra.mxu0 %v1869
    %2295 = vmatpush.bf16.msra.mxu0 %v1868
    %2296 = vmatpush.bf16.msra.mxu0 %v1867
    %2297 = vmatpush.bf16.msra.mxu0 %v1866
    %2298 = vmatmul.bf16.gmra.mxu0 %v981
    %v2299 = vpop.f32.mrf.mxu0
    %v2300 = vadd.f32 %v2236, %v2299
    %v2301 = vpop.f32.mrf.mxu0
    %v2302 = vadd.f32 %v2238, %v2301
    %2303 = vmatmul.bf16.gmra.mxu0 %v997
    %v2304 = vpop.f32.mrf.mxu0
    %v2305 = vadd.f32 %v2241, %v2304
    %v2306 = vpop.f32.mrf.mxu0
    %v2307 = vadd.f32 %v2243, %v2306
    %2308 = vmatmul.bf16.gmra.mxu0 %v1013
    %v2309 = vpop.f32.mrf.mxu0
    %v2310 = vadd.f32 %v2246, %v2309
    %v2311 = vpop.f32.mrf.mxu0
    %v2312 = vadd.f32 %v2248, %v2311
    %2313 = vmatmul.bf16.gmra.mxu0 %v1029
    %v2314 = vpop.f32.mrf.mxu0
    %v2315 = vadd.f32 %v2251, %v2314
    %v2316 = vpop.f32.mrf.mxu0
    %v2317 = vadd.f32 %v2253, %v2316
    %2318 = vmatmul.bf16.gmra.mxu0 %v1045
    %v2319 = vpop.f32.mrf.mxu0
    %v2320 = vadd.f32 %v2256, %v2319
    %v2321 = vpop.f32.mrf.mxu0
    %v2322 = vadd.f32 %v2258, %v2321
    %2323 = vmatmul.bf16.gmra.mxu0 %v1061
    %v2324 = vpop.f32.mrf.mxu0
    %v2325 = vadd.f32 %v2261, %v2324
    %v2326 = vpop.f32.mrf.mxu0
    %v2327 = vadd.f32 %v2263, %v2326
    %2328 = vmatmul.bf16.gmra.mxu0 %v1077
    %v2329 = vpop.f32.mrf.mxu0
    %v2330 = vadd.f32 %v2266, %v2329
    %v2331 = vpop.f32.mrf.mxu0
    %v2332 = vadd.f32 %v2268, %v2331
    %2333 = vmatmul.bf16.gmra.mxu0 %v1093
    %v2334 = vpop.f32.mrf.mxu0
    %v2335 = vadd.f32 %v2271, %v2334
    %v2336 = vpop.f32.mrf.mxu0
    %v2337 = vadd.f32 %v2273, %v2336
    %2338 = vmatmul.bf16.gmra.mxu0 %v1109
    %v2339 = vpop.f32.mrf.mxu0
    %v2340 = vadd.f32 %v2276, %v2339
    %v2341 = vpop.f32.mrf.mxu0
    %v2342 = vadd.f32 %v2278, %v2341
    %2343 = vmatmul.bf16.gmra.mxu0 %v1125
    %v2344 = vpop.f32.mrf.mxu0
    %v2345 = vadd.f32 %v2281, %v2344
    %v2346 = vpop.f32.mrf.mxu0
    %v2347 = vadd.f32 %v2283, %v2346
    %2348 = vmatmul.bf16.gmra.mxu0 %v1141
    %v2349 = vpop.f32.mrf.mxu0
    %v2350 = vadd.f32 %v2286, %v2349
    %v2351 = vpop.f32.mrf.mxu0
    %v2352 = vadd.f32 %v2288, %v2351
    %2353 = vdwg.mxu0
    %2354 = vmatpush.bf16.msra.mxu0 %v1881
    %2355 = vmatpush.bf16.msra.mxu0 %v1880
    %2356 = vmatpush.bf16.msra.mxu0 %v1879
    %2357 = vmatpush.bf16.msra.mxu0 %v1878
    %2358 = vmatpush.bf16.msra.mxu0 %v1877
    %2359 = vmatpush.bf16.msra.mxu0 %v1876
    %2360 = vmatpush.bf16.msra.mxu0 %v1875
    %2361 = vmatpush.bf16.msra.mxu0 %v1874
    %2362 = vmatmul.bf16.gmra.mxu0 %v982
    %v2363 = vpop.f32.mrf.mxu0
    %v2364 = vadd.f32 %v2300, %v2363
    %v2365 = vpop.f32.mrf.mxu0
    %v2366 = vadd.f32 %v2302, %v2365
    %2367 = vmatmul.bf16.gmra.mxu0 %v998
    %v2368 = vpop.f32.mrf.mxu0
    %v2369 = vadd.f32 %v2305, %v2368
    %v2370 = vpop.f32.mrf.mxu0
    %v2371 = vadd.f32 %v2307, %v2370
    %2372 = vmatmul.bf16.gmra.mxu0 %v1014
    %v2373 = vpop.f32.mrf.mxu0
    %v2374 = vadd.f32 %v2310, %v2373
    %v2375 = vpop.f32.mrf.mxu0
    %v2376 = vadd.f32 %v2312, %v2375
    %2377 = vmatmul.bf16.gmra.mxu0 %v1030
    %v2378 = vpop.f32.mrf.mxu0
    %v2379 = vadd.f32 %v2315, %v2378
    %v2380 = vpop.f32.mrf.mxu0
    %v2381 = vadd.f32 %v2317, %v2380
    %2382 = vmatmul.bf16.gmra.mxu0 %v1046
    %v2383 = vpop.f32.mrf.mxu0
    %v2384 = vadd.f32 %v2320, %v2383
    %v2385 = vpop.f32.mrf.mxu0
    %v2386 = vadd.f32 %v2322, %v2385
    %2387 = vmatmul.bf16.gmra.mxu0 %v1062
    %v2388 = vpop.f32.mrf.mxu0
    %v2389 = vadd.f32 %v2325, %v2388
    %v2390 = vpop.f32.mrf.mxu0
    %v2391 = vadd.f32 %v2327, %v2390
    %2392 = vmatmul.bf16.gmra.mxu0 %v1078
    %v2393 = vpop.f32.mrf.mxu0
    %v2394 = vadd.f32 %v2330, %v2393
    %v2395 = vpop.f32.mrf.mxu0
    %v2396 = vadd.f32 %v2332, %v2395
    %2397 = vmatmul.bf16.gmra.mxu0 %v1094
    %v2398 = vpop.f32.mrf.mxu0
    %v2399 = vadd.f32 %v2335, %v2398
    %v2400 = vpop.f32.mrf.mxu0
    %v2401 = vadd.f32 %v2337, %v2400
    %2402 = vmatmul.bf16.gmra.mxu0 %v1110
    %v2403 = vpop.f32.mrf.mxu0
    %v2404 = vadd.f32 %v2340, %v2403
    %v2405 = vpop.f32.mrf.mxu0
    %v2406 = vadd.f32 %v2342, %v2405
    %2407 = vmatmul.bf16.gmra.mxu0 %v1126
    %v2408 = vpop.f32.mrf.mxu0
    %v2409 = vadd.f32 %v2345, %v2408
    %v2410 = vpop.f32.mrf.mxu0
    %v2411 = vadd.f32 %v2347, %v2410
    %2412 = vmatmul.bf16.gmra.mxu0 %v1142
    %v2413 = vpop.f32.mrf.mxu0
    %v2414 = vadd.f32 %v2350, %v2413
    %v2415 = vpop.f32.mrf.mxu0
    %v2416 = vadd.f32 %v2352, %v2415
    %2417 = vdwg.mxu0
    %2418 = vmatpush.bf16.msra.mxu0 %v1889
    %2419 = vmatpush.bf16.msra.mxu0 %v1888
    %2420 = vmatpush.bf16.msra.mxu0 %v1887
    %2421 = vmatpush.bf16.msra.mxu0 %v1886
    %2422 = vmatpush.bf16.msra.mxu0 %v1885
    %2423 = vmatpush.bf16.msra.mxu0 %v1884
    %2424 = vmatpush.bf16.msra.mxu0 %v1883
    %2425 = vmatpush.bf16.msra.mxu0 %v1882
    %2426 = vmatmul.bf16.gmra.mxu0 %v983
    %v2427 = vpop.f32.mrf.mxu0
    %v2428 = vadd.f32 %v2364, %v2427
    %v2429 = vpop.f32.mrf.mxu0
    %v2430 = vadd.f32 %v2366, %v2429
    %2431 = vmatmul.bf16.gmra.mxu0 %v999
    %v2432 = vpop.f32.mrf.mxu0
    %v2433 = vadd.f32 %v2369, %v2432
    %v2434 = vpop.f32.mrf.mxu0
    %v2435 = vadd.f32 %v2371, %v2434
    %2436 = vmatmul.bf16.gmra.mxu0 %v1015
    %v2437 = vpop.f32.mrf.mxu0
    %v2438 = vadd.f32 %v2374, %v2437
    %v2439 = vpop.f32.mrf.mxu0
    %v2440 = vadd.f32 %v2376, %v2439
    %2441 = vmatmul.bf16.gmra.mxu0 %v1031
    %v2442 = vpop.f32.mrf.mxu0
    %v2443 = vadd.f32 %v2379, %v2442
    %v2444 = vpop.f32.mrf.mxu0
    %v2445 = vadd.f32 %v2381, %v2444
    %2446 = vmatmul.bf16.gmra.mxu0 %v1047
    %v2447 = vpop.f32.mrf.mxu0
    %v2448 = vadd.f32 %v2384, %v2447
    %v2449 = vpop.f32.mrf.mxu0
    %v2450 = vadd.f32 %v2386, %v2449
    %2451 = vmatmul.bf16.gmra.mxu0 %v1063
    %v2452 = vpop.f32.mrf.mxu0
    %v2453 = vadd.f32 %v2389, %v2452
    %v2454 = vpop.f32.mrf.mxu0
    %v2455 = vadd.f32 %v2391, %v2454
    %2456 = vmatmul.bf16.gmra.mxu0 %v1079
    %v2457 = vpop.f32.mrf.mxu0
    %v2458 = vadd.f32 %v2394, %v2457
    %v2459 = vpop.f32.mrf.mxu0
    %v2460 = vadd.f32 %v2396, %v2459
    %2461 = vmatmul.bf16.gmra.mxu0 %v1095
    %v2462 = vpop.f32.mrf.mxu0
    %v2463 = vadd.f32 %v2399, %v2462
    %v2464 = vpop.f32.mrf.mxu0
    %v2465 = vadd.f32 %v2401, %v2464
    %2466 = vmatmul.bf16.gmra.mxu0 %v1111
    %v2467 = vpop.f32.mrf.mxu0
    %v2468 = vadd.f32 %v2404, %v2467
    %v2469 = vpop.f32.mrf.mxu0
    %v2470 = vadd.f32 %v2406, %v2469
    %2471 = vmatmul.bf16.gmra.mxu0 %v1127
    %v2472 = vpop.f32.mrf.mxu0
    %v2473 = vadd.f32 %v2409, %v2472
    %v2474 = vpop.f32.mrf.mxu0
    %v2475 = vadd.f32 %v2411, %v2474
    %2476 = vmatmul.bf16.gmra.mxu0 %v1143
    %v2477 = vpop.f32.mrf.mxu0
    %v2478 = vadd.f32 %v2414, %v2477
    %v2479 = vpop.f32.mrf.mxu0
    %v2480 = vadd.f32 %v2416, %v2479
    %2481 = vdwg.mxu0
    %2482 = vmatpush.bf16.msra.mxu0 %v1897
    %2483 = vmatpush.bf16.msra.mxu0 %v1896
    %2484 = vmatpush.bf16.msra.mxu0 %v1895
    %2485 = vmatpush.bf16.msra.mxu0 %v1894
    %2486 = vmatpush.bf16.msra.mxu0 %v1893
    %2487 = vmatpush.bf16.msra.mxu0 %v1892
    %2488 = vmatpush.bf16.msra.mxu0 %v1891
    %2489 = vmatpush.bf16.msra.mxu0 %v1890
    %2490 = vmatmul.bf16.gmra.mxu0 %v984
    %v2491 = vpop.f32.mrf.mxu0
    %v2492 = vadd.f32 %v2428, %v2491
    %v2493 = vpop.f32.mrf.mxu0
    %v2494 = vadd.f32 %v2430, %v2493
    %2495 = vmatmul.bf16.gmra.mxu0 %v1000
    %v2496 = vpop.f32.mrf.mxu0
    %v2497 = vadd.f32 %v2433, %v2496
    %v2498 = vpop.f32.mrf.mxu0
    %v2499 = vadd.f32 %v2435, %v2498
    %2500 = vmatmul.bf16.gmra.mxu0 %v1016
    %v2501 = vpop.f32.mrf.mxu0
    %v2502 = vadd.f32 %v2438, %v2501
    %v2503 = vpop.f32.mrf.mxu0
    %v2504 = vadd.f32 %v2440, %v2503
    %2505 = vmatmul.bf16.gmra.mxu0 %v1032
    %v2506 = vpop.f32.mrf.mxu0
    %v2507 = vadd.f32 %v2443, %v2506
    %v2508 = vpop.f32.mrf.mxu0
    %v2509 = vadd.f32 %v2445, %v2508
    %2510 = vmatmul.bf16.gmra.mxu0 %v1048
    %v2511 = vpop.f32.mrf.mxu0
    %v2512 = vadd.f32 %v2448, %v2511
    %v2513 = vpop.f32.mrf.mxu0
    %v2514 = vadd.f32 %v2450, %v2513
    %2515 = vmatmul.bf16.gmra.mxu0 %v1064
    %v2516 = vpop.f32.mrf.mxu0
    %v2517 = vadd.f32 %v2453, %v2516
    %v2518 = vpop.f32.mrf.mxu0
    %v2519 = vadd.f32 %v2455, %v2518
    %2520 = vmatmul.bf16.gmra.mxu0 %v1080
    %v2521 = vpop.f32.mrf.mxu0
    %v2522 = vadd.f32 %v2458, %v2521
    %v2523 = vpop.f32.mrf.mxu0
    %v2524 = vadd.f32 %v2460, %v2523
    %2525 = vmatmul.bf16.gmra.mxu0 %v1096
    %v2526 = vpop.f32.mrf.mxu0
    %v2527 = vadd.f32 %v2463, %v2526
    %v2528 = vpop.f32.mrf.mxu0
    %v2529 = vadd.f32 %v2465, %v2528
    %2530 = vmatmul.bf16.gmra.mxu0 %v1112
    %v2531 = vpop.f32.mrf.mxu0
    %v2532 = vadd.f32 %v2468, %v2531
    %v2533 = vpop.f32.mrf.mxu0
    %v2534 = vadd.f32 %v2470, %v2533
    %2535 = vmatmul.bf16.gmra.mxu0 %v1128
    %v2536 = vpop.f32.mrf.mxu0
    %v2537 = vadd.f32 %v2473, %v2536
    %v2538 = vpop.f32.mrf.mxu0
    %v2539 = vadd.f32 %v2475, %v2538
    %2540 = vmatmul.bf16.gmra.mxu0 %v1144
    %v2541 = vpop.f32.mrf.mxu0
    %v2542 = vadd.f32 %v2478, %v2541
    %v2543 = vpop.f32.mrf.mxu0
    %v2544 = vadd.f32 %v2480, %v2543
    %2545 = vdwg.mxu0
    %2546 = vmatpush.bf16.msra.mxu0 %v1905
    %2547 = vmatpush.bf16.msra.mxu0 %v1904
    %2548 = vmatpush.bf16.msra.mxu0 %v1903
    %2549 = vmatpush.bf16.msra.mxu0 %v1902
    %2550 = vmatpush.bf16.msra.mxu0 %v1901
    %2551 = vmatpush.bf16.msra.mxu0 %v1900
    %2552 = vmatpush.bf16.msra.mxu0 %v1899
    %2553 = vmatpush.bf16.msra.mxu0 %v1898
    %2554 = vmatmul.bf16.gmra.mxu0 %v985
    %v2555 = vpop.f32.mrf.mxu0
    %v2556 = vadd.f32 %v2492, %v2555
    %v2557 = vpop.f32.mrf.mxu0
    %v2558 = vadd.f32 %v2494, %v2557
    %2559 = vmatmul.bf16.gmra.mxu0 %v1001
    %v2560 = vpop.f32.mrf.mxu0
    %v2561 = vadd.f32 %v2497, %v2560
    %v2562 = vpop.f32.mrf.mxu0
    %v2563 = vadd.f32 %v2499, %v2562
    %2564 = vmatmul.bf16.gmra.mxu0 %v1017
    %v2565 = vpop.f32.mrf.mxu0
    %v2566 = vadd.f32 %v2502, %v2565
    %v2567 = vpop.f32.mrf.mxu0
    %v2568 = vadd.f32 %v2504, %v2567
    %2569 = vmatmul.bf16.gmra.mxu0 %v1033
    %v2570 = vpop.f32.mrf.mxu0
    %v2571 = vadd.f32 %v2507, %v2570
    %v2572 = vpop.f32.mrf.mxu0
    %v2573 = vadd.f32 %v2509, %v2572
    %2574 = vmatmul.bf16.gmra.mxu0 %v1049
    %v2575 = vpop.f32.mrf.mxu0
    %v2576 = vadd.f32 %v2512, %v2575
    %v2577 = vpop.f32.mrf.mxu0
    %v2578 = vadd.f32 %v2514, %v2577
    %2579 = vmatmul.bf16.gmra.mxu0 %v1065
    %v2580 = vpop.f32.mrf.mxu0
    %v2581 = vadd.f32 %v2517, %v2580
    %v2582 = vpop.f32.mrf.mxu0
    %v2583 = vadd.f32 %v2519, %v2582
    %2584 = vmatmul.bf16.gmra.mxu0 %v1081
    %v2585 = vpop.f32.mrf.mxu0
    %v2586 = vadd.f32 %v2522, %v2585
    %v2587 = vpop.f32.mrf.mxu0
    %v2588 = vadd.f32 %v2524, %v2587
    %2589 = vmatmul.bf16.gmra.mxu0 %v1097
    %v2590 = vpop.f32.mrf.mxu0
    %v2591 = vadd.f32 %v2527, %v2590
    %v2592 = vpop.f32.mrf.mxu0
    %v2593 = vadd.f32 %v2529, %v2592
    %2594 = vmatmul.bf16.gmra.mxu0 %v1113
    %v2595 = vpop.f32.mrf.mxu0
    %v2596 = vadd.f32 %v2532, %v2595
    %v2597 = vpop.f32.mrf.mxu0
    %v2598 = vadd.f32 %v2534, %v2597
    %2599 = vmatmul.bf16.gmra.mxu0 %v1129
    %v2600 = vpop.f32.mrf.mxu0
    %v2601 = vadd.f32 %v2537, %v2600
    %v2602 = vpop.f32.mrf.mxu0
    %v2603 = vadd.f32 %v2539, %v2602
    %2604 = vmatmul.bf16.gmra.mxu0 %v1145
    %v2605 = vpop.f32.mrf.mxu0
    %v2606 = vadd.f32 %v2542, %v2605
    %v2607 = vpop.f32.mrf.mxu0
    %v2608 = vadd.f32 %v2544, %v2607
    %2609 = vdwg.mxu0
    %2610 = vmatpush.bf16.msra.mxu0 %v1913
    %2611 = vmatpush.bf16.msra.mxu0 %v1912
    %2612 = vmatpush.bf16.msra.mxu0 %v1911
    %2613 = vmatpush.bf16.msra.mxu0 %v1910
    %2614 = vmatpush.bf16.msra.mxu0 %v1909
    %2615 = vmatpush.bf16.msra.mxu0 %v1908
    %2616 = vmatpush.bf16.msra.mxu0 %v1907
    %2617 = vmatpush.bf16.msra.mxu0 %v1906
    %2618 = vmatmul.bf16.gmra.mxu0 %v986
    %v2619 = vpop.f32.mrf.mxu0
    %v2620 = vadd.f32 %v2556, %v2619
    %v2621 = vpop.f32.mrf.mxu0
    %v2622 = vadd.f32 %v2558, %v2621
    %2623 = vmatmul.bf16.gmra.mxu0 %v1002
    %v2624 = vpop.f32.mrf.mxu0
    %v2625 = vadd.f32 %v2561, %v2624
    %v2626 = vpop.f32.mrf.mxu0
    %v2627 = vadd.f32 %v2563, %v2626
    %2628 = vmatmul.bf16.gmra.mxu0 %v1018
    %v2629 = vpop.f32.mrf.mxu0
    %v2630 = vadd.f32 %v2566, %v2629
    %v2631 = vpop.f32.mrf.mxu0
    %v2632 = vadd.f32 %v2568, %v2631
    %2633 = vmatmul.bf16.gmra.mxu0 %v1034
    %v2634 = vpop.f32.mrf.mxu0
    %v2635 = vadd.f32 %v2571, %v2634
    %v2636 = vpop.f32.mrf.mxu0
    %v2637 = vadd.f32 %v2573, %v2636
    %2638 = vmatmul.bf16.gmra.mxu0 %v1050
    %v2639 = vpop.f32.mrf.mxu0
    %v2640 = vadd.f32 %v2576, %v2639
    %v2641 = vpop.f32.mrf.mxu0
    %v2642 = vadd.f32 %v2578, %v2641
    %2643 = vmatmul.bf16.gmra.mxu0 %v1066
    %v2644 = vpop.f32.mrf.mxu0
    %v2645 = vadd.f32 %v2581, %v2644
    %v2646 = vpop.f32.mrf.mxu0
    %v2647 = vadd.f32 %v2583, %v2646
    %2648 = vmatmul.bf16.gmra.mxu0 %v1082
    %v2649 = vpop.f32.mrf.mxu0
    %v2650 = vadd.f32 %v2586, %v2649
    %v2651 = vpop.f32.mrf.mxu0
    %v2652 = vadd.f32 %v2588, %v2651
    %2653 = vmatmul.bf16.gmra.mxu0 %v1098
    %v2654 = vpop.f32.mrf.mxu0
    %v2655 = vadd.f32 %v2591, %v2654
    %v2656 = vpop.f32.mrf.mxu0
    %v2657 = vadd.f32 %v2593, %v2656
    %2658 = vmatmul.bf16.gmra.mxu0 %v1114
    %v2659 = vpop.f32.mrf.mxu0
    %v2660 = vadd.f32 %v2596, %v2659
    %v2661 = vpop.f32.mrf.mxu0
    %v2662 = vadd.f32 %v2598, %v2661
    %2663 = vmatmul.bf16.gmra.mxu0 %v1130
    %v2664 = vpop.f32.mrf.mxu0
    %v2665 = vadd.f32 %v2601, %v2664
    %v2666 = vpop.f32.mrf.mxu0
    %v2667 = vadd.f32 %v2603, %v2666
    %2668 = vmatmul.bf16.gmra.mxu0 %v1146
    %v2669 = vpop.f32.mrf.mxu0
    %v2670 = vadd.f32 %v2606, %v2669
    %v2671 = vpop.f32.mrf.mxu0
    %v2672 = vadd.f32 %v2608, %v2671
    %2673 = vdwg.mxu0
    %2674 = vmatpush.bf16.msra.mxu0 %v1921
    %2675 = vmatpush.bf16.msra.mxu0 %v1920
    %2676 = vmatpush.bf16.msra.mxu0 %v1919
    %2677 = vmatpush.bf16.msra.mxu0 %v1918
    %2678 = vmatpush.bf16.msra.mxu0 %v1917
    %2679 = vmatpush.bf16.msra.mxu0 %v1916
    %2680 = vmatpush.bf16.msra.mxu0 %v1915
    %2681 = vmatpush.bf16.msra.mxu0 %v1914
    %2682 = vmatmul.bf16.gmra.mxu0 %v987
    %v2683 = vpop.f32.mrf.mxu0
    %v2684 = vadd.f32 %v2620, %v2683
    %v2685 = vpop.f32.mrf.mxu0
    %v2686 = vadd.f32 %v2622, %v2685
    %2687 = vmatmul.bf16.gmra.mxu0 %v1003
    %v2688 = vpop.f32.mrf.mxu0
    %v2689 = vadd.f32 %v2625, %v2688
    %v2690 = vpop.f32.mrf.mxu0
    %v2691 = vadd.f32 %v2627, %v2690
    %2692 = vmatmul.bf16.gmra.mxu0 %v1019
    %v2693 = vpop.f32.mrf.mxu0
    %v2694 = vadd.f32 %v2630, %v2693
    %v2695 = vpop.f32.mrf.mxu0
    %v2696 = vadd.f32 %v2632, %v2695
    %2697 = vmatmul.bf16.gmra.mxu0 %v1035
    %v2698 = vpop.f32.mrf.mxu0
    %v2699 = vadd.f32 %v2635, %v2698
    %v2700 = vpop.f32.mrf.mxu0
    %v2701 = vadd.f32 %v2637, %v2700
    %2702 = vmatmul.bf16.gmra.mxu0 %v1051
    %v2703 = vpop.f32.mrf.mxu0
    %v2704 = vadd.f32 %v2640, %v2703
    %v2705 = vpop.f32.mrf.mxu0
    %v2706 = vadd.f32 %v2642, %v2705
    %2707 = vmatmul.bf16.gmra.mxu0 %v1067
    %v2708 = vpop.f32.mrf.mxu0
    %v2709 = vadd.f32 %v2645, %v2708
    %v2710 = vpop.f32.mrf.mxu0
    %v2711 = vadd.f32 %v2647, %v2710
    %2712 = vmatmul.bf16.gmra.mxu0 %v1083
    %v2713 = vpop.f32.mrf.mxu0
    %v2714 = vadd.f32 %v2650, %v2713
    %v2715 = vpop.f32.mrf.mxu0
    %v2716 = vadd.f32 %v2652, %v2715
    %2717 = vmatmul.bf16.gmra.mxu0 %v1099
    %v2718 = vpop.f32.mrf.mxu0
    %v2719 = vadd.f32 %v2655, %v2718
    %v2720 = vpop.f32.mrf.mxu0
    %v2721 = vadd.f32 %v2657, %v2720
    %2722 = vmatmul.bf16.gmra.mxu0 %v1115
    %v2723 = vpop.f32.mrf.mxu0
    %v2724 = vadd.f32 %v2660, %v2723
    %v2725 = vpop.f32.mrf.mxu0
    %v2726 = vadd.f32 %v2662, %v2725
    %2727 = vmatmul.bf16.gmra.mxu0 %v1131
    %v2728 = vpop.f32.mrf.mxu0
    %v2729 = vadd.f32 %v2665, %v2728
    %v2730 = vpop.f32.mrf.mxu0
    %v2731 = vadd.f32 %v2667, %v2730
    %2732 = vmatmul.bf16.gmra.mxu0 %v1147
    %v2733 = vpop.f32.mrf.mxu0
    %v2734 = vadd.f32 %v2670, %v2733
    %v2735 = vpop.f32.mrf.mxu0
    %v2736 = vadd.f32 %v2672, %v2735
    %2737 = vdwg.mxu0
    %2738 = vmatpush.bf16.msra.mxu0 %v1929
    %2739 = vmatpush.bf16.msra.mxu0 %v1928
    %2740 = vmatpush.bf16.msra.mxu0 %v1927
    %2741 = vmatpush.bf16.msra.mxu0 %v1926
    %2742 = vmatpush.bf16.msra.mxu0 %v1925
    %2743 = vmatpush.bf16.msra.mxu0 %v1924
    %2744 = vmatpush.bf16.msra.mxu0 %v1923
    %2745 = vmatpush.bf16.msra.mxu0 %v1922
    %2746 = vmatmul.bf16.gmra.mxu0 %v988
    %v2747 = vpop.f32.mrf.mxu0
    %v2748 = vadd.f32 %v2684, %v2747
    %v2749 = vpop.f32.mrf.mxu0
    %v2750 = vadd.f32 %v2686, %v2749
    %2751 = vmatmul.bf16.gmra.mxu0 %v1004
    %v2752 = vpop.f32.mrf.mxu0
    %v2753 = vadd.f32 %v2689, %v2752
    %v2754 = vpop.f32.mrf.mxu0
    %v2755 = vadd.f32 %v2691, %v2754
    %2756 = vmatmul.bf16.gmra.mxu0 %v1020
    %v2757 = vpop.f32.mrf.mxu0
    %v2758 = vadd.f32 %v2694, %v2757
    %v2759 = vpop.f32.mrf.mxu0
    %v2760 = vadd.f32 %v2696, %v2759
    %2761 = vmatmul.bf16.gmra.mxu0 %v1036
    %v2762 = vpop.f32.mrf.mxu0
    %v2763 = vadd.f32 %v2699, %v2762
    %v2764 = vpop.f32.mrf.mxu0
    %v2765 = vadd.f32 %v2701, %v2764
    %2766 = vmatmul.bf16.gmra.mxu0 %v1052
    %v2767 = vpop.f32.mrf.mxu0
    %v2768 = vadd.f32 %v2704, %v2767
    %v2769 = vpop.f32.mrf.mxu0
    %v2770 = vadd.f32 %v2706, %v2769
    %2771 = vmatmul.bf16.gmra.mxu0 %v1068
    %v2772 = vpop.f32.mrf.mxu0
    %v2773 = vadd.f32 %v2709, %v2772
    %v2774 = vpop.f32.mrf.mxu0
    %v2775 = vadd.f32 %v2711, %v2774
    %2776 = vmatmul.bf16.gmra.mxu0 %v1084
    %v2777 = vpop.f32.mrf.mxu0
    %v2778 = vadd.f32 %v2714, %v2777
    %v2779 = vpop.f32.mrf.mxu0
    %v2780 = vadd.f32 %v2716, %v2779
    %2781 = vmatmul.bf16.gmra.mxu0 %v1100
    %v2782 = vpop.f32.mrf.mxu0
    %v2783 = vadd.f32 %v2719, %v2782
    %v2784 = vpop.f32.mrf.mxu0
    %v2785 = vadd.f32 %v2721, %v2784
    %2786 = vmatmul.bf16.gmra.mxu0 %v1116
    %v2787 = vpop.f32.mrf.mxu0
    %v2788 = vadd.f32 %v2724, %v2787
    %v2789 = vpop.f32.mrf.mxu0
    %v2790 = vadd.f32 %v2726, %v2789
    %2791 = vmatmul.bf16.gmra.mxu0 %v1132
    %v2792 = vpop.f32.mrf.mxu0
    %v2793 = vadd.f32 %v2729, %v2792
    %v2794 = vpop.f32.mrf.mxu0
    %v2795 = vadd.f32 %v2731, %v2794
    %2796 = vmatmul.bf16.gmra.mxu0 %v1148
    %v2797 = vpop.f32.mrf.mxu0
    %v2798 = vadd.f32 %v2734, %v2797
    %v2799 = vpop.f32.mrf.mxu0
    %v2800 = vadd.f32 %v2736, %v2799
    %2801 = vdwg.mxu0
    %2802 = vmatpush.bf16.msra.mxu0 %v1937
    %2803 = vmatpush.bf16.msra.mxu0 %v1936
    %2804 = vmatpush.bf16.msra.mxu0 %v1935
    %2805 = vmatpush.bf16.msra.mxu0 %v1934
    %2806 = vmatpush.bf16.msra.mxu0 %v1933
    %2807 = vmatpush.bf16.msra.mxu0 %v1932
    %2808 = vmatpush.bf16.msra.mxu0 %v1931
    %2809 = vmatpush.bf16.msra.mxu0 %v1930
    %2810 = vmatmul.bf16.gmra.mxu0 %v989
    %v2811 = vpop.f32.mrf.mxu0
    %v2812 = vadd.f32 %v2748, %v2811
    %v2813 = vpop.f32.mrf.mxu0
    %v2814 = vadd.f32 %v2750, %v2813
    %2815 = vmatmul.bf16.gmra.mxu0 %v1005
    %v2816 = vpop.f32.mrf.mxu0
    %v2817 = vadd.f32 %v2753, %v2816
    %v2818 = vpop.f32.mrf.mxu0
    %v2819 = vadd.f32 %v2755, %v2818
    %2820 = vmatmul.bf16.gmra.mxu0 %v1021
    %v2821 = vpop.f32.mrf.mxu0
    %v2822 = vadd.f32 %v2758, %v2821
    %v2823 = vpop.f32.mrf.mxu0
    %v2824 = vadd.f32 %v2760, %v2823
    %2825 = vmatmul.bf16.gmra.mxu0 %v1037
    %v2826 = vpop.f32.mrf.mxu0
    %v2827 = vadd.f32 %v2763, %v2826
    %v2828 = vpop.f32.mrf.mxu0
    %v2829 = vadd.f32 %v2765, %v2828
    %2830 = vmatmul.bf16.gmra.mxu0 %v1053
    %v2831 = vpop.f32.mrf.mxu0
    %v2832 = vadd.f32 %v2768, %v2831
    %v2833 = vpop.f32.mrf.mxu0
    %v2834 = vadd.f32 %v2770, %v2833
    %2835 = vmatmul.bf16.gmra.mxu0 %v1069
    %v2836 = vpop.f32.mrf.mxu0
    %v2837 = vadd.f32 %v2773, %v2836
    %v2838 = vpop.f32.mrf.mxu0
    %v2839 = vadd.f32 %v2775, %v2838
    %2840 = vmatmul.bf16.gmra.mxu0 %v1085
    %v2841 = vpop.f32.mrf.mxu0
    %v2842 = vadd.f32 %v2778, %v2841
    %v2843 = vpop.f32.mrf.mxu0
    %v2844 = vadd.f32 %v2780, %v2843
    %2845 = vmatmul.bf16.gmra.mxu0 %v1101
    %v2846 = vpop.f32.mrf.mxu0
    %v2847 = vadd.f32 %v2783, %v2846
    %v2848 = vpop.f32.mrf.mxu0
    %v2849 = vadd.f32 %v2785, %v2848
    %2850 = vmatmul.bf16.gmra.mxu0 %v1117
    %v2851 = vpop.f32.mrf.mxu0
    %v2852 = vadd.f32 %v2788, %v2851
    %v2853 = vpop.f32.mrf.mxu0
    %v2854 = vadd.f32 %v2790, %v2853
    %2855 = vmatmul.bf16.gmra.mxu0 %v1133
    %v2856 = vpop.f32.mrf.mxu0
    %v2857 = vadd.f32 %v2793, %v2856
    %v2858 = vpop.f32.mrf.mxu0
    %v2859 = vadd.f32 %v2795, %v2858
    %2860 = vmatmul.bf16.gmra.mxu0 %v1149
    %v2861 = vpop.f32.mrf.mxu0
    %v2862 = vadd.f32 %v2798, %v2861
    %v2863 = vpop.f32.mrf.mxu0
    %v2864 = vadd.f32 %v2800, %v2863
    %2865 = vdwg.mxu0
    %2866 = vmatpush.bf16.msra.mxu0 %v1945
    %2867 = vmatpush.bf16.msra.mxu0 %v1944
    %2868 = vmatpush.bf16.msra.mxu0 %v1943
    %2869 = vmatpush.bf16.msra.mxu0 %v1942
    %2870 = vmatpush.bf16.msra.mxu0 %v1941
    %2871 = vmatpush.bf16.msra.mxu0 %v1940
    %2872 = vmatpush.bf16.msra.mxu0 %v1939
    %2873 = vmatpush.bf16.msra.mxu0 %v1938
    %2874 = vmatmul.bf16.gmra.mxu0 %v990
    %v2875 = vpop.f32.mrf.mxu0
    %v2876 = vadd.f32 %v2812, %v2875
    %v2877 = vpop.f32.mrf.mxu0
    %v2878 = vadd.f32 %v2814, %v2877
    %2879 = vmatmul.bf16.gmra.mxu0 %v1006
    %v2880 = vpop.f32.mrf.mxu0
    %v2881 = vadd.f32 %v2817, %v2880
    %v2882 = vpop.f32.mrf.mxu0
    %v2883 = vadd.f32 %v2819, %v2882
    %2884 = vmatmul.bf16.gmra.mxu0 %v1022
    %v2885 = vpop.f32.mrf.mxu0
    %v2886 = vadd.f32 %v2822, %v2885
    %v2887 = vpop.f32.mrf.mxu0
    %v2888 = vadd.f32 %v2824, %v2887
    %2889 = vmatmul.bf16.gmra.mxu0 %v1038
    %v2890 = vpop.f32.mrf.mxu0
    %v2891 = vadd.f32 %v2827, %v2890
    %v2892 = vpop.f32.mrf.mxu0
    %v2893 = vadd.f32 %v2829, %v2892
    %2894 = vmatmul.bf16.gmra.mxu0 %v1054
    %v2895 = vpop.f32.mrf.mxu0
    %v2896 = vadd.f32 %v2832, %v2895
    %v2897 = vpop.f32.mrf.mxu0
    %v2898 = vadd.f32 %v2834, %v2897
    %2899 = vmatmul.bf16.gmra.mxu0 %v1070
    %v2900 = vpop.f32.mrf.mxu0
    %v2901 = vadd.f32 %v2837, %v2900
    %v2902 = vpop.f32.mrf.mxu0
    %v2903 = vadd.f32 %v2839, %v2902
    %2904 = vmatmul.bf16.gmra.mxu0 %v1086
    %v2905 = vpop.f32.mrf.mxu0
    %v2906 = vadd.f32 %v2842, %v2905
    %v2907 = vpop.f32.mrf.mxu0
    %v2908 = vadd.f32 %v2844, %v2907
    %2909 = vmatmul.bf16.gmra.mxu0 %v1102
    %v2910 = vpop.f32.mrf.mxu0
    %v2911 = vadd.f32 %v2847, %v2910
    %v2912 = vpop.f32.mrf.mxu0
    %v2913 = vadd.f32 %v2849, %v2912
    %2914 = vmatmul.bf16.gmra.mxu0 %v1118
    %v2915 = vpop.f32.mrf.mxu0
    %v2916 = vadd.f32 %v2852, %v2915
    %v2917 = vpop.f32.mrf.mxu0
    %v2918 = vadd.f32 %v2854, %v2917
    %2919 = vmatmul.bf16.gmra.mxu0 %v1134
    %v2920 = vpop.f32.mrf.mxu0
    %v2921 = vadd.f32 %v2857, %v2920
    %v2922 = vpop.f32.mrf.mxu0
    %v2923 = vadd.f32 %v2859, %v2922
    %2924 = vmatmul.bf16.gmra.mxu0 %v1150
    %v2925 = vpop.f32.mrf.mxu0
    %v2926 = vadd.f32 %v2862, %v2925
    %v2927 = vpop.f32.mrf.mxu0
    %v2928 = vadd.f32 %v2864, %v2927
    %2929 = vdwg.mxu0
    %2930 = vmatpush.bf16.msra.mxu0 %v1953
    %2931 = vmatpush.bf16.msra.mxu0 %v1952
    %2932 = vmatpush.bf16.msra.mxu0 %v1951
    %2933 = vmatpush.bf16.msra.mxu0 %v1950
    %2934 = vmatpush.bf16.msra.mxu0 %v1949
    %2935 = vmatpush.bf16.msra.mxu0 %v1948
    %2936 = vmatpush.bf16.msra.mxu0 %v1947
    %2937 = vmatpush.bf16.msra.mxu0 %v1946
    %2938 = vmatmul.bf16.gmra.mxu0 %v991
    %v2939 = vpop.f32.mrf.mxu0
    %v2940 = vadd.f32 %v2876, %v2939
    %v2941 = vpop.f32.mrf.mxu0
    %v2942 = vadd.f32 %v2878, %v2941
    %2943 = vmatmul.bf16.gmra.mxu0 %v1007
    %v2944 = vpop.f32.mrf.mxu0
    %v2945 = vadd.f32 %v2881, %v2944
    %v2946 = vpop.f32.mrf.mxu0
    %v2947 = vadd.f32 %v2883, %v2946
    %2948 = vmatmul.bf16.gmra.mxu0 %v1023
    %v2949 = vpop.f32.mrf.mxu0
    %v2950 = vadd.f32 %v2886, %v2949
    %v2951 = vpop.f32.mrf.mxu0
    %v2952 = vadd.f32 %v2888, %v2951
    %2953 = vmatmul.bf16.gmra.mxu0 %v1039
    %v2954 = vpop.f32.mrf.mxu0
    %v2955 = vadd.f32 %v2891, %v2954
    %v2956 = vpop.f32.mrf.mxu0
    %v2957 = vadd.f32 %v2893, %v2956
    %2958 = vmatmul.bf16.gmra.mxu0 %v1055
    %v2959 = vpop.f32.mrf.mxu0
    %v2960 = vadd.f32 %v2896, %v2959
    %v2961 = vpop.f32.mrf.mxu0
    %v2962 = vadd.f32 %v2898, %v2961
    %2963 = vmatmul.bf16.gmra.mxu0 %v1071
    %v2964 = vpop.f32.mrf.mxu0
    %v2965 = vadd.f32 %v2901, %v2964
    %v2966 = vpop.f32.mrf.mxu0
    %v2967 = vadd.f32 %v2903, %v2966
    %2968 = vmatmul.bf16.gmra.mxu0 %v1087
    %v2969 = vpop.f32.mrf.mxu0
    %v2970 = vadd.f32 %v2906, %v2969
    %v2971 = vpop.f32.mrf.mxu0
    %v2972 = vadd.f32 %v2908, %v2971
    %2973 = vmatmul.bf16.gmra.mxu0 %v1103
    %v2974 = vpop.f32.mrf.mxu0
    %v2975 = vadd.f32 %v2911, %v2974
    %v2976 = vpop.f32.mrf.mxu0
    %v2977 = vadd.f32 %v2913, %v2976
    %2978 = vmatmul.bf16.gmra.mxu0 %v1119
    %v2979 = vpop.f32.mrf.mxu0
    %v2980 = vadd.f32 %v2916, %v2979
    %v2981 = vpop.f32.mrf.mxu0
    %v2982 = vadd.f32 %v2918, %v2981
    %2983 = vmatmul.bf16.gmra.mxu0 %v1135
    %v2984 = vpop.f32.mrf.mxu0
    %v2985 = vadd.f32 %v2921, %v2984
    %v2986 = vpop.f32.mrf.mxu0
    %v2987 = vadd.f32 %v2923, %v2986
    %2988 = vmatmul.bf16.gmra.mxu0 %v1151
    %v2989 = vpop.f32.mrf.mxu0
    %v2990 = vadd.f32 %v2926, %v2989
    %v2991 = vpop.f32.mrf.mxu0
    %v2992 = vadd.f32 %v2928, %v2991
    %2993 = vdwg.mxu0
    %2994 = vmatpush.bf16.msra.mxu0 %v1961
    %2995 = vmatpush.bf16.msra.mxu0 %v1960
    %2996 = vmatpush.bf16.msra.mxu0 %v1959
    %2997 = vmatpush.bf16.msra.mxu0 %v1958
    %2998 = vmatpush.bf16.msra.mxu0 %v1957
    %2999 = vmatpush.bf16.msra.mxu0 %v1956
    %3000 = vmatpush.bf16.msra.mxu0 %v1955
    %3001 = vmatpush.bf16.msra.mxu0 %v1954
    %3002 = vmatmul.bf16.gmra.mxu0 %v992
    %v3003 = vpop.f32.mrf.mxu0
    %v3004 = vadd.f32 %v2940, %v3003
    %v3005 = vpop.f32.mrf.mxu0
    %v3006 = vadd.f32 %v2942, %v3005
    %3007 = vmatmul.bf16.gmra.mxu0 %v1008
    %v3008 = vpop.f32.mrf.mxu0
    %v3009 = vadd.f32 %v2945, %v3008
    %v3010 = vpop.f32.mrf.mxu0
    %v3011 = vadd.f32 %v2947, %v3010
    %3012 = vmatmul.bf16.gmra.mxu0 %v1024
    %v3013 = vpop.f32.mrf.mxu0
    %v3014 = vadd.f32 %v2950, %v3013
    %v3015 = vpop.f32.mrf.mxu0
    %v3016 = vadd.f32 %v2952, %v3015
    %3017 = vmatmul.bf16.gmra.mxu0 %v1040
    %v3018 = vpop.f32.mrf.mxu0
    %v3019 = vadd.f32 %v2955, %v3018
    %v3020 = vpop.f32.mrf.mxu0
    %v3021 = vadd.f32 %v2957, %v3020
    %3022 = vmatmul.bf16.gmra.mxu0 %v1056
    %v3023 = vpop.f32.mrf.mxu0
    %v3024 = vadd.f32 %v2960, %v3023
    %v3025 = vpop.f32.mrf.mxu0
    %v3026 = vadd.f32 %v2962, %v3025
    %3027 = vmatmul.bf16.gmra.mxu0 %v1072
    %v3028 = vpop.f32.mrf.mxu0
    %v3029 = vadd.f32 %v2965, %v3028
    %v3030 = vpop.f32.mrf.mxu0
    %v3031 = vadd.f32 %v2967, %v3030
    %3032 = vmatmul.bf16.gmra.mxu0 %v1088
    %v3033 = vpop.f32.mrf.mxu0
    %v3034 = vadd.f32 %v2970, %v3033
    %v3035 = vpop.f32.mrf.mxu0
    %v3036 = vadd.f32 %v2972, %v3035
    %3037 = vmatmul.bf16.gmra.mxu0 %v1104
    %v3038 = vpop.f32.mrf.mxu0
    %v3039 = vadd.f32 %v2975, %v3038
    %v3040 = vpop.f32.mrf.mxu0
    %v3041 = vadd.f32 %v2977, %v3040
    %3042 = vmatmul.bf16.gmra.mxu0 %v1120
    %v3043 = vpop.f32.mrf.mxu0
    %v3044 = vadd.f32 %v2980, %v3043
    %v3045 = vpop.f32.mrf.mxu0
    %v3046 = vadd.f32 %v2982, %v3045
    %3047 = vmatmul.bf16.gmra.mxu0 %v1136
    %v3048 = vpop.f32.mrf.mxu0
    %v3049 = vadd.f32 %v2985, %v3048
    %v3050 = vpop.f32.mrf.mxu0
    %v3051 = vadd.f32 %v2987, %v3050
    %3052 = vmatmul.bf16.gmra.mxu0 %v1152
    %v3053 = vpop.f32.mrf.mxu0
    %v3054 = vadd.f32 %v2990, %v3053
    %v3055 = vpop.f32.mrf.mxu0
    %v3056 = vadd.f32 %v2992, %v3055
    %3057 = vdwg.mxu0
    %3058 = vmatpush.bf16.msra.mxu0 %v1969
    %3059 = vmatpush.bf16.msra.mxu0 %v1968
    %3060 = vmatpush.bf16.msra.mxu0 %v1967
    %3061 = vmatpush.bf16.msra.mxu0 %v1966
    %3062 = vmatpush.bf16.msra.mxu0 %v1965
    %3063 = vmatpush.bf16.msra.mxu0 %v1964
    %3064 = vmatpush.bf16.msra.mxu0 %v1963
    %3065 = vmatpush.bf16.msra.mxu0 %v1962
    %3066 = vmatmul.bf16.gmra.mxu0 %v993
    %v3067 = vpop.f32.mrf.mxu0
    %v3068 = vadd.f32 %v3004, %v3067
    %v3069 = vpop.f32.mrf.mxu0
    %v3070 = vadd.f32 %v3006, %v3069
    %3071 = vmatmul.bf16.gmra.mxu0 %v1009
    %v3072 = vpop.f32.mrf.mxu0
    %v3073 = vadd.f32 %v3009, %v3072
    %v3074 = vpop.f32.mrf.mxu0
    %v3075 = vadd.f32 %v3011, %v3074
    %3076 = vmatmul.bf16.gmra.mxu0 %v1025
    %v3077 = vpop.f32.mrf.mxu0
    %v3078 = vadd.f32 %v3014, %v3077
    %v3079 = vpop.f32.mrf.mxu0
    %v3080 = vadd.f32 %v3016, %v3079
    %3081 = vmatmul.bf16.gmra.mxu0 %v1041
    %v3082 = vpop.f32.mrf.mxu0
    %v3083 = vadd.f32 %v3019, %v3082
    %v3084 = vpop.f32.mrf.mxu0
    %v3085 = vadd.f32 %v3021, %v3084
    %3086 = vmatmul.bf16.gmra.mxu0 %v1057
    %v3087 = vpop.f32.mrf.mxu0
    %v3088 = vadd.f32 %v3024, %v3087
    %v3089 = vpop.f32.mrf.mxu0
    %v3090 = vadd.f32 %v3026, %v3089
    %3091 = vmatmul.bf16.gmra.mxu0 %v1073
    %v3092 = vpop.f32.mrf.mxu0
    %v3093 = vadd.f32 %v3029, %v3092
    %v3094 = vpop.f32.mrf.mxu0
    %v3095 = vadd.f32 %v3031, %v3094
    %3096 = vmatmul.bf16.gmra.mxu0 %v1089
    %v3097 = vpop.f32.mrf.mxu0
    %v3098 = vadd.f32 %v3034, %v3097
    %v3099 = vpop.f32.mrf.mxu0
    %v3100 = vadd.f32 %v3036, %v3099
    %3101 = vmatmul.bf16.gmra.mxu0 %v1105
    %v3102 = vpop.f32.mrf.mxu0
    %v3103 = vadd.f32 %v3039, %v3102
    %v3104 = vpop.f32.mrf.mxu0
    %v3105 = vadd.f32 %v3041, %v3104
    %3106 = vmatmul.bf16.gmra.mxu0 %v1121
    %v3107 = vpop.f32.mrf.mxu0
    %v3108 = vadd.f32 %v3044, %v3107
    %v3109 = vpop.f32.mrf.mxu0
    %v3110 = vadd.f32 %v3046, %v3109
    %3111 = vmatmul.bf16.gmra.mxu0 %v1137
    %v3112 = vpop.f32.mrf.mxu0
    %v3113 = vadd.f32 %v3049, %v3112
    %v3114 = vpop.f32.mrf.mxu0
    %v3115 = vadd.f32 %v3051, %v3114
    %3116 = vmatmul.bf16.gmra.mxu0 %v1153
    %v3117 = vpop.f32.mrf.mxu0
    %v3118 = vadd.f32 %v3054, %v3117
    %v3119 = vpop.f32.mrf.mxu0
    %v3120 = vadd.f32 %v3056, %v3119
    %3121 = vdwg.mxu0
    %v3122 = vmax.f32 %v3068, 0.0
    %v3123 = vmax.f32 %v3070, 0.0
    %v3124 = vmax.f32 %v3073, 0.0
    %v3125 = vmax.f32 %v3075, 0.0
    %v3126 = vmax.f32 %v3078, 0.0
    %v3127 = vmax.f32 %v3080, 0.0
    %v3128 = vmax.f32 %v3083, 0.0
    %v3129 = vmax.f32 %v3085, 0.0
    %v3130 = vmax.f32 %v3088, 0.0
    %v3131 = vmax.f32 %v3090, 0.0
    %v3132 = vmax.f32 %v3093, 0.0
    %v3133 = vmax.f32 %v3095, 0.0
    %v3134 = vmax.f32 %v3098, 0.0
    %v3135 = vmax.f32 %v3100, 0.0
    %v3136 = vmax.f32 %v3103, 0.0
    %v3137 = vmax.f32 %v3105, 0.0
    %v3138 = vmax.f32 %v3108, 0.0
    %v3139 = vmax.f32 %v3110, 0.0
    %v3140 = vmax.f32 %v3113, 0.0
    %v3141 = vmax.f32 %v3115, 0.0
    %v3142 = vmax.f32 %v3118, 0.0
    %v3143 = vmax.f32 %v3120, 0.0
    %v3144 = vpack.c.bf16 %v3122, %v3122
    %v3145 = vpack.c.bf16 %v3123, %v3123
    %v3146 = vpack.c.bf16 %v3124, %v3124
    %v3147 = vpack.c.bf16 %v3125, %v3125
    %v3148 = vpack.c.bf16 %v3126, %v3126
    %v3149 = vpack.c.bf16 %v3127, %v3127
    %v3150 = vpack.c.bf16 %v3128, %v3128
    %v3151 = vpack.c.bf16 %v3129, %v3129
    %v3152 = vpack.c.bf16 %v3130, %v3130
    %v3153 = vpack.c.bf16 %v3131, %v3131
    %v3154 = vpack.c.bf16 %v3132, %v3132
    %v3155 = vpack.c.bf16 %v3133, %v3133
    %v3156 = vpack.c.bf16 %v3134, %v3134
    %v3157 = vpack.c.bf16 %v3135, %v3135
    %v3158 = vpack.c.bf16 %v3136, %v3136
    %v3159 = vpack.c.bf16 %v3137, %v3137
    %v3160 = vpack.c.bf16 %v3138, %v3138
    %v3161 = vpack.c.bf16 %v3139, %v3139
    %v3162 = vpack.c.bf16 %v3140, %v3140
    %v3163 = vpack.c.bf16 %v3141, %v3141
    %v3164 = vpack.c.bf16 %v3142, %v3142
    %v3165 = vpack.c.bf16 %v3143, %v3143
    %3166 = vst [vmem:[#allocation2] sm:$0xf] %v3144
    %3167 = vst [vmem:[#allocation2 + $0x4] sm:$0xf] %v3145
    %3168 = vst [vmem:[#allocation2 + $0x8] sm:$0xf] %v3146
    %3169 = vst [vmem:[#allocation2 + $0xc] sm:$0xf] %v3147
    %3170 = vst [vmem:[#allocation2 + $0x10] sm:$0xf] %v3148
    %3171 = vst [vmem:[#allocation2 + $0x14] sm:$0xf] %v3149
    %3172 = vst [vmem:[#allocation2 + $0x18] sm:$0xf] %v3150
    %3173 = vst [vmem:[#allocation2 + $0x1c] sm:$0xf] %v3151
    %3174 = vst [vmem:[#allocation2 + $0x20] sm:$0xf] %v3152
    %3175 = vst [vmem:[#allocation2 + $0x24] sm:$0xf] %v3153
    %3176 = vst [vmem:[#allocation2 + $0x28] sm:$0xf] %v3154
    %3177 = vst [vmem:[#allocation2 + $0x2c] sm:$0xf] %v3155
    %3178 = vst [vmem:[#allocation2 + $0x30] sm:$0xf] %v3156
    %3179 = vst [vmem:[#allocation2 + $0x34] sm:$0xf] %v3157
    %3180 = vst [vmem:[#allocation2 + $0x38] sm:$0xf] %v3158
    %3181 = vst [vmem:[#allocation2 + $0x3c] sm:$0xf] %v3159
    %3182 = vst [vmem:[#allocation2 + $0x40] sm:$0xf] %v3160
    %3183 = vst [vmem:[#allocation2 + $0x44] sm:$0xf] %v3161
    %3184 = vst [vmem:[#allocation2 + $0x48] sm:$0xf] %v3162
    %3185 = vst [vmem:[#allocation2 + $0x4c] sm:$0xf] %v3163
    %3186 = vst [vmem:[#allocation2 + $0x50] sm:$0xf] %v3164
    %3187 = vst [vmem:[#allocation2 + $0x54] sm:$0xf] %v3165
    // Predicated region
    $region14: #{qcnn_forward_pallas.5} parent=1 // pred_check
      _
    $region15: #{qcnn_forward_pallas.5} parent=1 // pred_check_branch
      %3189 = sbr.rel (0) target = $region17
    $region16: #{qcnn_forward_pallas.5} parent=1 // pred_region
      // Predicated region
      $region18: #{qcnn_forward_pallas.5} parent=16 // pred_check
        _
      $region19: #{qcnn_forward_pallas.5} parent=16 // pred_check_branch
        %3191 = sbr.rel (0) target = $region21
      $region20: #{qcnn_forward_pallas.5} parent=16 // pred_region
        // Predicated region
        $region22: #{qcnn_forward_pallas.5} parent=20 // pred_check
          _
        $region23: #{qcnn_forward_pallas.5} parent=20 // pred_check_branch
          %3193 = sbr.rel target = $region25
        $region24: #{qcnn_forward_pallas.5} parent=20 // pred_region
          // Predicated region
          $region37: #{qcnn_forward_pallas.5} parent=24 // pred_check
            _
          $region38: #{qcnn_forward_pallas.5} parent=24 // pred_check_branch
            %3249 = sbr.rel (0) target = $region40
          $region39: #{qcnn_forward_pallas.5} parent=24 // pred_region
            loop: start=0, step=1, limit=1
            $region41: #{qcnn_forward_pallas.5} parent=39 // loop_pre_header
              _
            $region42: #{qcnn_forward_pallas.5} parent=39 // loop_header
              %s3251 = sphi 0, %s3255
              %p3252 = scmp.ge.s32.totalorder %s3251, 1
              %s3256 = sphi [#allocation2], [#allocation2]
              %s3257 = sphi %s3, %s3
            $region43: #{qcnn_forward_pallas.5} parent=39 // loop_header_branch
              %3254 = sbr.rel (%p3252) target = $region47
            $region44: #{qcnn_forward_pallas.5} parent=39 // loop_body
              _
            $region45: #{qcnn_forward_pallas.5} parent=39 // loop_footer
              %s3255 = sadd.s32 1, %s3251
            $region46: #{qcnn_forward_pallas.5} parent=39 // loop_footer_branch
              %3250 = sbr.rel target = $region42
            $region47: #{qcnn_forward_pallas.5} parent=39 // loop_exit
              _
            %s3259 = ssub.s32 16, 1
            loop: start=0, step=1, limit=1
            $region48: #{qcnn_forward_pallas.5} parent=39 // loop_pre_header
              _
            $region49: #{qcnn_forward_pallas.5} parent=39 // loop_header
              %s3261 = sphi 0, %s3265
              %p3262 = scmp.ge.s32.totalorder %s3261, 1
              %s3266 = sphi [#allocation2], [#allocation2]
              %s3267 = sphi %s3, %s3
            $region50: #{qcnn_forward_pallas.5} parent=39 // loop_header_branch
              %3264 = sbr.rel (%p3262) target = $region54
            $region51: #{qcnn_forward_pallas.5} parent=39 // loop_body
              %v3268 = vld [vmem:[%s3266] sm:%s3259]
              %3269 = vst [vmem:[%s3267] sm:%s3259] %v3268
              %v3270 = vld [vmem:[%s3266 + $0x4] sm:%s3259]
              %3271 = vst [vmem:[%s3267 + $0x4] sm:%s3259] %v3270
              %v3272 = vld [vmem:[%s3266 + $0x8] sm:%s3259]
              %3273 = vst [vmem:[%s3267 + $0x8] sm:%s3259] %v3272
              %v3274 = vld [vmem:[%s3266 + $0xc] sm:%s3259]
              %3275 = vst [vmem:[%s3267 + $0xc] sm:%s3259] %v3274
              %v3276 = vld [vmem:[%s3266 + $0x10] sm:%s3259]
              %3277 = vst [vmem:[%s3267 + $0x10] sm:%s3259] %v3276
              %v3278 = vld [vmem:[%s3266 + $0x14] sm:%s3259]
              %3279 = vst [vmem:[%s3267 + $0x14] sm:%s3259] %v3278
              %v3280 = vld [vmem:[%s3266 + $0x18] sm:%s3259]
              %3281 = vst [vmem:[%s3267 + $0x18] sm:%s3259] %v3280
              %v3282 = vld [vmem:[%s3266 + $0x1c] sm:%s3259]
              %3283 = vst [vmem:[%s3267 + $0x1c] sm:%s3259] %v3282
              %v3284 = vld [vmem:[%s3266 + $0x20] sm:%s3259]
              %3285 = vst [vmem:[%s3267 + $0x20] sm:%s3259] %v3284
              %v3286 = vld [vmem:[%s3266 + $0x24] sm:%s3259]
              %3287 = vst [vmem:[%s3267 + $0x24] sm:%s3259] %v3286
              %v3288 = vld [vmem:[%s3266 + $0x28] sm:%s3259]
              %3289 = vst [vmem:[%s3267 + $0x28] sm:%s3259] %v3288
              %v3290 = vld [vmem:[%s3266 + $0x2c] sm:%s3259]
              %3291 = vst [vmem:[%s3267 + $0x2c] sm:%s3259] %v3290
              %v3292 = vld [vmem:[%s3266 + $0x30] sm:%s3259]
              %3293 = vst [vmem:[%s3267 + $0x30] sm:%s3259] %v3292
              %v3294 = vld [vmem:[%s3266 + $0x34] sm:%s3259]
              %3295 = vst [vmem:[%s3267 + $0x34] sm:%s3259] %v3294
              %v3296 = vld [vmem:[%s3266 + $0x38] sm:%s3259]
              %3297 = vst [vmem:[%s3267 + $0x38] sm:%s3259] %v3296
              %v3298 = vld [vmem:[%s3266 + $0x3c] sm:%s3259]
              %3299 = vst [vmem:[%s3267 + $0x3c] sm:%s3259] %v3298
              %v3300 = vld [vmem:[%s3266 + $0x40] sm:%s3259]
              %3301 = vst [vmem:[%s3267 + $0x40] sm:%s3259] %v3300
              %v3302 = vld [vmem:[%s3266 + $0x44] sm:%s3259]
              %3303 = vst [vmem:[%s3267 + $0x44] sm:%s3259] %v3302
              %v3304 = vld [vmem:[%s3266 + $0x48] sm:%s3259]
              %3305 = vst [vmem:[%s3267 + $0x48] sm:%s3259] %v3304
              %v3306 = vld [vmem:[%s3266 + $0x4c] sm:%s3259]
              %3307 = vst [vmem:[%s3267 + $0x4c] sm:%s3259] %v3306
              %v3308 = vld [vmem:[%s3266 + $0x50] sm:%s3259]
              %3309 = vst [vmem:[%s3267 + $0x50] sm:%s3259] %v3308
            $region52: #{qcnn_forward_pallas.5} parent=39 // loop_footer
              %s3265 = sadd.s32 1, %s3261
            $region53: #{qcnn_forward_pallas.5} parent=39 // loop_footer_branch
              %3260 = sbr.rel target = $region49
            $region54: #{qcnn_forward_pallas.5} parent=39 // loop_exit
              _
          $region40: #{qcnn_forward_pallas.5} parent=24 // pred_fallthru
            _
        $region25: #{qcnn_forward_pallas.5} parent=20 // pred_fallthru
          _
        // Predicated region
        $region26: #{qcnn_forward_pallas.5} parent=20 // pred_check
          _
        $region27: #{qcnn_forward_pallas.5} parent=20 // pred_check_branch
          %3195 = sbr.rel (0) target = $region29
        $region28: #{qcnn_forward_pallas.5} parent=20 // pred_region
          %s3197 = ssub.s32 16, 1
          loop: start=0, step=1, limit=1
          $region30: #{qcnn_forward_pallas.5} parent=28 // loop_pre_header
            _
          $region31: #{qcnn_forward_pallas.5} parent=28 // loop_header
            %s3199 = sphi 0, %s3203
            %p3200 = scmp.ge.s32.totalorder %s3199, 1
            %s3204 = sphi [#allocation2], [#allocation2]
            %s3205 = sphi %s3, %s3
          $region32: #{qcnn_forward_pallas.5} parent=28 // loop_header_branch
            %3202 = sbr.rel (%p3200) target = $region36
          $region33: #{qcnn_forward_pallas.5} parent=28 // loop_body
            %v3206 = vld [vmem:[%s3204] sm:%s3197]
            %3207 = vst [vmem:[%s3205] sm:%s3197] %v3206
            %v3208 = vld [vmem:[%s3204 + $0x4] sm:%s3197]
            %3209 = vst [vmem:[%s3205 + $0x4] sm:%s3197] %v3208
            %v3210 = vld [vmem:[%s3204 + $0x8] sm:%s3197]
            %3211 = vst [vmem:[%s3205 + $0x8] sm:%s3197] %v3210
            %v3212 = vld [vmem:[%s3204 + $0xc] sm:%s3197]
            %3213 = vst [vmem:[%s3205 + $0xc] sm:%s3197] %v3212
            %v3214 = vld [vmem:[%s3204 + $0x10] sm:%s3197]
            %3215 = vst [vmem:[%s3205 + $0x10] sm:%s3197] %v3214
            %v3216 = vld [vmem:[%s3204 + $0x14] sm:%s3197]
            %3217 = vst [vmem:[%s3205 + $0x14] sm:%s3197] %v3216
            %v3218 = vld [vmem:[%s3204 + $0x18] sm:%s3197]
            %3219 = vst [vmem:[%s3205 + $0x18] sm:%s3197] %v3218
            %v3220 = vld [vmem:[%s3204 + $0x1c] sm:%s3197]
            %3221 = vst [vmem:[%s3205 + $0x1c] sm:%s3197] %v3220
            %v3222 = vld [vmem:[%s3204 + $0x20] sm:%s3197]
            %3223 = vst [vmem:[%s3205 + $0x20] sm:%s3197] %v3222
            %v3224 = vld [vmem:[%s3204 + $0x24] sm:%s3197]
            %3225 = vst [vmem:[%s3205 + $0x24] sm:%s3197] %v3224
            %v3226 = vld [vmem:[%s3204 + $0x28] sm:%s3197]
            %3227 = vst [vmem:[%s3205 + $0x28] sm:%s3197] %v3226
            %v3228 = vld [vmem:[%s3204 + $0x2c] sm:%s3197]
            %3229 = vst [vmem:[%s3205 + $0x2c] sm:%s3197] %v3228
            %v3230 = vld [vmem:[%s3204 + $0x30] sm:%s3197]
            %3231 = vst [vmem:[%s3205 + $0x30] sm:%s3197] %v3230
            %v3232 = vld [vmem:[%s3204 + $0x34] sm:%s3197]
            %3233 = vst [vmem:[%s3205 + $0x34] sm:%s3197] %v3232
            %v3234 = vld [vmem:[%s3204 + $0x38] sm:%s3197]
            %3235 = vst [vmem:[%s3205 + $0x38] sm:%s3197] %v3234
            %v3236 = vld [vmem:[%s3204 + $0x3c] sm:%s3197]
            %3237 = vst [vmem:[%s3205 + $0x3c] sm:%s3197] %v3236
            %v3238 = vld [vmem:[%s3204 + $0x40] sm:%s3197]
            %3239 = vst [vmem:[%s3205 + $0x40] sm:%s3197] %v3238
            %v3240 = vld [vmem:[%s3204 + $0x44] sm:%s3197]
            %3241 = vst [vmem:[%s3205 + $0x44] sm:%s3197] %v3240
            %v3242 = vld [vmem:[%s3204 + $0x48] sm:%s3197]
            %3243 = vst [vmem:[%s3205 + $0x48] sm:%s3197] %v3242
            %v3244 = vld [vmem:[%s3204 + $0x4c] sm:%s3197]
            %3245 = vst [vmem:[%s3205 + $0x4c] sm:%s3197] %v3244
            %v3246 = vld [vmem:[%s3204 + $0x50] sm:%s3197]
            %3247 = vst [vmem:[%s3205 + $0x50] sm:%s3197] %v3246
          $region34: #{qcnn_forward_pallas.5} parent=28 // loop_footer
            %s3203 = sadd.s32 1, %s3199
          $region35: #{qcnn_forward_pallas.5} parent=28 // loop_footer_branch
            %3198 = sbr.rel target = $region31
          $region36: #{qcnn_forward_pallas.5} parent=28 // loop_exit
            _
        $region29: #{qcnn_forward_pallas.5} parent=20 // pred_fallthru
          _
      $region21: #{qcnn_forward_pallas.5} parent=16 // pred_fallthru
        _
      %3310 = vnop
    $region17: #{qcnn_forward_pallas.5} parent=1 // pred_fallthru
      _
    // Predicated region
    $region55: #{qcnn_forward_pallas.5} parent=1 // pred_check
      _
    $region56: #{qcnn_forward_pallas.5} parent=1 // pred_check_branch
      %3312 = sbr.rel (0) target = $region58
    $region57: #{qcnn_forward_pallas.5} parent=1 // pred_region
      _
    $region58: #{qcnn_forward_pallas.5} parent=1 // pred_fallthru
      _

// kernel: qcnn_forward_pallas.6
$region0: #{qcnn_forward_pallas.6}
  #allocation0 [shape = 'u32[]', space=smem, size = 0x4, offset = 0x4, fixed_abs, tag = 'smem constant byte address 0x4 - core index']
  #allocation1 [shape = 'u32[72,128]{1,0:T(1,128)}', space=vmem, size = 0x9000, scoped, tag = 'internal scratch']
  %s0 = inlined_call_operand.vmem [shape: bf16[98,1152], index: 0, kind: input, shape index: {}]
  %s1 = inlined_call_operand.vmem [shape: bf16[1152,128], index: 1, kind: input, shape index: {}]
  %s2 = inlined_call_operand.vmem [shape: f32[1,128], index: 2, kind: input, shape index: {}]
  %s3 = inlined_call_operand.vmem [shape: bf16[98,128], index: 3, kind: output, shape index: {}]
  %s4 = sld [smem:[#allocation0]]
  $region59: #{qcnn_forward_pallas.6} parent=0
    _
  %s6 = ssub.s32 1, %s4
  %s7 = scalar_select 0, %s6, %s4
  $region1: #{qcnn_forward_pallas.6} parent=0
    #allocation2 [shape = 'u8[28672]{0}', space=vmem, size = 0x7000, scoped, tag = 'output window, operand 0, single buffered']
    // Predicated region
    $region2: #{qcnn_forward_pallas.6} parent=1 // pred_check
      _
    $region3: #{qcnn_forward_pallas.6} parent=1 // pred_check_branch
      %9 = sbr.rel (0) target = $region5
    $region4: #{qcnn_forward_pallas.6} parent=1 // pred_region
      _
    $region5: #{qcnn_forward_pallas.6} parent=1 // pred_fallthru
      _
    // Predicated region
    $region6: #{qcnn_forward_pallas.6} parent=1 // pred_check
      _
    $region7: #{qcnn_forward_pallas.6} parent=1 // pred_check_branch
      %11 = sbr.rel (0) target = $region9
    $region8: #{qcnn_forward_pallas.6} parent=1 // pred_region
      _
    $region9: #{qcnn_forward_pallas.6} parent=1 // pred_fallthru
      _
    // Predicated region
    $region10: #{qcnn_forward_pallas.6} parent=1 // pred_check
      _
    $region11: #{qcnn_forward_pallas.6} parent=1 // pred_check_branch
      %13 = sbr.rel (0) target = $region13
    $region12: #{qcnn_forward_pallas.6} parent=1 // pred_region
      _
    $region13: #{qcnn_forward_pallas.6} parent=1 // pred_fallthru
      _
    %v14 = vld [vmem:[%s0] sm:$0xff]
    %v15 = vld [vmem:[%s0 + $0x8] sm:$0xff]
    %v16 = vld [vmem:[%s0 + $0x10] sm:$0xff]
    %v17 = vld [vmem:[%s0 + $0x18] sm:$0xff]
    %v18 = vld [vmem:[%s0 + $0x20] sm:$0xf]
    %v19 = vld [vmem:[%s0 + $0x24] sm:$0xff]
    %v20 = vld [vmem:[%s0 + $0x2c] sm:$0xff]
    %v21 = vld [vmem:[%s0 + $0x34] sm:$0xff]
    %v22 = vld [vmem:[%s0 + $0x3c] sm:$0xff]
    %v23 = vld [vmem:[%s0 + $0x44] sm:$0xf]
    %v24 = vld [vmem:[%s0 + $0x48] sm:$0xff]
    %v25 = vld [vmem:[%s0 + $0x50] sm:$0xff]
    %v26 = vld [vmem:[%s0 + $0x58] sm:$0xff]
    %v27 = vld [vmem:[%s0 + $0x60] sm:$0xff]
    %v28 = vld [vmem:[%s0 + $0x68] sm:$0xf]
    %v29 = vld [vmem:[%s0 + $0x6c] sm:$0xff]
    %v30 = vld [vmem:[%s0 + $0x74] sm:$0xff]
    %v31 = vld [vmem:[%s0 + $0x7c] sm:$0xff]
    %v32 = vld [vmem:[%s0 + $0x84] sm:$0xff]
    %v33 = vld [vmem:[%s0 + $0x8c] sm:$0xf]
    %v34 = vld [vmem:[%s0 + $0x90] sm:$0xff]
    %v35 = vld [vmem:[%s0 + $0x98] sm:$0xff]
    %v36 = vld [vmem:[%s0 + $0xa0] sm:$0xff]
    %v37 = vld [vmem:[%s0 + $0xa8] sm:$0xff]
    %v38 = vld [vmem:[%s0 + $0xb0] sm:$0xf]
    %v39 = vld [vmem:[%s0 + $0xb4] sm:$0xff]
    %v40 = vld [vmem:[%s0 + $0xbc] sm:$0xff]
    %v41 = vld [vmem:[%s0 + $0xc4] sm:$0xff]
    %v42 = vld [vmem:[%s0 + $0xcc] sm:$0xff]
    %v43 = vld [vmem:[%s0 + $0xd4] sm:$0xf]
    %v44 = vld [vmem:[%s0 + $0xd8] sm:$0xff]
    %v45 = vld [vmem:[%s0 + $0xe0] sm:$0xff]
    %v46 = vld [vmem:[%s0 + $0xe8] sm:$0xff]
    %v47 = vld [vmem:[%s0 + $0xf0] sm:$0xff]
    %v48 = vld [vmem:[%s0 + $0xf8] sm:$0xf]
    %v49 = vld [vmem:[%s0 + $0xfc] sm:$0xff]
    %v50 = vld [vmem:[%s0 + $0x104] sm:$0xff]
    %v51 = vld [vmem:[%s0 + $0x10c] sm:$0xff]
    %v52 = vld [vmem:[%s0 + $0x114] sm:$0xff]
    %v53 = vld [vmem:[%s0 + $0x11c] sm:$0xf]
    %v54 = vld [vmem:[%s0 + $0x120] sm:$0xff]
    %v55 = vld [vmem:[%s0 + $0x128] sm:$0xff]
    %v56 = vld [vmem:[%s0 + $0x130] sm:$0xff]
    %v57 = vld [vmem:[%s0 + $0x138] sm:$0xff]
    %v58 = vld [vmem:[%s0 + $0x140] sm:$0xf]
    %v59 = vld [vmem:[%s0 + $0x144] sm:$0xff]
    %v60 = vld [vmem:[%s0 + $0x14c] sm:$0xff]
    %v61 = vld [vmem:[%s0 + $0x154] sm:$0xff]
    %v62 = vld [vmem:[%s0 + $0x15c] sm:$0xff]
    %v63 = vld [vmem:[%s0 + $0x164] sm:$0xf]
    %v64 = vld [vmem:[%s0 + $0x168] sm:$0xff]
    %v65 = vld [vmem:[%s0 + $0x170] sm:$0xff]
    %v66 = vld [vmem:[%s0 + $0x178] sm:$0xff]
    %v67 = vld [vmem:[%s0 + $0x180] sm:$0xff]
    %v68 = vld [vmem:[%s0 + $0x188] sm:$0xf]
    %v69 = vld [vmem:[%s0 + $0x18c] sm:$0xff]
    %v70 = vld [vmem:[%s0 + $0x194] sm:$0xff]
    %v71 = vld [vmem:[%s0 + $0x19c] sm:$0xff]
    %v72 = vld [vmem:[%s0 + $0x1a4] sm:$0xff]
    %v73 = vld [vmem:[%s0 + $0x1ac] sm:$0xf]
    %v74 = vld [vmem:[%s0 + $0x1b0] sm:$0xff]
    %v75 = vld [vmem:[%s0 + $0x1b8] sm:$0xff]
    %v76 = vld [vmem:[%s0 + $0x1c0] sm:$0xff]
    %v77 = vld [vmem:[%s0 + $0x1c8] sm:$0xff]
    %v78 = vld [vmem:[%s0 + $0x1d0] sm:$0xf]
    %v79 = vld [vmem:[%s0 + $0x1d4] sm:$0xff]
    %v80 = vld [vmem:[%s0 + $0x1dc] sm:$0xff]
    %v81 = vld [vmem:[%s0 + $0x1e4] sm:$0xff]
    %v82 = vld [vmem:[%s0 + $0x1ec] sm:$0xff]
    %v83 = vld [vmem:[%s0 + $0x1f4] sm:$0xf]
    %v84 = vld [vmem:[%s1] sm:$0xf]
    %v85 = vld [vmem:[%s1 + $0x4] sm:$0xf]
    %v86 = vld [vmem:[%s1 + $0x8] sm:$0xf]
    %v87 = vld [vmem:[%s1 + $0xc] sm:$0xf]
    %v88 = vld [vmem:[%s1 + $0x10] sm:$0xf]
    %v89 = vld [vmem:[%s1 + $0x14] sm:$0xf]
    %v90 = vld [vmem:[%s1 + $0x18] sm:$0xf]
    %v91 = vld [vmem:[%s1 + $0x1c] sm:$0xf]
    %v92 = vld [vmem:[%s1 + $0x20] sm:$0xf]
    %v93 = vld [vmem:[%s1 + $0x24] sm:$0xf]
    %v94 = vld [vmem:[%s1 + $0x28] sm:$0xf]
    %v95 = vld [vmem:[%s1 + $0x2c] sm:$0xf]
    %v96 = vld [vmem:[%s1 + $0x30] sm:$0xf]
    %v97 = vld [vmem:[%s1 + $0x34] sm:$0xf]
    %v98 = vld [vmem:[%s1 + $0x38] sm:$0xf]
    %v99 = vld [vmem:[%s1 + $0x3c] sm:$0xf]
    %v100 = vld [vmem:[%s1 + $0x40] sm:$0xf]
    %v101 = vld [vmem:[%s1 + $0x44] sm:$0xf]
    %v102 = vld [vmem:[%s1 + $0x48] sm:$0xf]
    %v103 = vld [vmem:[%s1 + $0x4c] sm:$0xf]
    %v104 = vld [vmem:[%s1 + $0x50] sm:$0xf]
    %v105 = vld [vmem:[%s1 + $0x54] sm:$0xf]
    %v106 = vld [vmem:[%s1 + $0x58] sm:$0xf]
    %v107 = vld [vmem:[%s1 + $0x5c] sm:$0xf]
    %v108 = vld [vmem:[%s1 + $0x60] sm:$0xf]
    %v109 = vld [vmem:[%s1 + $0x64] sm:$0xf]
    %v110 = vld [vmem:[%s1 + $0x68] sm:$0xf]
    %v111 = vld [vmem:[%s1 + $0x6c] sm:$0xf]
    %v112 = vld [vmem:[%s1 + $0x70] sm:$0xf]
    %v113 = vld [vmem:[%s1 + $0x74] sm:$0xf]
    %v114 = vld [vmem:[%s1 + $0x78] sm:$0xf]
    %v115 = vld [vmem:[%s1 + $0x7c] sm:$0xf]
    %v116 = vld [vmem:[%s1 + $0x80] sm:$0xf]
    %v117 = vld [vmem:[%s1 + $0x84] sm:$0xf]
    %v118 = vld [vmem:[%s1 + $0x88] sm:$0xf]
    %v119 = vld [vmem:[%s1 + $0x8c] sm:$0xf]
    %v120 = vld [vmem:[%s1 + $0x90] sm:$0xf]
    %v121 = vld [vmem:[%s1 + $0x94] sm:$0xf]
    %v122 = vld [vmem:[%s1 + $0x98] sm:$0xf]
    %v123 = vld [vmem:[%s1 + $0x9c] sm:$0xf]
    %v124 = vld [vmem:[%s1 + $0xa0] sm:$0xf]
    %v125 = vld [vmem:[%s1 + $0xa4] sm:$0xf]
    %v126 = vld [vmem:[%s1 + $0xa8] sm:$0xf]
    %v127 = vld [vmem:[%s1 + $0xac] sm:$0xf]
    %v128 = vld [vmem:[%s1 + $0xb0] sm:$0xf]
    %v129 = vld [vmem:[%s1 + $0xb4] sm:$0xf]
    %v130 = vld [vmem:[%s1 + $0xb8] sm:$0xf]
    %v131 = vld [vmem:[%s1 + $0xbc] sm:$0xf]
    %v132 = vld [vmem:[%s1 + $0xc0] sm:$0xf]
    %v133 = vld [vmem:[%s1 + $0xc4] sm:$0xf]
    %v134 = vld [vmem:[%s1 + $0xc8] sm:$0xf]
    %v135 = vld [vmem:[%s1 + $0xcc] sm:$0xf]
    %v136 = vld [vmem:[%s1 + $0xd0] sm:$0xf]
    %v137 = vld [vmem:[%s1 + $0xd4] sm:$0xf]
    %v138 = vld [vmem:[%s1 + $0xd8] sm:$0xf]
    %v139 = vld [vmem:[%s1 + $0xdc] sm:$0xf]
    %v140 = vld [vmem:[%s1 + $0xe0] sm:$0xf]
    %v141 = vld [vmem:[%s1 + $0xe4] sm:$0xf]
    %v142 = vld [vmem:[%s1 + $0xe8] sm:$0xf]
    %v143 = vld [vmem:[%s1 + $0xec] sm:$0xf]
    %v144 = vld [vmem:[%s1 + $0xf0] sm:$0xf]
    %v145 = vld [vmem:[%s1 + $0xf4] sm:$0xf]
    %v146 = vld [vmem:[%s1 + $0xf8] sm:$0xf]
    %v147 = vld [vmem:[%s1 + $0xfc] sm:$0xf]
    %v148 = vld [vmem:[%s1 + $0x100] sm:$0xf]
    %v149 = vld [vmem:[%s1 + $0x104] sm:$0xf]
    %v150 = vld [vmem:[%s1 + $0x108] sm:$0xf]
    %v151 = vld [vmem:[%s1 + $0x10c] sm:$0xf]
    %v152 = vld [vmem:[%s1 + $0x110] sm:$0xf]
    %v153 = vld [vmem:[%s1 + $0x114] sm:$0xf]
    %v154 = vld [vmem:[%s1 + $0x118] sm:$0xf]
    %v155 = vld [vmem:[%s1 + $0x11c] sm:$0xf]
    %v156 = vld [vmem:[%s1 + $0x120] sm:$0xf]
    %v157 = vld [vmem:[%s1 + $0x124] sm:$0xf]
    %v158 = vld [vmem:[%s1 + $0x128] sm:$0xf]
    %v159 = vld [vmem:[%s1 + $0x12c] sm:$0xf]
    %v160 = vld [vmem:[%s1 + $0x130] sm:$0xf]
    %v161 = vld [vmem:[%s1 + $0x134] sm:$0xf]
    %v162 = vld [vmem:[%s1 + $0x138] sm:$0xf]
    %v163 = vld [vmem:[%s1 + $0x13c] sm:$0xf]
    %v164 = vld [vmem:[%s1 + $0x140] sm:$0xf]
    %v165 = vld [vmem:[%s1 + $0x144] sm:$0xf]
    %v166 = vld [vmem:[%s1 + $0x148] sm:$0xf]
    %v167 = vld [vmem:[%s1 + $0x14c] sm:$0xf]
    %v168 = vld [vmem:[%s1 + $0x150] sm:$0xf]
    %v169 = vld [vmem:[%s1 + $0x154] sm:$0xf]
    %v170 = vld [vmem:[%s1 + $0x158] sm:$0xf]
    %v171 = vld [vmem:[%s1 + $0x15c] sm:$0xf]
    %v172 = vld [vmem:[%s1 + $0x160] sm:$0xf]
    %v173 = vld [vmem:[%s1 + $0x164] sm:$0xf]
    %v174 = vld [vmem:[%s1 + $0x168] sm:$0xf]
    %v175 = vld [vmem:[%s1 + $0x16c] sm:$0xf]
    %v176 = vld [vmem:[%s1 + $0x170] sm:$0xf]
    %v177 = vld [vmem:[%s1 + $0x174] sm:$0xf]
    %v178 = vld [vmem:[%s1 + $0x178] sm:$0xf]
    %v179 = vld [vmem:[%s1 + $0x17c] sm:$0xf]
    %v180 = vld [vmem:[%s1 + $0x180] sm:$0xf]
    %v181 = vld [vmem:[%s1 + $0x184] sm:$0xf]
    %v182 = vld [vmem:[%s1 + $0x188] sm:$0xf]
    %v183 = vld [vmem:[%s1 + $0x18c] sm:$0xf]
    %v184 = vld [vmem:[%s1 + $0x190] sm:$0xf]
    %v185 = vld [vmem:[%s1 + $0x194] sm:$0xf]
    %v186 = vld [vmem:[%s1 + $0x198] sm:$0xf]
    %v187 = vld [vmem:[%s1 + $0x19c] sm:$0xf]
    %v188 = vld [vmem:[%s1 + $0x1a0] sm:$0xf]
    %v189 = vld [vmem:[%s1 + $0x1a4] sm:$0xf]
    %v190 = vld [vmem:[%s1 + $0x1a8] sm:$0xf]
    %v191 = vld [vmem:[%s1 + $0x1ac] sm:$0xf]
    %v192 = vld [vmem:[%s1 + $0x1b0] sm:$0xf]
    %v193 = vld [vmem:[%s1 + $0x1b4] sm:$0xf]
    %v194 = vld [vmem:[%s1 + $0x1b8] sm:$0xf]
    %v195 = vld [vmem:[%s1 + $0x1bc] sm:$0xf]
    %v196 = vld [vmem:[%s1 + $0x1c0] sm:$0xf]
    %v197 = vld [vmem:[%s1 + $0x1c4] sm:$0xf]
    %v198 = vld [vmem:[%s1 + $0x1c8] sm:$0xf]
    %v199 = vld [vmem:[%s1 + $0x1cc] sm:$0xf]
    %v200 = vld [vmem:[%s1 + $0x1d0] sm:$0xf]
    %v201 = vld [vmem:[%s1 + $0x1d4] sm:$0xf]
    %v202 = vld [vmem:[%s1 + $0x1d8] sm:$0xf]
    %v203 = vld [vmem:[%s1 + $0x1dc] sm:$0xf]
    %v204 = vld [vmem:[%s1 + $0x1e0] sm:$0xf]
    %v205 = vld [vmem:[%s1 + $0x1e4] sm:$0xf]
    %v206 = vld [vmem:[%s1 + $0x1e8] sm:$0xf]
    %v207 = vld [vmem:[%s1 + $0x1ec] sm:$0xf]
    %v208 = vld [vmem:[%s1 + $0x1f0] sm:$0xf]
    %v209 = vld [vmem:[%s1 + $0x1f4] sm:$0xf]
    %v210 = vld [vmem:[%s1 + $0x1f8] sm:$0xf]
    %v211 = vld [vmem:[%s1 + $0x1fc] sm:$0xf]
    %v212 = vld [vmem:[%s1 + $0x200] sm:$0xf]
    %v213 = vld [vmem:[%s1 + $0x204] sm:$0xf]
    %v214 = vld [vmem:[%s1 + $0x208] sm:$0xf]
    %v215 = vld [vmem:[%s1 + $0x20c] sm:$0xf]
    %v216 = vld [vmem:[%s1 + $0x210] sm:$0xf]
    %v217 = vld [vmem:[%s1 + $0x214] sm:$0xf]
    %v218 = vld [vmem:[%s1 + $0x218] sm:$0xf]
    %v219 = vld [vmem:[%s1 + $0x21c] sm:$0xf]
    %v220 = vld [vmem:[%s1 + $0x220] sm:$0xf]
    %v221 = vld [vmem:[%s1 + $0x224] sm:$0xf]
    %v222 = vld [vmem:[%s1 + $0x228] sm:$0xf]
    %v223 = vld [vmem:[%s1 + $0x22c] sm:$0xf]
    %v224 = vld [vmem:[%s1 + $0x230] sm:$0xf]
    %v225 = vld [vmem:[%s1 + $0x234] sm:$0xf]
    %v226 = vld [vmem:[%s1 + $0x238] sm:$0xf]
    %v227 = vld [vmem:[%s1 + $0x23c] sm:$0xf]
    %v228 = vld [vmem:[%s2] sm:$0x1]
    %v230 = vperm.slane %v228, 0
    %v302 = vunpack.c.l.b16 %v14
    %v303 = vunpack.c.h.b16 %v14
    %v304 = vunpack.c.l.b16 %v15
    %v305 = vunpack.c.h.b16 %v15
    %v306 = vunpack.c.l.b16 %v16
    %v307 = vunpack.c.h.b16 %v16
    %v308 = vunpack.c.l.b16 %v17
    %v309 = vunpack.c.h.b16 %v17
    %v310 = vunpack.c.l.b16 %v18
    %v311 = vunpack.c.l.b16 %v19
    %v312 = vunpack.c.h.b16 %v19
    %v313 = vunpack.c.l.b16 %v20
    %v314 = vunpack.c.h.b16 %v20
    %v315 = vunpack.c.l.b16 %v21
    %v316 = vunpack.c.h.b16 %v21
    %v317 = vunpack.c.l.b16 %v22
    %v318 = vunpack.c.h.b16 %v22
    %v319 = vunpack.c.l.b16 %v23
    %v320 = vunpack.c.l.b16 %v24
    %v321 = vunpack.c.h.b16 %v24
    %v322 = vunpack.c.l.b16 %v25
    %v323 = vunpack.c.h.b16 %v25
    %v324 = vunpack.c.l.b16 %v26
    %v325 = vunpack.c.h.b16 %v26
    %v326 = vunpack.c.l.b16 %v27
    %v327 = vunpack.c.h.b16 %v27
    %v328 = vunpack.c.l.b16 %v28
    %v329 = vunpack.c.l.b16 %v29
    %v330 = vunpack.c.h.b16 %v29
    %v331 = vunpack.c.l.b16 %v30
    %v332 = vunpack.c.h.b16 %v30
    %v333 = vunpack.c.l.b16 %v31
    %v334 = vunpack.c.h.b16 %v31
    %v335 = vunpack.c.l.b16 %v32
    %v336 = vunpack.c.h.b16 %v32
    %v337 = vunpack.c.l.b16 %v33
    %v338 = vunpack.c.l.b16 %v34
    %v339 = vunpack.c.h.b16 %v34
    %v340 = vunpack.c.l.b16 %v35
    %v341 = vunpack.c.h.b16 %v35
    %v342 = vunpack.c.l.b16 %v36
    %v343 = vunpack.c.h.b16 %v36
    %v344 = vunpack.c.l.b16 %v37
    %v345 = vunpack.c.h.b16 %v37
    %v346 = vunpack.c.l.b16 %v38
    %v347 = vunpack.c.l.b16 %v39
    %v348 = vunpack.c.h.b16 %v39
    %v349 = vunpack.c.l.b16 %v40
    %v350 = vunpack.c.h.b16 %v40
    %v351 = vunpack.c.l.b16 %v41
    %v352 = vunpack.c.h.b16 %v41
    %v353 = vunpack.c.l.b16 %v42
    %v354 = vunpack.c.h.b16 %v42
    %v355 = vunpack.c.l.b16 %v43
    %v356 = vunpack.c.l.b16 %v44
    %v357 = vunpack.c.h.b16 %v44
    %v358 = vunpack.c.l.b16 %v45
    %v359 = vunpack.c.h.b16 %v45
    %v360 = vunpack.c.l.b16 %v46
    %v361 = vunpack.c.h.b16 %v46
    %v362 = vunpack.c.l.b16 %v47
    %v363 = vunpack.c.h.b16 %v47
    %v364 = vunpack.c.l.b16 %v48
    %v365 = vunpack.c.l.b16 %v49
    %v366 = vunpack.c.h.b16 %v49
    %v367 = vunpack.c.l.b16 %v50
    %v368 = vunpack.c.h.b16 %v50
    %v369 = vunpack.c.l.b16 %v51
    %v370 = vunpack.c.h.b16 %v51
    %v371 = vunpack.c.l.b16 %v52
    %v372 = vunpack.c.h.b16 %v52
    %v373 = vunpack.c.l.b16 %v53
    %v374 = vunpack.c.l.b16 %v54
    %v375 = vunpack.c.h.b16 %v54
    %v376 = vunpack.c.l.b16 %v55
    %v377 = vunpack.c.h.b16 %v55
    %v378 = vunpack.c.l.b16 %v56
    %v379 = vunpack.c.h.b16 %v56
    %v380 = vunpack.c.l.b16 %v57
    %v381 = vunpack.c.h.b16 %v57
    %v382 = vunpack.c.l.b16 %v58
    %v383 = vunpack.c.l.b16 %v59
    %v384 = vunpack.c.h.b16 %v59
    %v385 = vunpack.c.l.b16 %v60
    %v386 = vunpack.c.h.b16 %v60
    %v387 = vunpack.c.l.b16 %v61
    %v388 = vunpack.c.h.b16 %v61
    %v389 = vunpack.c.l.b16 %v62
    %v390 = vunpack.c.h.b16 %v62
    %v391 = vunpack.c.l.b16 %v63
    %v392 = vunpack.c.l.b16 %v64
    %v393 = vunpack.c.h.b16 %v64
    %v394 = vunpack.c.l.b16 %v65
    %v395 = vunpack.c.h.b16 %v65
    %v396 = vunpack.c.l.b16 %v66
    %v397 = vunpack.c.h.b16 %v66
    %v398 = vunpack.c.l.b16 %v67
    %v399 = vunpack.c.h.b16 %v67
    %v400 = vunpack.c.l.b16 %v68
    %v401 = vunpack.c.l.b16 %v69
    %v402 = vunpack.c.h.b16 %v69
    %v403 = vunpack.c.l.b16 %v70
    %v404 = vunpack.c.h.b16 %v70
    %v405 = vunpack.c.l.b16 %v71
    %v406 = vunpack.c.h.b16 %v71
    %v407 = vunpack.c.l.b16 %v72
    %v408 = vunpack.c.h.b16 %v72
    %v409 = vunpack.c.l.b16 %v73
    %v410 = vunpack.c.l.b16 %v74
    %v411 = vunpack.c.h.b16 %v74
    %v412 = vunpack.c.l.b16 %v75
    %v413 = vunpack.c.h.b16 %v75
    %v414 = vunpack.c.l.b16 %v76
    %v415 = vunpack.c.h.b16 %v76
    %v416 = vunpack.c.l.b16 %v77
    %v417 = vunpack.c.h.b16 %v77
    %v418 = vunpack.c.l.b16 %v78
    %v419 = vunpack.c.l.b16 %v79
    %v420 = vunpack.c.h.b16 %v79
    %v421 = vunpack.c.l.b16 %v80
    %v422 = vunpack.c.h.b16 %v80
    %v423 = vunpack.c.l.b16 %v81
    %v424 = vunpack.c.h.b16 %v81
    %v425 = vunpack.c.l.b16 %v82
    %v426 = vunpack.c.h.b16 %v82
    %v427 = vunpack.c.l.b16 %v83
    %v428 = vpack.c.b16 %v311, %v302
    %v429 = vpack.c.b16 %v312, %v303
    %v430 = vpack.c.b16 %v313, %v304
    %v431 = vpack.c.b16 %v314, %v305
    %v432 = vpack.c.b16 %v315, %v306
    %v433 = vpack.c.b16 %v316, %v307
    %v434 = vpack.c.b16 %v317, %v308
    %v435 = vpack.c.b16 %v318, %v309
    %v436 = vpack.c.b16 %v319, %v310
    %v437 = vpack.c.b16 %v329, %v320
    %v438 = vpack.c.b16 %v330, %v321
    %v439 = vpack.c.b16 %v331, %v322
    %v440 = vpack.c.b16 %v332, %v323
    %v441 = vpack.c.b16 %v333, %v324
    %v442 = vpack.c.b16 %v334, %v325
    %v443 = vpack.c.b16 %v335, %v326
    %v444 = vpack.c.b16 %v336, %v327
    %v445 = vpack.c.b16 %v337, %v328
    %v446 = vpack.c.b16 %v347, %v338
    %v447 = vpack.c.b16 %v348, %v339
    %v448 = vpack.c.b16 %v349, %v340
    %v449 = vpack.c.b16 %v350, %v341
    %v450 = vpack.c.b16 %v351, %v342
    %v451 = vpack.c.b16 %v352, %v343
    %v452 = vpack.c.b16 %v353, %v344
    %v453 = vpack.c.b16 %v354, %v345
    %v454 = vpack.c.b16 %v355, %v346
    %v455 = vpack.c.b16 %v365, %v356
    %v456 = vpack.c.b16 %v366, %v357
    %v457 = vpack.c.b16 %v367, %v358
    %v458 = vpack.c.b16 %v368, %v359
    %v459 = vpack.c.b16 %v369, %v360
    %v460 = vpack.c.b16 %v370, %v361
    %v461 = vpack.c.b16 %v371, %v362
    %v462 = vpack.c.b16 %v372, %v363
    %v463 = vpack.c.b16 %v373, %v364
    %v464 = vpack.c.b16 %v383, %v374
    %v465 = vpack.c.b16 %v384, %v375
    %v466 = vpack.c.b16 %v385, %v376
    %v467 = vpack.c.b16 %v386, %v377
    %v468 = vpack.c.b16 %v387, %v378
    %v469 = vpack.c.b16 %v388, %v379
    %v470 = vpack.c.b16 %v389, %v380
    %v471 = vpack.c.b16 %v390, %v381
    %v472 = vpack.c.b16 %v391, %v382
    %v473 = vpack.c.b16 %v401, %v392
    %v474 = vpack.c.b16 %v402, %v393
    %v475 = vpack.c.b16 %v403, %v394
    %v476 = vpack.c.b16 %v404, %v395
    %v477 = vpack.c.b16 %v405, %v396
    %v478 = vpack.c.b16 %v406, %v397
    %v479 = vpack.c.b16 %v407, %v398
    %v480 = vpack.c.b16 %v408, %v399
    %v481 = vpack.c.b16 %v409, %v400
    %v482 = vpack.c.b16 %v419, %v410
    %v483 = vpack.c.b16 %v420, %v411
    %v484 = vpack.c.b16 %v421, %v412
    %v485 = vpack.c.b16 %v422, %v413
    %v486 = vpack.c.b16 %v423, %v414
    %v487 = vpack.c.b16 %v424, %v415
    %v488 = vpack.c.b16 %v425, %v416
    %v489 = vpack.c.b16 %v426, %v417
    %v490 = vpack.c.b16 %v427, %v418
    %v698 = vunpack.c.l.b16 %v84
    %v699 = vunpack.c.l.b16 %v85
    %v700 = vunpack.c.l.b16 %v86
    %v701 = vunpack.c.l.b16 %v87
    %v702 = vunpack.c.l.b16 %v88
    %v703 = vunpack.c.l.b16 %v89
    %v704 = vunpack.c.l.b16 %v90
    %v705 = vunpack.c.l.b16 %v91
    %v706 = vunpack.c.l.b16 %v92
    %v707 = vunpack.c.l.b16 %v93
    %v708 = vunpack.c.l.b16 %v94
    %v709 = vunpack.c.l.b16 %v95
    %v710 = vunpack.c.l.b16 %v96
    %v711 = vunpack.c.l.b16 %v97
    %v712 = vunpack.c.l.b16 %v98
    %v713 = vunpack.c.l.b16 %v99
    %v714 = vunpack.c.l.b16 %v100
    %v715 = vunpack.c.l.b16 %v101
    %v716 = vunpack.c.l.b16 %v102
    %v717 = vunpack.c.l.b16 %v103
    %v718 = vunpack.c.l.b16 %v104
    %v719 = vunpack.c.l.b16 %v105
    %v720 = vunpack.c.l.b16 %v106
    %v721 = vunpack.c.l.b16 %v107
    %v722 = vunpack.c.l.b16 %v108
    %v723 = vunpack.c.l.b16 %v109
    %v724 = vunpack.c.l.b16 %v110
    %v725 = vunpack.c.l.b16 %v111
    %v726 = vunpack.c.l.b16 %v112
    %v727 = vunpack.c.l.b16 %v113
    %v728 = vunpack.c.l.b16 %v114
    %v729 = vunpack.c.l.b16 %v115
    %v730 = vunpack.c.l.b16 %v116
    %v731 = vunpack.c.l.b16 %v117
    %v732 = vunpack.c.l.b16 %v118
    %v733 = vunpack.c.l.b16 %v119
    %v734 = vunpack.c.l.b16 %v120
    %v735 = vunpack.c.l.b16 %v121
    %v736 = vunpack.c.l.b16 %v122
    %v737 = vunpack.c.l.b16 %v123
    %v738 = vunpack.c.l.b16 %v124
    %v739 = vunpack.c.l.b16 %v125
    %v740 = vunpack.c.l.b16 %v126
    %v741 = vunpack.c.l.b16 %v127
    %v742 = vunpack.c.l.b16 %v128
    %v743 = vunpack.c.l.b16 %v129
    %v744 = vunpack.c.l.b16 %v130
    %v745 = vunpack.c.l.b16 %v131
    %v746 = vunpack.c.l.b16 %v132
    %v747 = vunpack.c.l.b16 %v133
    %v748 = vunpack.c.l.b16 %v134
    %v749 = vunpack.c.l.b16 %v135
    %v750 = vunpack.c.l.b16 %v136
    %v751 = vunpack.c.l.b16 %v137
    %v752 = vunpack.c.l.b16 %v138
    %v753 = vunpack.c.l.b16 %v139
    %v754 = vunpack.c.l.b16 %v140
    %v755 = vunpack.c.l.b16 %v141
    %v756 = vunpack.c.l.b16 %v142
    %v757 = vunpack.c.l.b16 %v143
    %v758 = vunpack.c.l.b16 %v144
    %v759 = vunpack.c.l.b16 %v145
    %v760 = vunpack.c.l.b16 %v146
    %v761 = vunpack.c.l.b16 %v147
    %v762 = vunpack.c.l.b16 %v148
    %v763 = vunpack.c.l.b16 %v149
    %v764 = vunpack.c.l.b16 %v150
    %v765 = vunpack.c.l.b16 %v151
    %v766 = vunpack.c.l.b16 %v152
    %v767 = vunpack.c.l.b16 %v153
    %v768 = vunpack.c.l.b16 %v154
    %v769 = vunpack.c.l.b16 %v155
    %v770 = vunpack.c.l.b16 %v156
    %v771 = vunpack.c.l.b16 %v157
    %v772 = vunpack.c.l.b16 %v158
    %v773 = vunpack.c.l.b16 %v159
    %v774 = vunpack.c.l.b16 %v160
    %v775 = vunpack.c.l.b16 %v161
    %v776 = vunpack.c.l.b16 %v162
    %v777 = vunpack.c.l.b16 %v163
    %v778 = vunpack.c.l.b16 %v164
    %v779 = vunpack.c.l.b16 %v165
    %v780 = vunpack.c.l.b16 %v166
    %v781 = vunpack.c.l.b16 %v167
    %v782 = vunpack.c.l.b16 %v168
    %v783 = vunpack.c.l.b16 %v169
    %v784 = vunpack.c.l.b16 %v170
    %v785 = vunpack.c.l.b16 %v171
    %v786 = vunpack.c.l.b16 %v172
    %v787 = vunpack.c.l.b16 %v173
    %v788 = vunpack.c.l.b16 %v174
    %v789 = vunpack.c.l.b16 %v175
    %v790 = vunpack.c.l.b16 %v176
    %v791 = vunpack.c.l.b16 %v177
    %v792 = vunpack.c.l.b16 %v178
    %v793 = vunpack.c.l.b16 %v179
    %v794 = vunpack.c.l.b16 %v180
    %v795 = vunpack.c.l.b16 %v181
    %v796 = vunpack.c.l.b16 %v182
    %v797 = vunpack.c.l.b16 %v183
    %v798 = vunpack.c.l.b16 %v184
    %v799 = vunpack.c.l.b16 %v185
    %v800 = vunpack.c.l.b16 %v186
    %v801 = vunpack.c.l.b16 %v187
    %v802 = vunpack.c.l.b16 %v188
    %v803 = vunpack.c.l.b16 %v189
    %v804 = vunpack.c.l.b16 %v190
    %v805 = vunpack.c.l.b16 %v191
    %v806 = vunpack.c.l.b16 %v192
    %v807 = vunpack.c.l.b16 %v193
    %v808 = vunpack.c.l.b16 %v194
    %v809 = vunpack.c.l.b16 %v195
    %v810 = vunpack.c.l.b16 %v196
    %v811 = vunpack.c.l.b16 %v197
    %v812 = vunpack.c.l.b16 %v198
    %v813 = vunpack.c.l.b16 %v199
    %v814 = vunpack.c.l.b16 %v200
    %v815 = vunpack.c.l.b16 %v201
    %v816 = vunpack.c.l.b16 %v202
    %v817 = vunpack.c.l.b16 %v203
    %v818 = vunpack.c.l.b16 %v204
    %v819 = vunpack.c.l.b16 %v205
    %v820 = vunpack.c.l.b16 %v206
    %v821 = vunpack.c.l.b16 %v207
    %v822 = vunpack.c.l.b16 %v208
    %v823 = vunpack.c.l.b16 %v209
    %v824 = vunpack.c.l.b16 %v210
    %v825 = vunpack.c.l.b16 %v211
    %v826 = vunpack.c.l.b16 %v212
    %v827 = vunpack.c.l.b16 %v213
    %v828 = vunpack.c.l.b16 %v214
    %v829 = vunpack.c.l.b16 %v215
    %v830 = vunpack.c.l.b16 %v216
    %v831 = vunpack.c.l.b16 %v217
    %v832 = vunpack.c.l.b16 %v218
    %v833 = vunpack.c.l.b16 %v219
    %v834 = vunpack.c.l.b16 %v220
    %v835 = vunpack.c.l.b16 %v221
    %v836 = vunpack.c.l.b16 %v222
    %v837 = vunpack.c.l.b16 %v223
    %v838 = vunpack.c.l.b16 %v224
    %v839 = vunpack.c.l.b16 %v225
    %v840 = vunpack.c.l.b16 %v226
    %v841 = vunpack.c.l.b16 %v227
    %v842 = vpack.c.b16 %v699, %v698
    %v843 = vpack.c.b16 %v701, %v700
    %v844 = vpack.c.b16 %v703, %v702
    %v845 = vpack.c.b16 %v705, %v704
    %v846 = vpack.c.b16 %v707, %v706
    %v847 = vpack.c.b16 %v709, %v708
    %v848 = vpack.c.b16 %v711, %v710
    %v849 = vpack.c.b16 %v713, %v712
    %v850 = vpack.c.b16 %v715, %v714
    %v851 = vpack.c.b16 %v717, %v716
    %v852 = vpack.c.b16 %v719, %v718
    %v853 = vpack.c.b16 %v721, %v720
    %v854 = vpack.c.b16 %v723, %v722
    %v855 = vpack.c.b16 %v725, %v724
    %v856 = vpack.c.b16 %v727, %v726
    %v857 = vpack.c.b16 %v729, %v728
    %v858 = vpack.c.b16 %v731, %v730
    %v859 = vpack.c.b16 %v733, %v732
    %v860 = vpack.c.b16 %v735, %v734
    %v861 = vpack.c.b16 %v737, %v736
    %v862 = vpack.c.b16 %v739, %v738
    %v863 = vpack.c.b16 %v741, %v740
    %v864 = vpack.c.b16 %v743, %v742
    %v865 = vpack.c.b16 %v745, %v744
    %v866 = vpack.c.b16 %v747, %v746
    %v867 = vpack.c.b16 %v749, %v748
    %v868 = vpack.c.b16 %v751, %v750
    %v869 = vpack.c.b16 %v753, %v752
    %v870 = vpack.c.b16 %v755, %v754
    %v871 = vpack.c.b16 %v757, %v756
    %v872 = vpack.c.b16 %v759, %v758
    %v873 = vpack.c.b16 %v761, %v760
    %v874 = vpack.c.b16 %v763, %v762
    %v875 = vpack.c.b16 %v765, %v764
    %v876 = vpack.c.b16 %v767, %v766
    %v877 = vpack.c.b16 %v769, %v768
    %v878 = vpack.c.b16 %v771, %v770
    %v879 = vpack.c.b16 %v773, %v772
    %v880 = vpack.c.b16 %v775, %v774
    %v881 = vpack.c.b16 %v777, %v776
    %v882 = vpack.c.b16 %v779, %v778
    %v883 = vpack.c.b16 %v781, %v780
    %v884 = vpack.c.b16 %v783, %v782
    %v885 = vpack.c.b16 %v785, %v784
    %v886 = vpack.c.b16 %v787, %v786
    %v887 = vpack.c.b16 %v789, %v788
    %v888 = vpack.c.b16 %v791, %v790
    %v889 = vpack.c.b16 %v793, %v792
    %v890 = vpack.c.b16 %v795, %v794
    %v891 = vpack.c.b16 %v797, %v796
    %v892 = vpack.c.b16 %v799, %v798
    %v893 = vpack.c.b16 %v801, %v800
    %v894 = vpack.c.b16 %v803, %v802
    %v895 = vpack.c.b16 %v805, %v804
    %v896 = vpack.c.b16 %v807, %v806
    %v897 = vpack.c.b16 %v809, %v808
    %v898 = vpack.c.b16 %v811, %v810
    %v899 = vpack.c.b16 %v813, %v812
    %v900 = vpack.c.b16 %v815, %v814
    %v901 = vpack.c.b16 %v817, %v816
    %v902 = vpack.c.b16 %v819, %v818
    %v903 = vpack.c.b16 %v821, %v820
    %v904 = vpack.c.b16 %v823, %v822
    %v905 = vpack.c.b16 %v825, %v824
    %v906 = vpack.c.b16 %v827, %v826
    %v907 = vpack.c.b16 %v829, %v828
    %v908 = vpack.c.b16 %v831, %v830
    %v909 = vpack.c.b16 %v833, %v832
    %v910 = vpack.c.b16 %v835, %v834
    %v911 = vpack.c.b16 %v837, %v836
    %v912 = vpack.c.b16 %v839, %v838
    %v913 = vpack.c.b16 %v841, %v840
    %986 = vmatpush.bf16.msra.mxu0 %v849
    %987 = vmatpush.bf16.msra.mxu0 %v848
    %988 = vmatpush.bf16.msra.mxu0 %v847
    %989 = vmatpush.bf16.msra.mxu0 %v846
    %990 = vmatpush.bf16.msra.mxu0 %v845
    %991 = vmatpush.bf16.msra.mxu0 %v844
    %992 = vmatpush.bf16.msra.mxu0 %v843
    %993 = vmatpush.bf16.msra.mxu0 %v842
    %994 = vmatmul.bf16.gmra.mxu0 %v428
    %v995 = vpop.f32.mrf.mxu0
    %v996 = vadd.f32 %v230, %v995
    %v997 = vpop.f32.mrf.mxu0
    %v998 = vadd.f32 %v230, %v997
    %999 = vmatmul.bf16.gmra.mxu0 %v437
    %v1000 = vpop.f32.mrf.mxu0
    %v1001 = vadd.f32 %v230, %v1000
    %v1002 = vpop.f32.mrf.mxu0
    %v1003 = vadd.f32 %v230, %v1002
    %1004 = vmatmul.bf16.gmra.mxu0 %v446
    %v1005 = vpop.f32.mrf.mxu0
    %v1006 = vadd.f32 %v230, %v1005
    %v1007 = vpop.f32.mrf.mxu0
    %v1008 = vadd.f32 %v230, %v1007
    %1009 = vmatmul.bf16.gmra.mxu0 %v455
    %v1010 = vpop.f32.mrf.mxu0
    %v1011 = vadd.f32 %v230, %v1010
    %v1012 = vpop.f32.mrf.mxu0
    %v1013 = vadd.f32 %v230, %v1012
    %1014 = vmatmul.bf16.gmra.mxu0 %v464
    %v1015 = vpop.f32.mrf.mxu0
    %v1016 = vadd.f32 %v230, %v1015
    %v1017 = vpop.f32.mrf.mxu0
    %v1018 = vadd.f32 %v230, %v1017
    %1019 = vmatmul.bf16.gmra.mxu0 %v473
    %v1020 = vpop.f32.mrf.mxu0
    %v1021 = vadd.f32 %v230, %v1020
    %v1022 = vpop.f32.mrf.mxu0
    %v1023 = vadd.f32 %v230, %v1022
    %1024 = vmatmul.bf16.gmra.mxu0 %v482
    %v1025 = vpop.f32.mrf.mxu0
    %v1026 = vadd.f32 %v230, %v1025
    %v1027 = vpop.f32.mrf.mxu0
    %v1028 = vadd.f32 %v230, %v1027
    %1029 = vdwg.mxu0
    %1030 = vmatpush.bf16.msra.mxu0 %v857
    %1031 = vmatpush.bf16.msra.mxu0 %v856
    %1032 = vmatpush.bf16.msra.mxu0 %v855
    %1033 = vmatpush.bf16.msra.mxu0 %v854
    %1034 = vmatpush.bf16.msra.mxu0 %v853
    %1035 = vmatpush.bf16.msra.mxu0 %v852
    %1036 = vmatpush.bf16.msra.mxu0 %v851
    %1037 = vmatpush.bf16.msra.mxu0 %v850
    %1038 = vmatmul.bf16.gmra.mxu0 %v429
    %v1039 = vpop.f32.mrf.mxu0
    %v1040 = vadd.f32 %v996, %v1039
    %v1041 = vpop.f32.mrf.mxu0
    %v1042 = vadd.f32 %v998, %v1041
    %1043 = vmatmul.bf16.gmra.mxu0 %v438
    %v1044 = vpop.f32.mrf.mxu0
    %v1045 = vadd.f32 %v1001, %v1044
    %v1046 = vpop.f32.mrf.mxu0
    %v1047 = vadd.f32 %v1003, %v1046
    %1048 = vmatmul.bf16.gmra.mxu0 %v447
    %v1049 = vpop.f32.mrf.mxu0
    %v1050 = vadd.f32 %v1006, %v1049
    %v1051 = vpop.f32.mrf.mxu0
    %v1052 = vadd.f32 %v1008, %v1051
    %1053 = vmatmul.bf16.gmra.mxu0 %v456
    %v1054 = vpop.f32.mrf.mxu0
    %v1055 = vadd.f32 %v1011, %v1054
    %v1056 = vpop.f32.mrf.mxu0
    %v1057 = vadd.f32 %v1013, %v1056
    %1058 = vmatmul.bf16.gmra.mxu0 %v465
    %v1059 = vpop.f32.mrf.mxu0
    %v1060 = vadd.f32 %v1016, %v1059
    %v1061 = vpop.f32.mrf.mxu0
    %v1062 = vadd.f32 %v1018, %v1061
    %1063 = vmatmul.bf16.gmra.mxu0 %v474
    %v1064 = vpop.f32.mrf.mxu0
    %v1065 = vadd.f32 %v1021, %v1064
    %v1066 = vpop.f32.mrf.mxu0
    %v1067 = vadd.f32 %v1023, %v1066
    %1068 = vmatmul.bf16.gmra.mxu0 %v483
    %v1069 = vpop.f32.mrf.mxu0
    %v1070 = vadd.f32 %v1026, %v1069
    %v1071 = vpop.f32.mrf.mxu0
    %v1072 = vadd.f32 %v1028, %v1071
    %1073 = vdwg.mxu0
    %1074 = vmatpush.bf16.msra.mxu0 %v865
    %1075 = vmatpush.bf16.msra.mxu0 %v864
    %1076 = vmatpush.bf16.msra.mxu0 %v863
    %1077 = vmatpush.bf16.msra.mxu0 %v862
    %1078 = vmatpush.bf16.msra.mxu0 %v861
    %1079 = vmatpush.bf16.msra.mxu0 %v860
    %1080 = vmatpush.bf16.msra.mxu0 %v859
    %1081 = vmatpush.bf16.msra.mxu0 %v858
    %1082 = vmatmul.bf16.gmra.mxu0 %v430
    %v1083 = vpop.f32.mrf.mxu0
    %v1084 = vadd.f32 %v1040, %v1083
    %v1085 = vpop.f32.mrf.mxu0
    %v1086 = vadd.f32 %v1042, %v1085
    %1087 = vmatmul.bf16.gmra.mxu0 %v439
    %v1088 = vpop.f32.mrf.mxu0
    %v1089 = vadd.f32 %v1045, %v1088
    %v1090 = vpop.f32.mrf.mxu0
    %v1091 = vadd.f32 %v1047, %v1090
    %1092 = vmatmul.bf16.gmra.mxu0 %v448
    %v1093 = vpop.f32.mrf.mxu0
    %v1094 = vadd.f32 %v1050, %v1093
    %v1095 = vpop.f32.mrf.mxu0
    %v1096 = vadd.f32 %v1052, %v1095
    %1097 = vmatmul.bf16.gmra.mxu0 %v457
    %v1098 = vpop.f32.mrf.mxu0
    %v1099 = vadd.f32 %v1055, %v1098
    %v1100 = vpop.f32.mrf.mxu0
    %v1101 = vadd.f32 %v1057, %v1100
    %1102 = vmatmul.bf16.gmra.mxu0 %v466
    %v1103 = vpop.f32.mrf.mxu0
    %v1104 = vadd.f32 %v1060, %v1103
    %v1105 = vpop.f32.mrf.mxu0
    %v1106 = vadd.f32 %v1062, %v1105
    %1107 = vmatmul.bf16.gmra.mxu0 %v475
    %v1108 = vpop.f32.mrf.mxu0
    %v1109 = vadd.f32 %v1065, %v1108
    %v1110 = vpop.f32.mrf.mxu0
    %v1111 = vadd.f32 %v1067, %v1110
    %1112 = vmatmul.bf16.gmra.mxu0 %v484
    %v1113 = vpop.f32.mrf.mxu0
    %v1114 = vadd.f32 %v1070, %v1113
    %v1115 = vpop.f32.mrf.mxu0
    %v1116 = vadd.f32 %v1072, %v1115
    %1117 = vdwg.mxu0
    %1118 = vmatpush.bf16.msra.mxu0 %v873
    %1119 = vmatpush.bf16.msra.mxu0 %v872
    %1120 = vmatpush.bf16.msra.mxu0 %v871
    %1121 = vmatpush.bf16.msra.mxu0 %v870
    %1122 = vmatpush.bf16.msra.mxu0 %v869
    %1123 = vmatpush.bf16.msra.mxu0 %v868
    %1124 = vmatpush.bf16.msra.mxu0 %v867
    %1125 = vmatpush.bf16.msra.mxu0 %v866
    %1126 = vmatmul.bf16.gmra.mxu0 %v431
    %v1127 = vpop.f32.mrf.mxu0
    %v1128 = vadd.f32 %v1084, %v1127
    %v1129 = vpop.f32.mrf.mxu0
    %v1130 = vadd.f32 %v1086, %v1129
    %1131 = vmatmul.bf16.gmra.mxu0 %v440
    %v1132 = vpop.f32.mrf.mxu0
    %v1133 = vadd.f32 %v1089, %v1132
    %v1134 = vpop.f32.mrf.mxu0
    %v1135 = vadd.f32 %v1091, %v1134
    %1136 = vmatmul.bf16.gmra.mxu0 %v449
    %v1137 = vpop.f32.mrf.mxu0
    %v1138 = vadd.f32 %v1094, %v1137
    %v1139 = vpop.f32.mrf.mxu0
    %v1140 = vadd.f32 %v1096, %v1139
    %1141 = vmatmul.bf16.gmra.mxu0 %v458
    %v1142 = vpop.f32.mrf.mxu0
    %v1143 = vadd.f32 %v1099, %v1142
    %v1144 = vpop.f32.mrf.mxu0
    %v1145 = vadd.f32 %v1101, %v1144
    %1146 = vmatmul.bf16.gmra.mxu0 %v467
    %v1147 = vpop.f32.mrf.mxu0
    %v1148 = vadd.f32 %v1104, %v1147
    %v1149 = vpop.f32.mrf.mxu0
    %v1150 = vadd.f32 %v1106, %v1149
    %1151 = vmatmul.bf16.gmra.mxu0 %v476
    %v1152 = vpop.f32.mrf.mxu0
    %v1153 = vadd.f32 %v1109, %v1152
    %v1154 = vpop.f32.mrf.mxu0
    %v1155 = vadd.f32 %v1111, %v1154
    %1156 = vmatmul.bf16.gmra.mxu0 %v485
    %v1157 = vpop.f32.mrf.mxu0
    %v1158 = vadd.f32 %v1114, %v1157
    %v1159 = vpop.f32.mrf.mxu0
    %v1160 = vadd.f32 %v1116, %v1159
    %1161 = vdwg.mxu0
    %1162 = vmatpush.bf16.msra.mxu0 %v881
    %1163 = vmatpush.bf16.msra.mxu0 %v880
    %1164 = vmatpush.bf16.msra.mxu0 %v879
    %1165 = vmatpush.bf16.msra.mxu0 %v878
    %1166 = vmatpush.bf16.msra.mxu0 %v877
    %1167 = vmatpush.bf16.msra.mxu0 %v876
    %1168 = vmatpush.bf16.msra.mxu0 %v875
    %1169 = vmatpush.bf16.msra.mxu0 %v874
    %1170 = vmatmul.bf16.gmra.mxu0 %v432
    %v1171 = vpop.f32.mrf.mxu0
    %v1172 = vadd.f32 %v1128, %v1171
    %v1173 = vpop.f32.mrf.mxu0
    %v1174 = vadd.f32 %v1130, %v1173
    %1175 = vmatmul.bf16.gmra.mxu0 %v441
    %v1176 = vpop.f32.mrf.mxu0
    %v1177 = vadd.f32 %v1133, %v1176
    %v1178 = vpop.f32.mrf.mxu0
    %v1179 = vadd.f32 %v1135, %v1178
    %1180 = vmatmul.bf16.gmra.mxu0 %v450
    %v1181 = vpop.f32.mrf.mxu0
    %v1182 = vadd.f32 %v1138, %v1181
    %v1183 = vpop.f32.mrf.mxu0
    %v1184 = vadd.f32 %v1140, %v1183
    %1185 = vmatmul.bf16.gmra.mxu0 %v459
    %v1186 = vpop.f32.mrf.mxu0
    %v1187 = vadd.f32 %v1143, %v1186
    %v1188 = vpop.f32.mrf.mxu0
    %v1189 = vadd.f32 %v1145, %v1188
    %1190 = vmatmul.bf16.gmra.mxu0 %v468
    %v1191 = vpop.f32.mrf.mxu0
    %v1192 = vadd.f32 %v1148, %v1191
    %v1193 = vpop.f32.mrf.mxu0
    %v1194 = vadd.f32 %v1150, %v1193
    %1195 = vmatmul.bf16.gmra.mxu0 %v477
    %v1196 = vpop.f32.mrf.mxu0
    %v1197 = vadd.f32 %v1153, %v1196
    %v1198 = vpop.f32.mrf.mxu0
    %v1199 = vadd.f32 %v1155, %v1198
    %1200 = vmatmul.bf16.gmra.mxu0 %v486
    %v1201 = vpop.f32.mrf.mxu0
    %v1202 = vadd.f32 %v1158, %v1201
    %v1203 = vpop.f32.mrf.mxu0
    %v1204 = vadd.f32 %v1160, %v1203
    %1205 = vdwg.mxu0
    %1206 = vmatpush.bf16.msra.mxu0 %v889
    %1207 = vmatpush.bf16.msra.mxu0 %v888
    %1208 = vmatpush.bf16.msra.mxu0 %v887
    %1209 = vmatpush.bf16.msra.mxu0 %v886
    %1210 = vmatpush.bf16.msra.mxu0 %v885
    %1211 = vmatpush.bf16.msra.mxu0 %v884
    %1212 = vmatpush.bf16.msra.mxu0 %v883
    %1213 = vmatpush.bf16.msra.mxu0 %v882
    %1214 = vmatmul.bf16.gmra.mxu0 %v433
    %v1215 = vpop.f32.mrf.mxu0
    %v1216 = vadd.f32 %v1172, %v1215
    %v1217 = vpop.f32.mrf.mxu0
    %v1218 = vadd.f32 %v1174, %v1217
    %1219 = vmatmul.bf16.gmra.mxu0 %v442
    %v1220 = vpop.f32.mrf.mxu0
    %v1221 = vadd.f32 %v1177, %v1220
    %v1222 = vpop.f32.mrf.mxu0
    %v1223 = vadd.f32 %v1179, %v1222
    %1224 = vmatmul.bf16.gmra.mxu0 %v451
    %v1225 = vpop.f32.mrf.mxu0
    %v1226 = vadd.f32 %v1182, %v1225
    %v1227 = vpop.f32.mrf.mxu0
    %v1228 = vadd.f32 %v1184, %v1227
    %1229 = vmatmul.bf16.gmra.mxu0 %v460
    %v1230 = vpop.f32.mrf.mxu0
    %v1231 = vadd.f32 %v1187, %v1230
    %v1232 = vpop.f32.mrf.mxu0
    %v1233 = vadd.f32 %v1189, %v1232
    %1234 = vmatmul.bf16.gmra.mxu0 %v469
    %v1235 = vpop.f32.mrf.mxu0
    %v1236 = vadd.f32 %v1192, %v1235
    %v1237 = vpop.f32.mrf.mxu0
    %v1238 = vadd.f32 %v1194, %v1237
    %1239 = vmatmul.bf16.gmra.mxu0 %v478
    %v1240 = vpop.f32.mrf.mxu0
    %v1241 = vadd.f32 %v1197, %v1240
    %v1242 = vpop.f32.mrf.mxu0
    %v1243 = vadd.f32 %v1199, %v1242
    %1244 = vmatmul.bf16.gmra.mxu0 %v487
    %v1245 = vpop.f32.mrf.mxu0
    %v1246 = vadd.f32 %v1202, %v1245
    %v1247 = vpop.f32.mrf.mxu0
    %v1248 = vadd.f32 %v1204, %v1247
    %1249 = vdwg.mxu0
    %1250 = vmatpush.bf16.msra.mxu0 %v897
    %1251 = vmatpush.bf16.msra.mxu0 %v896
    %1252 = vmatpush.bf16.msra.mxu0 %v895
    %1253 = vmatpush.bf16.msra.mxu0 %v894
    %1254 = vmatpush.bf16.msra.mxu0 %v893
    %1255 = vmatpush.bf16.msra.mxu0 %v892
    %1256 = vmatpush.bf16.msra.mxu0 %v891
    %1257 = vmatpush.bf16.msra.mxu0 %v890
    %1258 = vmatmul.bf16.gmra.mxu0 %v434
    %v1259 = vpop.f32.mrf.mxu0
    %v1260 = vadd.f32 %v1216, %v1259
    %v1261 = vpop.f32.mrf.mxu0
    %v1262 = vadd.f32 %v1218, %v1261
    %1263 = vmatmul.bf16.gmra.mxu0 %v443
    %v1264 = vpop.f32.mrf.mxu0
    %v1265 = vadd.f32 %v1221, %v1264
    %v1266 = vpop.f32.mrf.mxu0
    %v1267 = vadd.f32 %v1223, %v1266
    %1268 = vmatmul.bf16.gmra.mxu0 %v452
    %v1269 = vpop.f32.mrf.mxu0
    %v1270 = vadd.f32 %v1226, %v1269
    %v1271 = vpop.f32.mrf.mxu0
    %v1272 = vadd.f32 %v1228, %v1271
    %1273 = vmatmul.bf16.gmra.mxu0 %v461
    %v1274 = vpop.f32.mrf.mxu0
    %v1275 = vadd.f32 %v1231, %v1274
    %v1276 = vpop.f32.mrf.mxu0
    %v1277 = vadd.f32 %v1233, %v1276
    %1278 = vmatmul.bf16.gmra.mxu0 %v470
    %v1279 = vpop.f32.mrf.mxu0
    %v1280 = vadd.f32 %v1236, %v1279
    %v1281 = vpop.f32.mrf.mxu0
    %v1282 = vadd.f32 %v1238, %v1281
    %1283 = vmatmul.bf16.gmra.mxu0 %v479
    %v1284 = vpop.f32.mrf.mxu0
    %v1285 = vadd.f32 %v1241, %v1284
    %v1286 = vpop.f32.mrf.mxu0
    %v1287 = vadd.f32 %v1243, %v1286
    %1288 = vmatmul.bf16.gmra.mxu0 %v488
    %v1289 = vpop.f32.mrf.mxu0
    %v1290 = vadd.f32 %v1246, %v1289
    %v1291 = vpop.f32.mrf.mxu0
    %v1292 = vadd.f32 %v1248, %v1291
    %1293 = vdwg.mxu0
    %1294 = vmatpush.bf16.msra.mxu0 %v905
    %1295 = vmatpush.bf16.msra.mxu0 %v904
    %1296 = vmatpush.bf16.msra.mxu0 %v903
    %1297 = vmatpush.bf16.msra.mxu0 %v902
    %1298 = vmatpush.bf16.msra.mxu0 %v901
    %1299 = vmatpush.bf16.msra.mxu0 %v900
    %1300 = vmatpush.bf16.msra.mxu0 %v899
    %1301 = vmatpush.bf16.msra.mxu0 %v898
    %1302 = vmatmul.bf16.gmra.mxu0 %v435
    %v1303 = vpop.f32.mrf.mxu0
    %v1304 = vadd.f32 %v1260, %v1303
    %v1305 = vpop.f32.mrf.mxu0
    %v1306 = vadd.f32 %v1262, %v1305
    %1307 = vmatmul.bf16.gmra.mxu0 %v444
    %v1308 = vpop.f32.mrf.mxu0
    %v1309 = vadd.f32 %v1265, %v1308
    %v1310 = vpop.f32.mrf.mxu0
    %v1311 = vadd.f32 %v1267, %v1310
    %1312 = vmatmul.bf16.gmra.mxu0 %v453
    %v1313 = vpop.f32.mrf.mxu0
    %v1314 = vadd.f32 %v1270, %v1313
    %v1315 = vpop.f32.mrf.mxu0
    %v1316 = vadd.f32 %v1272, %v1315
    %1317 = vmatmul.bf16.gmra.mxu0 %v462
    %v1318 = vpop.f32.mrf.mxu0
    %v1319 = vadd.f32 %v1275, %v1318
    %v1320 = vpop.f32.mrf.mxu0
    %v1321 = vadd.f32 %v1277, %v1320
    %1322 = vmatmul.bf16.gmra.mxu0 %v471
    %v1323 = vpop.f32.mrf.mxu0
    %v1324 = vadd.f32 %v1280, %v1323
    %v1325 = vpop.f32.mrf.mxu0
    %v1326 = vadd.f32 %v1282, %v1325
    %1327 = vmatmul.bf16.gmra.mxu0 %v480
    %v1328 = vpop.f32.mrf.mxu0
    %v1329 = vadd.f32 %v1285, %v1328
    %v1330 = vpop.f32.mrf.mxu0
    %v1331 = vadd.f32 %v1287, %v1330
    %1332 = vmatmul.bf16.gmra.mxu0 %v489
    %v1333 = vpop.f32.mrf.mxu0
    %v1334 = vadd.f32 %v1290, %v1333
    %v1335 = vpop.f32.mrf.mxu0
    %v1336 = vadd.f32 %v1292, %v1335
    %1337 = vdwg.mxu0
    %1338 = vmatpush.bf16.msra.mxu0 %v913
    %1339 = vmatpush.bf16.msra.mxu0 %v912
    %1340 = vmatpush.bf16.msra.mxu0 %v911
    %1341 = vmatpush.bf16.msra.mxu0 %v910
    %1342 = vmatpush.bf16.msra.mxu0 %v909
    %1343 = vmatpush.bf16.msra.mxu0 %v908
    %1344 = vmatpush.bf16.msra.mxu0 %v907
    %1345 = vmatpush.bf16.msra.mxu0 %v906
    %1346 = vmatmul.bf16.gmra.mxu0 %v436
    %v1347 = vpop.f32.mrf.mxu0
    %v1348 = vadd.f32 %v1304, %v1347
    %v1349 = vpop.f32.mrf.mxu0
    %v1350 = vadd.f32 %v1306, %v1349
    %1351 = vmatmul.bf16.gmra.mxu0 %v445
    %v1352 = vpop.f32.mrf.mxu0
    %v1353 = vadd.f32 %v1309, %v1352
    %v1354 = vpop.f32.mrf.mxu0
    %v1355 = vadd.f32 %v1311, %v1354
    %1356 = vmatmul.bf16.gmra.mxu0 %v454
    %v1357 = vpop.f32.mrf.mxu0
    %v1358 = vadd.f32 %v1314, %v1357
    %v1359 = vpop.f32.mrf.mxu0
    %v1360 = vadd.f32 %v1316, %v1359
    %1361 = vmatmul.bf16.gmra.mxu0 %v463
    %v1362 = vpop.f32.mrf.mxu0
    %v1363 = vadd.f32 %v1319, %v1362
    %v1364 = vpop.f32.mrf.mxu0
    %v1365 = vadd.f32 %v1321, %v1364
    %1366 = vmatmul.bf16.gmra.mxu0 %v472
    %v1367 = vpop.f32.mrf.mxu0
    %v1368 = vadd.f32 %v1324, %v1367
    %v1369 = vpop.f32.mrf.mxu0
    %v1370 = vadd.f32 %v1326, %v1369
    %1371 = vmatmul.bf16.gmra.mxu0 %v481
    %v1372 = vpop.f32.mrf.mxu0
    %v1373 = vadd.f32 %v1329, %v1372
    %v1374 = vpop.f32.mrf.mxu0
    %v1375 = vadd.f32 %v1331, %v1374
    %1376 = vmatmul.bf16.gmra.mxu0 %v490
    %v1377 = vpop.f32.mrf.mxu0
    %v1378 = vadd.f32 %v1334, %v1377
    %v1379 = vpop.f32.mrf.mxu0
    %v1380 = vadd.f32 %v1336, %v1379
    %1381 = vdwg.mxu0
    %v1382 = vmax.f32 %v1348, 0.0
    %v1383 = vmax.f32 %v1350, 0.0
    %v1384 = vmax.f32 %v1353, 0.0
    %v1385 = vmax.f32 %v1355, 0.0
    %v1386 = vmax.f32 %v1358, 0.0
    %v1387 = vmax.f32 %v1360, 0.0
    %v1388 = vmax.f32 %v1363, 0.0
    %v1389 = vmax.f32 %v1365, 0.0
    %v1390 = vmax.f32 %v1368, 0.0
    %v1391 = vmax.f32 %v1370, 0.0
    %v1392 = vmax.f32 %v1373, 0.0
    %v1393 = vmax.f32 %v1375, 0.0
    %v1394 = vmax.f32 %v1378, 0.0
    %v1395 = vmax.f32 %v1380, 0.0
    %v1396 = vpack.c.bf16 %v1382, %v1382
    %v1397 = vpack.c.bf16 %v1383, %v1383
    %v1398 = vpack.c.bf16 %v1384, %v1384
    %v1399 = vpack.c.bf16 %v1385, %v1385
    %v1400 = vpack.c.bf16 %v1386, %v1386
    %v1401 = vpack.c.bf16 %v1387, %v1387
    %v1402 = vpack.c.bf16 %v1388, %v1388
    %v1403 = vpack.c.bf16 %v1389, %v1389
    %v1404 = vpack.c.bf16 %v1390, %v1390
    %v1405 = vpack.c.bf16 %v1391, %v1391
    %v1406 = vpack.c.bf16 %v1392, %v1392
    %v1407 = vpack.c.bf16 %v1393, %v1393
    %v1408 = vpack.c.bf16 %v1394, %v1394
    %v1409 = vpack.c.bf16 %v1395, %v1395
    %1410 = vst [vmem:[#allocation2] sm:$0xf] %v1396
    %1411 = vst [vmem:[#allocation2 + $0x4] sm:$0xf] %v1397
    %1412 = vst [vmem:[#allocation2 + $0x8] sm:$0xf] %v1398
    %1413 = vst [vmem:[#allocation2 + $0xc] sm:$0xf] %v1399
    %1414 = vst [vmem:[#allocation2 + $0x10] sm:$0xf] %v1400
    %1415 = vst [vmem:[#allocation2 + $0x14] sm:$0xf] %v1401
    %1416 = vst [vmem:[#allocation2 + $0x18] sm:$0xf] %v1402
    %1417 = vst [vmem:[#allocation2 + $0x1c] sm:$0xf] %v1403
    %1418 = vst [vmem:[#allocation2 + $0x20] sm:$0xf] %v1404
    %1419 = vst [vmem:[#allocation2 + $0x24] sm:$0xf] %v1405
    %1420 = vst [vmem:[#allocation2 + $0x28] sm:$0xf] %v1406
    %1421 = vst [vmem:[#allocation2 + $0x2c] sm:$0xf] %v1407
    %1422 = vst [vmem:[#allocation2 + $0x30] sm:$0xf] %v1408
    %1423 = vst [vmem:[#allocation2 + $0x34] sm:$0xf] %v1409
    // Predicated region
    $region14: #{qcnn_forward_pallas.6} parent=1 // pred_check
      _
    $region15: #{qcnn_forward_pallas.6} parent=1 // pred_check_branch
      %1425 = sbr.rel (0) target = $region17
    $region16: #{qcnn_forward_pallas.6} parent=1 // pred_region
      // Predicated region
      $region18: #{qcnn_forward_pallas.6} parent=16 // pred_check
        _
      $region19: #{qcnn_forward_pallas.6} parent=16 // pred_check_branch
        %1427 = sbr.rel (0) target = $region21
      $region20: #{qcnn_forward_pallas.6} parent=16 // pred_region
        // Predicated region
        $region22: #{qcnn_forward_pallas.6} parent=20 // pred_check
          _
        $region23: #{qcnn_forward_pallas.6} parent=20 // pred_check_branch
          %1429 = sbr.rel target = $region25
        $region24: #{qcnn_forward_pallas.6} parent=20 // pred_region
          // Predicated region
          $region37: #{qcnn_forward_pallas.6} parent=24 // pred_check
            _
          $region38: #{qcnn_forward_pallas.6} parent=24 // pred_check_branch
            %1469 = sbr.rel (0) target = $region40
          $region39: #{qcnn_forward_pallas.6} parent=24 // pred_region
            loop: start=0, step=1, limit=1
            $region41: #{qcnn_forward_pallas.6} parent=39 // loop_pre_header
              _
            $region42: #{qcnn_forward_pallas.6} parent=39 // loop_header
              %s1471 = sphi 0, %s1475
              %p1472 = scmp.ge.s32.totalorder %s1471, 1
              %s1476 = sphi [#allocation2], [#allocation2]
              %s1477 = sphi %s3, %s3
            $region43: #{qcnn_forward_pallas.6} parent=39 // loop_header_branch
              %1474 = sbr.rel (%p1472) target = $region47
            $region44: #{qcnn_forward_pallas.6} parent=39 // loop_body
              _
            $region45: #{qcnn_forward_pallas.6} parent=39 // loop_footer
              %s1475 = sadd.s32 1, %s1471
            $region46: #{qcnn_forward_pallas.6} parent=39 // loop_footer_branch
              %1470 = sbr.rel target = $region42
            $region47: #{qcnn_forward_pallas.6} parent=39 // loop_exit
              _
            %s1479 = ssub.s32 16, 1
            loop: start=0, step=1, limit=1
            $region48: #{qcnn_forward_pallas.6} parent=39 // loop_pre_header
              _
            $region49: #{qcnn_forward_pallas.6} parent=39 // loop_header
              %s1481 = sphi 0, %s1485
              %p1482 = scmp.ge.s32.totalorder %s1481, 1
              %s1486 = sphi [#allocation2], [#allocation2]
              %s1487 = sphi %s3, %s3
            $region50: #{qcnn_forward_pallas.6} parent=39 // loop_header_branch
              %1484 = sbr.rel (%p1482) target = $region54
            $region51: #{qcnn_forward_pallas.6} parent=39 // loop_body
              %v1488 = vld [vmem:[%s1486] sm:%s1479]
              %1489 = vst [vmem:[%s1487] sm:%s1479] %v1488
              %v1490 = vld [vmem:[%s1486 + $0x4] sm:%s1479]
              %1491 = vst [vmem:[%s1487 + $0x4] sm:%s1479] %v1490
              %v1492 = vld [vmem:[%s1486 + $0x8] sm:%s1479]
              %1493 = vst [vmem:[%s1487 + $0x8] sm:%s1479] %v1492
              %v1494 = vld [vmem:[%s1486 + $0xc] sm:%s1479]
              %1495 = vst [vmem:[%s1487 + $0xc] sm:%s1479] %v1494
              %v1496 = vld [vmem:[%s1486 + $0x10] sm:%s1479]
              %1497 = vst [vmem:[%s1487 + $0x10] sm:%s1479] %v1496
              %v1498 = vld [vmem:[%s1486 + $0x14] sm:%s1479]
              %1499 = vst [vmem:[%s1487 + $0x14] sm:%s1479] %v1498
              %v1500 = vld [vmem:[%s1486 + $0x18] sm:%s1479]
              %1501 = vst [vmem:[%s1487 + $0x18] sm:%s1479] %v1500
              %v1502 = vld [vmem:[%s1486 + $0x1c] sm:%s1479]
              %1503 = vst [vmem:[%s1487 + $0x1c] sm:%s1479] %v1502
              %v1504 = vld [vmem:[%s1486 + $0x20] sm:%s1479]
              %1505 = vst [vmem:[%s1487 + $0x20] sm:%s1479] %v1504
              %v1506 = vld [vmem:[%s1486 + $0x24] sm:%s1479]
              %1507 = vst [vmem:[%s1487 + $0x24] sm:%s1479] %v1506
              %v1508 = vld [vmem:[%s1486 + $0x28] sm:%s1479]
              %1509 = vst [vmem:[%s1487 + $0x28] sm:%s1479] %v1508
              %v1510 = vld [vmem:[%s1486 + $0x2c] sm:%s1479]
              %1511 = vst [vmem:[%s1487 + $0x2c] sm:%s1479] %v1510
              %v1512 = vld [vmem:[%s1486 + $0x30] sm:%s1479]
              %1513 = vst [vmem:[%s1487 + $0x30] sm:%s1479] %v1512
            $region52: #{qcnn_forward_pallas.6} parent=39 // loop_footer
              %s1485 = sadd.s32 1, %s1481
            $region53: #{qcnn_forward_pallas.6} parent=39 // loop_footer_branch
              %1480 = sbr.rel target = $region49
            $region54: #{qcnn_forward_pallas.6} parent=39 // loop_exit
              _
          $region40: #{qcnn_forward_pallas.6} parent=24 // pred_fallthru
            _
        $region25: #{qcnn_forward_pallas.6} parent=20 // pred_fallthru
          _
        // Predicated region
        $region26: #{qcnn_forward_pallas.6} parent=20 // pred_check
          _
        $region27: #{qcnn_forward_pallas.6} parent=20 // pred_check_branch
          %1431 = sbr.rel (0) target = $region29
        $region28: #{qcnn_forward_pallas.6} parent=20 // pred_region
          %s1433 = ssub.s32 16, 1
          loop: start=0, step=1, limit=1
          $region30: #{qcnn_forward_pallas.6} parent=28 // loop_pre_header
            _
          $region31: #{qcnn_forward_pallas.6} parent=28 // loop_header
            %s1435 = sphi 0, %s1439
            %p1436 = scmp.ge.s32.totalorder %s1435, 1
            %s1440 = sphi [#allocation2], [#allocation2]
            %s1441 = sphi %s3, %s3
          $region32: #{qcnn_forward_pallas.6} parent=28 // loop_header_branch
            %1438 = sbr.rel (%p1436) target = $region36
          $region33: #{qcnn_forward_pallas.6} parent=28 // loop_body
            %v1442 = vld [vmem:[%s1440] sm:%s1433]
            %1443 = vst [vmem:[%s1441] sm:%s1433] %v1442
            %v1444 = vld [vmem:[%s1440 + $0x4] sm:%s1433]
            %1445 = vst [vmem:[%s1441 + $0x4] sm:%s1433] %v1444
            %v1446 = vld [vmem:[%s1440 + $0x8] sm:%s1433]
            %1447 = vst [vmem:[%s1441 + $0x8] sm:%s1433] %v1446
            %v1448 = vld [vmem:[%s1440 + $0xc] sm:%s1433]
            %1449 = vst [vmem:[%s1441 + $0xc] sm:%s1433] %v1448
            %v1450 = vld [vmem:[%s1440 + $0x10] sm:%s1433]
            %1451 = vst [vmem:[%s1441 + $0x10] sm:%s1433] %v1450
            %v1452 = vld [vmem:[%s1440 + $0x14] sm:%s1433]
            %1453 = vst [vmem:[%s1441 + $0x14] sm:%s1433] %v1452
            %v1454 = vld [vmem:[%s1440 + $0x18] sm:%s1433]
            %1455 = vst [vmem:[%s1441 + $0x18] sm:%s1433] %v1454
            %v1456 = vld [vmem:[%s1440 + $0x1c] sm:%s1433]
            %1457 = vst [vmem:[%s1441 + $0x1c] sm:%s1433] %v1456
            %v1458 = vld [vmem:[%s1440 + $0x20] sm:%s1433]
            %1459 = vst [vmem:[%s1441 + $0x20] sm:%s1433] %v1458
            %v1460 = vld [vmem:[%s1440 + $0x24] sm:%s1433]
            %1461 = vst [vmem:[%s1441 + $0x24] sm:%s1433] %v1460
            %v1462 = vld [vmem:[%s1440 + $0x28] sm:%s1433]
            %1463 = vst [vmem:[%s1441 + $0x28] sm:%s1433] %v1462
            %v1464 = vld [vmem:[%s1440 + $0x2c] sm:%s1433]
            %1465 = vst [vmem:[%s1441 + $0x2c] sm:%s1433] %v1464
            %v1466 = vld [vmem:[%s1440 + $0x30] sm:%s1433]
            %1467 = vst [vmem:[%s1441 + $0x30] sm:%s1433] %v1466
          $region34: #{qcnn_forward_pallas.6} parent=28 // loop_footer
            %s1439 = sadd.s32 1, %s1435
          $region35: #{qcnn_forward_pallas.6} parent=28 // loop_footer_branch
            %1434 = sbr.rel target = $region31
          $region36: #{qcnn_forward_pallas.6} parent=28 // loop_exit
            _
        $region29: #{qcnn_forward_pallas.6} parent=20 // pred_fallthru
          _
      $region21: #{qcnn_forward_pallas.6} parent=16 // pred_fallthru
        _
      %1514 = vnop
    $region17: #{qcnn_forward_pallas.6} parent=1 // pred_fallthru
      _
    // Predicated region
    $region55: #{qcnn_forward_pallas.6} parent=1 // pred_check
      _
    $region56: #{qcnn_forward_pallas.6} parent=1 // pred_check_branch
      %1516 = sbr.rel (0) target = $region58
    $region57: #{qcnn_forward_pallas.6} parent=1 // pred_region
      _
    $region58: #{qcnn_forward_pallas.6} parent=1 // pred_fallthru
      _

// kernel: qcnn_forward_pallas.7
$region0: #{qcnn_forward_pallas.7}
  #allocation0 [shape = 'u32[]', space=smem, size = 0x4, offset = 0x4, fixed_abs, tag = 'smem constant byte address 0x4 - core index']
  #allocation1 [shape = 'u32[72,128]{1,0:T(1,128)}', space=vmem, size = 0x9000, scoped, tag = 'internal scratch']
  %s0 = inlined_call_operand.vmem [shape: bf16[2,6272], index: 0, kind: input, shape index: {}]
  %s1 = inlined_call_operand.vmem [shape: bf16[6272,256], index: 1, kind: input, shape index: {}]
  %s2 = inlined_call_operand.vmem [shape: f32[1,256], index: 2, kind: input, shape index: {}]
  %s3 = inlined_call_operand.vmem [shape: bf16[256,128], index: 3, kind: input, shape index: {}]
  %s4 = inlined_call_operand.vmem [shape: f32[1,128], index: 4, kind: input, shape index: {}]
  %s5 = inlined_call_operand.hbm [shape: f32[2,128], index: 5, kind: output, shape index: {}]
  %s6 = sld [smem:[#allocation0]]
  $region30: #{qcnn_forward_pallas.7} parent=0
    _
  %s8 = ssub.s32 1, %s6
  %s9 = scalar_select 0, %s8, %s6
  $region1: #{qcnn_forward_pallas.7} parent=0
    #allocation2 [shape = 'u8[8192]{0}', space=vmem, size = 0x2000, scoped, tag = 'output window, operand 0, single buffered']
    #allocation3 [shape = 's32[1]{0}', space=sflag, size = 0x4, scoped, tag = 'scoped memory for qcnn_forward_pallas.7']
    %10 = vsyncpa [#allocation3], 0
    // Predicated region
    $region2: #{qcnn_forward_pallas.7} parent=1 // pred_check
      _
    $region3: #{qcnn_forward_pallas.7} parent=1 // pred_check_branch
      %12 = sbr.rel (0) target = $region5
    $region4: #{qcnn_forward_pallas.7} parent=1 // pred_region
      _
    $region5: #{qcnn_forward_pallas.7} parent=1 // pred_fallthru
      _
    // Predicated region
    $region6: #{qcnn_forward_pallas.7} parent=1 // pred_check
      _
    $region7: #{qcnn_forward_pallas.7} parent=1 // pred_check_branch
      %14 = sbr.rel (0) target = $region9
    $region8: #{qcnn_forward_pallas.7} parent=1 // pred_region
      _
    $region9: #{qcnn_forward_pallas.7} parent=1 // pred_fallthru
      _
    // Predicated region
    $region10: #{qcnn_forward_pallas.7} parent=1 // pred_check
      _
    $region11: #{qcnn_forward_pallas.7} parent=1 // pred_check_branch
      %16 = sbr.rel (0) target = $region13
    $region12: #{qcnn_forward_pallas.7} parent=1 // pred_region
      _
    $region13: #{qcnn_forward_pallas.7} parent=1 // pred_fallthru
      _
    // Predicated region
    $region14: #{qcnn_forward_pallas.7} parent=1 // pred_check
      _
    $region15: #{qcnn_forward_pallas.7} parent=1 // pred_check_branch
      %18 = sbr.rel (0) target = $region17
    $region16: #{qcnn_forward_pallas.7} parent=1 // pred_region
      _
    $region17: #{qcnn_forward_pallas.7} parent=1 // pred_fallthru
      _
    // Predicated region
    $region18: #{qcnn_forward_pallas.7} parent=1 // pred_check
      _
    $region19: #{qcnn_forward_pallas.7} parent=1 // pred_check_branch
      %20 = sbr.rel (0) target = $region21
    $region20: #{qcnn_forward_pallas.7} parent=1 // pred_region
      _
    $region21: #{qcnn_forward_pallas.7} parent=1 // pred_fallthru
      _
    %v21 = vld [vmem:[%s0] sm:$0xff]
    %v22 = vld [vmem:[%s0 + $0x8] sm:$0xff]
    %v23 = vld [vmem:[%s0 + $0x10] sm:$0xff]
    %v24 = vld [vmem:[%s0 + $0x18] sm:$0xff]
    %v25 = vld [vmem:[%s0 + $0x20] sm:$0xff]
    %v26 = vld [vmem:[%s0 + $0x28] sm:$0xff]
    %v27 = vld [vmem:[%s0 + $0x30] sm:$0x1]
    %v28 = vld [vmem:[%s0 + $0x31] sm:$0xff]
    %v29 = vld [vmem:[%s0 + $0x39] sm:$0xff]
    %v30 = vld [vmem:[%s0 + $0x41] sm:$0xff]
    %v31 = vld [vmem:[%s0 + $0x49] sm:$0xff]
    %v32 = vld [vmem:[%s0 + $0x51] sm:$0xff]
    %v33 = vld [vmem:[%s0 + $0x59] sm:$0xff]
    %v34 = vld [vmem:[%s0 + $0x61] sm:$0x1]
    %v35 = vld [vmem:[%s0 + $0x62] sm:$0xff]
    %v36 = vld [vmem:[%s0 + $0x6a] sm:$0xff]
    %v37 = vld [vmem:[%s0 + $0x72] sm:$0xff]
    %v38 = vld [vmem:[%s0 + $0x7a] sm:$0xff]
    %v39 = vld [vmem:[%s0 + $0x82] sm:$0xff]
    %v40 = vld [vmem:[%s0 + $0x8a] sm:$0xff]
    %v41 = vld [vmem:[%s0 + $0x92] sm:$0x1]
    %v42 = vld [vmem:[%s0 + $0x93] sm:$0xff]
    %v43 = vld [vmem:[%s0 + $0x9b] sm:$0xff]
    %v44 = vld [vmem:[%s0 + $0xa3] sm:$0xff]
    %v45 = vld [vmem:[%s0 + $0xab] sm:$0xff]
    %v46 = vld [vmem:[%s0 + $0xb3] sm:$0xff]
    %v47 = vld [vmem:[%s0 + $0xbb] sm:$0xff]
    %v48 = vld [vmem:[%s0 + $0xc3] sm:$0x1]
    %v49 = vld [vmem:[%s0 + $0xc4] sm:$0xff]
    %v50 = vld [vmem:[%s0 + $0xcc] sm:$0xff]
    %v51 = vld [vmem:[%s0 + $0xd4] sm:$0xff]
    %v52 = vld [vmem:[%s0 + $0xdc] sm:$0xff]
    %v53 = vld [vmem:[%s0 + $0xe4] sm:$0xff]
    %v54 = vld [vmem:[%s0 + $0xec] sm:$0xff]
    %v55 = vld [vmem:[%s0 + $0xf4] sm:$0x1]
    %v56 = vld [vmem:[%s0 + $0xf5] sm:$0xff]
    %v57 = vld [vmem:[%s0 + $0xfd] sm:$0xff]
    %v58 = vld [vmem:[%s0 + $0x105] sm:$0xff]
    %v59 = vld [vmem:[%s0 + $0x10d] sm:$0xff]
    %v60 = vld [vmem:[%s0 + $0x115] sm:$0xff]
    %v61 = vld [vmem:[%s0 + $0x11d] sm:$0xff]
    %v62 = vld [vmem:[%s0 + $0x125] sm:$0x1]
    %v63 = vld [vmem:[%s0 + $0x126] sm:$0xff]
    %v64 = vld [vmem:[%s0 + $0x12e] sm:$0xff]
    %v65 = vld [vmem:[%s0 + $0x136] sm:$0xff]
    %v66 = vld [vmem:[%s0 + $0x13e] sm:$0xff]
    %v67 = vld [vmem:[%s0 + $0x146] sm:$0xff]
    %v68 = vld [vmem:[%s0 + $0x14e] sm:$0xff]
    %v69 = vld [vmem:[%s0 + $0x156] sm:$0x1]
    %v70 = vld [vmem:[%s0 + $0x157] sm:$0xff]
    %v71 = vld [vmem:[%s0 + $0x15f] sm:$0xff]
    %v72 = vld [vmem:[%s0 + $0x167] sm:$0xff]
    %v73 = vld [vmem:[%s0 + $0x16f] sm:$0xff]
    %v74 = vld [vmem:[%s0 + $0x177] sm:$0xff]
    %v75 = vld [vmem:[%s0 + $0x17f] sm:$0xff]
    %v76 = vld [vmem:[%s0 + $0x187] sm:$0x1]
    %v77 = vld [vmem:[%s1] sm:$0xff]
    %v78 = vld [vmem:[%s1 + $0x8] sm:$0xff]
    %v79 = vld [vmem:[%s1 + $0x10] sm:$0xff]
    %v80 = vld [vmem:[%s1 + $0x18] sm:$0xff]
    %v81 = vld [vmem:[%s1 + $0x20] sm:$0xff]
    %v82 = vld [vmem:[%s1 + $0x28] sm:$0xff]
    %v83 = vld [vmem:[%s1 + $0x30] sm:$0xff]
    %v84 = vld [vmem:[%s1 + $0x38] sm:$0xff]
    %v85 = vld [vmem:[%s1 + $0x40] sm:$0xff]
    %v86 = vld [vmem:[%s1 + $0x48] sm:$0xff]
    %v87 = vld [vmem:[%s1 + $0x50] sm:$0xff]
    %v88 = vld [vmem:[%s1 + $0x58] sm:$0xff]
    %v89 = vld [vmem:[%s1 + $0x60] sm:$0xff]
    %v90 = vld [vmem:[%s1 + $0x68] sm:$0xff]
    %v91 = vld [vmem:[%s1 + $0x70] sm:$0xff]
    %v92 = vld [vmem:[%s1 + $0x78] sm:$0xff]
    %v93 = vld [vmem:[%s1 + $0x80] sm:$0xff]
    %v94 = vld [vmem:[%s1 + $0x88] sm:$0xff]
    %v95 = vld [vmem:[%s1 + $0x90] sm:$0xff]
    %v96 = vld [vmem:[%s1 + $0x98] sm:$0xff]
    %v97 = vld [vmem:[%s1 + $0xa0] sm:$0xff]
    %v98 = vld [vmem:[%s1 + $0xa8] sm:$0xff]
    %v99 = vld [vmem:[%s1 + $0xb0] sm:$0xff]
    %v100 = vld [vmem:[%s1 + $0xb8] sm:$0xff]
    %v101 = vld [vmem:[%s1 + $0xc0] sm:$0xff]
    %v102 = vld [vmem:[%s1 + $0xc8] sm:$0xff]
    %v103 = vld [vmem:[%s1 + $0xd0] sm:$0xff]
    %v104 = vld [vmem:[%s1 + $0xd8] sm:$0xff]
    %v105 = vld [vmem:[%s1 + $0xe0] sm:$0xff]
    %v106 = vld [vmem:[%s1 + $0xe8] sm:$0xff]
    %v107 = vld [vmem:[%s1 + $0xf0] sm:$0xff]
    %v108 = vld [vmem:[%s1 + $0xf8] sm:$0xff]
    %v109 = vld [vmem:[%s1 + $0x100] sm:$0xff]
    %v110 = vld [vmem:[%s1 + $0x108] sm:$0xff]
    %v111 = vld [vmem:[%s1 + $0x110] sm:$0xff]
    %v112 = vld [vmem:[%s1 + $0x118] sm:$0xff]
    %v113 = vld [vmem:[%s1 + $0x120] sm:$0xff]
    %v114 = vld [vmem:[%s1 + $0x128] sm:$0xff]
    %v115 = vld [vmem:[%s1 + $0x130] sm:$0xff]
    %v116 = vld [vmem:[%s1 + $0x138] sm:$0xff]
    %v117 = vld [vmem:[%s1 + $0x140] sm:$0xff]
    %v118 = vld [vmem:[%s1 + $0x148] sm:$0xff]
    %v119 = vld [vmem:[%s1 + $0x150] sm:$0xff]
    %v120 = vld [vmem:[%s1 + $0x158] sm:$0xff]
    %v121 = vld [vmem:[%s1 + $0x160] sm:$0xff]
    %v122 = vld [vmem:[%s1 + $0x168] sm:$0xff]
    %v123 = vld [vmem:[%s1 + $0x170] sm:$0xff]
    %v124 = vld [vmem:[%s1 + $0x178] sm:$0xff]
    %v125 = vld [vmem:[%s1 + $0x180] sm:$0xff]
    %v126 = vld [vmem:[%s1 + $0x188] sm:$0xff]
    %v127 = vld [vmem:[%s1 + $0x190] sm:$0xff]
    %v128 = vld [vmem:[%s1 + $0x198] sm:$0xff]
    %v129 = vld [vmem:[%s1 + $0x1a0] sm:$0xff]
    %v130 = vld [vmem:[%s1 + $0x1a8] sm:$0xff]
    %v131 = vld [vmem:[%s1 + $0x1b0] sm:$0xff]
    %v132 = vld [vmem:[%s1 + $0x1b8] sm:$0xff]
    %v133 = vld [vmem:[%s1 + $0x1c0] sm:$0xff]
    %v134 = vld [vmem:[%s1 + $0x1c8] sm:$0xff]
    %v135 = vld [vmem:[%s1 + $0x1d0] sm:$0xff]
    %v136 = vld [vmem:[%s1 + $0x1d8] sm:$0xff]
    %v137 = vld [vmem:[%s1 + $0x1e0] sm:$0xff]
    %v138 = vld [vmem:[%s1 + $0x1e8] sm:$0xff]
    %v139 = vld [vmem:[%s1 + $0x1f0] sm:$0xff]
    %v140 = vld [vmem:[%s1 + $0x1f8] sm:$0xff]
    %v141 = vld [vmem:[%s1 + $0x200] sm:$0xff]
    %v142 = vld [vmem:[%s1 + $0x208] sm:$0xff]
    %v143 = vld [vmem:[%s1 + $0x210] sm:$0xff]
    %v144 = vld [vmem:[%s1 + $0x218] sm:$0xff]
    %v145 = vld [vmem:[%s1 + $0x220] sm:$0xff]
    %v146 = vld [vmem:[%s1 + $0x228] sm:$0xff]
    %v147 = vld [vmem:[%s1 + $0x230] sm:$0xff]
    %v148 = vld [vmem:[%s1 + $0x238] sm:$0xff]
    %v149 = vld [vmem:[%s1 + $0x240] sm:$0xff]
    %v150 = vld [vmem:[%s1 + $0x248] sm:$0xff]
    %v151 = vld [vmem:[%s1 + $0x250] sm:$0xff]
    %v152 = vld [vmem:[%s1 + $0x258] sm:$0xff]
    %v153 = vld [vmem:[%s1 + $0x260] sm:$0xff]
    %v154 = vld [vmem:[%s1 + $0x268] sm:$0xff]
    %v155 = vld [vmem:[%s1 + $0x270] sm:$0xff]
    %v156 = vld [vmem:[%s1 + $0x278] sm:$0xff]
    %v157 = vld [vmem:[%s1 + $0x280] sm:$0xff]
    %v158 = vld [vmem:[%s1 + $0x288] sm:$0xff]
    %v159 = vld [vmem:[%s1 + $0x290] sm:$0xff]
    %v160 = vld [vmem:[%s1 + $0x298] sm:$0xff]
    %v161 = vld [vmem:[%s1 + $0x2a0] sm:$0xff]
    %v162 = vld [vmem:[%s1 + $0x2a8] sm:$0xff]
    %v163 = vld [vmem:[%s1 + $0x2b0] sm:$0xff]
    %v164 = vld [vmem:[%s1 + $0x2b8] sm:$0xff]
    %v165 = vld [vmem:[%s1 + $0x2c0] sm:$0xff]
    %v166 = vld [vmem:[%s1 + $0x2c8] sm:$0xff]
    %v167 = vld [vmem:[%s1 + $0x2d0] sm:$0xff]
    %v168 = vld [vmem:[%s1 + $0x2d8] sm:$0xff]
    %v169 = vld [vmem:[%s1 + $0x2e0] sm:$0xff]
    %v170 = vld [vmem:[%s1 + $0x2e8] sm:$0xff]
    %v171 = vld [vmem:[%s1 + $0x2f0] sm:$0xff]
    %v172 = vld [vmem:[%s1 + $0x2f8] sm:$0xff]
    %v173 = vld [vmem:[%s1 + $0x300] sm:$0xff]
    %v174 = vld [vmem:[%s1 + $0x308] sm:$0xff]
    %v175 = vld [vmem:[%s1 + $0x310] sm:$0xff]
    %v176 = vld [vmem:[%s1 + $0x318] sm:$0xff]
    %v177 = vld [vmem:[%s1 + $0x320] sm:$0xff]
    %v178 = vld [vmem:[%s1 + $0x328] sm:$0xff]
    %v179 = vld [vmem:[%s1 + $0x330] sm:$0xff]
    %v180 = vld [vmem:[%s1 + $0x338] sm:$0xff]
    %v181 = vld [vmem:[%s1 + $0x340] sm:$0xff]
    %v182 = vld [vmem:[%s1 + $0x348] sm:$0xff]
    %v183 = vld [vmem:[%s1 + $0x350] sm:$0xff]
    %v184 = vld [vmem:[%s1 + $0x358] sm:$0xff]
    %v185 = vld [vmem:[%s1 + $0x360] sm:$0xff]
    %v186 = vld [vmem:[%s1 + $0x368] sm:$0xff]
    %v187 = vld [vmem:[%s1 + $0x370] sm:$0xff]
    %v188 = vld [vmem:[%s1 + $0x378] sm:$0xff]
    %v189 = vld [vmem:[%s1 + $0x380] sm:$0xff]
    %v190 = vld [vmem:[%s1 + $0x388] sm:$0xff]
    %v191 = vld [vmem:[%s1 + $0x390] sm:$0xff]
    %v192 = vld [vmem:[%s1 + $0x398] sm:$0xff]
    %v193 = vld [vmem:[%s1 + $0x3a0] sm:$0xff]
    %v194 = vld [vmem:[%s1 + $0x3a8] sm:$0xff]
    %v195 = vld [vmem:[%s1 + $0x3b0] sm:$0xff]
    %v196 = vld [vmem:[%s1 + $0x3b8] sm:$0xff]
    %v197 = vld [vmem:[%s1 + $0x3c0] sm:$0xff]
    %v198 = vld [vmem:[%s1 + $0x3c8] sm:$0xff]
    %v199 = vld [vmem:[%s1 + $0x3d0] sm:$0xff]
    %v200 = vld [vmem:[%s1 + $0x3d8] sm:$0xff]
    %v201 = vld [vmem:[%s1 + $0x3e0] sm:$0xff]
    %v202 = vld [vmem:[%s1 + $0x3e8] sm:$0xff]
    %v203 = vld [vmem:[%s1 + $0x3f0] sm:$0xff]
    %v204 = vld [vmem:[%s1 + $0x3f8] sm:$0xff]
    %v205 = vld [vmem:[%s1 + $0x400] sm:$0xff]
    %v206 = vld [vmem:[%s1 + $0x408] sm:$0xff]
    %v207 = vld [vmem:[%s1 + $0x410] sm:$0xff]
    %v208 = vld [vmem:[%s1 + $0x418] sm:$0xff]
    %v209 = vld [vmem:[%s1 + $0x420] sm:$0xff]
    %v210 = vld [vmem:[%s1 + $0x428] sm:$0xff]
    %v211 = vld [vmem:[%s1 + $0x430] sm:$0xff]
    %v212 = vld [vmem:[%s1 + $0x438] sm:$0xff]
    %v213 = vld [vmem:[%s1 + $0x440] sm:$0xff]
    %v214 = vld [vmem:[%s1 + $0x448] sm:$0xff]
    %v215 = vld [vmem:[%s1 + $0x450] sm:$0xff]
    %v216 = vld [vmem:[%s1 + $0x458] sm:$0xff]
    %v217 = vld [vmem:[%s1 + $0x460] sm:$0xff]
    %v218 = vld [vmem:[%s1 + $0x468] sm:$0xff]
    %v219 = vld [vmem:[%s1 + $0x470] sm:$0xff]
    %v220 = vld [vmem:[%s1 + $0x478] sm:$0xff]
    %v221 = vld [vmem:[%s1 + $0x480] sm:$0xff]
    %v222 = vld [vmem:[%s1 + $0x488] sm:$0xff]
    %v223 = vld [vmem:[%s1 + $0x490] sm:$0xff]
    %v224 = vld [vmem:[%s1 + $0x498] sm:$0xff]
    %v225 = vld [vmem:[%s1 + $0x4a0] sm:$0xff]
    %v226 = vld [vmem:[%s1 + $0x4a8] sm:$0xff]
    %v227 = vld [vmem:[%s1 + $0x4b0] sm:$0xff]
    %v228 = vld [vmem:[%s1 + $0x4b8] sm:$0xff]
    %v229 = vld [vmem:[%s1 + $0x4c0] sm:$0xff]
    %v230 = vld [vmem:[%s1 + $0x4c8] sm:$0xff]
    %v231 = vld [vmem:[%s1 + $0x4d0] sm:$0xff]
    %v232 = vld [vmem:[%s1 + $0x4d8] sm:$0xff]
    %v233 = vld [vmem:[%s1 + $0x4e0] sm:$0xff]
    %v234 = vld [vmem:[%s1 + $0x4e8] sm:$0xff]
    %v235 = vld [vmem:[%s1 + $0x4f0] sm:$0xff]
    %v236 = vld [vmem:[%s1 + $0x4f8] sm:$0xff]
    %v237 = vld [vmem:[%s1 + $0x500] sm:$0xff]
    %v238 = vld [vmem:[%s1 + $0x508] sm:$0xff]
    %v239 = vld [vmem:[%s1 + $0x510] sm:$0xff]
    %v240 = vld [vmem:[%s1 + $0x518] sm:$0xff]
    %v241 = vld [vmem:[%s1 + $0x520] sm:$0xff]
    %v242 = vld [vmem:[%s1 + $0x528] sm:$0xff]
    %v243 = vld [vmem:[%s1 + $0x530] sm:$0xff]
    %v244 = vld [vmem:[%s1 + $0x538] sm:$0xff]
    %v245 = vld [vmem:[%s1 + $0x540] sm:$0xff]
    %v246 = vld [vmem:[%s1 + $0x548] sm:$0xff]
    %v247 = vld [vmem:[%s1 + $0x550] sm:$0xff]
    %v248 = vld [vmem:[%s1 + $0x558] sm:$0xff]
    %v249 = vld [vmem:[%s1 + $0x560] sm:$0xff]
    %v250 = vld [vmem:[%s1 + $0x568] sm:$0xff]
    %v251 = vld [vmem:[%s1 + $0x570] sm:$0xff]
    %v252 = vld [vmem:[%s1 + $0x578] sm:$0xff]
    %v253 = vld [vmem:[%s1 + $0x580] sm:$0xff]
    %v254 = vld [vmem:[%s1 + $0x588] sm:$0xff]
    %v255 = vld [vmem:[%s1 + $0x590] sm:$0xff]
    %v256 = vld [vmem:[%s1 + $0x598] sm:$0xff]
    %v257 = vld [vmem:[%s1 + $0x5a0] sm:$0xff]
    %v258 = vld [vmem:[%s1 + $0x5a8] sm:$0xff]
    %v259 = vld [vmem:[%s1 + $0x5b0] sm:$0xff]
    %v260 = vld [vmem:[%s1 + $0x5b8] sm:$0xff]
    %v261 = vld [vmem:[%s1 + $0x5c0] sm:$0xff]
    %v262 = vld [vmem:[%s1 + $0x5c8] sm:$0xff]
    %v263 = vld [vmem:[%s1 + $0x5d0] sm:$0xff]
    %v264 = vld [vmem:[%s1 + $0x5d8] sm:$0xff]
    %v265 = vld [vmem:[%s1 + $0x5e0] sm:$0xff]
    %v266 = vld [vmem:[%s1 + $0x5e8] sm:$0xff]
    %v267 = vld [vmem:[%s1 + $0x5f0] sm:$0xff]
    %v268 = vld [vmem:[%s1 + $0x5f8] sm:$0xff]
    %v269 = vld [vmem:[%s1 + $0x600] sm:$0xff]
    %v270 = vld [vmem:[%s1 + $0x608] sm:$0xff]
    %v271 = vld [vmem:[%s1 + $0x610] sm:$0xff]
    %v272 = vld [vmem:[%s1 + $0x618] sm:$0xff]
    %v273 = vld [vmem:[%s1 + $0x620] sm:$0xff]
    %v274 = vld [vmem:[%s1 + $0x628] sm:$0xff]
    %v275 = vld [vmem:[%s1 + $0x630] sm:$0xff]
    %v276 = vld [vmem:[%s1 + $0x638] sm:$0xff]
    %v277 = vld [vmem:[%s1 + $0x640] sm:$0xff]
    %v278 = vld [vmem:[%s1 + $0x648] sm:$0xff]
    %v279 = vld [vmem:[%s1 + $0x650] sm:$0xff]
    %v280 = vld [vmem:[%s1 + $0x658] sm:$0xff]
    %v281 = vld [vmem:[%s1 + $0x660] sm:$0xff]
    %v282 = vld [vmem:[%s1 + $0x668] sm:$0xff]
    %v283 = vld [vmem:[%s1 + $0x670] sm:$0xff]
    %v284 = vld [vmem:[%s1 + $0x678] sm:$0xff]
    %v285 = vld [vmem:[%s1 + $0x680] sm:$0xff]
    %v286 = vld [vmem:[%s1 + $0x688] sm:$0xff]
    %v287 = vld [vmem:[%s1 + $0x690] sm:$0xff]
    %v288 = vld [vmem:[%s1 + $0x698] sm:$0xff]
    %v289 = vld [vmem:[%s1 + $0x6a0] sm:$0xff]
    %v290 = vld [vmem:[%s1 + $0x6a8] sm:$0xff]
    %v291 = vld [vmem:[%s1 + $0x6b0] sm:$0xff]
    %v292 = vld [vmem:[%s1 + $0x6b8] sm:$0xff]
    %v293 = vld [vmem:[%s1 + $0x6c0] sm:$0xff]
    %v294 = vld [vmem:[%s1 + $0x6c8] sm:$0xff]
    %v295 = vld [vmem:[%s1 + $0x6d0] sm:$0xff]
    %v296 = vld [vmem:[%s1 + $0x6d8] sm:$0xff]
    %v297 = vld [vmem:[%s1 + $0x6e0] sm:$0xff]
    %v298 = vld [vmem:[%s1 + $0x6e8] sm:$0xff]
    %v299 = vld [vmem:[%s1 + $0x6f0] sm:$0xff]
    %v300 = vld [vmem:[%s1 + $0x6f8] sm:$0xff]
    %v301 = vld [vmem:[%s1 + $0x700] sm:$0xff]
    %v302 = vld [vmem:[%s1 + $0x708] sm:$0xff]
    %v303 = vld [vmem:[%s1 + $0x710] sm:$0xff]
    %v304 = vld [vmem:[%s1 + $0x718] sm:$0xff]
    %v305 = vld [vmem:[%s1 + $0x720] sm:$0xff]
    %v306 = vld [vmem:[%s1 + $0x728] sm:$0xff]
    %v307 = vld [vmem:[%s1 + $0x730] sm:$0xff]
    %v308 = vld [vmem:[%s1 + $0x738] sm:$0xff]
    %v309 = vld [vmem:[%s1 + $0x740] sm:$0xff]
    %v310 = vld [vmem:[%s1 + $0x748] sm:$0xff]
    %v311 = vld [vmem:[%s1 + $0x750] sm:$0xff]
    %v312 = vld [vmem:[%s1 + $0x758] sm:$0xff]
    %v313 = vld [vmem:[%s1 + $0x760] sm:$0xff]
    %v314 = vld [vmem:[%s1 + $0x768] sm:$0xff]
    %v315 = vld [vmem:[%s1 + $0x770] sm:$0xff]
    %v316 = vld [vmem:[%s1 + $0x778] sm:$0xff]
    %v317 = vld [vmem:[%s1 + $0x780] sm:$0xff]
    %v318 = vld [vmem:[%s1 + $0x788] sm:$0xff]
    %v319 = vld [vmem:[%s1 + $0x790] sm:$0xff]
    %v320 = vld [vmem:[%s1 + $0x798] sm:$0xff]
    %v321 = vld [vmem:[%s1 + $0x7a0] sm:$0xff]
    %v322 = vld [vmem:[%s1 + $0x7a8] sm:$0xff]
    %v323 = vld [vmem:[%s1 + $0x7b0] sm:$0xff]
    %v324 = vld [vmem:[%s1 + $0x7b8] sm:$0xff]
    %v325 = vld [vmem:[%s1 + $0x7c0] sm:$0xff]
    %v326 = vld [vmem:[%s1 + $0x7c8] sm:$0xff]
    %v327 = vld [vmem:[%s1 + $0x7d0] sm:$0xff]
    %v328 = vld [vmem:[%s1 + $0x7d8] sm:$0xff]
    %v329 = vld [vmem:[%s1 + $0x7e0] sm:$0xff]
    %v330 = vld [vmem:[%s1 + $0x7e8] sm:$0xff]
    %v331 = vld [vmem:[%s1 + $0x7f0] sm:$0xff]
    %v332 = vld [vmem:[%s1 + $0x7f8] sm:$0xff]
    %v333 = vld [vmem:[%s1 + $0x800] sm:$0xff]
    %v334 = vld [vmem:[%s1 + $0x808] sm:$0xff]
    %v335 = vld [vmem:[%s1 + $0x810] sm:$0xff]
    %v336 = vld [vmem:[%s1 + $0x818] sm:$0xff]
    %v337 = vld [vmem:[%s1 + $0x820] sm:$0xff]
    %v338 = vld [vmem:[%s1 + $0x828] sm:$0xff]
    %v339 = vld [vmem:[%s1 + $0x830] sm:$0xff]
    %v340 = vld [vmem:[%s1 + $0x838] sm:$0xff]
    %v341 = vld [vmem:[%s1 + $0x840] sm:$0xff]
    %v342 = vld [vmem:[%s1 + $0x848] sm:$0xff]
    %v343 = vld [vmem:[%s1 + $0x850] sm:$0xff]
    %v344 = vld [vmem:[%s1 + $0x858] sm:$0xff]
    %v345 = vld [vmem:[%s1 + $0x860] sm:$0xff]
    %v346 = vld [vmem:[%s1 + $0x868] sm:$0xff]
    %v347 = vld [vmem:[%s1 + $0x870] sm:$0xff]
    %v348 = vld [vmem:[%s1 + $0x878] sm:$0xff]
    %v349 = vld [vmem:[%s1 + $0x880] sm:$0xff]
    %v350 = vld [vmem:[%s1 + $0x888] sm:$0xff]
    %v351 = vld [vmem:[%s1 + $0x890] sm:$0xff]
    %v352 = vld [vmem:[%s1 + $0x898] sm:$0xff]
    %v353 = vld [vmem:[%s1 + $0x8a0] sm:$0xff]
    %v354 = vld [vmem:[%s1 + $0x8a8] sm:$0xff]
    %v355 = vld [vmem:[%s1 + $0x8b0] sm:$0xff]
    %v356 = vld [vmem:[%s1 + $0x8b8] sm:$0xff]
    %v357 = vld [vmem:[%s1 + $0x8c0] sm:$0xff]
    %v358 = vld [vmem:[%s1 + $0x8c8] sm:$0xff]
    %v359 = vld [vmem:[%s1 + $0x8d0] sm:$0xff]
    %v360 = vld [vmem:[%s1 + $0x8d8] sm:$0xff]
    %v361 = vld [vmem:[%s1 + $0x8e0] sm:$0xff]
    %v362 = vld [vmem:[%s1 + $0x8e8] sm:$0xff]
    %v363 = vld [vmem:[%s1 + $0x8f0] sm:$0xff]
    %v364 = vld [vmem:[%s1 + $0x8f8] sm:$0xff]
    %v365 = vld [vmem:[%s1 + $0x900] sm:$0xff]
    %v366 = vld [vmem:[%s1 + $0x908] sm:$0xff]
    %v367 = vld [vmem:[%s1 + $0x910] sm:$0xff]
    %v368 = vld [vmem:[%s1 + $0x918] sm:$0xff]
    %v369 = vld [vmem:[%s1 + $0x920] sm:$0xff]
    %v370 = vld [vmem:[%s1 + $0x928] sm:$0xff]
    %v371 = vld [vmem:[%s1 + $0x930] sm:$0xff]
    %v372 = vld [vmem:[%s1 + $0x938] sm:$0xff]
    %v373 = vld [vmem:[%s1 + $0x940] sm:$0xff]
    %v374 = vld [vmem:[%s1 + $0x948] sm:$0xff]
    %v375 = vld [vmem:[%s1 + $0x950] sm:$0xff]
    %v376 = vld [vmem:[%s1 + $0x958] sm:$0xff]
    %v377 = vld [vmem:[%s1 + $0x960] sm:$0xff]
    %v378 = vld [vmem:[%s1 + $0x968] sm:$0xff]
    %v379 = vld [vmem:[%s1 + $0x970] sm:$0xff]
    %v380 = vld [vmem:[%s1 + $0x978] sm:$0xff]
    %v381 = vld [vmem:[%s1 + $0x980] sm:$0xff]
    %v382 = vld [vmem:[%s1 + $0x988] sm:$0xff]
    %v383 = vld [vmem:[%s1 + $0x990] sm:$0xff]
    %v384 = vld [vmem:[%s1 + $0x998] sm:$0xff]
    %v385 = vld [vmem:[%s1 + $0x9a0] sm:$0xff]
    %v386 = vld [vmem:[%s1 + $0x9a8] sm:$0xff]
    %v387 = vld [vmem:[%s1 + $0x9b0] sm:$0xff]
    %v388 = vld [vmem:[%s1 + $0x9b8] sm:$0xff]
    %v389 = vld [vmem:[%s1 + $0x9c0] sm:$0xff]
    %v390 = vld [vmem:[%s1 + $0x9c8] sm:$0xff]
    %v391 = vld [vmem:[%s1 + $0x9d0] sm:$0xff]
    %v392 = vld [vmem:[%s1 + $0x9d8] sm:$0xff]
    %v393 = vld [vmem:[%s1 + $0x9e0] sm:$0xff]
    %v394 = vld [vmem:[%s1 + $0x9e8] sm:$0xff]
    %v395 = vld [vmem:[%s1 + $0x9f0] sm:$0xff]
    %v396 = vld [vmem:[%s1 + $0x9f8] sm:$0xff]
    %v397 = vld [vmem:[%s1 + $0xa00] sm:$0xff]
    %v398 = vld [vmem:[%s1 + $0xa08] sm:$0xff]
    %v399 = vld [vmem:[%s1 + $0xa10] sm:$0xff]
    %v400 = vld [vmem:[%s1 + $0xa18] sm:$0xff]
    %v401 = vld [vmem:[%s1 + $0xa20] sm:$0xff]
    %v402 = vld [vmem:[%s1 + $0xa28] sm:$0xff]
    %v403 = vld [vmem:[%s1 + $0xa30] sm:$0xff]
    %v404 = vld [vmem:[%s1 + $0xa38] sm:$0xff]
    %v405 = vld [vmem:[%s1 + $0xa40] sm:$0xff]
    %v406 = vld [vmem:[%s1 + $0xa48] sm:$0xff]
    %v407 = vld [vmem:[%s1 + $0xa50] sm:$0xff]
    %v408 = vld [vmem:[%s1 + $0xa58] sm:$0xff]
    %v409 = vld [vmem:[%s1 + $0xa60] sm:$0xff]
    %v410 = vld [vmem:[%s1 + $0xa68] sm:$0xff]
    %v411 = vld [vmem:[%s1 + $0xa70] sm:$0xff]
    %v412 = vld [vmem:[%s1 + $0xa78] sm:$0xff]
    %v413 = vld [vmem:[%s1 + $0xa80] sm:$0xff]
    %v414 = vld [vmem:[%s1 + $0xa88] sm:$0xff]
    %v415 = vld [vmem:[%s1 + $0xa90] sm:$0xff]
    %v416 = vld [vmem:[%s1 + $0xa98] sm:$0xff]
    %v417 = vld [vmem:[%s1 + $0xaa0] sm:$0xff]
    %v418 = vld [vmem:[%s1 + $0xaa8] sm:$0xff]
    %v419 = vld [vmem:[%s1 + $0xab0] sm:$0xff]
    %v420 = vld [vmem:[%s1 + $0xab8] sm:$0xff]
    %v421 = vld [vmem:[%s1 + $0xac0] sm:$0xff]
    %v422 = vld [vmem:[%s1 + $0xac8] sm:$0xff]
    %v423 = vld [vmem:[%s1 + $0xad0] sm:$0xff]
    %v424 = vld [vmem:[%s1 + $0xad8] sm:$0xff]
    %v425 = vld [vmem:[%s1 + $0xae0] sm:$0xff]
    %v426 = vld [vmem:[%s1 + $0xae8] sm:$0xff]
    %v427 = vld [vmem:[%s1 + $0xaf0] sm:$0xff]
    %v428 = vld [vmem:[%s1 + $0xaf8] sm:$0xff]
    %v429 = vld [vmem:[%s1 + $0xb00] sm:$0xff]
    %v430 = vld [vmem:[%s1 + $0xb08] sm:$0xff]
    %v431 = vld [vmem:[%s1 + $0xb10] sm:$0xff]
    %v432 = vld [vmem:[%s1 + $0xb18] sm:$0xff]
    %v433 = vld [vmem:[%s1 + $0xb20] sm:$0xff]
    %v434 = vld [vmem:[%s1 + $0xb28] sm:$0xff]
    %v435 = vld [vmem:[%s1 + $0xb30] sm:$0xff]
    %v436 = vld [vmem:[%s1 + $0xb38] sm:$0xff]
    %v437 = vld [vmem:[%s1 + $0xb40] sm:$0xff]
    %v438 = vld [vmem:[%s1 + $0xb48] sm:$0xff]
    %v439 = vld [vmem:[%s1 + $0xb50] sm:$0xff]
    %v440 = vld [vmem:[%s1 + $0xb58] sm:$0xff]
    %v441 = vld [vmem:[%s1 + $0xb60] sm:$0xff]
    %v442 = vld [vmem:[%s1 + $0xb68] sm:$0xff]
    %v443 = vld [vmem:[%s1 + $0xb70] sm:$0xff]
    %v444 = vld [vmem:[%s1 + $0xb78] sm:$0xff]
    %v445 = vld [vmem:[%s1 + $0xb80] sm:$0xff]
    %v446 = vld [vmem:[%s1 + $0xb88] sm:$0xff]
    %v447 = vld [vmem:[%s1 + $0xb90] sm:$0xff]
    %v448 = vld [vmem:[%s1 + $0xb98] sm:$0xff]
    %v449 = vld [vmem:[%s1 + $0xba0] sm:$0xff]
    %v450 = vld [vmem:[%s1 + $0xba8] sm:$0xff]
    %v451 = vld [vmem:[%s1 + $0xbb0] sm:$0xff]
    %v452 = vld [vmem:[%s1 + $0xbb8] sm:$0xff]
    %v453 = vld [vmem:[%s1 + $0xbc0] sm:$0xff]
    %v454 = vld [vmem:[%s1 + $0xbc8] sm:$0xff]
    %v455 = vld [vmem:[%s1 + $0xbd0] sm:$0xff]
    %v456 = vld [vmem:[%s1 + $0xbd8] sm:$0xff]
    %v457 = vld [vmem:[%s1 + $0xbe0] sm:$0xff]
    %v458 = vld [vmem:[%s1 + $0xbe8] sm:$0xff]
    %v459 = vld [vmem:[%s1 + $0xbf0] sm:$0xff]
    %v460 = vld [vmem:[%s1 + $0xbf8] sm:$0xff]
    %v461 = vld [vmem:[%s1 + $0xc00] sm:$0xff]
    %v462 = vld [vmem:[%s1 + $0xc08] sm:$0xff]
    %v463 = vld [vmem:[%s1 + $0xc10] sm:$0xff]
    %v464 = vld [vmem:[%s1 + $0xc18] sm:$0xff]
    %v465 = vld [vmem:[%s1 + $0xc20] sm:$0xff]
    %v466 = vld [vmem:[%s1 + $0xc28] sm:$0xff]
    %v467 = vld [vmem:[%s1 + $0xc30] sm:$0xff]
    %v468 = vld [vmem:[%s1 + $0xc38] sm:$0xff]
    %v469 = vld [vmem:[%s1 + $0xc40] sm:$0xff]
    %v470 = vld [vmem:[%s1 + $0xc48] sm:$0xff]
    %v471 = vld [vmem:[%s1 + $0xc50] sm:$0xff]
    %v472 = vld [vmem:[%s1 + $0xc58] sm:$0xff]
    %v473 = vld [vmem:[%s1 + $0xc60] sm:$0xff]
    %v474 = vld [vmem:[%s1 + $0xc68] sm:$0xff]
    %v475 = vld [vmem:[%s1 + $0xc70] sm:$0xff]
    %v476 = vld [vmem:[%s1 + $0xc78] sm:$0xff]
    %v477 = vld [vmem:[%s1 + $0xc80] sm:$0xff]
    %v478 = vld [vmem:[%s1 + $0xc88] sm:$0xff]
    %v479 = vld [vmem:[%s1 + $0xc90] sm:$0xff]
    %v480 = vld [vmem:[%s1 + $0xc98] sm:$0xff]
    %v481 = vld [vmem:[%s1 + $0xca0] sm:$0xff]
    %v482 = vld [vmem:[%s1 + $0xca8] sm:$0xff]
    %v483 = vld [vmem:[%s1 + $0xcb0] sm:$0xff]
    %v484 = vld [vmem:[%s1 + $0xcb8] sm:$0xff]
    %v485 = vld [vmem:[%s1 + $0xcc0] sm:$0xff]
    %v486 = vld [vmem:[%s1 + $0xcc8] sm:$0xff]
    %v487 = vld [vmem:[%s1 + $0xcd0] sm:$0xff]
    %v488 = vld [vmem:[%s1 + $0xcd8] sm:$0xff]
    %v489 = vld [vmem:[%s1 + $0xce0] sm:$0xff]
    %v490 = vld [vmem:[%s1 + $0xce8] sm:$0xff]
    %v491 = vld [vmem:[%s1 + $0xcf0] sm:$0xff]
    %v492 = vld [vmem:[%s1 + $0xcf8] sm:$0xff]
    %v493 = vld [vmem:[%s1 + $0xd00] sm:$0xff]
    %v494 = vld [vmem:[%s1 + $0xd08] sm:$0xff]
    %v495 = vld [vmem:[%s1 + $0xd10] sm:$0xff]
    %v496 = vld [vmem:[%s1 + $0xd18] sm:$0xff]
    %v497 = vld [vmem:[%s1 + $0xd20] sm:$0xff]
    %v498 = vld [vmem:[%s1 + $0xd28] sm:$0xff]
    %v499 = vld [vmem:[%s1 + $0xd30] sm:$0xff]
    %v500 = vld [vmem:[%s1 + $0xd38] sm:$0xff]
    %v501 = vld [vmem:[%s1 + $0xd40] sm:$0xff]
    %v502 = vld [vmem:[%s1 + $0xd48] sm:$0xff]
    %v503 = vld [vmem:[%s1 + $0xd50] sm:$0xff]
    %v504 = vld [vmem:[%s1 + $0xd58] sm:$0xff]
    %v505 = vld [vmem:[%s1 + $0xd60] sm:$0xff]
    %v506 = vld [vmem:[%s1 + $0xd68] sm:$0xff]
    %v507 = vld [vmem:[%s1 + $0xd70] sm:$0xff]
    %v508 = vld [vmem:[%s1 + $0xd78] sm:$0xff]
    %v509 = vld [vmem:[%s1 + $0xd80] sm:$0xff]
    %v510 = vld [vmem:[%s1 + $0xd88] sm:$0xff]
    %v511 = vld [vmem:[%s1 + $0xd90] sm:$0xff]
    %v512 = vld [vmem:[%s1 + $0xd98] sm:$0xff]
    %v513 = vld [vmem:[%s1 + $0xda0] sm:$0xff]
    %v514 = vld [vmem:[%s1 + $0xda8] sm:$0xff]
    %v515 = vld [vmem:[%s1 + $0xdb0] sm:$0xff]
    %v516 = vld [vmem:[%s1 + $0xdb8] sm:$0xff]
    %v517 = vld [vmem:[%s1 + $0xdc0] sm:$0xff]
    %v518 = vld [vmem:[%s1 + $0xdc8] sm:$0xff]
    %v519 = vld [vmem:[%s1 + $0xdd0] sm:$0xff]
    %v520 = vld [vmem:[%s1 + $0xdd8] sm:$0xff]
    %v521 = vld [vmem:[%s1 + $0xde0] sm:$0xff]
    %v522 = vld [vmem:[%s1 + $0xde8] sm:$0xff]
    %v523 = vld [vmem:[%s1 + $0xdf0] sm:$0xff]
    %v524 = vld [vmem:[%s1 + $0xdf8] sm:$0xff]
    %v525 = vld [vmem:[%s1 + $0xe00] sm:$0xff]
    %v526 = vld [vmem:[%s1 + $0xe08] sm:$0xff]
    %v527 = vld [vmem:[%s1 + $0xe10] sm:$0xff]
    %v528 = vld [vmem:[%s1 + $0xe18] sm:$0xff]
    %v529 = vld [vmem:[%s1 + $0xe20] sm:$0xff]
    %v530 = vld [vmem:[%s1 + $0xe28] sm:$0xff]
    %v531 = vld [vmem:[%s1 + $0xe30] sm:$0xff]
    %v532 = vld [vmem:[%s1 + $0xe38] sm:$0xff]
    %v533 = vld [vmem:[%s1 + $0xe40] sm:$0xff]
    %v534 = vld [vmem:[%s1 + $0xe48] sm:$0xff]
    %v535 = vld [vmem:[%s1 + $0xe50] sm:$0xff]
    %v536 = vld [vmem:[%s1 + $0xe58] sm:$0xff]
    %v537 = vld [vmem:[%s1 + $0xe60] sm:$0xff]
    %v538 = vld [vmem:[%s1 + $0xe68] sm:$0xff]
    %v539 = vld [vmem:[%s1 + $0xe70] sm:$0xff]
    %v540 = vld [vmem:[%s1 + $0xe78] sm:$0xff]
    %v541 = vld [vmem:[%s1 + $0xe80] sm:$0xff]
    %v542 = vld [vmem:[%s1 + $0xe88] sm:$0xff]
    %v543 = vld [vmem:[%s1 + $0xe90] sm:$0xff]
    %v544 = vld [vmem:[%s1 + $0xe98] sm:$0xff]
    %v545 = vld [vmem:[%s1 + $0xea0] sm:$0xff]
    %v546 = vld [vmem:[%s1 + $0xea8] sm:$0xff]
    %v547 = vld [vmem:[%s1 + $0xeb0] sm:$0xff]
    %v548 = vld [vmem:[%s1 + $0xeb8] sm:$0xff]
    %v549 = vld [vmem:[%s1 + $0xec0] sm:$0xff]
    %v550 = vld [vmem:[%s1 + $0xec8] sm:$0xff]
    %v551 = vld [vmem:[%s1 + $0xed0] sm:$0xff]
    %v552 = vld [vmem:[%s1 + $0xed8] sm:$0xff]
    %v553 = vld [vmem:[%s1 + $0xee0] sm:$0xff]
    %v554 = vld [vmem:[%s1 + $0xee8] sm:$0xff]
    %v555 = vld [vmem:[%s1 + $0xef0] sm:$0xff]
    %v556 = vld [vmem:[%s1 + $0xef8] sm:$0xff]
    %v557 = vld [vmem:[%s1 + $0xf00] sm:$0xff]
    %v558 = vld [vmem:[%s1 + $0xf08] sm:$0xff]
    %v559 = vld [vmem:[%s1 + $0xf10] sm:$0xff]
    %v560 = vld [vmem:[%s1 + $0xf18] sm:$0xff]
    %v561 = vld [vmem:[%s1 + $0xf20] sm:$0xff]
    %v562 = vld [vmem:[%s1 + $0xf28] sm:$0xff]
    %v563 = vld [vmem:[%s1 + $0xf30] sm:$0xff]
    %v564 = vld [vmem:[%s1 + $0xf38] sm:$0xff]
    %v565 = vld [vmem:[%s1 + $0xf40] sm:$0xff]
    %v566 = vld [vmem:[%s1 + $0xf48] sm:$0xff]
    %v567 = vld [vmem:[%s1 + $0xf50] sm:$0xff]
    %v568 = vld [vmem:[%s1 + $0xf58] sm:$0xff]
    %v569 = vld [vmem:[%s1 + $0xf60] sm:$0xff]
    %v570 = vld [vmem:[%s1 + $0xf68] sm:$0xff]
    %v571 = vld [vmem:[%s1 + $0xf70] sm:$0xff]
    %v572 = vld [vmem:[%s1 + $0xf78] sm:$0xff]
    %v573 = vld [vmem:[%s1 + $0xf80] sm:$0xff]
    %v574 = vld [vmem:[%s1 + $0xf88] sm:$0xff]
    %v575 = vld [vmem:[%s1 + $0xf90] sm:$0xff]
    %v576 = vld [vmem:[%s1 + $0xf98] sm:$0xff]
    %v577 = vld [vmem:[%s1 + $0xfa0] sm:$0xff]
    %v578 = vld [vmem:[%s1 + $0xfa8] sm:$0xff]
    %v579 = vld [vmem:[%s1 + $0xfb0] sm:$0xff]
    %v580 = vld [vmem:[%s1 + $0xfb8] sm:$0xff]
    %v581 = vld [vmem:[%s1 + $0xfc0] sm:$0xff]
    %v582 = vld [vmem:[%s1 + $0xfc8] sm:$0xff]
    %v583 = vld [vmem:[%s1 + $0xfd0] sm:$0xff]
    %v584 = vld [vmem:[%s1 + $0xfd8] sm:$0xff]
    %v585 = vld [vmem:[%s1 + $0xfe0] sm:$0xff]
    %v586 = vld [vmem:[%s1 + $0xfe8] sm:$0xff]
    %v587 = vld [vmem:[%s1 + $0xff0] sm:$0xff]
    %v588 = vld [vmem:[%s1 + $0xff8] sm:$0xff]
    %v589 = vld [vmem:[%s1 + $0x1000] sm:$0xff]
    %v590 = vld [vmem:[%s1 + $0x1008] sm:$0xff]
    %v591 = vld [vmem:[%s1 + $0x1010] sm:$0xff]
    %v592 = vld [vmem:[%s1 + $0x1018] sm:$0xff]
    %v593 = vld [vmem:[%s1 + $0x1020] sm:$0xff]
    %v594 = vld [vmem:[%s1 + $0x1028] sm:$0xff]
    %v595 = vld [vmem:[%s1 + $0x1030] sm:$0xff]
    %v596 = vld [vmem:[%s1 + $0x1038] sm:$0xff]
    %v597 = vld [vmem:[%s1 + $0x1040] sm:$0xff]
    %v598 = vld [vmem:[%s1 + $0x1048] sm:$0xff]
    %v599 = vld [vmem:[%s1 + $0x1050] sm:$0xff]
    %v600 = vld [vmem:[%s1 + $0x1058] sm:$0xff]
    %v601 = vld [vmem:[%s1 + $0x1060] sm:$0xff]
    %v602 = vld [vmem:[%s1 + $0x1068] sm:$0xff]
    %v603 = vld [vmem:[%s1 + $0x1070] sm:$0xff]
    %v604 = vld [vmem:[%s1 + $0x1078] sm:$0xff]
    %v605 = vld [vmem:[%s1 + $0x1080] sm:$0xff]
    %v606 = vld [vmem:[%s1 + $0x1088] sm:$0xff]
    %v607 = vld [vmem:[%s1 + $0x1090] sm:$0xff]
    %v608 = vld [vmem:[%s1 + $0x1098] sm:$0xff]
    %v609 = vld [vmem:[%s1 + $0x10a0] sm:$0xff]
    %v610 = vld [vmem:[%s1 + $0x10a8] sm:$0xff]
    %v611 = vld [vmem:[%s1 + $0x10b0] sm:$0xff]
    %v612 = vld [vmem:[%s1 + $0x10b8] sm:$0xff]
    %v613 = vld [vmem:[%s1 + $0x10c0] sm:$0xff]
    %v614 = vld [vmem:[%s1 + $0x10c8] sm:$0xff]
    %v615 = vld [vmem:[%s1 + $0x10d0] sm:$0xff]
    %v616 = vld [vmem:[%s1 + $0x10d8] sm:$0xff]
    %v617 = vld [vmem:[%s1 + $0x10e0] sm:$0xff]
    %v618 = vld [vmem:[%s1 + $0x10e8] sm:$0xff]
    %v619 = vld [vmem:[%s1 + $0x10f0] sm:$0xff]
    %v620 = vld [vmem:[%s1 + $0x10f8] sm:$0xff]
    %v621 = vld [vmem:[%s1 + $0x1100] sm:$0xff]
    %v622 = vld [vmem:[%s1 + $0x1108] sm:$0xff]
    %v623 = vld [vmem:[%s1 + $0x1110] sm:$0xff]
    %v624 = vld [vmem:[%s1 + $0x1118] sm:$0xff]
    %v625 = vld [vmem:[%s1 + $0x1120] sm:$0xff]
    %v626 = vld [vmem:[%s1 + $0x1128] sm:$0xff]
    %v627 = vld [vmem:[%s1 + $0x1130] sm:$0xff]
    %v628 = vld [vmem:[%s1 + $0x1138] sm:$0xff]
    %v629 = vld [vmem:[%s1 + $0x1140] sm:$0xff]
    %v630 = vld [vmem:[%s1 + $0x1148] sm:$0xff]
    %v631 = vld [vmem:[%s1 + $0x1150] sm:$0xff]
    %v632 = vld [vmem:[%s1 + $0x1158] sm:$0xff]
    %v633 = vld [vmem:[%s1 + $0x1160] sm:$0xff]
    %v634 = vld [vmem:[%s1 + $0x1168] sm:$0xff]
    %v635 = vld [vmem:[%s1 + $0x1170] sm:$0xff]
    %v636 = vld [vmem:[%s1 + $0x1178] sm:$0xff]
    %v637 = vld [vmem:[%s1 + $0x1180] sm:$0xff]
    %v638 = vld [vmem:[%s1 + $0x1188] sm:$0xff]
    %v639 = vld [vmem:[%s1 + $0x1190] sm:$0xff]
    %v640 = vld [vmem:[%s1 + $0x1198] sm:$0xff]
    %v641 = vld [vmem:[%s1 + $0x11a0] sm:$0xff]
    %v642 = vld [vmem:[%s1 + $0x11a8] sm:$0xff]
    %v643 = vld [vmem:[%s1 + $0x11b0] sm:$0xff]
    %v644 = vld [vmem:[%s1 + $0x11b8] sm:$0xff]
    %v645 = vld [vmem:[%s1 + $0x11c0] sm:$0xff]
    %v646 = vld [vmem:[%s1 + $0x11c8] sm:$0xff]
    %v647 = vld [vmem:[%s1 + $0x11d0] sm:$0xff]
    %v648 = vld [vmem:[%s1 + $0x11d8] sm:$0xff]
    %v649 = vld [vmem:[%s1 + $0x11e0] sm:$0xff]
    %v650 = vld [vmem:[%s1 + $0x11e8] sm:$0xff]
    %v651 = vld [vmem:[%s1 + $0x11f0] sm:$0xff]
    %v652 = vld [vmem:[%s1 + $0x11f8] sm:$0xff]
    %v653 = vld [vmem:[%s1 + $0x1200] sm:$0xff]
    %v654 = vld [vmem:[%s1 + $0x1208] sm:$0xff]
    %v655 = vld [vmem:[%s1 + $0x1210] sm:$0xff]
    %v656 = vld [vmem:[%s1 + $0x1218] sm:$0xff]
    %v657 = vld [vmem:[%s1 + $0x1220] sm:$0xff]
    %v658 = vld [vmem:[%s1 + $0x1228] sm:$0xff]
    %v659 = vld [vmem:[%s1 + $0x1230] sm:$0xff]
    %v660 = vld [vmem:[%s1 + $0x1238] sm:$0xff]
    %v661 = vld [vmem:[%s1 + $0x1240] sm:$0xff]
    %v662 = vld [vmem:[%s1 + $0x1248] sm:$0xff]
    %v663 = vld [vmem:[%s1 + $0x1250] sm:$0xff]
    %v664 = vld [vmem:[%s1 + $0x1258] sm:$0xff]
    %v665 = vld [vmem:[%s1 + $0x1260] sm:$0xff]
    %v666 = vld [vmem:[%s1 + $0x1268] sm:$0xff]
    %v667 = vld [vmem:[%s1 + $0x1270] sm:$0xff]
    %v668 = vld [vmem:[%s1 + $0x1278] sm:$0xff]
    %v669 = vld [vmem:[%s1 + $0x1280] sm:$0xff]
    %v670 = vld [vmem:[%s1 + $0x1288] sm:$0xff]
    %v671 = vld [vmem:[%s1 + $0x1290] sm:$0xff]
    %v672 = vld [vmem:[%s1 + $0x1298] sm:$0xff]
    %v673 = vld [vmem:[%s1 + $0x12a0] sm:$0xff]
    %v674 = vld [vmem:[%s1 + $0x12a8] sm:$0xff]
    %v675 = vld [vmem:[%s1 + $0x12b0] sm:$0xff]
    %v676 = vld [vmem:[%s1 + $0x12b8] sm:$0xff]
    %v677 = vld [vmem:[%s1 + $0x12c0] sm:$0xff]
    %v678 = vld [vmem:[%s1 + $0x12c8] sm:$0xff]
    %v679 = vld [vmem:[%s1 + $0x12d0] sm:$0xff]
    %v680 = vld [vmem:[%s1 + $0x12d8] sm:$0xff]
    %v681 = vld [vmem:[%s1 + $0x12e0] sm:$0xff]
    %v682 = vld [vmem:[%s1 + $0x12e8] sm:$0xff]
    %v683 = vld [vmem:[%s1 + $0x12f0] sm:$0xff]
    %v684 = vld [vmem:[%s1 + $0x12f8] sm:$0xff]
    %v685 = vld [vmem:[%s1 + $0x1300] sm:$0xff]
    %v686 = vld [vmem:[%s1 + $0x1308] sm:$0xff]
    %v687 = vld [vmem:[%s1 + $0x1310] sm:$0xff]
    %v688 = vld [vmem:[%s1 + $0x1318] sm:$0xff]
    %v689 = vld [vmem:[%s1 + $0x1320] sm:$0xff]
    %v690 = vld [vmem:[%s1 + $0x1328] sm:$0xff]
    %v691 = vld [vmem:[%s1 + $0x1330] sm:$0xff]
    %v692 = vld [vmem:[%s1 + $0x1338] sm:$0xff]
    %v693 = vld [vmem:[%s1 + $0x1340] sm:$0xff]
    %v694 = vld [vmem:[%s1 + $0x1348] sm:$0xff]
    %v695 = vld [vmem:[%s1 + $0x1350] sm:$0xff]
    %v696 = vld [vmem:[%s1 + $0x1358] sm:$0xff]
    %v697 = vld [vmem:[%s1 + $0x1360] sm:$0xff]
    %v698 = vld [vmem:[%s1 + $0x1368] sm:$0xff]
    %v699 = vld [vmem:[%s1 + $0x1370] sm:$0xff]
    %v700 = vld [vmem:[%s1 + $0x1378] sm:$0xff]
    %v701 = vld [vmem:[%s1 + $0x1380] sm:$0xff]
    %v702 = vld [vmem:[%s1 + $0x1388] sm:$0xff]
    %v703 = vld [vmem:[%s1 + $0x1390] sm:$0xff]
    %v704 = vld [vmem:[%s1 + $0x1398] sm:$0xff]
    %v705 = vld [vmem:[%s1 + $0x13a0] sm:$0xff]
    %v706 = vld [vmem:[%s1 + $0x13a8] sm:$0xff]
    %v707 = vld [vmem:[%s1 + $0x13b0] sm:$0xff]
    %v708 = vld [vmem:[%s1 + $0x13b8] sm:$0xff]
    %v709 = vld [vmem:[%s1 + $0x13c0] sm:$0xff]
    %v710 = vld [vmem:[%s1 + $0x13c8] sm:$0xff]
    %v711 = vld [vmem:[%s1 + $0x13d0] sm:$0xff]
    %v712 = vld [vmem:[%s1 + $0x13d8] sm:$0xff]
    %v713 = vld [vmem:[%s1 + $0x13e0] sm:$0xff]
    %v714 = vld [vmem:[%s1 + $0x13e8] sm:$0xff]
    %v715 = vld [vmem:[%s1 + $0x13f0] sm:$0xff]
    %v716 = vld [vmem:[%s1 + $0x13f8] sm:$0xff]
    %v717 = vld [vmem:[%s1 + $0x1400] sm:$0xff]
    %v718 = vld [vmem:[%s1 + $0x1408] sm:$0xff]
    %v719 = vld [vmem:[%s1 + $0x1410] sm:$0xff]
    %v720 = vld [vmem:[%s1 + $0x1418] sm:$0xff]
    %v721 = vld [vmem:[%s1 + $0x1420] sm:$0xff]
    %v722 = vld [vmem:[%s1 + $0x1428] sm:$0xff]
    %v723 = vld [vmem:[%s1 + $0x1430] sm:$0xff]
    %v724 = vld [vmem:[%s1 + $0x1438] sm:$0xff]
    %v725 = vld [vmem:[%s1 + $0x1440] sm:$0xff]
    %v726 = vld [vmem:[%s1 + $0x1448] sm:$0xff]
    %v727 = vld [vmem:[%s1 + $0x1450] sm:$0xff]
    %v728 = vld [vmem:[%s1 + $0x1458] sm:$0xff]
    %v729 = vld [vmem:[%s1 + $0x1460] sm:$0xff]
    %v730 = vld [vmem:[%s1 + $0x1468] sm:$0xff]
    %v731 = vld [vmem:[%s1 + $0x1470] sm:$0xff]
    %v732 = vld [vmem:[%s1 + $0x1478] sm:$0xff]
    %v733 = vld [vmem:[%s1 + $0x1480] sm:$0xff]
    %v734 = vld [vmem:[%s1 + $0x1488] sm:$0xff]
    %v735 = vld [vmem:[%s1 + $0x1490] sm:$0xff]
    %v736 = vld [vmem:[%s1 + $0x1498] sm:$0xff]
    %v737 = vld [vmem:[%s1 + $0x14a0] sm:$0xff]
    %v738 = vld [vmem:[%s1 + $0x14a8] sm:$0xff]
    %v739 = vld [vmem:[%s1 + $0x14b0] sm:$0xff]
    %v740 = vld [vmem:[%s1 + $0x14b8] sm:$0xff]
    %v741 = vld [vmem:[%s1 + $0x14c0] sm:$0xff]
    %v742 = vld [vmem:[%s1 + $0x14c8] sm:$0xff]
    %v743 = vld [vmem:[%s1 + $0x14d0] sm:$0xff]
    %v744 = vld [vmem:[%s1 + $0x14d8] sm:$0xff]
    %v745 = vld [vmem:[%s1 + $0x14e0] sm:$0xff]
    %v746 = vld [vmem:[%s1 + $0x14e8] sm:$0xff]
    %v747 = vld [vmem:[%s1 + $0x14f0] sm:$0xff]
    %v748 = vld [vmem:[%s1 + $0x14f8] sm:$0xff]
    %v749 = vld [vmem:[%s1 + $0x1500] sm:$0xff]
    %v750 = vld [vmem:[%s1 + $0x1508] sm:$0xff]
    %v751 = vld [vmem:[%s1 + $0x1510] sm:$0xff]
    %v752 = vld [vmem:[%s1 + $0x1518] sm:$0xff]
    %v753 = vld [vmem:[%s1 + $0x1520] sm:$0xff]
    %v754 = vld [vmem:[%s1 + $0x1528] sm:$0xff]
    %v755 = vld [vmem:[%s1 + $0x1530] sm:$0xff]
    %v756 = vld [vmem:[%s1 + $0x1538] sm:$0xff]
    %v757 = vld [vmem:[%s1 + $0x1540] sm:$0xff]
    %v758 = vld [vmem:[%s1 + $0x1548] sm:$0xff]
    %v759 = vld [vmem:[%s1 + $0x1550] sm:$0xff]
    %v760 = vld [vmem:[%s1 + $0x1558] sm:$0xff]
    %v761 = vld [vmem:[%s1 + $0x1560] sm:$0xff]
    %v762 = vld [vmem:[%s1 + $0x1568] sm:$0xff]
    %v763 = vld [vmem:[%s1 + $0x1570] sm:$0xff]
    %v764 = vld [vmem:[%s1 + $0x1578] sm:$0xff]
    %v765 = vld [vmem:[%s1 + $0x1580] sm:$0xff]
    %v766 = vld [vmem:[%s1 + $0x1588] sm:$0xff]
    %v767 = vld [vmem:[%s1 + $0x1590] sm:$0xff]
    %v768 = vld [vmem:[%s1 + $0x1598] sm:$0xff]
    %v769 = vld [vmem:[%s1 + $0x15a0] sm:$0xff]
    %v770 = vld [vmem:[%s1 + $0x15a8] sm:$0xff]
    %v771 = vld [vmem:[%s1 + $0x15b0] sm:$0xff]
    %v772 = vld [vmem:[%s1 + $0x15b8] sm:$0xff]
    %v773 = vld [vmem:[%s1 + $0x15c0] sm:$0xff]
    %v774 = vld [vmem:[%s1 + $0x15c8] sm:$0xff]
    %v775 = vld [vmem:[%s1 + $0x15d0] sm:$0xff]
    %v776 = vld [vmem:[%s1 + $0x15d8] sm:$0xff]
    %v777 = vld [vmem:[%s1 + $0x15e0] sm:$0xff]
    %v778 = vld [vmem:[%s1 + $0x15e8] sm:$0xff]
    %v779 = vld [vmem:[%s1 + $0x15f0] sm:$0xff]
    %v780 = vld [vmem:[%s1 + $0x15f8] sm:$0xff]
    %v781 = vld [vmem:[%s1 + $0x1600] sm:$0xff]
    %v782 = vld [vmem:[%s1 + $0x1608] sm:$0xff]
    %v783 = vld [vmem:[%s1 + $0x1610] sm:$0xff]
    %v784 = vld [vmem:[%s1 + $0x1618] sm:$0xff]
    %v785 = vld [vmem:[%s1 + $0x1620] sm:$0xff]
    %v786 = vld [vmem:[%s1 + $0x1628] sm:$0xff]
    %v787 = vld [vmem:[%s1 + $0x1630] sm:$0xff]
    %v788 = vld [vmem:[%s1 + $0x1638] sm:$0xff]
    %v789 = vld [vmem:[%s1 + $0x1640] sm:$0xff]
    %v790 = vld [vmem:[%s1 + $0x1648] sm:$0xff]
    %v791 = vld [vmem:[%s1 + $0x1650] sm:$0xff]
    %v792 = vld [vmem:[%s1 + $0x1658] sm:$0xff]
    %v793 = vld [vmem:[%s1 + $0x1660] sm:$0xff]
    %v794 = vld [vmem:[%s1 + $0x1668] sm:$0xff]
    %v795 = vld [vmem:[%s1 + $0x1670] sm:$0xff]
    %v796 = vld [vmem:[%s1 + $0x1678] sm:$0xff]
    %v797 = vld [vmem:[%s1 + $0x1680] sm:$0xff]
    %v798 = vld [vmem:[%s1 + $0x1688] sm:$0xff]
    %v799 = vld [vmem:[%s1 + $0x1690] sm:$0xff]
    %v800 = vld [vmem:[%s1 + $0x1698] sm:$0xff]
    %v801 = vld [vmem:[%s1 + $0x16a0] sm:$0xff]
    %v802 = vld [vmem:[%s1 + $0x16a8] sm:$0xff]
    %v803 = vld [vmem:[%s1 + $0x16b0] sm:$0xff]
    %v804 = vld [vmem:[%s1 + $0x16b8] sm:$0xff]
    %v805 = vld [vmem:[%s1 + $0x16c0] sm:$0xff]
    %v806 = vld [vmem:[%s1 + $0x16c8] sm:$0xff]
    %v807 = vld [vmem:[%s1 + $0x16d0] sm:$0xff]
    %v808 = vld [vmem:[%s1 + $0x16d8] sm:$0xff]
    %v809 = vld [vmem:[%s1 + $0x16e0] sm:$0xff]
    %v810 = vld [vmem:[%s1 + $0x16e8] sm:$0xff]
    %v811 = vld [vmem:[%s1 + $0x16f0] sm:$0xff]
    %v812 = vld [vmem:[%s1 + $0x16f8] sm:$0xff]
    %v813 = vld [vmem:[%s1 + $0x1700] sm:$0xff]
    %v814 = vld [vmem:[%s1 + $0x1708] sm:$0xff]
    %v815 = vld [vmem:[%s1 + $0x1710] sm:$0xff]
    %v816 = vld [vmem:[%s1 + $0x1718] sm:$0xff]
    %v817 = vld [vmem:[%s1 + $0x1720] sm:$0xff]
    %v818 = vld [vmem:[%s1 + $0x1728] sm:$0xff]
    %v819 = vld [vmem:[%s1 + $0x1730] sm:$0xff]
    %v820 = vld [vmem:[%s1 + $0x1738] sm:$0xff]
    %v821 = vld [vmem:[%s1 + $0x1740] sm:$0xff]
    %v822 = vld [vmem:[%s1 + $0x1748] sm:$0xff]
    %v823 = vld [vmem:[%s1 + $0x1750] sm:$0xff]
    %v824 = vld [vmem:[%s1 + $0x1758] sm:$0xff]
    %v825 = vld [vmem:[%s1 + $0x1760] sm:$0xff]
    %v826 = vld [vmem:[%s1 + $0x1768] sm:$0xff]
    %v827 = vld [vmem:[%s1 + $0x1770] sm:$0xff]
    %v828 = vld [vmem:[%s1 + $0x1778] sm:$0xff]
    %v829 = vld [vmem:[%s1 + $0x1780] sm:$0xff]
    %v830 = vld [vmem:[%s1 + $0x1788] sm:$0xff]
    %v831 = vld [vmem:[%s1 + $0x1790] sm:$0xff]
    %v832 = vld [vmem:[%s1 + $0x1798] sm:$0xff]
    %v833 = vld [vmem:[%s1 + $0x17a0] sm:$0xff]
    %v834 = vld [vmem:[%s1 + $0x17a8] sm:$0xff]
    %v835 = vld [vmem:[%s1 + $0x17b0] sm:$0xff]
    %v836 = vld [vmem:[%s1 + $0x17b8] sm:$0xff]
    %v837 = vld [vmem:[%s1 + $0x17c0] sm:$0xff]
    %v838 = vld [vmem:[%s1 + $0x17c8] sm:$0xff]
    %v839 = vld [vmem:[%s1 + $0x17d0] sm:$0xff]
    %v840 = vld [vmem:[%s1 + $0x17d8] sm:$0xff]
    %v841 = vld [vmem:[%s1 + $0x17e0] sm:$0xff]
    %v842 = vld [vmem:[%s1 + $0x17e8] sm:$0xff]
    %v843 = vld [vmem:[%s1 + $0x17f0] sm:$0xff]
    %v844 = vld [vmem:[%s1 + $0x17f8] sm:$0xff]
    %v845 = vld [vmem:[%s1 + $0x1800] sm:$0xff]
    %v846 = vld [vmem:[%s1 + $0x1808] sm:$0xff]
    %v847 = vld [vmem:[%s1 + $0x1810] sm:$0xff]
    %v848 = vld [vmem:[%s1 + $0x1818] sm:$0xff]
    %v849 = vld [vmem:[%s1 + $0x1820] sm:$0xff]
    %v850 = vld [vmem:[%s1 + $0x1828] sm:$0xff]
    %v851 = vld [vmem:[%s1 + $0x1830] sm:$0xff]
    %v852 = vld [vmem:[%s1 + $0x1838] sm:$0xff]
    %v853 = vld [vmem:[%s1 + $0x1840] sm:$0xff]
    %v854 = vld [vmem:[%s1 + $0x1848] sm:$0xff]
    %v855 = vld [vmem:[%s1 + $0x1850] sm:$0xff]
    %v856 = vld [vmem:[%s1 + $0x1858] sm:$0xff]
    %v857 = vld [vmem:[%s1 + $0x1860] sm:$0xff]
    %v858 = vld [vmem:[%s1 + $0x1868] sm:$0xff]
    %v859 = vld [vmem:[%s1 + $0x1870] sm:$0xff]
    %v860 = vld [vmem:[%s1 + $0x1878] sm:$0xff]
    %v861 = vld [vmem:[%s2] sm:$0x3]
    %v863 = vperm.slane %v861, 0
    %v864 = vperm.slane %v861, 1
    %868 = vst [vmem:[#allocation1] ss:$9 sm:$0xff] %v21
    %s870 = scalar_lea.vmem [#allocation1], 1
    %871 = vst [vmem:[%s870] ss:$9 sm:$0xff] %v28
    %s873 = scalar_lea.vmem [#allocation1], 2
    %874 = vst [vmem:[%s873] ss:$9 sm:$0xff] %v35
    %s876 = scalar_lea.vmem [#allocation1], 3
    %877 = vst [vmem:[%s876] ss:$9 sm:$0xff] %v42
    %s879 = scalar_lea.vmem [#allocation1], 4
    %880 = vst [vmem:[%s879] ss:$9 sm:$0xff] %v49
    %s882 = scalar_lea.vmem [#allocation1], 5
    %883 = vst [vmem:[%s882] ss:$9 sm:$0xff] %v56
    %s885 = scalar_lea.vmem [#allocation1], 6
    %886 = vst [vmem:[%s885] ss:$9 sm:$0xff] %v63
    %s888 = scalar_lea.vmem [#allocation1], 7
    %889 = vst [vmem:[%s888] ss:$9 sm:$0xff] %v70
    %v890 = vld [vmem:[#allocation1] sm:$0xff]
    %v891 = vld [vmem:[#allocation1 + $0x9] sm:$0xff]
    %v892 = vld [vmem:[#allocation1 + $0x12] sm:$0xff]
    %v893 = vld [vmem:[#allocation1 + $0x1b] sm:$0xff]
    %v894 = vld [vmem:[#allocation1 + $0x24] sm:$0xff]
    %v895 = vld [vmem:[#allocation1 + $0x2d] sm:$0xff]
    %v896 = vld [vmem:[#allocation1 + $0x36] sm:$0xff]
    %v897 = vld [vmem:[#allocation1 + $0x3f] sm:$0xff]
    %899 = vst [vmem:[#allocation1] ss:$9 sm:$0xff] %v22
    %901 = vst [vmem:[%s870] ss:$9 sm:$0xff] %v29
    %903 = vst [vmem:[%s873] ss:$9 sm:$0xff] %v36
    %905 = vst [vmem:[%s876] ss:$9 sm:$0xff] %v43
    %907 = vst [vmem:[%s879] ss:$9 sm:$0xff] %v50
    %909 = vst [vmem:[%s882] ss:$9 sm:$0xff] %v57
    %911 = vst [vmem:[%s885] ss:$9 sm:$0xff] %v64
    %913 = vst [vmem:[%s888] ss:$9 sm:$0xff] %v71
    %v914 = vld [vmem:[#allocation1] sm:$0xff]
    %v915 = vld [vmem:[#allocation1 + $0x9] sm:$0xff]
    %v916 = vld [vmem:[#allocation1 + $0x12] sm:$0xff]
    %v917 = vld [vmem:[#allocation1 + $0x1b] sm:$0xff]
    %v918 = vld [vmem:[#allocation1 + $0x24] sm:$0xff]
    %v919 = vld [vmem:[#allocation1 + $0x2d] sm:$0xff]
    %v920 = vld [vmem:[#allocation1 + $0x36] sm:$0xff]
    %v921 = vld [vmem:[#allocation1 + $0x3f] sm:$0xff]
    %923 = vst [vmem:[#allocation1] ss:$9 sm:$0xff] %v23
    %925 = vst [vmem:[%s870] ss:$9 sm:$0xff] %v30
    %927 = vst [vmem:[%s873] ss:$9 sm:$0xff] %v37
    %929 = vst [vmem:[%s876] ss:$9 sm:$0xff] %v44
    %931 = vst [vmem:[%s879] ss:$9 sm:$0xff] %v51
    %933 = vst [vmem:[%s882] ss:$9 sm:$0xff] %v58
    %935 = vst [vmem:[%s885] ss:$9 sm:$0xff] %v65
    %937 = vst [vmem:[%s888] ss:$9 sm:$0xff] %v72
    %v938 = vld [vmem:[#allocation1] sm:$0xff]
    %v939 = vld [vmem:[#allocation1 + $0x9] sm:$0xff]
    %v940 = vld [vmem:[#allocation1 + $0x12] sm:$0xff]
    %v941 = vld [vmem:[#allocation1 + $0x1b] sm:$0xff]
    %v942 = vld [vmem:[#allocation1 + $0x24] sm:$0xff]
    %v943 = vld [vmem:[#allocation1 + $0x2d] sm:$0xff]
    %v944 = vld [vmem:[#allocation1 + $0x36] sm:$0xff]
    %v945 = vld [vmem:[#allocation1 + $0x3f] sm:$0xff]
    %947 = vst [vmem:[#allocation1] ss:$9 sm:$0xff] %v24
    %949 = vst [vmem:[%s870] ss:$9 sm:$0xff] %v31
    %951 = vst [vmem:[%s873] ss:$9 sm:$0xff] %v38
    %953 = vst [vmem:[%s876] ss:$9 sm:$0xff] %v45
    %955 = vst [vmem:[%s879] ss:$9 sm:$0xff] %v52
    %957 = vst [vmem:[%s882] ss:$9 sm:$0xff] %v59
    %959 = vst [vmem:[%s885] ss:$9 sm:$0xff] %v66
    %961 = vst [vmem:[%s888] ss:$9 sm:$0xff] %v73
    %v962 = vld [vmem:[#allocation1] sm:$0xff]
    %v963 = vld [vmem:[#allocation1 + $0x9] sm:$0xff]
    %v964 = vld [vmem:[#allocation1 + $0x12] sm:$0xff]
    %v965 = vld [vmem:[#allocation1 + $0x1b] sm:$0xff]
    %v966 = vld [vmem:[#allocation1 + $0x24] sm:$0xff]
    %v967 = vld [vmem:[#allocation1 + $0x2d] sm:$0xff]
    %v968 = vld [vmem:[#allocation1 + $0x36] sm:$0xff]
    %v969 = vld [vmem:[#allocation1 + $0x3f] sm:$0xff]
    %971 = vst [vmem:[#allocation1] ss:$9 sm:$0xff] %v25
    %973 = vst [vmem:[%s870] ss:$9 sm:$0xff] %v32
    %975 = vst [vmem:[%s873] ss:$9 sm:$0xff] %v39
    %977 = vst [vmem:[%s876] ss:$9 sm:$0xff] %v46
    %979 = vst [vmem:[%s879] ss:$9 sm:$0xff] %v53
    %981 = vst [vmem:[%s882] ss:$9 sm:$0xff] %v60
    %983 = vst [vmem:[%s885] ss:$9 sm:$0xff] %v67
    %985 = vst [vmem:[%s888] ss:$9 sm:$0xff] %v74
    %v986 = vld [vmem:[#allocation1] sm:$0xff]
    %v987 = vld [vmem:[#allocation1 + $0x9] sm:$0xff]
    %v988 = vld [vmem:[#allocation1 + $0x12] sm:$0xff]
    %v989 = vld [vmem:[#allocation1 + $0x1b] sm:$0xff]
    %v990 = vld [vmem:[#allocation1 + $0x24] sm:$0xff]
    %v991 = vld [vmem:[#allocation1 + $0x2d] sm:$0xff]
    %v992 = vld [vmem:[#allocation1 + $0x36] sm:$0xff]
    %v993 = vld [vmem:[#allocation1 + $0x3f] sm:$0xff]
    %995 = vst [vmem:[#allocation1] ss:$9 sm:$0xff] %v26
    %997 = vst [vmem:[%s870] ss:$9 sm:$0xff] %v33
    %999 = vst [vmem:[%s873] ss:$9 sm:$0xff] %v40
    %1001 = vst [vmem:[%s876] ss:$9 sm:$0xff] %v47
    %1003 = vst [vmem:[%s879] ss:$9 sm:$0xff] %v54
    %1005 = vst [vmem:[%s882] ss:$9 sm:$0xff] %v61
    %1007 = vst [vmem:[%s885] ss:$9 sm:$0xff] %v68
    %1009 = vst [vmem:[%s888] ss:$9 sm:$0xff] %v75
    %v1010 = vld [vmem:[#allocation1] sm:$0xff]
    %v1011 = vld [vmem:[#allocation1 + $0x9] sm:$0xff]
    %v1012 = vld [vmem:[#allocation1 + $0x12] sm:$0xff]
    %v1013 = vld [vmem:[#allocation1 + $0x1b] sm:$0xff]
    %v1014 = vld [vmem:[#allocation1 + $0x24] sm:$0xff]
    %v1015 = vld [vmem:[#allocation1 + $0x2d] sm:$0xff]
    %v1016 = vld [vmem:[#allocation1 + $0x36] sm:$0xff]
    %v1017 = vld [vmem:[#allocation1 + $0x3f] sm:$0xff]
    %1019 = vst [vmem:[#allocation1] ss:$9 sm:$0xff] %v27
    %1021 = vst [vmem:[%s870] ss:$9 sm:$0xff] %v34
    %1023 = vst [vmem:[%s873] ss:$9 sm:$0xff] %v41
    %1025 = vst [vmem:[%s876] ss:$9 sm:$0xff] %v48
    %1027 = vst [vmem:[%s879] ss:$9 sm:$0xff] %v55
    %1029 = vst [vmem:[%s882] ss:$9 sm:$0xff] %v62
    %1031 = vst [vmem:[%s885] ss:$9 sm:$0xff] %v69
    %1033 = vst [vmem:[%s888] ss:$9 sm:$0xff] %v76
    %v1034 = vld [vmem:[#allocation1] sm:$0xff]
    %v1868 = vunpack.c.l.b16 %v77
    %v1869 = vunpack.c.h.b16 %v77
    %v1870 = vunpack.c.l.b16 %v78
    %v1871 = vunpack.c.h.b16 %v78
    %v1872 = vunpack.c.l.b16 %v79
    %v1873 = vunpack.c.h.b16 %v79
    %v1874 = vunpack.c.l.b16 %v80
    %v1875 = vunpack.c.h.b16 %v80
    %v1876 = vunpack.c.l.b16 %v81
    %v1877 = vunpack.c.h.b16 %v81
    %v1878 = vunpack.c.l.b16 %v82
    %v1879 = vunpack.c.h.b16 %v82
    %v1880 = vunpack.c.l.b16 %v83
    %v1881 = vunpack.c.h.b16 %v83
    %v1882 = vunpack.c.l.b16 %v84
    %v1883 = vunpack.c.h.b16 %v84
    %v1884 = vunpack.c.l.b16 %v85
    %v1885 = vunpack.c.h.b16 %v85
    %v1886 = vunpack.c.l.b16 %v86
    %v1887 = vunpack.c.h.b16 %v86
    %v1888 = vunpack.c.l.b16 %v87
    %v1889 = vunpack.c.h.b16 %v87
    %v1890 = vunpack.c.l.b16 %v88
    %v1891 = vunpack.c.h.b16 %v88
    %v1892 = vunpack.c.l.b16 %v89
    %v1893 = vunpack.c.h.b16 %v89
    %v1894 = vunpack.c.l.b16 %v90
    %v1895 = vunpack.c.h.b16 %v90
    %v1896 = vunpack.c.l.b16 %v91
    %v1897 = vunpack.c.h.b16 %v91
    %v1898 = vunpack.c.l.b16 %v92
    %v1899 = vunpack.c.h.b16 %v92
    %v1900 = vunpack.c.l.b16 %v93
    %v1901 = vunpack.c.h.b16 %v93
    %v1902 = vunpack.c.l.b16 %v94
    %v1903 = vunpack.c.h.b16 %v94
    %v1904 = vunpack.c.l.b16 %v95
    %v1905 = vunpack.c.h.b16 %v95
    %v1906 = vunpack.c.l.b16 %v96
    %v1907 = vunpack.c.h.b16 %v96
    %v1908 = vunpack.c.l.b16 %v97
    %v1909 = vunpack.c.h.b16 %v97
    %v1910 = vunpack.c.l.b16 %v98
    %v1911 = vunpack.c.h.b16 %v98
    %v1912 = vunpack.c.l.b16 %v99
    %v1913 = vunpack.c.h.b16 %v99
    %v1914 = vunpack.c.l.b16 %v100
    %v1915 = vunpack.c.h.b16 %v100
    %v1916 = vunpack.c.l.b16 %v101
    %v1917 = vunpack.c.h.b16 %v101
    %v1918 = vunpack.c.l.b16 %v102
    %v1919 = vunpack.c.h.b16 %v102
    %v1920 = vunpack.c.l.b16 %v103
    %v1921 = vunpack.c.h.b16 %v103
    %v1922 = vunpack.c.l.b16 %v104
    %v1923 = vunpack.c.h.b16 %v104
    %v1924 = vunpack.c.l.b16 %v105
    %v1925 = vunpack.c.h.b16 %v105
    %v1926 = vunpack.c.l.b16 %v106
    %v1927 = vunpack.c.h.b16 %v106
    %v1928 = vunpack.c.l.b16 %v107
    %v1929 = vunpack.c.h.b16 %v107
    %v1930 = vunpack.c.l.b16 %v108
    %v1931 = vunpack.c.h.b16 %v108
    %v1932 = vunpack.c.l.b16 %v109
    %v1933 = vunpack.c.h.b16 %v109
    %v1934 = vunpack.c.l.b16 %v110
    %v1935 = vunpack.c.h.b16 %v110
    %v1936 = vunpack.c.l.b16 %v111
    %v1937 = vunpack.c.h.b16 %v111
    %v1938 = vunpack.c.l.b16 %v112
    %v1939 = vunpack.c.h.b16 %v112
    %v1940 = vunpack.c.l.b16 %v113
    %v1941 = vunpack.c.h.b16 %v113
    %v1942 = vunpack.c.l.b16 %v114
    %v1943 = vunpack.c.h.b16 %v114
    %v1944 = vunpack.c.l.b16 %v115
    %v1945 = vunpack.c.h.b16 %v115
    %v1946 = vunpack.c.l.b16 %v116
    %v1947 = vunpack.c.h.b16 %v116
    %v1948 = vunpack.c.l.b16 %v117
    %v1949 = vunpack.c.h.b16 %v117
    %v1950 = vunpack.c.l.b16 %v118
    %v1951 = vunpack.c.h.b16 %v118
    %v1952 = vunpack.c.l.b16 %v119
    %v1953 = vunpack.c.h.b16 %v119
    %v1954 = vunpack.c.l.b16 %v120
    %v1955 = vunpack.c.h.b16 %v120
    %v1956 = vunpack.c.l.b16 %v121
    %v1957 = vunpack.c.h.b16 %v121
    %v1958 = vunpack.c.l.b16 %v122
    %v1959 = vunpack.c.h.b16 %v122
    %v1960 = vunpack.c.l.b16 %v123
    %v1961 = vunpack.c.h.b16 %v123
    %v1962 = vunpack.c.l.b16 %v124
    %v1963 = vunpack.c.h.b16 %v124
    %v1964 = vunpack.c.l.b16 %v125
    %v1965 = vunpack.c.h.b16 %v125
    %v1966 = vunpack.c.l.b16 %v126
    %v1967 = vunpack.c.h.b16 %v126
    %v1968 = vunpack.c.l.b16 %v127
    %v1969 = vunpack.c.h.b16 %v127
    %v1970 = vunpack.c.l.b16 %v128
    %v1971 = vunpack.c.h.b16 %v128
    %v1972 = vunpack.c.l.b16 %v129
    %v1973 = vunpack.c.h.b16 %v129
    %v1974 = vunpack.c.l.b16 %v130
    %v1975 = vunpack.c.h.b16 %v130
    %v1976 = vunpack.c.l.b16 %v131
    %v1977 = vunpack.c.h.b16 %v131
    %v1978 = vunpack.c.l.b16 %v132
    %v1979 = vunpack.c.h.b16 %v132
    %v1980 = vunpack.c.l.b16 %v133
    %v1981 = vunpack.c.h.b16 %v133
    %v1982 = vunpack.c.l.b16 %v134
    %v1983 = vunpack.c.h.b16 %v134
    %v1984 = vunpack.c.l.b16 %v135
    %v1985 = vunpack.c.h.b16 %v135
    %v1986 = vunpack.c.l.b16 %v136
    %v1987 = vunpack.c.h.b16 %v136
    %v1988 = vunpack.c.l.b16 %v137
    %v1989 = vunpack.c.h.b16 %v137
    %v1990 = vunpack.c.l.b16 %v138
    %v1991 = vunpack.c.h.b16 %v138
    %v1992 = vunpack.c.l.b16 %v139
    %v1993 = vunpack.c.h.b16 %v139
    %v1994 = vunpack.c.l.b16 %v140
    %v1995 = vunpack.c.h.b16 %v140
    %v1996 = vunpack.c.l.b16 %v141
    %v1997 = vunpack.c.h.b16 %v141
    %v1998 = vunpack.c.l.b16 %v142
    %v1999 = vunpack.c.h.b16 %v142
    %v2000 = vunpack.c.l.b16 %v143
    %v2001 = vunpack.c.h.b16 %v143
    %v2002 = vunpack.c.l.b16 %v144
    %v2003 = vunpack.c.h.b16 %v144
    %v2004 = vunpack.c.l.b16 %v145
    %v2005 = vunpack.c.h.b16 %v145
    %v2006 = vunpack.c.l.b16 %v146
    %v2007 = vunpack.c.h.b16 %v146
    %v2008 = vunpack.c.l.b16 %v147
    %v2009 = vunpack.c.h.b16 %v147
    %v2010 = vunpack.c.l.b16 %v148
    %v2011 = vunpack.c.h.b16 %v148
    %v2012 = vunpack.c.l.b16 %v149
    %v2013 = vunpack.c.h.b16 %v149
    %v2014 = vunpack.c.l.b16 %v150
    %v2015 = vunpack.c.h.b16 %v150
    %v2016 = vunpack.c.l.b16 %v151
    %v2017 = vunpack.c.h.b16 %v151
    %v2018 = vunpack.c.l.b16 %v152
    %v2019 = vunpack.c.h.b16 %v152
    %v2020 = vunpack.c.l.b16 %v153
    %v2021 = vunpack.c.h.b16 %v153
    %v2022 = vunpack.c.l.b16 %v154
    %v2023 = vunpack.c.h.b16 %v154
    %v2024 = vunpack.c.l.b16 %v155
    %v2025 = vunpack.c.h.b16 %v155
    %v2026 = vunpack.c.l.b16 %v156
    %v2027 = vunpack.c.h.b16 %v156
    %v2028 = vunpack.c.l.b16 %v157
    %v2029 = vunpack.c.h.b16 %v157
    %v2030 = vunpack.c.l.b16 %v158
    %v2031 = vunpack.c.h.b16 %v158
    %v2032 = vunpack.c.l.b16 %v159
    %v2033 = vunpack.c.h.b16 %v159
    %v2034 = vunpack.c.l.b16 %v160
    %v2035 = vunpack.c.h.b16 %v160
    %v2036 = vunpack.c.l.b16 %v161
    %v2037 = vunpack.c.h.b16 %v161
    %v2038 = vunpack.c.l.b16 %v162
    %v2039 = vunpack.c.h.b16 %v162
    %v2040 = vunpack.c.l.b16 %v163
    %v2041 = vunpack.c.h.b16 %v163
    %v2042 = vunpack.c.l.b16 %v164
    %v2043 = vunpack.c.h.b16 %v164
    %v2044 = vunpack.c.l.b16 %v165
    %v2045 = vunpack.c.h.b16 %v165
    %v2046 = vunpack.c.l.b16 %v166
    %v2047 = vunpack.c.h.b16 %v166
    %v2048 = vunpack.c.l.b16 %v167
    %v2049 = vunpack.c.h.b16 %v167
    %v2050 = vunpack.c.l.b16 %v168
    %v2051 = vunpack.c.h.b16 %v168
    %v2052 = vunpack.c.l.b16 %v169
    %v2053 = vunpack.c.h.b16 %v169
    %v2054 = vunpack.c.l.b16 %v170
    %v2055 = vunpack.c.h.b16 %v170
    %v2056 = vunpack.c.l.b16 %v171
    %v2057 = vunpack.c.h.b16 %v171
    %v2058 = vunpack.c.l.b16 %v172
    %v2059 = vunpack.c.h.b16 %v172
    %v2060 = vunpack.c.l.b16 %v173
    %v2061 = vunpack.c.h.b16 %v173
    %v2062 = vunpack.c.l.b16 %v174
    %v2063 = vunpack.c.h.b16 %v174
    %v2064 = vunpack.c.l.b16 %v175
    %v2065 = vunpack.c.h.b16 %v175
    %v2066 = vunpack.c.l.b16 %v176
    %v2067 = vunpack.c.h.b16 %v176
    %v2068 = vunpack.c.l.b16 %v177
    %v2069 = vunpack.c.h.b16 %v177
    %v2070 = vunpack.c.l.b16 %v178
    %v2071 = vunpack.c.h.b16 %v178
    %v2072 = vunpack.c.l.b16 %v179
    %v2073 = vunpack.c.h.b16 %v179
    %v2074 = vunpack.c.l.b16 %v180
    %v2075 = vunpack.c.h.b16 %v180
    %v2076 = vunpack.c.l.b16 %v181
    %v2077 = vunpack.c.h.b16 %v181
    %v2078 = vunpack.c.l.b16 %v182
    %v2079 = vunpack.c.h.b16 %v182
    %v2080 = vunpack.c.l.b16 %v183
    %v2081 = vunpack.c.h.b16 %v183
    %v2082 = vunpack.c.l.b16 %v184
    %v2083 = vunpack.c.h.b16 %v184
    %v2084 = vunpack.c.l.b16 %v185
    %v2085 = vunpack.c.h.b16 %v185
    %v2086 = vunpack.c.l.b16 %v186
    %v2087 = vunpack.c.h.b16 %v186
    %v2088 = vunpack.c.l.b16 %v187
    %v2089 = vunpack.c.h.b16 %v187
    %v2090 = vunpack.c.l.b16 %v188
    %v2091 = vunpack.c.h.b16 %v188
    %v2092 = vunpack.c.l.b16 %v189
    %v2093 = vunpack.c.h.b16 %v189
    %v2094 = vunpack.c.l.b16 %v190
    %v2095 = vunpack.c.h.b16 %v190
    %v2096 = vunpack.c.l.b16 %v191
    %v2097 = vunpack.c.h.b16 %v191
    %v2098 = vunpack.c.l.b16 %v192
    %v2099 = vunpack.c.h.b16 %v192
    %v2100 = vunpack.c.l.b16 %v193
    %v2101 = vunpack.c.h.b16 %v193
    %v2102 = vunpack.c.l.b16 %v194
    %v2103 = vunpack.c.h.b16 %v194
    %v2104 = vunpack.c.l.b16 %v195
    %v2105 = vunpack.c.h.b16 %v195
    %v2106 = vunpack.c.l.b16 %v196
    %v2107 = vunpack.c.h.b16 %v196
    %v2108 = vunpack.c.l.b16 %v197
    %v2109 = vunpack.c.h.b16 %v197
    %v2110 = vunpack.c.l.b16 %v198
    %v2111 = vunpack.c.h.b16 %v198
    %v2112 = vunpack.c.l.b16 %v199
    %v2113 = vunpack.c.h.b16 %v199
    %v2114 = vunpack.c.l.b16 %v200
    %v2115 = vunpack.c.h.b16 %v200
    %v2116 = vunpack.c.l.b16 %v201
    %v2117 = vunpack.c.h.b16 %v201
    %v2118 = vunpack.c.l.b16 %v202
    %v2119 = vunpack.c.h.b16 %v202
    %v2120 = vunpack.c.l.b16 %v203
    %v2121 = vunpack.c.h.b16 %v203
    %v2122 = vunpack.c.l.b16 %v204
    %v2123 = vunpack.c.h.b16 %v204
    %v2124 = vunpack.c.l.b16 %v205
    %v2125 = vunpack.c.h.b16 %v205
    %v2126 = vunpack.c.l.b16 %v206
    %v2127 = vunpack.c.h.b16 %v206
    %v2128 = vunpack.c.l.b16 %v207
    %v2129 = vunpack.c.h.b16 %v207
    %v2130 = vunpack.c.l.b16 %v208
    %v2131 = vunpack.c.h.b16 %v208
    %v2132 = vunpack.c.l.b16 %v209
    %v2133 = vunpack.c.h.b16 %v209
    %v2134 = vunpack.c.l.b16 %v210
    %v2135 = vunpack.c.h.b16 %v210
    %v2136 = vunpack.c.l.b16 %v211
    %v2137 = vunpack.c.h.b16 %v211
    %v2138 = vunpack.c.l.b16 %v212
    %v2139 = vunpack.c.h.b16 %v212
    %v2140 = vunpack.c.l.b16 %v213
    %v2141 = vunpack.c.h.b16 %v213
    %v2142 = vunpack.c.l.b16 %v214
    %v2143 = vunpack.c.h.b16 %v214
    %v2144 = vunpack.c.l.b16 %v215
    %v2145 = vunpack.c.h.b16 %v215
    %v2146 = vunpack.c.l.b16 %v216
    %v2147 = vunpack.c.h.b16 %v216
    %v2148 = vunpack.c.l.b16 %v217
    %v2149 = vunpack.c.h.b16 %v217
    %v2150 = vunpack.c.l.b16 %v218
    %v2151 = vunpack.c.h.b16 %v218
    %v2152 = vunpack.c.l.b16 %v219
    %v2153 = vunpack.c.h.b16 %v219
    %v2154 = vunpack.c.l.b16 %v220
    %v2155 = vunpack.c.h.b16 %v220
    %v2156 = vunpack.c.l.b16 %v221
    %v2157 = vunpack.c.h.b16 %v221
    %v2158 = vunpack.c.l.b16 %v222
    %v2159 = vunpack.c.h.b16 %v222
    %v2160 = vunpack.c.l.b16 %v223
    %v2161 = vunpack.c.h.b16 %v223
    %v2162 = vunpack.c.l.b16 %v224
    %v2163 = vunpack.c.h.b16 %v224
    %v2164 = vunpack.c.l.b16 %v225
    %v2165 = vunpack.c.h.b16 %v225
    %v2166 = vunpack.c.l.b16 %v226
    %v2167 = vunpack.c.h.b16 %v226
    %v2168 = vunpack.c.l.b16 %v227
    %v2169 = vunpack.c.h.b16 %v227
    %v2170 = vunpack.c.l.b16 %v228
    %v2171 = vunpack.c.h.b16 %v228
    %v2172 = vunpack.c.l.b16 %v229
    %v2173 = vunpack.c.h.b16 %v229
    %v2174 = vunpack.c.l.b16 %v230
    %v2175 = vunpack.c.h.b16 %v230
    %v2176 = vunpack.c.l.b16 %v231
    %v2177 = vunpack.c.h.b16 %v231
    %v2178 = vunpack.c.l.b16 %v232
    %v2179 = vunpack.c.h.b16 %v232
    %v2180 = vunpack.c.l.b16 %v233
    %v2181 = vunpack.c.h.b16 %v233
    %v2182 = vunpack.c.l.b16 %v234
    %v2183 = vunpack.c.h.b16 %v234
    %v2184 = vunpack.c.l.b16 %v235
    %v2185 = vunpack.c.h.b16 %v235
    %v2186 = vunpack.c.l.b16 %v236
    %v2187 = vunpack.c.h.b16 %v236
    %v2188 = vunpack.c.l.b16 %v237
    %v2189 = vunpack.c.h.b16 %v237
    %v2190 = vunpack.c.l.b16 %v238
    %v2191 = vunpack.c.h.b16 %v238
    %v2192 = vunpack.c.l.b16 %v239
    %v2193 = vunpack.c.h.b16 %v239
    %v2194 = vunpack.c.l.b16 %v240
    %v2195 = vunpack.c.h.b16 %v240
    %v2196 = vunpack.c.l.b16 %v241
    %v2197 = vunpack.c.h.b16 %v241
    %v2198 = vunpack.c.l.b16 %v242
    %v2199 = vunpack.c.h.b16 %v242
    %v2200 = vunpack.c.l.b16 %v243
    %v2201 = vunpack.c.h.b16 %v243
    %v2202 = vunpack.c.l.b16 %v244
    %v2203 = vunpack.c.h.b16 %v244
    %v2204 = vunpack.c.l.b16 %v245
    %v2205 = vunpack.c.h.b16 %v245
    %v2206 = vunpack.c.l.b16 %v246
    %v2207 = vunpack.c.h.b16 %v246
    %v2208 = vunpack.c.l.b16 %v247
    %v2209 = vunpack.c.h.b16 %v247
    %v2210 = vunpack.c.l.b16 %v248
    %v2211 = vunpack.c.h.b16 %v248
    %v2212 = vunpack.c.l.b16 %v249
    %v2213 = vunpack.c.h.b16 %v249
    %v2214 = vunpack.c.l.b16 %v250
    %v2215 = vunpack.c.h.b16 %v250
    %v2216 = vunpack.c.l.b16 %v251
    %v2217 = vunpack.c.h.b16 %v251
    %v2218 = vunpack.c.l.b16 %v252
    %v2219 = vunpack.c.h.b16 %v252
    %v2220 = vunpack.c.l.b16 %v253
    %v2221 = vunpack.c.h.b16 %v253
    %v2222 = vunpack.c.l.b16 %v254
    %v2223 = vunpack.c.h.b16 %v254
    %v2224 = vunpack.c.l.b16 %v255
    %v2225 = vunpack.c.h.b16 %v255
    %v2226 = vunpack.c.l.b16 %v256
    %v2227 = vunpack.c.h.b16 %v256
    %v2228 = vunpack.c.l.b16 %v257
    %v2229 = vunpack.c.h.b16 %v257
    %v2230 = vunpack.c.l.b16 %v258
    %v2231 = vunpack.c.h.b16 %v258
    %v2232 = vunpack.c.l.b16 %v259
    %v2233 = vunpack.c.h.b16 %v259
    %v2234 = vunpack.c.l.b16 %v260
    %v2235 = vunpack.c.h.b16 %v260
    %v2236 = vunpack.c.l.b16 %v261
    %v2237 = vunpack.c.h.b16 %v261
    %v2238 = vunpack.c.l.b16 %v262
    %v2239 = vunpack.c.h.b16 %v262
    %v2240 = vunpack.c.l.b16 %v263
    %v2241 = vunpack.c.h.b16 %v263
    %v2242 = vunpack.c.l.b16 %v264
    %v2243 = vunpack.c.h.b16 %v264
    %v2244 = vunpack.c.l.b16 %v265
    %v2245 = vunpack.c.h.b16 %v265
    %v2246 = vunpack.c.l.b16 %v266
    %v2247 = vunpack.c.h.b16 %v266
    %v2248 = vunpack.c.l.b16 %v267
    %v2249 = vunpack.c.h.b16 %v267
    %v2250 = vunpack.c.l.b16 %v268
    %v2251 = vunpack.c.h.b16 %v268
    %v2252 = vunpack.c.l.b16 %v269
    %v2253 = vunpack.c.h.b16 %v269
    %v2254 = vunpack.c.l.b16 %v270
    %v2255 = vunpack.c.h.b16 %v270
    %v2256 = vunpack.c.l.b16 %v271
    %v2257 = vunpack.c.h.b16 %v271
    %v2258 = vunpack.c.l.b16 %v272
    %v2259 = vunpack.c.h.b16 %v272
    %v2260 = vunpack.c.l.b16 %v273
    %v2261 = vunpack.c.h.b16 %v273
    %v2262 = vunpack.c.l.b16 %v274
    %v2263 = vunpack.c.h.b16 %v274
    %v2264 = vunpack.c.l.b16 %v275
    %v2265 = vunpack.c.h.b16 %v275
    %v2266 = vunpack.c.l.b16 %v276
    %v2267 = vunpack.c.h.b16 %v276
    %v2268 = vunpack.c.l.b16 %v277
    %v2269 = vunpack.c.h.b16 %v277
    %v2270 = vunpack.c.l.b16 %v278
    %v2271 = vunpack.c.h.b16 %v278
    %v2272 = vunpack.c.l.b16 %v279
    %v2273 = vunpack.c.h.b16 %v279
    %v2274 = vunpack.c.l.b16 %v280
    %v2275 = vunpack.c.h.b16 %v280
    %v2276 = vunpack.c.l.b16 %v281
    %v2277 = vunpack.c.h.b16 %v281
    %v2278 = vunpack.c.l.b16 %v282
    %v2279 = vunpack.c.h.b16 %v282
    %v2280 = vunpack.c.l.b16 %v283
    %v2281 = vunpack.c.h.b16 %v283
    %v2282 = vunpack.c.l.b16 %v284
    %v2283 = vunpack.c.h.b16 %v284
    %v2284 = vunpack.c.l.b16 %v285
    %v2285 = vunpack.c.h.b16 %v285
    %v2286 = vunpack.c.l.b16 %v286
    %v2287 = vunpack.c.h.b16 %v286
    %v2288 = vunpack.c.l.b16 %v287
    %v2289 = vunpack.c.h.b16 %v287
    %v2290 = vunpack.c.l.b16 %v288
    %v2291 = vunpack.c.h.b16 %v288
    %v2292 = vunpack.c.l.b16 %v289
    %v2293 = vunpack.c.h.b16 %v289
    %v2294 = vunpack.c.l.b16 %v290
    %v2295 = vunpack.c.h.b16 %v290
    %v2296 = vunpack.c.l.b16 %v291
    %v2297 = vunpack.c.h.b16 %v291
    %v2298 = vunpack.c.l.b16 %v292
    %v2299 = vunpack.c.h.b16 %v292
    %v2300 = vunpack.c.l.b16 %v293
    %v2301 = vunpack.c.h.b16 %v293
    %v2302 = vunpack.c.l.b16 %v294
    %v2303 = vunpack.c.h.b16 %v294
    %v2304 = vunpack.c.l.b16 %v295
    %v2305 = vunpack.c.h.b16 %v295
    %v2306 = vunpack.c.l.b16 %v296
    %v2307 = vunpack.c.h.b16 %v296
    %v2308 = vunpack.c.l.b16 %v297
    %v2309 = vunpack.c.h.b16 %v297
    %v2310 = vunpack.c.l.b16 %v298
    %v2311 = vunpack.c.h.b16 %v298
    %v2312 = vunpack.c.l.b16 %v299
    %v2313 = vunpack.c.h.b16 %v299
    %v2314 = vunpack.c.l.b16 %v300
    %v2315 = vunpack.c.h.b16 %v300
    %v2316 = vunpack.c.l.b16 %v301
    %v2317 = vunpack.c.h.b16 %v301
    %v2318 = vunpack.c.l.b16 %v302
    %v2319 = vunpack.c.h.b16 %v302
    %v2320 = vunpack.c.l.b16 %v303
    %v2321 = vunpack.c.h.b16 %v303
    %v2322 = vunpack.c.l.b16 %v304
    %v2323 = vunpack.c.h.b16 %v304
    %v2324 = vunpack.c.l.b16 %v305
    %v2325 = vunpack.c.h.b16 %v305
    %v2326 = vunpack.c.l.b16 %v306
    %v2327 = vunpack.c.h.b16 %v306
    %v2328 = vunpack.c.l.b16 %v307
    %v2329 = vunpack.c.h.b16 %v307
    %v2330 = vunpack.c.l.b16 %v308
    %v2331 = vunpack.c.h.b16 %v308
    %v2332 = vunpack.c.l.b16 %v309
    %v2333 = vunpack.c.h.b16 %v309
    %v2334 = vunpack.c.l.b16 %v310
    %v2335 = vunpack.c.h.b16 %v310
    %v2336 = vunpack.c.l.b16 %v311
    %v2337 = vunpack.c.h.b16 %v311
    %v2338 = vunpack.c.l.b16 %v312
    %v2339 = vunpack.c.h.b16 %v312
    %v2340 = vunpack.c.l.b16 %v313
    %v2341 = vunpack.c.h.b16 %v313
    %v2342 = vunpack.c.l.b16 %v314
    %v2343 = vunpack.c.h.b16 %v314
    %v2344 = vunpack.c.l.b16 %v315
    %v2345 = vunpack.c.h.b16 %v315
    %v2346 = vunpack.c.l.b16 %v316
    %v2347 = vunpack.c.h.b16 %v316
    %v2348 = vunpack.c.l.b16 %v317
    %v2349 = vunpack.c.h.b16 %v317
    %v2350 = vunpack.c.l.b16 %v318
    %v2351 = vunpack.c.h.b16 %v318
    %v2352 = vunpack.c.l.b16 %v319
    %v2353 = vunpack.c.h.b16 %v319
    %v2354 = vunpack.c.l.b16 %v320
    %v2355 = vunpack.c.h.b16 %v320
    %v2356 = vunpack.c.l.b16 %v321
    %v2357 = vunpack.c.h.b16 %v321
    %v2358 = vunpack.c.l.b16 %v322
    %v2359 = vunpack.c.h.b16 %v322
    %v2360 = vunpack.c.l.b16 %v323
    %v2361 = vunpack.c.h.b16 %v323
    %v2362 = vunpack.c.l.b16 %v324
    %v2363 = vunpack.c.h.b16 %v324
    %v2364 = vunpack.c.l.b16 %v325
    %v2365 = vunpack.c.h.b16 %v325
    %v2366 = vunpack.c.l.b16 %v326
    %v2367 = vunpack.c.h.b16 %v326
    %v2368 = vunpack.c.l.b16 %v327
    %v2369 = vunpack.c.h.b16 %v327
    %v2370 = vunpack.c.l.b16 %v328
    %v2371 = vunpack.c.h.b16 %v328
    %v2372 = vunpack.c.l.b16 %v329
    %v2373 = vunpack.c.h.b16 %v329
    %v2374 = vunpack.c.l.b16 %v330
    %v2375 = vunpack.c.h.b16 %v330
    %v2376 = vunpack.c.l.b16 %v331
    %v2377 = vunpack.c.h.b16 %v331
    %v2378 = vunpack.c.l.b16 %v332
    %v2379 = vunpack.c.h.b16 %v332
    %v2380 = vunpack.c.l.b16 %v333
    %v2381 = vunpack.c.h.b16 %v333
    %v2382 = vunpack.c.l.b16 %v334
    %v2383 = vunpack.c.h.b16 %v334
    %v2384 = vunpack.c.l.b16 %v335
    %v2385 = vunpack.c.h.b16 %v335
    %v2386 = vunpack.c.l.b16 %v336
    %v2387 = vunpack.c.h.b16 %v336
    %v2388 = vunpack.c.l.b16 %v337
    %v2389 = vunpack.c.h.b16 %v337
    %v2390 = vunpack.c.l.b16 %v338
    %v2391 = vunpack.c.h.b16 %v338
    %v2392 = vunpack.c.l.b16 %v339
    %v2393 = vunpack.c.h.b16 %v339
    %v2394 = vunpack.c.l.b16 %v340
    %v2395 = vunpack.c.h.b16 %v340
    %v2396 = vunpack.c.l.b16 %v341
    %v2397 = vunpack.c.h.b16 %v341
    %v2398 = vunpack.c.l.b16 %v342
    %v2399 = vunpack.c.h.b16 %v342
    %v2400 = vunpack.c.l.b16 %v343
    %v2401 = vunpack.c.h.b16 %v343
    %v2402 = vunpack.c.l.b16 %v344
    %v2403 = vunpack.c.h.b16 %v344
    %v2404 = vunpack.c.l.b16 %v345
    %v2405 = vunpack.c.h.b16 %v345
    %v2406 = vunpack.c.l.b16 %v346
    %v2407 = vunpack.c.h.b16 %v346
    %v2408 = vunpack.c.l.b16 %v347
    %v2409 = vunpack.c.h.b16 %v347
    %v2410 = vunpack.c.l.b16 %v348
    %v2411 = vunpack.c.h.b16 %v348
    %v2412 = vunpack.c.l.b16 %v349
    %v2413 = vunpack.c.h.b16 %v349
    %v2414 = vunpack.c.l.b16 %v350
    %v2415 = vunpack.c.h.b16 %v350
    %v2416 = vunpack.c.l.b16 %v351
    %v2417 = vunpack.c.h.b16 %v351
    %v2418 = vunpack.c.l.b16 %v352
    %v2419 = vunpack.c.h.b16 %v352
    %v2420 = vunpack.c.l.b16 %v353
    %v2421 = vunpack.c.h.b16 %v353
    %v2422 = vunpack.c.l.b16 %v354
    %v2423 = vunpack.c.h.b16 %v354
    %v2424 = vunpack.c.l.b16 %v355
    %v2425 = vunpack.c.h.b16 %v355
    %v2426 = vunpack.c.l.b16 %v356
    %v2427 = vunpack.c.h.b16 %v356
    %v2428 = vunpack.c.l.b16 %v357
    %v2429 = vunpack.c.h.b16 %v357
    %v2430 = vunpack.c.l.b16 %v358
    %v2431 = vunpack.c.h.b16 %v358
    %v2432 = vunpack.c.l.b16 %v359
    %v2433 = vunpack.c.h.b16 %v359
    %v2434 = vunpack.c.l.b16 %v360
    %v2435 = vunpack.c.h.b16 %v360
    %v2436 = vunpack.c.l.b16 %v361
    %v2437 = vunpack.c.h.b16 %v361
    %v2438 = vunpack.c.l.b16 %v362
    %v2439 = vunpack.c.h.b16 %v362
    %v2440 = vunpack.c.l.b16 %v363
    %v2441 = vunpack.c.h.b16 %v363
    %v2442 = vunpack.c.l.b16 %v364
    %v2443 = vunpack.c.h.b16 %v364
    %v2444 = vunpack.c.l.b16 %v365
    %v2445 = vunpack.c.h.b16 %v365
    %v2446 = vunpack.c.l.b16 %v366
    %v2447 = vunpack.c.h.b16 %v366
    %v2448 = vunpack.c.l.b16 %v367
    %v2449 = vunpack.c.h.b16 %v367
    %v2450 = vunpack.c.l.b16 %v368
    %v2451 = vunpack.c.h.b16 %v368
    %v2452 = vunpack.c.l.b16 %v369
    %v2453 = vunpack.c.h.b16 %v369
    %v2454 = vunpack.c.l.b16 %v370
    %v2455 = vunpack.c.h.b16 %v370
    %v2456 = vunpack.c.l.b16 %v371
    %v2457 = vunpack.c.h.b16 %v371
    %v2458 = vunpack.c.l.b16 %v372
    %v2459 = vunpack.c.h.b16 %v372
    %v2460 = vunpack.c.l.b16 %v373
    %v2461 = vunpack.c.h.b16 %v373
    %v2462 = vunpack.c.l.b16 %v374
    %v2463 = vunpack.c.h.b16 %v374
    %v2464 = vunpack.c.l.b16 %v375
    %v2465 = vunpack.c.h.b16 %v375
    %v2466 = vunpack.c.l.b16 %v376
    %v2467 = vunpack.c.h.b16 %v376
    %v2468 = vunpack.c.l.b16 %v377
    %v2469 = vunpack.c.h.b16 %v377
    %v2470 = vunpack.c.l.b16 %v378
    %v2471 = vunpack.c.h.b16 %v378
    %v2472 = vunpack.c.l.b16 %v379
    %v2473 = vunpack.c.h.b16 %v379
    %v2474 = vunpack.c.l.b16 %v380
    %v2475 = vunpack.c.h.b16 %v380
    %v2476 = vunpack.c.l.b16 %v381
    %v2477 = vunpack.c.h.b16 %v381
    %v2478 = vunpack.c.l.b16 %v382
    %v2479 = vunpack.c.h.b16 %v382
    %v2480 = vunpack.c.l.b16 %v383
    %v2481 = vunpack.c.h.b16 %v383
    %v2482 = vunpack.c.l.b16 %v384
    %v2483 = vunpack.c.h.b16 %v384
    %v2484 = vunpack.c.l.b16 %v385
    %v2485 = vunpack.c.h.b16 %v385
    %v2486 = vunpack.c.l.b16 %v386
    %v2487 = vunpack.c.h.b16 %v386
    %v2488 = vunpack.c.l.b16 %v387
    %v2489 = vunpack.c.h.b16 %v387
    %v2490 = vunpack.c.l.b16 %v388
    %v2491 = vunpack.c.h.b16 %v388
    %v2492 = vunpack.c.l.b16 %v389
    %v2493 = vunpack.c.h.b16 %v389
    %v2494 = vunpack.c.l.b16 %v390
    %v2495 = vunpack.c.h.b16 %v390
    %v2496 = vunpack.c.l.b16 %v391
    %v2497 = vunpack.c.h.b16 %v391
    %v2498 = vunpack.c.l.b16 %v392
    %v2499 = vunpack.c.h.b16 %v392
    %v2500 = vunpack.c.l.b16 %v393
    %v2501 = vunpack.c.h.b16 %v393
    %v2502 = vunpack.c.l.b16 %v394
    %v2503 = vunpack.c.h.b16 %v394
    %v2504 = vunpack.c.l.b16 %v395
    %v2505 = vunpack.c.h.b16 %v395
    %v2506 = vunpack.c.l.b16 %v396
    %v2507 = vunpack.c.h.b16 %v396
    %v2508 = vunpack.c.l.b16 %v397
    %v2509 = vunpack.c.h.b16 %v397
    %v2510 = vunpack.c.l.b16 %v398
    %v2511 = vunpack.c.h.b16 %v398
    %v2512 = vunpack.c.l.b16 %v399
    %v2513 = vunpack.c.h.b16 %v399
    %v2514 = vunpack.c.l.b16 %v400
    %v2515 = vunpack.c.h.b16 %v400
    %v2516 = vunpack.c.l.b16 %v401
    %v2517 = vunpack.c.h.b16 %v401
    %v2518 = vunpack.c.l.b16 %v402
    %v2519 = vunpack.c.h.b16 %v402
    %v2520 = vunpack.c.l.b16 %v403
    %v2521 = vunpack.c.h.b16 %v403
    %v2522 = vunpack.c.l.b16 %v404
    %v2523 = vunpack.c.h.b16 %v404
    %v2524 = vunpack.c.l.b16 %v405
    %v2525 = vunpack.c.h.b16 %v405
    %v2526 = vunpack.c.l.b16 %v406
    %v2527 = vunpack.c.h.b16 %v406
    %v2528 = vunpack.c.l.b16 %v407
    %v2529 = vunpack.c.h.b16 %v407
    %v2530 = vunpack.c.l.b16 %v408
    %v2531 = vunpack.c.h.b16 %v408
    %v2532 = vunpack.c.l.b16 %v409
    %v2533 = vunpack.c.h.b16 %v409
    %v2534 = vunpack.c.l.b16 %v410
    %v2535 = vunpack.c.h.b16 %v410
    %v2536 = vunpack.c.l.b16 %v411
    %v2537 = vunpack.c.h.b16 %v411
    %v2538 = vunpack.c.l.b16 %v412
    %v2539 = vunpack.c.h.b16 %v412
    %v2540 = vunpack.c.l.b16 %v413
    %v2541 = vunpack.c.h.b16 %v413
    %v2542 = vunpack.c.l.b16 %v414
    %v2543 = vunpack.c.h.b16 %v414
    %v2544 = vunpack.c.l.b16 %v415
    %v2545 = vunpack.c.h.b16 %v415
    %v2546 = vunpack.c.l.b16 %v416
    %v2547 = vunpack.c.h.b16 %v416
    %v2548 = vunpack.c.l.b16 %v417
    %v2549 = vunpack.c.h.b16 %v417
    %v2550 = vunpack.c.l.b16 %v418
    %v2551 = vunpack.c.h.b16 %v418
    %v2552 = vunpack.c.l.b16 %v419
    %v2553 = vunpack.c.h.b16 %v419
    %v2554 = vunpack.c.l.b16 %v420
    %v2555 = vunpack.c.h.b16 %v420
    %v2556 = vunpack.c.l.b16 %v421
    %v2557 = vunpack.c.h.b16 %v421
    %v2558 = vunpack.c.l.b16 %v422
    %v2559 = vunpack.c.h.b16 %v422
    %v2560 = vunpack.c.l.b16 %v423
    %v2561 = vunpack.c.h.b16 %v423
    %v2562 = vunpack.c.l.b16 %v424
    %v2563 = vunpack.c.h.b16 %v424
    %v2564 = vunpack.c.l.b16 %v425
    %v2565 = vunpack.c.h.b16 %v425
    %v2566 = vunpack.c.l.b16 %v426
    %v2567 = vunpack.c.h.b16 %v426
    %v2568 = vunpack.c.l.b16 %v427
    %v2569 = vunpack.c.h.b16 %v427
    %v2570 = vunpack.c.l.b16 %v428
    %v2571 = vunpack.c.h.b16 %v428
    %v2572 = vunpack.c.l.b16 %v429
    %v2573 = vunpack.c.h.b16 %v429
    %v2574 = vunpack.c.l.b16 %v430
    %v2575 = vunpack.c.h.b16 %v430
    %v2576 = vunpack.c.l.b16 %v431
    %v2577 = vunpack.c.h.b16 %v431
    %v2578 = vunpack.c.l.b16 %v432
    %v2579 = vunpack.c.h.b16 %v432
    %v2580 = vunpack.c.l.b16 %v433
    %v2581 = vunpack.c.h.b16 %v433
    %v2582 = vunpack.c.l.b16 %v434
    %v2583 = vunpack.c.h.b16 %v434
    %v2584 = vunpack.c.l.b16 %v435
    %v2585 = vunpack.c.h.b16 %v435
    %v2586 = vunpack.c.l.b16 %v436
    %v2587 = vunpack.c.h.b16 %v436
    %v2588 = vunpack.c.l.b16 %v437
    %v2589 = vunpack.c.h.b16 %v437
    %v2590 = vunpack.c.l.b16 %v438
    %v2591 = vunpack.c.h.b16 %v438
    %v2592 = vunpack.c.l.b16 %v439
    %v2593 = vunpack.c.h.b16 %v439
    %v2594 = vunpack.c.l.b16 %v440
    %v2595 = vunpack.c.h.b16 %v440
    %v2596 = vunpack.c.l.b16 %v441
    %v2597 = vunpack.c.h.b16 %v441
    %v2598 = vunpack.c.l.b16 %v442
    %v2599 = vunpack.c.h.b16 %v442
    %v2600 = vunpack.c.l.b16 %v443
    %v2601 = vunpack.c.h.b16 %v443
    %v2602 = vunpack.c.l.b16 %v444
    %v2603 = vunpack.c.h.b16 %v444
    %v2604 = vunpack.c.l.b16 %v445
    %v2605 = vunpack.c.h.b16 %v445
    %v2606 = vunpack.c.l.b16 %v446
    %v2607 = vunpack.c.h.b16 %v446
    %v2608 = vunpack.c.l.b16 %v447
    %v2609 = vunpack.c.h.b16 %v447
    %v2610 = vunpack.c.l.b16 %v448
    %v2611 = vunpack.c.h.b16 %v448
    %v2612 = vunpack.c.l.b16 %v449
    %v2613 = vunpack.c.h.b16 %v449
    %v2614 = vunpack.c.l.b16 %v450
    %v2615 = vunpack.c.h.b16 %v450
    %v2616 = vunpack.c.l.b16 %v451
    %v2617 = vunpack.c.h.b16 %v451
    %v2618 = vunpack.c.l.b16 %v452
    %v2619 = vunpack.c.h.b16 %v452
    %v2620 = vunpack.c.l.b16 %v453
    %v2621 = vunpack.c.h.b16 %v453
    %v2622 = vunpack.c.l.b16 %v454
    %v2623 = vunpack.c.h.b16 %v454
    %v2624 = vunpack.c.l.b16 %v455
    %v2625 = vunpack.c.h.b16 %v455
    %v2626 = vunpack.c.l.b16 %v456
    %v2627 = vunpack.c.h.b16 %v456
    %v2628 = vunpack.c.l.b16 %v457
    %v2629 = vunpack.c.h.b16 %v457
    %v2630 = vunpack.c.l.b16 %v458
    %v2631 = vunpack.c.h.b16 %v458
    %v2632 = vunpack.c.l.b16 %v459
    %v2633 = vunpack.c.h.b16 %v459
    %v2634 = vunpack.c.l.b16 %v460
    %v2635 = vunpack.c.h.b16 %v460
    %v2636 = vunpack.c.l.b16 %v461
    %v2637 = vunpack.c.h.b16 %v461
    %v2638 = vunpack.c.l.b16 %v462
    %v2639 = vunpack.c.h.b16 %v462
    %v2640 = vunpack.c.l.b16 %v463
    %v2641 = vunpack.c.h.b16 %v463
    %v2642 = vunpack.c.l.b16 %v464
    %v2643 = vunpack.c.h.b16 %v464
    %v2644 = vunpack.c.l.b16 %v465
    %v2645 = vunpack.c.h.b16 %v465
    %v2646 = vunpack.c.l.b16 %v466
    %v2647 = vunpack.c.h.b16 %v466
    %v2648 = vunpack.c.l.b16 %v467
    %v2649 = vunpack.c.h.b16 %v467
    %v2650 = vunpack.c.l.b16 %v468
    %v2651 = vunpack.c.h.b16 %v468
    %v2652 = vunpack.c.l.b16 %v469
    %v2653 = vunpack.c.h.b16 %v469
    %v2654 = vunpack.c.l.b16 %v470
    %v2655 = vunpack.c.h.b16 %v470
    %v2656 = vunpack.c.l.b16 %v471
    %v2657 = vunpack.c.h.b16 %v471
    %v2658 = vunpack.c.l.b16 %v472
    %v2659 = vunpack.c.h.b16 %v472
    %v2660 = vunpack.c.l.b16 %v473
    %v2661 = vunpack.c.h.b16 %v473
    %v2662 = vunpack.c.l.b16 %v474
    %v2663 = vunpack.c.h.b16 %v474
    %v2664 = vunpack.c.l.b16 %v475
    %v2665 = vunpack.c.h.b16 %v475
    %v2666 = vunpack.c.l.b16 %v476
    %v2667 = vunpack.c.h.b16 %v476
    %v2668 = vunpack.c.l.b16 %v477
    %v2669 = vunpack.c.h.b16 %v477
    %v2670 = vunpack.c.l.b16 %v478
    %v2671 = vunpack.c.h.b16 %v478
    %v2672 = vunpack.c.l.b16 %v479
    %v2673 = vunpack.c.h.b16 %v479
    %v2674 = vunpack.c.l.b16 %v480
    %v2675 = vunpack.c.h.b16 %v480
    %v2676 = vunpack.c.l.b16 %v481
    %v2677 = vunpack.c.h.b16 %v481
    %v2678 = vunpack.c.l.b16 %v482
    %v2679 = vunpack.c.h.b16 %v482
    %v2680 = vunpack.c.l.b16 %v483
    %v2681 = vunpack.c.h.b16 %v483
    %v2682 = vunpack.c.l.b16 %v484
    %v2683 = vunpack.c.h.b16 %v484
    %v2684 = vunpack.c.l.b16 %v485
    %v2685 = vunpack.c.h.b16 %v485
    %v2686 = vunpack.c.l.b16 %v486
    %v2687 = vunpack.c.h.b16 %v486
    %v2688 = vunpack.c.l.b16 %v487
    %v2689 = vunpack.c.h.b16 %v487
    %v2690 = vunpack.c.l.b16 %v488
    %v2691 = vunpack.c.h.b16 %v488
    %v2692 = vunpack.c.l.b16 %v489
    %v2693 = vunpack.c.h.b16 %v489
    %v2694 = vunpack.c.l.b16 %v490
    %v2695 = vunpack.c.h.b16 %v490
    %v2696 = vunpack.c.l.b16 %v491
    %v2697 = vunpack.c.h.b16 %v491
    %v2698 = vunpack.c.l.b16 %v492
    %v2699 = vunpack.c.h.b16 %v492
    %v2700 = vunpack.c.l.b16 %v493
    %v2701 = vunpack.c.h.b16 %v493
    %v2702 = vunpack.c.l.b16 %v494
    %v2703 = vunpack.c.h.b16 %v494
    %v2704 = vunpack.c.l.b16 %v495
    %v2705 = vunpack.c.h.b16 %v495
    %v2706 = vunpack.c.l.b16 %v496
    %v2707 = vunpack.c.h.b16 %v496
    %v2708 = vunpack.c.l.b16 %v497
    %v2709 = vunpack.c.h.b16 %v497
    %v2710 = vunpack.c.l.b16 %v498
    %v2711 = vunpack.c.h.b16 %v498
    %v2712 = vunpack.c.l.b16 %v499
    %v2713 = vunpack.c.h.b16 %v499
    %v2714 = vunpack.c.l.b16 %v500
    %v2715 = vunpack.c.h.b16 %v500
    %v2716 = vunpack.c.l.b16 %v501
    %v2717 = vunpack.c.h.b16 %v501
    %v2718 = vunpack.c.l.b16 %v502
    %v2719 = vunpack.c.h.b16 %v502
    %v2720 = vunpack.c.l.b16 %v503
    %v2721 = vunpack.c.h.b16 %v503
    %v2722 = vunpack.c.l.b16 %v504
    %v2723 = vunpack.c.h.b16 %v504
    %v2724 = vunpack.c.l.b16 %v505
    %v2725 = vunpack.c.h.b16 %v505
    %v2726 = vunpack.c.l.b16 %v506
    %v2727 = vunpack.c.h.b16 %v506
    %v2728 = vunpack.c.l.b16 %v507
    %v2729 = vunpack.c.h.b16 %v507
    %v2730 = vunpack.c.l.b16 %v508
    %v2731 = vunpack.c.h.b16 %v508
    %v2732 = vunpack.c.l.b16 %v509
    %v2733 = vunpack.c.h.b16 %v509
    %v2734 = vunpack.c.l.b16 %v510
    %v2735 = vunpack.c.h.b16 %v510
    %v2736 = vunpack.c.l.b16 %v511
    %v2737 = vunpack.c.h.b16 %v511
    %v2738 = vunpack.c.l.b16 %v512
    %v2739 = vunpack.c.h.b16 %v512
    %v2740 = vunpack.c.l.b16 %v513
    %v2741 = vunpack.c.h.b16 %v513
    %v2742 = vunpack.c.l.b16 %v514
    %v2743 = vunpack.c.h.b16 %v514
    %v2744 = vunpack.c.l.b16 %v515
    %v2745 = vunpack.c.h.b16 %v515
    %v2746 = vunpack.c.l.b16 %v516
    %v2747 = vunpack.c.h.b16 %v516
    %v2748 = vunpack.c.l.b16 %v517
    %v2749 = vunpack.c.h.b16 %v517
    %v2750 = vunpack.c.l.b16 %v518
    %v2751 = vunpack.c.h.b16 %v518
    %v2752 = vunpack.c.l.b16 %v519
    %v2753 = vunpack.c.h.b16 %v519
    %v2754 = vunpack.c.l.b16 %v520
    %v2755 = vunpack.c.h.b16 %v520
    %v2756 = vunpack.c.l.b16 %v521
    %v2757 = vunpack.c.h.b16 %v521
    %v2758 = vunpack.c.l.b16 %v522
    %v2759 = vunpack.c.h.b16 %v522
    %v2760 = vunpack.c.l.b16 %v523
    %v2761 = vunpack.c.h.b16 %v523
    %v2762 = vunpack.c.l.b16 %v524
    %v2763 = vunpack.c.h.b16 %v524
    %v2764 = vunpack.c.l.b16 %v525
    %v2765 = vunpack.c.h.b16 %v525
    %v2766 = vunpack.c.l.b16 %v526
    %v2767 = vunpack.c.h.b16 %v526
    %v2768 = vunpack.c.l.b16 %v527
    %v2769 = vunpack.c.h.b16 %v527
    %v2770 = vunpack.c.l.b16 %v528
    %v2771 = vunpack.c.h.b16 %v528
    %v2772 = vunpack.c.l.b16 %v529
    %v2773 = vunpack.c.h.b16 %v529
    %v2774 = vunpack.c.l.b16 %v530
    %v2775 = vunpack.c.h.b16 %v530
    %v2776 = vunpack.c.l.b16 %v531
    %v2777 = vunpack.c.h.b16 %v531
    %v2778 = vunpack.c.l.b16 %v532
    %v2779 = vunpack.c.h.b16 %v532
    %v2780 = vunpack.c.l.b16 %v533
    %v2781 = vunpack.c.h.b16 %v533
    %v2782 = vunpack.c.l.b16 %v534
    %v2783 = vunpack.c.h.b16 %v534
    %v2784 = vunpack.c.l.b16 %v535
    %v2785 = vunpack.c.h.b16 %v535
    %v2786 = vunpack.c.l.b16 %v536
    %v2787 = vunpack.c.h.b16 %v536
    %v2788 = vunpack.c.l.b16 %v537
    %v2789 = vunpack.c.h.b16 %v537
    %v2790 = vunpack.c.l.b16 %v538
    %v2791 = vunpack.c.h.b16 %v538
    %v2792 = vunpack.c.l.b16 %v539
    %v2793 = vunpack.c.h.b16 %v539
    %v2794 = vunpack.c.l.b16 %v540
    %v2795 = vunpack.c.h.b16 %v540
    %v2796 = vunpack.c.l.b16 %v541
    %v2797 = vunpack.c.h.b16 %v541
    %v2798 = vunpack.c.l.b16 %v542
    %v2799 = vunpack.c.h.b16 %v542
    %v2800 = vunpack.c.l.b16 %v543
    %v2801 = vunpack.c.h.b16 %v543
    %v2802 = vunpack.c.l.b16 %v544
    %v2803 = vunpack.c.h.b16 %v544
    %v2804 = vunpack.c.l.b16 %v545
    %v2805 = vunpack.c.h.b16 %v545
    %v2806 = vunpack.c.l.b16 %v546
    %v2807 = vunpack.c.h.b16 %v546
    %v2808 = vunpack.c.l.b16 %v547
    %v2809 = vunpack.c.h.b16 %v547
    %v2810 = vunpack.c.l.b16 %v548
    %v2811 = vunpack.c.h.b16 %v548
    %v2812 = vunpack.c.l.b16 %v549
    %v2813 = vunpack.c.h.b16 %v549
    %v2814 = vunpack.c.l.b16 %v550
    %v2815 = vunpack.c.h.b16 %v550
    %v2816 = vunpack.c.l.b16 %v551
    %v2817 = vunpack.c.h.b16 %v551
    %v2818 = vunpack.c.l.b16 %v552
    %v2819 = vunpack.c.h.b16 %v552
    %v2820 = vunpack.c.l.b16 %v553
    %v2821 = vunpack.c.h.b16 %v553
    %v2822 = vunpack.c.l.b16 %v554
    %v2823 = vunpack.c.h.b16 %v554
    %v2824 = vunpack.c.l.b16 %v555
    %v2825 = vunpack.c.h.b16 %v555
    %v2826 = vunpack.c.l.b16 %v556
    %v2827 = vunpack.c.h.b16 %v556
    %v2828 = vunpack.c.l.b16 %v557
    %v2829 = vunpack.c.h.b16 %v557
    %v2830 = vunpack.c.l.b16 %v558
    %v2831 = vunpack.c.h.b16 %v558
    %v2832 = vunpack.c.l.b16 %v559
    %v2833 = vunpack.c.h.b16 %v559
    %v2834 = vunpack.c.l.b16 %v560
    %v2835 = vunpack.c.h.b16 %v560
    %v2836 = vunpack.c.l.b16 %v561
    %v2837 = vunpack.c.h.b16 %v561
    %v2838 = vunpack.c.l.b16 %v562
    %v2839 = vunpack.c.h.b16 %v562
    %v2840 = vunpack.c.l.b16 %v563
    %v2841 = vunpack.c.h.b16 %v563
    %v2842 = vunpack.c.l.b16 %v564
    %v2843 = vunpack.c.h.b16 %v564
    %v2844 = vunpack.c.l.b16 %v565
    %v2845 = vunpack.c.h.b16 %v565
    %v2846 = vunpack.c.l.b16 %v566
    %v2847 = vunpack.c.h.b16 %v566
    %v2848 = vunpack.c.l.b16 %v567
    %v2849 = vunpack.c.h.b16 %v567
    %v2850 = vunpack.c.l.b16 %v568
    %v2851 = vunpack.c.h.b16 %v568
    %v2852 = vunpack.c.l.b16 %v569
    %v2853 = vunpack.c.h.b16 %v569
    %v2854 = vunpack.c.l.b16 %v570
    %v2855 = vunpack.c.h.b16 %v570
    %v2856 = vunpack.c.l.b16 %v571
    %v2857 = vunpack.c.h.b16 %v571
    %v2858 = vunpack.c.l.b16 %v572
    %v2859 = vunpack.c.h.b16 %v572
    %v2860 = vunpack.c.l.b16 %v573
    %v2861 = vunpack.c.h.b16 %v573
    %v2862 = vunpack.c.l.b16 %v574
    %v2863 = vunpack.c.h.b16 %v574
    %v2864 = vunpack.c.l.b16 %v575
    %v2865 = vunpack.c.h.b16 %v575
    %v2866 = vunpack.c.l.b16 %v576
    %v2867 = vunpack.c.h.b16 %v576
    %v2868 = vunpack.c.l.b16 %v577
    %v2869 = vunpack.c.h.b16 %v577
    %v2870 = vunpack.c.l.b16 %v578
    %v2871 = vunpack.c.h.b16 %v578
    %v2872 = vunpack.c.l.b16 %v579
    %v2873 = vunpack.c.h.b16 %v579
    %v2874 = vunpack.c.l.b16 %v580
    %v2875 = vunpack.c.h.b16 %v580
    %v2876 = vunpack.c.l.b16 %v581
    %v2877 = vunpack.c.h.b16 %v581
    %v2878 = vunpack.c.l.b16 %v582
    %v2879 = vunpack.c.h.b16 %v582
    %v2880 = vunpack.c.l.b16 %v583
    %v2881 = vunpack.c.h.b16 %v583
    %v2882 = vunpack.c.l.b16 %v584
    %v2883 = vunpack.c.h.b16 %v584
    %v2884 = vunpack.c.l.b16 %v585
    %v2885 = vunpack.c.h.b16 %v585
    %v2886 = vunpack.c.l.b16 %v586
    %v2887 = vunpack.c.h.b16 %v586
    %v2888 = vunpack.c.l.b16 %v587
    %v2889 = vunpack.c.h.b16 %v587
    %v2890 = vunpack.c.l.b16 %v588
    %v2891 = vunpack.c.h.b16 %v588
    %v2892 = vunpack.c.l.b16 %v589
    %v2893 = vunpack.c.h.b16 %v589
    %v2894 = vunpack.c.l.b16 %v590
    %v2895 = vunpack.c.h.b16 %v590
    %v2896 = vunpack.c.l.b16 %v591
    %v2897 = vunpack.c.h.b16 %v591
    %v2898 = vunpack.c.l.b16 %v592
    %v2899 = vunpack.c.h.b16 %v592
    %v2900 = vunpack.c.l.b16 %v593
    %v2901 = vunpack.c.h.b16 %v593
    %v2902 = vunpack.c.l.b16 %v594
    %v2903 = vunpack.c.h.b16 %v594
    %v2904 = vunpack.c.l.b16 %v595
    %v2905 = vunpack.c.h.b16 %v595
    %v2906 = vunpack.c.l.b16 %v596
    %v2907 = vunpack.c.h.b16 %v596
    %v2908 = vunpack.c.l.b16 %v597
    %v2909 = vunpack.c.h.b16 %v597
    %v2910 = vunpack.c.l.b16 %v598
    %v2911 = vunpack.c.h.b16 %v598
    %v2912 = vunpack.c.l.b16 %v599
    %v2913 = vunpack.c.h.b16 %v599
    %v2914 = vunpack.c.l.b16 %v600
    %v2915 = vunpack.c.h.b16 %v600
    %v2916 = vunpack.c.l.b16 %v601
    %v2917 = vunpack.c.h.b16 %v601
    %v2918 = vunpack.c.l.b16 %v602
    %v2919 = vunpack.c.h.b16 %v602
    %v2920 = vunpack.c.l.b16 %v603
    %v2921 = vunpack.c.h.b16 %v603
    %v2922 = vunpack.c.l.b16 %v604
    %v2923 = vunpack.c.h.b16 %v604
    %v2924 = vunpack.c.l.b16 %v605
    %v2925 = vunpack.c.h.b16 %v605
    %v2926 = vunpack.c.l.b16 %v606
    %v2927 = vunpack.c.h.b16 %v606
    %v2928 = vunpack.c.l.b16 %v607
    %v2929 = vunpack.c.h.b16 %v607
    %v2930 = vunpack.c.l.b16 %v608
    %v2931 = vunpack.c.h.b16 %v608
    %v2932 = vunpack.c.l.b16 %v609
    %v2933 = vunpack.c.h.b16 %v609
    %v2934 = vunpack.c.l.b16 %v610
    %v2935 = vunpack.c.h.b16 %v610
    %v2936 = vunpack.c.l.b16 %v611
    %v2937 = vunpack.c.h.b16 %v611
    %v2938 = vunpack.c.l.b16 %v612
    %v2939 = vunpack.c.h.b16 %v612
    %v2940 = vunpack.c.l.b16 %v613
    %v2941 = vunpack.c.h.b16 %v613
    %v2942 = vunpack.c.l.b16 %v614
    %v2943 = vunpack.c.h.b16 %v614
    %v2944 = vunpack.c.l.b16 %v615
    %v2945 = vunpack.c.h.b16 %v615
    %v2946 = vunpack.c.l.b16 %v616
    %v2947 = vunpack.c.h.b16 %v616
    %v2948 = vunpack.c.l.b16 %v617
    %v2949 = vunpack.c.h.b16 %v617
    %v2950 = vunpack.c.l.b16 %v618
    %v2951 = vunpack.c.h.b16 %v618
    %v2952 = vunpack.c.l.b16 %v619
    %v2953 = vunpack.c.h.b16 %v619
    %v2954 = vunpack.c.l.b16 %v620
    %v2955 = vunpack.c.h.b16 %v620
    %v2956 = vunpack.c.l.b16 %v621
    %v2957 = vunpack.c.h.b16 %v621
    %v2958 = vunpack.c.l.b16 %v622
    %v2959 = vunpack.c.h.b16 %v622
    %v2960 = vunpack.c.l.b16 %v623
    %v2961 = vunpack.c.h.b16 %v623
    %v2962 = vunpack.c.l.b16 %v624
    %v2963 = vunpack.c.h.b16 %v624
    %v2964 = vunpack.c.l.b16 %v625
    %v2965 = vunpack.c.h.b16 %v625
    %v2966 = vunpack.c.l.b16 %v626
    %v2967 = vunpack.c.h.b16 %v626
    %v2968 = vunpack.c.l.b16 %v627
    %v2969 = vunpack.c.h.b16 %v627
    %v2970 = vunpack.c.l.b16 %v628
    %v2971 = vunpack.c.h.b16 %v628
    %v2972 = vunpack.c.l.b16 %v629
    %v2973 = vunpack.c.h.b16 %v629
    %v2974 = vunpack.c.l.b16 %v630
    %v2975 = vunpack.c.h.b16 %v630
    %v2976 = vunpack.c.l.b16 %v631
    %v2977 = vunpack.c.h.b16 %v631
    %v2978 = vunpack.c.l.b16 %v632
    %v2979 = vunpack.c.h.b16 %v632
    %v2980 = vunpack.c.l.b16 %v633
    %v2981 = vunpack.c.h.b16 %v633
    %v2982 = vunpack.c.l.b16 %v634
    %v2983 = vunpack.c.h.b16 %v634
    %v2984 = vunpack.c.l.b16 %v635
    %v2985 = vunpack.c.h.b16 %v635
    %v2986 = vunpack.c.l.b16 %v636
    %v2987 = vunpack.c.h.b16 %v636
    %v2988 = vunpack.c.l.b16 %v637
    %v2989 = vunpack.c.h.b16 %v637
    %v2990 = vunpack.c.l.b16 %v638
    %v2991 = vunpack.c.h.b16 %v638
    %v2992 = vunpack.c.l.b16 %v639
    %v2993 = vunpack.c.h.b16 %v639
    %v2994 = vunpack.c.l.b16 %v640
    %v2995 = vunpack.c.h.b16 %v640
    %v2996 = vunpack.c.l.b16 %v641
    %v2997 = vunpack.c.h.b16 %v641
    %v2998 = vunpack.c.l.b16 %v642
    %v2999 = vunpack.c.h.b16 %v642
    %v3000 = vunpack.c.l.b16 %v643
    %v3001 = vunpack.c.h.b16 %v643
    %v3002 = vunpack.c.l.b16 %v644
    %v3003 = vunpack.c.h.b16 %v644
    %v3004 = vunpack.c.l.b16 %v645
    %v3005 = vunpack.c.h.b16 %v645
    %v3006 = vunpack.c.l.b16 %v646
    %v3007 = vunpack.c.h.b16 %v646
    %v3008 = vunpack.c.l.b16 %v647
    %v3009 = vunpack.c.h.b16 %v647
    %v3010 = vunpack.c.l.b16 %v648
    %v3011 = vunpack.c.h.b16 %v648
    %v3012 = vunpack.c.l.b16 %v649
    %v3013 = vunpack.c.h.b16 %v649
    %v3014 = vunpack.c.l.b16 %v650
    %v3015 = vunpack.c.h.b16 %v650
    %v3016 = vunpack.c.l.b16 %v651
    %v3017 = vunpack.c.h.b16 %v651
    %v3018 = vunpack.c.l.b16 %v652
    %v3019 = vunpack.c.h.b16 %v652
    %v3020 = vunpack.c.l.b16 %v653
    %v3021 = vunpack.c.h.b16 %v653
    %v3022 = vunpack.c.l.b16 %v654
    %v3023 = vunpack.c.h.b16 %v654
    %v3024 = vunpack.c.l.b16 %v655
    %v3025 = vunpack.c.h.b16 %v655
    %v3026 = vunpack.c.l.b16 %v656
    %v3027 = vunpack.c.h.b16 %v656
    %v3028 = vunpack.c.l.b16 %v657
    %v3029 = vunpack.c.h.b16 %v657
    %v3030 = vunpack.c.l.b16 %v658
    %v3031 = vunpack.c.h.b16 %v658
    %v3032 = vunpack.c.l.b16 %v659
    %v3033 = vunpack.c.h.b16 %v659
    %v3034 = vunpack.c.l.b16 %v660
    %v3035 = vunpack.c.h.b16 %v660
    %v3036 = vunpack.c.l.b16 %v661
    %v3037 = vunpack.c.h.b16 %v661
    %v3038 = vunpack.c.l.b16 %v662
    %v3039 = vunpack.c.h.b16 %v662
    %v3040 = vunpack.c.l.b16 %v663
    %v3041 = vunpack.c.h.b16 %v663
    %v3042 = vunpack.c.l.b16 %v664
    %v3043 = vunpack.c.h.b16 %v664
    %v3044 = vunpack.c.l.b16 %v665
    %v3045 = vunpack.c.h.b16 %v665
    %v3046 = vunpack.c.l.b16 %v666
    %v3047 = vunpack.c.h.b16 %v666
    %v3048 = vunpack.c.l.b16 %v667
    %v3049 = vunpack.c.h.b16 %v667
    %v3050 = vunpack.c.l.b16 %v668
    %v3051 = vunpack.c.h.b16 %v668
    %v3052 = vunpack.c.l.b16 %v669
    %v3053 = vunpack.c.h.b16 %v669
    %v3054 = vunpack.c.l.b16 %v670
    %v3055 = vunpack.c.h.b16 %v670
    %v3056 = vunpack.c.l.b16 %v671
    %v3057 = vunpack.c.h.b16 %v671
    %v3058 = vunpack.c.l.b16 %v672
    %v3059 = vunpack.c.h.b16 %v672
    %v3060 = vunpack.c.l.b16 %v673
    %v3061 = vunpack.c.h.b16 %v673
    %v3062 = vunpack.c.l.b16 %v674
    %v3063 = vunpack.c.h.b16 %v674
    %v3064 = vunpack.c.l.b16 %v675
    %v3065 = vunpack.c.h.b16 %v675
    %v3066 = vunpack.c.l.b16 %v676
    %v3067 = vunpack.c.h.b16 %v676
    %v3068 = vunpack.c.l.b16 %v677
    %v3069 = vunpack.c.h.b16 %v677
    %v3070 = vunpack.c.l.b16 %v678
    %v3071 = vunpack.c.h.b16 %v678
    %v3072 = vunpack.c.l.b16 %v679
    %v3073 = vunpack.c.h.b16 %v679
    %v3074 = vunpack.c.l.b16 %v680
    %v3075 = vunpack.c.h.b16 %v680
    %v3076 = vunpack.c.l.b16 %v681
    %v3077 = vunpack.c.h.b16 %v681
    %v3078 = vunpack.c.l.b16 %v682
    %v3079 = vunpack.c.h.b16 %v682
    %v3080 = vunpack.c.l.b16 %v683
    %v3081 = vunpack.c.h.b16 %v683
    %v3082 = vunpack.c.l.b16 %v684
    %v3083 = vunpack.c.h.b16 %v684
    %v3084 = vunpack.c.l.b16 %v685
    %v3085 = vunpack.c.h.b16 %v685
    %v3086 = vunpack.c.l.b16 %v686
    %v3087 = vunpack.c.h.b16 %v686
    %v3088 = vunpack.c.l.b16 %v687
    %v3089 = vunpack.c.h.b16 %v687
    %v3090 = vunpack.c.l.b16 %v688
    %v3091 = vunpack.c.h.b16 %v688
    %v3092 = vunpack.c.l.b16 %v689
    %v3093 = vunpack.c.h.b16 %v689
    %v3094 = vunpack.c.l.b16 %v690
    %v3095 = vunpack.c.h.b16 %v690
    %v3096 = vunpack.c.l.b16 %v691
    %v3097 = vunpack.c.h.b16 %v691
    %v3098 = vunpack.c.l.b16 %v692
    %v3099 = vunpack.c.h.b16 %v692
    %v3100 = vunpack.c.l.b16 %v693
    %v3101 = vunpack.c.h.b16 %v693
    %v3102 = vunpack.c.l.b16 %v694
    %v3103 = vunpack.c.h.b16 %v694
    %v3104 = vunpack.c.l.b16 %v695
    %v3105 = vunpack.c.h.b16 %v695
    %v3106 = vunpack.c.l.b16 %v696
    %v3107 = vunpack.c.h.b16 %v696
    %v3108 = vunpack.c.l.b16 %v697
    %v3109 = vunpack.c.h.b16 %v697
    %v3110 = vunpack.c.l.b16 %v698
    %v3111 = vunpack.c.h.b16 %v698
    %v3112 = vunpack.c.l.b16 %v699
    %v3113 = vunpack.c.h.b16 %v699
    %v3114 = vunpack.c.l.b16 %v700
    %v3115 = vunpack.c.h.b16 %v700
    %v3116 = vunpack.c.l.b16 %v701
    %v3117 = vunpack.c.h.b16 %v701
    %v3118 = vunpack.c.l.b16 %v702
    %v3119 = vunpack.c.h.b16 %v702
    %v3120 = vunpack.c.l.b16 %v703
    %v3121 = vunpack.c.h.b16 %v703
    %v3122 = vunpack.c.l.b16 %v704
    %v3123 = vunpack.c.h.b16 %v704
    %v3124 = vunpack.c.l.b16 %v705
    %v3125 = vunpack.c.h.b16 %v705
    %v3126 = vunpack.c.l.b16 %v706
    %v3127 = vunpack.c.h.b16 %v706
    %v3128 = vunpack.c.l.b16 %v707
    %v3129 = vunpack.c.h.b16 %v707
    %v3130 = vunpack.c.l.b16 %v708
    %v3131 = vunpack.c.h.b16 %v708
    %v3132 = vunpack.c.l.b16 %v709
    %v3133 = vunpack.c.h.b16 %v709
    %v3134 = vunpack.c.l.b16 %v710
    %v3135 = vunpack.c.h.b16 %v710
    %v3136 = vunpack.c.l.b16 %v711
    %v3137 = vunpack.c.h.b16 %v711
    %v3138 = vunpack.c.l.b16 %v712
    %v3139 = vunpack.c.h.b16 %v712
    %v3140 = vunpack.c.l.b16 %v713
    %v3141 = vunpack.c.h.b16 %v713
    %v3142 = vunpack.c.l.b16 %v714
    %v3143 = vunpack.c.h.b16 %v714
    %v3144 = vunpack.c.l.b16 %v715
    %v3145 = vunpack.c.h.b16 %v715
    %v3146 = vunpack.c.l.b16 %v716
    %v3147 = vunpack.c.h.b16 %v716
    %v3148 = vunpack.c.l.b16 %v717
    %v3149 = vunpack.c.h.b16 %v717
    %v3150 = vunpack.c.l.b16 %v718
    %v3151 = vunpack.c.h.b16 %v718
    %v3152 = vunpack.c.l.b16 %v719
    %v3153 = vunpack.c.h.b16 %v719
    %v3154 = vunpack.c.l.b16 %v720
    %v3155 = vunpack.c.h.b16 %v720
    %v3156 = vunpack.c.l.b16 %v721
    %v3157 = vunpack.c.h.b16 %v721
    %v3158 = vunpack.c.l.b16 %v722
    %v3159 = vunpack.c.h.b16 %v722
    %v3160 = vunpack.c.l.b16 %v723
    %v3161 = vunpack.c.h.b16 %v723
    %v3162 = vunpack.c.l.b16 %v724
    %v3163 = vunpack.c.h.b16 %v724
    %v3164 = vunpack.c.l.b16 %v725
    %v3165 = vunpack.c.h.b16 %v725
    %v3166 = vunpack.c.l.b16 %v726
    %v3167 = vunpack.c.h.b16 %v726
    %v3168 = vunpack.c.l.b16 %v727
    %v3169 = vunpack.c.h.b16 %v727
    %v3170 = vunpack.c.l.b16 %v728
    %v3171 = vunpack.c.h.b16 %v728
    %v3172 = vunpack.c.l.b16 %v729
    %v3173 = vunpack.c.h.b16 %v729
    %v3174 = vunpack.c.l.b16 %v730
    %v3175 = vunpack.c.h.b16 %v730
    %v3176 = vunpack.c.l.b16 %v731
    %v3177 = vunpack.c.h.b16 %v731
    %v3178 = vunpack.c.l.b16 %v732
    %v3179 = vunpack.c.h.b16 %v732
    %v3180 = vunpack.c.l.b16 %v733
    %v3181 = vunpack.c.h.b16 %v733
    %v3182 = vunpack.c.l.b16 %v734
    %v3183 = vunpack.c.h.b16 %v734
    %v3184 = vunpack.c.l.b16 %v735
    %v3185 = vunpack.c.h.b16 %v735
    %v3186 = vunpack.c.l.b16 %v736
    %v3187 = vunpack.c.h.b16 %v736
    %v3188 = vunpack.c.l.b16 %v737
    %v3189 = vunpack.c.h.b16 %v737
    %v3190 = vunpack.c.l.b16 %v738
    %v3191 = vunpack.c.h.b16 %v738
    %v3192 = vunpack.c.l.b16 %v739
    %v3193 = vunpack.c.h.b16 %v739
    %v3194 = vunpack.c.l.b16 %v740
    %v3195 = vunpack.c.h.b16 %v740
    %v3196 = vunpack.c.l.b16 %v741
    %v3197 = vunpack.c.h.b16 %v741
    %v3198 = vunpack.c.l.b16 %v742
    %v3199 = vunpack.c.h.b16 %v742
    %v3200 = vunpack.c.l.b16 %v743
    %v3201 = vunpack.c.h.b16 %v743
    %v3202 = vunpack.c.l.b16 %v744
    %v3203 = vunpack.c.h.b16 %v744
    %v3204 = vunpack.c.l.b16 %v745
    %v3205 = vunpack.c.h.b16 %v745
    %v3206 = vunpack.c.l.b16 %v746
    %v3207 = vunpack.c.h.b16 %v746
    %v3208 = vunpack.c.l.b16 %v747
    %v3209 = vunpack.c.h.b16 %v747
    %v3210 = vunpack.c.l.b16 %v748
    %v3211 = vunpack.c.h.b16 %v748
    %v3212 = vunpack.c.l.b16 %v749
    %v3213 = vunpack.c.h.b16 %v749
    %v3214 = vunpack.c.l.b16 %v750
    %v3215 = vunpack.c.h.b16 %v750
    %v3216 = vunpack.c.l.b16 %v751
    %v3217 = vunpack.c.h.b16 %v751
    %v3218 = vunpack.c.l.b16 %v752
    %v3219 = vunpack.c.h.b16 %v752
    %v3220 = vunpack.c.l.b16 %v753
    %v3221 = vunpack.c.h.b16 %v753
    %v3222 = vunpack.c.l.b16 %v754
    %v3223 = vunpack.c.h.b16 %v754
    %v3224 = vunpack.c.l.b16 %v755
    %v3225 = vunpack.c.h.b16 %v755
    %v3226 = vunpack.c.l.b16 %v756
    %v3227 = vunpack.c.h.b16 %v756
    %v3228 = vunpack.c.l.b16 %v757
    %v3229 = vunpack.c.h.b16 %v757
    %v3230 = vunpack.c.l.b16 %v758
    %v3231 = vunpack.c.h.b16 %v758
    %v3232 = vunpack.c.l.b16 %v759
    %v3233 = vunpack.c.h.b16 %v759
    %v3234 = vunpack.c.l.b16 %v760
    %v3235 = vunpack.c.h.b16 %v760
    %v3236 = vunpack.c.l.b16 %v761
    %v3237 = vunpack.c.h.b16 %v761
    %v3238 = vunpack.c.l.b16 %v762
    %v3239 = vunpack.c.h.b16 %v762
    %v3240 = vunpack.c.l.b16 %v763
    %v3241 = vunpack.c.h.b16 %v763
    %v3242 = vunpack.c.l.b16 %v764
    %v3243 = vunpack.c.h.b16 %v764
    %v3244 = vunpack.c.l.b16 %v765
    %v3245 = vunpack.c.h.b16 %v765
    %v3246 = vunpack.c.l.b16 %v766
    %v3247 = vunpack.c.h.b16 %v766
    %v3248 = vunpack.c.l.b16 %v767
    %v3249 = vunpack.c.h.b16 %v767
    %v3250 = vunpack.c.l.b16 %v768
    %v3251 = vunpack.c.h.b16 %v768
    %v3252 = vunpack.c.l.b16 %v769
    %v3253 = vunpack.c.h.b16 %v769
    %v3254 = vunpack.c.l.b16 %v770
    %v3255 = vunpack.c.h.b16 %v770
    %v3256 = vunpack.c.l.b16 %v771
    %v3257 = vunpack.c.h.b16 %v771
    %v3258 = vunpack.c.l.b16 %v772
    %v3259 = vunpack.c.h.b16 %v772
    %v3260 = vunpack.c.l.b16 %v773
    %v3261 = vunpack.c.h.b16 %v773
    %v3262 = vunpack.c.l.b16 %v774
    %v3263 = vunpack.c.h.b16 %v774
    %v3264 = vunpack.c.l.b16 %v775
    %v3265 = vunpack.c.h.b16 %v775
    %v3266 = vunpack.c.l.b16 %v776
    %v3267 = vunpack.c.h.b16 %v776
    %v3268 = vunpack.c.l.b16 %v777
    %v3269 = vunpack.c.h.b16 %v777
    %v3270 = vunpack.c.l.b16 %v778
    %v3271 = vunpack.c.h.b16 %v778
    %v3272 = vunpack.c.l.b16 %v779
    %v3273 = vunpack.c.h.b16 %v779
    %v3274 = vunpack.c.l.b16 %v780
    %v3275 = vunpack.c.h.b16 %v780
    %v3276 = vunpack.c.l.b16 %v781
    %v3277 = vunpack.c.h.b16 %v781
    %v3278 = vunpack.c.l.b16 %v782
    %v3279 = vunpack.c.h.b16 %v782
    %v3280 = vunpack.c.l.b16 %v783
    %v3281 = vunpack.c.h.b16 %v783
    %v3282 = vunpack.c.l.b16 %v784
    %v3283 = vunpack.c.h.b16 %v784
    %v3284 = vunpack.c.l.b16 %v785
    %v3285 = vunpack.c.h.b16 %v785
    %v3286 = vunpack.c.l.b16 %v786
    %v3287 = vunpack.c.h.b16 %v786
    %v3288 = vunpack.c.l.b16 %v787
    %v3289 = vunpack.c.h.b16 %v787
    %v3290 = vunpack.c.l.b16 %v788
    %v3291 = vunpack.c.h.b16 %v788
    %v3292 = vunpack.c.l.b16 %v789
    %v3293 = vunpack.c.h.b16 %v789
    %v3294 = vunpack.c.l.b16 %v790
    %v3295 = vunpack.c.h.b16 %v790
    %v3296 = vunpack.c.l.b16 %v791
    %v3297 = vunpack.c.h.b16 %v791
    %v3298 = vunpack.c.l.b16 %v792
    %v3299 = vunpack.c.h.b16 %v792
    %v3300 = vunpack.c.l.b16 %v793
    %v3301 = vunpack.c.h.b16 %v793
    %v3302 = vunpack.c.l.b16 %v794
    %v3303 = vunpack.c.h.b16 %v794
    %v3304 = vunpack.c.l.b16 %v795
    %v3305 = vunpack.c.h.b16 %v795
    %v3306 = vunpack.c.l.b16 %v796
    %v3307 = vunpack.c.h.b16 %v796
    %v3308 = vunpack.c.l.b16 %v797
    %v3309 = vunpack.c.h.b16 %v797
    %v3310 = vunpack.c.l.b16 %v798
    %v3311 = vunpack.c.h.b16 %v798
    %v3312 = vunpack.c.l.b16 %v799
    %v3313 = vunpack.c.h.b16 %v799
    %v3314 = vunpack.c.l.b16 %v800
    %v3315 = vunpack.c.h.b16 %v800
    %v3316 = vunpack.c.l.b16 %v801
    %v3317 = vunpack.c.h.b16 %v801
    %v3318 = vunpack.c.l.b16 %v802
    %v3319 = vunpack.c.h.b16 %v802
    %v3320 = vunpack.c.l.b16 %v803
    %v3321 = vunpack.c.h.b16 %v803
    %v3322 = vunpack.c.l.b16 %v804
    %v3323 = vunpack.c.h.b16 %v804
    %v3324 = vunpack.c.l.b16 %v805
    %v3325 = vunpack.c.h.b16 %v805
    %v3326 = vunpack.c.l.b16 %v806
    %v3327 = vunpack.c.h.b16 %v806
    %v3328 = vunpack.c.l.b16 %v807
    %v3329 = vunpack.c.h.b16 %v807
    %v3330 = vunpack.c.l.b16 %v808
    %v3331 = vunpack.c.h.b16 %v808
    %v3332 = vunpack.c.l.b16 %v809
    %v3333 = vunpack.c.h.b16 %v809
    %v3334 = vunpack.c.l.b16 %v810
    %v3335 = vunpack.c.h.b16 %v810
    %v3336 = vunpack.c.l.b16 %v811
    %v3337 = vunpack.c.h.b16 %v811
    %v3338 = vunpack.c.l.b16 %v812
    %v3339 = vunpack.c.h.b16 %v812
    %v3340 = vunpack.c.l.b16 %v813
    %v3341 = vunpack.c.h.b16 %v813
    %v3342 = vunpack.c.l.b16 %v814
    %v3343 = vunpack.c.h.b16 %v814
    %v3344 = vunpack.c.l.b16 %v815
    %v3345 = vunpack.c.h.b16 %v815
    %v3346 = vunpack.c.l.b16 %v816
    %v3347 = vunpack.c.h.b16 %v816
    %v3348 = vunpack.c.l.b16 %v817
    %v3349 = vunpack.c.h.b16 %v817
    %v3350 = vunpack.c.l.b16 %v818
    %v3351 = vunpack.c.h.b16 %v818
    %v3352 = vunpack.c.l.b16 %v819
    %v3353 = vunpack.c.h.b16 %v819
    %v3354 = vunpack.c.l.b16 %v820
    %v3355 = vunpack.c.h.b16 %v820
    %v3356 = vunpack.c.l.b16 %v821
    %v3357 = vunpack.c.h.b16 %v821
    %v3358 = vunpack.c.l.b16 %v822
    %v3359 = vunpack.c.h.b16 %v822
    %v3360 = vunpack.c.l.b16 %v823
    %v3361 = vunpack.c.h.b16 %v823
    %v3362 = vunpack.c.l.b16 %v824
    %v3363 = vunpack.c.h.b16 %v824
    %v3364 = vunpack.c.l.b16 %v825
    %v3365 = vunpack.c.h.b16 %v825
    %v3366 = vunpack.c.l.b16 %v826
    %v3367 = vunpack.c.h.b16 %v826
    %v3368 = vunpack.c.l.b16 %v827
    %v3369 = vunpack.c.h.b16 %v827
    %v3370 = vunpack.c.l.b16 %v828
    %v3371 = vunpack.c.h.b16 %v828
    %v3372 = vunpack.c.l.b16 %v829
    %v3373 = vunpack.c.h.b16 %v829
    %v3374 = vunpack.c.l.b16 %v830
    %v3375 = vunpack.c.h.b16 %v830
    %v3376 = vunpack.c.l.b16 %v831
    %v3377 = vunpack.c.h.b16 %v831
    %v3378 = vunpack.c.l.b16 %v832
    %v3379 = vunpack.c.h.b16 %v832
    %v3380 = vunpack.c.l.b16 %v833
    %v3381 = vunpack.c.h.b16 %v833
    %v3382 = vunpack.c.l.b16 %v834
    %v3383 = vunpack.c.h.b16 %v834
    %v3384 = vunpack.c.l.b16 %v835
    %v3385 = vunpack.c.h.b16 %v835
    %v3386 = vunpack.c.l.b16 %v836
    %v3387 = vunpack.c.h.b16 %v836
    %v3388 = vunpack.c.l.b16 %v837
    %v3389 = vunpack.c.h.b16 %v837
    %v3390 = vunpack.c.l.b16 %v838
    %v3391 = vunpack.c.h.b16 %v838
    %v3392 = vunpack.c.l.b16 %v839
    %v3393 = vunpack.c.h.b16 %v839
    %v3394 = vunpack.c.l.b16 %v840
    %v3395 = vunpack.c.h.b16 %v840
    %v3396 = vunpack.c.l.b16 %v841
    %v3397 = vunpack.c.h.b16 %v841
    %v3398 = vunpack.c.l.b16 %v842
    %v3399 = vunpack.c.h.b16 %v842
    %v3400 = vunpack.c.l.b16 %v843
    %v3401 = vunpack.c.h.b16 %v843
    %v3402 = vunpack.c.l.b16 %v844
    %v3403 = vunpack.c.h.b16 %v844
    %v3404 = vunpack.c.l.b16 %v845
    %v3405 = vunpack.c.h.b16 %v845
    %v3406 = vunpack.c.l.b16 %v846
    %v3407 = vunpack.c.h.b16 %v846
    %v3408 = vunpack.c.l.b16 %v847
    %v3409 = vunpack.c.h.b16 %v847
    %v3410 = vunpack.c.l.b16 %v848
    %v3411 = vunpack.c.h.b16 %v848
    %v3412 = vunpack.c.l.b16 %v849
    %v3413 = vunpack.c.h.b16 %v849
    %v3414 = vunpack.c.l.b16 %v850
    %v3415 = vunpack.c.h.b16 %v850
    %v3416 = vunpack.c.l.b16 %v851
    %v3417 = vunpack.c.h.b16 %v851
    %v3418 = vunpack.c.l.b16 %v852
    %v3419 = vunpack.c.h.b16 %v852
    %v3420 = vunpack.c.l.b16 %v853
    %v3421 = vunpack.c.h.b16 %v853
    %v3422 = vunpack.c.l.b16 %v854
    %v3423 = vunpack.c.h.b16 %v854
    %v3424 = vunpack.c.l.b16 %v855
    %v3425 = vunpack.c.h.b16 %v855
    %v3426 = vunpack.c.l.b16 %v856
    %v3427 = vunpack.c.h.b16 %v856
    %v3428 = vunpack.c.l.b16 %v857
    %v3429 = vunpack.c.h.b16 %v857
    %v3430 = vunpack.c.l.b16 %v858
    %v3431 = vunpack.c.h.b16 %v858
    %v3432 = vunpack.c.l.b16 %v859
    %v3433 = vunpack.c.h.b16 %v859
    %v3434 = vunpack.c.l.b16 %v860
    %v3435 = vunpack.c.h.b16 %v860
    %v3436 = vpack.c.b16 %v1870, %v1868
    %v3437 = vpack.c.b16 %v1871, %v1869
    %v3438 = vpack.c.b16 %v1874, %v1872
    %v3439 = vpack.c.b16 %v1875, %v1873
    %v3440 = vpack.c.b16 %v1878, %v1876
    %v3441 = vpack.c.b16 %v1879, %v1877
    %v3442 = vpack.c.b16 %v1882, %v1880
    %v3443 = vpack.c.b16 %v1883, %v1881
    %v3444 = vpack.c.b16 %v1886, %v1884
    %v3445 = vpack.c.b16 %v1887, %v1885
    %v3446 = vpack.c.b16 %v1890, %v1888
    %v3447 = vpack.c.b16 %v1891, %v1889
    %v3448 = vpack.c.b16 %v1894, %v1892
    %v3449 = vpack.c.b16 %v1895, %v1893
    %v3450 = vpack.c.b16 %v1898, %v1896
    %v3451 = vpack.c.b16 %v1899, %v1897
    %v3452 = vpack.c.b16 %v1902, %v1900
    %v3453 = vpack.c.b16 %v1903, %v1901
    %v3454 = vpack.c.b16 %v1906, %v1904
    %v3455 = vpack.c.b16 %v1907, %v1905
    %v3456 = vpack.c.b16 %v1910, %v1908
    %v3457 = vpack.c.b16 %v1911, %v1909
    %v3458 = vpack.c.b16 %v1914, %v1912
    %v3459 = vpack.c.b16 %v1915, %v1913
    %v3460 = vpack.c.b16 %v1918, %v1916
    %v3461 = vpack.c.b16 %v1919, %v1917
    %v3462 = vpack.c.b16 %v1922, %v1920
    %v3463 = vpack.c.b16 %v1923, %v1921
    %v3464 = vpack.c.b16 %v1926, %v1924
    %v3465 = vpack.c.b16 %v1927, %v1925
    %v3466 = vpack.c.b16 %v1930, %v1928
    %v3467 = vpack.c.b16 %v1931, %v1929
    %v3468 = vpack.c.b16 %v1934, %v1932
    %v3469 = vpack.c.b16 %v1935, %v1933
    %v3470 = vpack.c.b16 %v1938, %v1936
    %v3471 = vpack.c.b16 %v1939, %v1937
    %v3472 = vpack.c.b16 %v1942, %v1940
    %v3473 = vpack.c.b16 %v1943, %v1941
    %v3474 = vpack.c.b16 %v1946, %v1944
    %v3475 = vpack.c.b16 %v1947, %v1945
    %v3476 = vpack.c.b16 %v1950, %v1948
    %v3477 = vpack.c.b16 %v1951, %v1949
    %v3478 = vpack.c.b16 %v1954, %v1952
    %v3479 = vpack.c.b16 %v1955, %v1953
    %v3480 = vpack.c.b16 %v1958, %v1956
    %v3481 = vpack.c.b16 %v1959, %v1957
    %v3482 = vpack.c.b16 %v1962, %v1960
    %v3483 = vpack.c.b16 %v1963, %v1961
    %v3484 = vpack.c.b16 %v1966, %v1964
    %v3485 = vpack.c.b16 %v1967, %v1965
    %v3486 = vpack.c.b16 %v1970, %v1968
    %v3487 = vpack.c.b16 %v1971, %v1969
    %v3488 = vpack.c.b16 %v1974, %v1972
    %v3489 = vpack.c.b16 %v1975, %v1973
    %v3490 = vpack.c.b16 %v1978, %v1976
    %v3491 = vpack.c.b16 %v1979, %v1977
    %v3492 = vpack.c.b16 %v1982, %v1980
    %v3493 = vpack.c.b16 %v1983, %v1981
    %v3494 = vpack.c.b16 %v1986, %v1984
    %v3495 = vpack.c.b16 %v1987, %v1985
    %v3496 = vpack.c.b16 %v1990, %v1988
    %v3497 = vpack.c.b16 %v1991, %v1989
    %v3498 = vpack.c.b16 %v1994, %v1992
    %v3499 = vpack.c.b16 %v1995, %v1993
    %v3500 = vpack.c.b16 %v1998, %v1996
    %v3501 = vpack.c.b16 %v1999, %v1997
    %v3502 = vpack.c.b16 %v2002, %v2000
    %v3503 = vpack.c.b16 %v2003, %v2001
    %v3504 = vpack.c.b16 %v2006, %v2004
    %v3505 = vpack.c.b16 %v2007, %v2005
    %v3506 = vpack.c.b16 %v2010, %v2008
    %v3507 = vpack.c.b16 %v2011, %v2009
    %v3508 = vpack.c.b16 %v2014, %v2012
    %v3509 = vpack.c.b16 %v2015, %v2013
    %v3510 = vpack.c.b16 %v2018, %v2016
    %v3511 = vpack.c.b16 %v2019, %v2017
    %v3512 = vpack.c.b16 %v2022, %v2020
    %v3513 = vpack.c.b16 %v2023, %v2021
    %v3514 = vpack.c.b16 %v2026, %v2024
    %v3515 = vpack.c.b16 %v2027, %v2025
    %v3516 = vpack.c.b16 %v2030, %v2028
    %v3517 = vpack.c.b16 %v2031, %v2029
    %v3518 = vpack.c.b16 %v2034, %v2032
    %v3519 = vpack.c.b16 %v2035, %v2033
    %v3520 = vpack.c.b16 %v2038, %v2036
    %v3521 = vpack.c.b16 %v2039, %v2037
    %v3522 = vpack.c.b16 %v2042, %v2040
    %v3523 = vpack.c.b16 %v2043, %v2041
    %v3524 = vpack.c.b16 %v2046, %v2044
    %v3525 = vpack.c.b16 %v2047, %v2045
    %v3526 = vpack.c.b16 %v2050, %v2048
    %v3527 = vpack.c.b16 %v2051, %v2049
    %v3528 = vpack.c.b16 %v2054, %v2052
    %v3529 = vpack.c.b16 %v2055, %v2053
    %v3530 = vpack.c.b16 %v2058, %v2056
    %v3531 = vpack.c.b16 %v2059, %v2057
    %v3532 = vpack.c.b16 %v2062, %v2060
    %v3533 = vpack.c.b16 %v2063, %v2061
    %v3534 = vpack.c.b16 %v2066, %v2064
    %v3535 = vpack.c.b16 %v2067, %v2065
    %v3536 = vpack.c.b16 %v2070, %v2068
    %v3537 = vpack.c.b16 %v2071, %v2069
    %v3538 = vpack.c.b16 %v2074, %v2072
    %v3539 = vpack.c.b16 %v2075, %v2073
    %v3540 = vpack.c.b16 %v2078, %v2076
    %v3541 = vpack.c.b16 %v2079, %v2077
    %v3542 = vpack.c.b16 %v2082, %v2080
    %v3543 = vpack.c.b16 %v2083, %v2081
    %v3544 = vpack.c.b16 %v2086, %v2084
    %v3545 = vpack.c.b16 %v2087, %v2085
    %v3546 = vpack.c.b16 %v2090, %v2088
    %v3547 = vpack.c.b16 %v2091, %v2089
    %v3548 = vpack.c.b16 %v2094, %v2092
    %v3549 = vpack.c.b16 %v2095, %v2093
    %v3550 = vpack.c.b16 %v2098, %v2096
    %v3551 = vpack.c.b16 %v2099, %v2097
    %v3552 = vpack.c.b16 %v2102, %v2100
    %v3553 = vpack.c.b16 %v2103, %v2101
    %v3554 = vpack.c.b16 %v2106, %v2104
    %v3555 = vpack.c.b16 %v2107, %v2105
    %v3556 = vpack.c.b16 %v2110, %v2108
    %v3557 = vpack.c.b16 %v2111, %v2109
    %v3558 = vpack.c.b16 %v2114, %v2112
    %v3559 = vpack.c.b16 %v2115, %v2113
    %v3560 = vpack.c.b16 %v2118, %v2116
    %v3561 = vpack.c.b16 %v2119, %v2117
    %v3562 = vpack.c.b16 %v2122, %v2120
    %v3563 = vpack.c.b16 %v2123, %v2121
    %v3564 = vpack.c.b16 %v2126, %v2124
    %v3565 = vpack.c.b16 %v2127, %v2125
    %v3566 = vpack.c.b16 %v2130, %v2128
    %v3567 = vpack.c.b16 %v2131, %v2129
    %v3568 = vpack.c.b16 %v2134, %v2132
    %v3569 = vpack.c.b16 %v2135, %v2133
    %v3570 = vpack.c.b16 %v2138, %v2136
    %v3571 = vpack.c.b16 %v2139, %v2137
    %v3572 = vpack.c.b16 %v2142, %v2140
    %v3573 = vpack.c.b16 %v2143, %v2141
    %v3574 = vpack.c.b16 %v2146, %v2144
    %v3575 = vpack.c.b16 %v2147, %v2145
    %v3576 = vpack.c.b16 %v2150, %v2148
    %v3577 = vpack.c.b16 %v2151, %v2149
    %v3578 = vpack.c.b16 %v2154, %v2152
    %v3579 = vpack.c.b16 %v2155, %v2153
    %v3580 = vpack.c.b16 %v2158, %v2156
    %v3581 = vpack.c.b16 %v2159, %v2157
    %v3582 = vpack.c.b16 %v2162, %v2160
    %v3583 = vpack.c.b16 %v2163, %v2161
    %v3584 = vpack.c.b16 %v2166, %v2164
    %v3585 = vpack.c.b16 %v2167, %v2165
    %v3586 = vpack.c.b16 %v2170, %v2168
    %v3587 = vpack.c.b16 %v2171, %v2169
    %v3588 = vpack.c.b16 %v2174, %v2172
    %v3589 = vpack.c.b16 %v2175, %v2173
    %v3590 = vpack.c.b16 %v2178, %v2176
    %v3591 = vpack.c.b16 %v2179, %v2177
    %v3592 = vpack.c.b16 %v2182, %v2180
    %v3593 = vpack.c.b16 %v2183, %v2181
    %v3594 = vpack.c.b16 %v2186, %v2184
    %v3595 = vpack.c.b16 %v2187, %v2185
    %v3596 = vpack.c.b16 %v2190, %v2188
    %v3597 = vpack.c.b16 %v2191, %v2189
    %v3598 = vpack.c.b16 %v2194, %v2192
    %v3599 = vpack.c.b16 %v2195, %v2193
    %v3600 = vpack.c.b16 %v2198, %v2196
    %v3601 = vpack.c.b16 %v2199, %v2197
    %v3602 = vpack.c.b16 %v2202, %v2200
    %v3603 = vpack.c.b16 %v2203, %v2201
    %v3604 = vpack.c.b16 %v2206, %v2204
    %v3605 = vpack.c.b16 %v2207, %v2205
    %v3606 = vpack.c.b16 %v2210, %v2208
    %v3607 = vpack.c.b16 %v2211, %v2209
    %v3608 = vpack.c.b16 %v2214, %v2212
    %v3609 = vpack.c.b16 %v2215, %v2213
    %v3610 = vpack.c.b16 %v2218, %v2216
    %v3611 = vpack.c.b16 %v2219, %v2217
    %v3612 = vpack.c.b16 %v2222, %v2220
    %v3613 = vpack.c.b16 %v2223, %v2221
    %v3614 = vpack.c.b16 %v2226, %v2224
    %v3615 = vpack.c.b16 %v2227, %v2225
    %v3616 = vpack.c.b16 %v2230, %v2228
    %v3617 = vpack.c.b16 %v2231, %v2229
    %v3618 = vpack.c.b16 %v2234, %v2232
    %v3619 = vpack.c.b16 %v2235, %v2233
    %v3620 = vpack.c.b16 %v2238, %v2236
    %v3621 = vpack.c.b16 %v2239, %v2237
    %v3622 = vpack.c.b16 %v2242, %v2240
    %v3623 = vpack.c.b16 %v2243, %v2241
    %v3624 = vpack.c.b16 %v2246, %v2244
    %v3625 = vpack.c.b16 %v2247, %v2245
    %v3626 = vpack.c.b16 %v2250, %v2248
    %v3627 = vpack.c.b16 %v2251, %v2249
    %v3628 = vpack.c.b16 %v2254, %v2252
    %v3629 = vpack.c.b16 %v2255, %v2253
    %v3630 = vpack.c.b16 %v2258, %v2256
    %v3631 = vpack.c.b16 %v2259, %v2257
    %v3632 = vpack.c.b16 %v2262, %v2260
    %v3633 = vpack.c.b16 %v2263, %v2261
    %v3634 = vpack.c.b16 %v2266, %v2264
    %v3635 = vpack.c.b16 %v2267, %v2265
    %v3636 = vpack.c.b16 %v2270, %v2268
    %v3637 = vpack.c.b16 %v2271, %v2269
    %v3638 = vpack.c.b16 %v2274, %v2272
    %v3639 = vpack.c.b16 %v2275, %v2273
    %v3640 = vpack.c.b16 %v2278, %v2276
    %v3641 = vpack.c.b16 %v2279, %v2277
    %v3642 = vpack.c.b16 %v2282, %v2280
    %v3643 = vpack.c.b16 %v2283, %v2281
    %v3644 = vpack.c.b16 %v2286, %v2284
    %v3645 = vpack.c.b16 %v2287, %v2285
    %v3646 = vpack.c.b16 %v2290, %v2288
    %v3647 = vpack.c.b16 %v2291, %v2289
    %v3648 = vpack.c.b16 %v2294, %v2292
    %v3649 = vpack.c.b16 %v2295, %v2293
    %v3650 = vpack.c.b16 %v2298, %v2296
    %v3651 = vpack.c.b16 %v2299, %v2297
    %v3652 = vpack.c.b16 %v2302, %v2300
    %v3653 = vpack.c.b16 %v2303, %v2301
    %v3654 = vpack.c.b16 %v2306, %v2304
    %v3655 = vpack.c.b16 %v2307, %v2305
    %v3656 = vpack.c.b16 %v2310, %v2308
    %v3657 = vpack.c.b16 %v2311, %v2309
    %v3658 = vpack.c.b16 %v2314, %v2312
    %v3659 = vpack.c.b16 %v2315, %v2313
    %v3660 = vpack.c.b16 %v2318, %v2316
    %v3661 = vpack.c.b16 %v2319, %v2317
    %v3662 = vpack.c.b16 %v2322, %v2320
    %v3663 = vpack.c.b16 %v2323, %v2321
    %v3664 = vpack.c.b16 %v2326, %v2324
    %v3665 = vpack.c.b16 %v2327, %v2325
    %v3666 = vpack.c.b16 %v2330, %v2328
    %v3667 = vpack.c.b16 %v2331, %v2329
    %v3668 = vpack.c.b16 %v2334, %v2332
    %v3669 = vpack.c.b16 %v2335, %v2333
    %v3670 = vpack.c.b16 %v2338, %v2336
    %v3671 = vpack.c.b16 %v2339, %v2337
    %v3672 = vpack.c.b16 %v2342, %v2340
    %v3673 = vpack.c.b16 %v2343, %v2341
    %v3674 = vpack.c.b16 %v2346, %v2344
    %v3675 = vpack.c.b16 %v2347, %v2345
    %v3676 = vpack.c.b16 %v2350, %v2348
    %v3677 = vpack.c.b16 %v2351, %v2349
    %v3678 = vpack.c.b16 %v2354, %v2352
    %v3679 = vpack.c.b16 %v2355, %v2353
    %v3680 = vpack.c.b16 %v2358, %v2356
    %v3681 = vpack.c.b16 %v2359, %v2357
    %v3682 = vpack.c.b16 %v2362, %v2360
    %v3683 = vpack.c.b16 %v2363, %v2361
    %v3684 = vpack.c.b16 %v2366, %v2364
    %v3685 = vpack.c.b16 %v2367, %v2365
    %v3686 = vpack.c.b16 %v2370, %v2368
    %v3687 = vpack.c.b16 %v2371, %v2369
    %v3688 = vpack.c.b16 %v2374, %v2372
    %v3689 = vpack.c.b16 %v2375, %v2373
    %v3690 = vpack.c.b16 %v2378, %v2376
    %v3691 = vpack.c.b16 %v2379, %v2377
    %v3692 = vpack.c.b16 %v2382, %v2380
    %v3693 = vpack.c.b16 %v2383, %v2381
    %v3694 = vpack.c.b16 %v2386, %v2384
    %v3695 = vpack.c.b16 %v2387, %v2385
    %v3696 = vpack.c.b16 %v2390, %v2388
    %v3697 = vpack.c.b16 %v2391, %v2389
    %v3698 = vpack.c.b16 %v2394, %v2392
    %v3699 = vpack.c.b16 %v2395, %v2393
    %v3700 = vpack.c.b16 %v2398, %v2396
    %v3701 = vpack.c.b16 %v2399, %v2397
    %v3702 = vpack.c.b16 %v2402, %v2400
    %v3703 = vpack.c.b16 %v2403, %v2401
    %v3704 = vpack.c.b16 %v2406, %v2404
    %v3705 = vpack.c.b16 %v2407, %v2405
    %v3706 = vpack.c.b16 %v2410, %v2408
    %v3707 = vpack.c.b16 %v2411, %v2409
    %v3708 = vpack.c.b16 %v2414, %v2412
    %v3709 = vpack.c.b16 %v2415, %v2413
    %v3710 = vpack.c.b16 %v2418, %v2416
    %v3711 = vpack.c.b16 %v2419, %v2417
    %v3712 = vpack.c.b16 %v2422, %v2420
    %v3713 = vpack.c.b16 %v2423, %v2421
    %v3714 = vpack.c.b16 %v2426, %v2424
    %v3715 = vpack.c.b16 %v2427, %v2425
    %v3716 = vpack.c.b16 %v2430, %v2428
    %v3717 = vpack.c.b16 %v2431, %v2429
    %v3718 = vpack.c.b16 %v2434, %v2432
    %v3719 = vpack.c.b16 %v2435, %v2433
    %v3720 = vpack.c.b16 %v2438, %v2436
    %v3721 = vpack.c.b16 %v2439, %v2437
    %v3722 = vpack.c.b16 %v2442, %v2440
    %v3723 = vpack.c.b16 %v2443, %v2441
    %v3724 = vpack.c.b16 %v2446, %v2444
    %v3725 = vpack.c.b16 %v2447, %v2445
    %v3726 = vpack.c.b16 %v2450, %v2448
    %v3727 = vpack.c.b16 %v2451, %v2449
    %v3728 = vpack.c.b16 %v2454, %v2452
    %v3729 = vpack.c.b16 %v2455, %v2453
    %v3730 = vpack.c.b16 %v2458, %v2456
    %v3731 = vpack.c.b16 %v2459, %v2457
    %v3732 = vpack.c.b16 %v2462, %v2460
    %v3733 = vpack.c.b16 %v2463, %v2461
    %v3734 = vpack.c.b16 %v2466, %v2464
    %v3735 = vpack.c.b16 %v2467, %v2465
    %v3736 = vpack.c.b16 %v2470, %v2468
    %v3737 = vpack.c.b16 %v2471, %v2469
    %v3738 = vpack.c.b16 %v2474, %v2472
    %v3739 = vpack.c.b16 %v2475, %v2473
    %v3740 = vpack.c.b16 %v2478, %v2476
    %v3741 = vpack.c.b16 %v2479, %v2477
    %v3742 = vpack.c.b16 %v2482, %v2480
    %v3743 = vpack.c.b16 %v2483, %v2481
    %v3744 = vpack.c.b16 %v2486, %v2484
    %v3745 = vpack.c.b16 %v2487, %v2485
    %v3746 = vpack.c.b16 %v2490, %v2488
    %v3747 = vpack.c.b16 %v2491, %v2489
    %v3748 = vpack.c.b16 %v2494, %v2492
    %v3749 = vpack.c.b16 %v2495, %v2493
    %v3750 = vpack.c.b16 %v2498, %v2496
    %v3751 = vpack.c.b16 %v2499, %v2497
    %v3752 = vpack.c.b16 %v2502, %v2500
    %v3753 = vpack.c.b16 %v2503, %v2501
    %v3754 = vpack.c.b16 %v2506, %v2504
    %v3755 = vpack.c.b16 %v2507, %v2505
    %v3756 = vpack.c.b16 %v2510, %v2508
    %v3757 = vpack.c.b16 %v2511, %v2509
    %v3758 = vpack.c.b16 %v2514, %v2512
    %v3759 = vpack.c.b16 %v2515, %v2513
    %v3760 = vpack.c.b16 %v2518, %v2516
    %v3761 = vpack.c.b16 %v2519, %v2517
    %v3762 = vpack.c.b16 %v2522, %v2520
    %v3763 = vpack.c.b16 %v2523, %v2521
    %v3764 = vpack.c.b16 %v2526, %v2524
    %v3765 = vpack.c.b16 %v2527, %v2525
    %v3766 = vpack.c.b16 %v2530, %v2528
    %v3767 = vpack.c.b16 %v2531, %v2529
    %v3768 = vpack.c.b16 %v2534, %v2532
    %v3769 = vpack.c.b16 %v2535, %v2533
    %v3770 = vpack.c.b16 %v2538, %v2536
    %v3771 = vpack.c.b16 %v2539, %v2537
    %v3772 = vpack.c.b16 %v2542, %v2540
    %v3773 = vpack.c.b16 %v2543, %v2541
    %v3774 = vpack.c.b16 %v2546, %v2544
    %v3775 = vpack.c.b16 %v2547, %v2545
    %v3776 = vpack.c.b16 %v2550, %v2548
    %v3777 = vpack.c.b16 %v2551, %v2549
    %v3778 = vpack.c.b16 %v2554, %v2552
    %v3779 = vpack.c.b16 %v2555, %v2553
    %v3780 = vpack.c.b16 %v2558, %v2556
    %v3781 = vpack.c.b16 %v2559, %v2557
    %v3782 = vpack.c.b16 %v2562, %v2560
    %v3783 = vpack.c.b16 %v2563, %v2561
    %v3784 = vpack.c.b16 %v2566, %v2564
    %v3785 = vpack.c.b16 %v2567, %v2565
    %v3786 = vpack.c.b16 %v2570, %v2568
    %v3787 = vpack.c.b16 %v2571, %v2569
    %v3788 = vpack.c.b16 %v2574, %v2572
    %v3789 = vpack.c.b16 %v2575, %v2573
    %v3790 = vpack.c.b16 %v2578, %v2576
    %v3791 = vpack.c.b16 %v2579, %v2577
    %v3792 = vpack.c.b16 %v2582, %v2580
    %v3793 = vpack.c.b16 %v2583, %v2581
    %v3794 = vpack.c.b16 %v2586, %v2584
    %v3795 = vpack.c.b16 %v2587, %v2585
    %v3796 = vpack.c.b16 %v2590, %v2588
    %v3797 = vpack.c.b16 %v2591, %v2589
    %v3798 = vpack.c.b16 %v2594, %v2592
    %v3799 = vpack.c.b16 %v2595, %v2593
    %v3800 = vpack.c.b16 %v2598, %v2596
    %v3801 = vpack.c.b16 %v2599, %v2597
    %v3802 = vpack.c.b16 %v2602, %v2600
    %v3803 = vpack.c.b16 %v2603, %v2601
    %v3804 = vpack.c.b16 %v2606, %v2604
    %v3805 = vpack.c.b16 %v2607, %v2605
    %v3806 = vpack.c.b16 %v2610, %v2608
    %v3807 = vpack.c.b16 %v2611, %v2609
    %v3808 = vpack.c.b16 %v2614, %v2612
    %v3809 = vpack.c.b16 %v2615, %v2613
    %v3810 = vpack.c.b16 %v2618, %v2616
    %v3811 = vpack.c.b16 %v2619, %v2617
    %v3812 = vpack.c.b16 %v2622, %v2620
    %v3813 = vpack.c.b16 %v2623, %v2621
    %v3814 = vpack.c.b16 %v2626, %v2624
    %v3815 = vpack.c.b16 %v2627, %v2625
    %v3816 = vpack.c.b16 %v2630, %v2628
    %v3817 = vpack.c.b16 %v2631, %v2629
    %v3818 = vpack.c.b16 %v2634, %v2632
    %v3819 = vpack.c.b16 %v2635, %v2633
    %v3820 = vpack.c.b16 %v2638, %v2636
    %v3821 = vpack.c.b16 %v2639, %v2637
    %v3822 = vpack.c.b16 %v2642, %v2640
    %v3823 = vpack.c.b16 %v2643, %v2641
    %v3824 = vpack.c.b16 %v2646, %v2644
    %v3825 = vpack.c.b16 %v2647, %v2645
    %v3826 = vpack.c.b16 %v2650, %v2648
    %v3827 = vpack.c.b16 %v2651, %v2649
    %v3828 = vpack.c.b16 %v2654, %v2652
    %v3829 = vpack.c.b16 %v2655, %v2653
    %v3830 = vpack.c.b16 %v2658, %v2656
    %v3831 = vpack.c.b16 %v2659, %v2657
    %v3832 = vpack.c.b16 %v2662, %v2660
    %v3833 = vpack.c.b16 %v2663, %v2661
    %v3834 = vpack.c.b16 %v2666, %v2664
    %v3835 = vpack.c.b16 %v2667, %v2665
    %v3836 = vpack.c.b16 %v2670, %v2668
    %v3837 = vpack.c.b16 %v2671, %v2669
    %v3838 = vpack.c.b16 %v2674, %v2672
    %v3839 = vpack.c.b16 %v2675, %v2673
    %v3840 = vpack.c.b16 %v2678, %v2676
    %v3841 = vpack.c.b16 %v2679, %v2677
    %v3842 = vpack.c.b16 %v2682, %v2680
    %v3843 = vpack.c.b16 %v2683, %v2681
    %v3844 = vpack.c.b16 %v2686, %v2684
    %v3845 = vpack.c.b16 %v2687, %v2685
    %v3846 = vpack.c.b16 %v2690, %v2688
    %v3847 = vpack.c.b16 %v2691, %v2689
    %v3848 = vpack.c.b16 %v2694, %v2692
    %v3849 = vpack.c.b16 %v2695, %v2693
    %v3850 = vpack.c.b16 %v2698, %v2696
    %v3851 = vpack.c.b16 %v2699, %v2697
    %v3852 = vpack.c.b16 %v2702, %v2700
    %v3853 = vpack.c.b16 %v2703, %v2701
    %v3854 = vpack.c.b16 %v2706, %v2704
    %v3855 = vpack.c.b16 %v2707, %v2705
    %v3856 = vpack.c.b16 %v2710, %v2708
    %v3857 = vpack.c.b16 %v2711, %v2709
    %v3858 = vpack.c.b16 %v2714, %v2712
    %v3859 = vpack.c.b16 %v2715, %v2713
    %v3860 = vpack.c.b16 %v2718, %v2716
    %v3861 = vpack.c.b16 %v2719, %v2717
    %v3862 = vpack.c.b16 %v2722, %v2720
    %v3863 = vpack.c.b16 %v2723, %v2721
    %v3864 = vpack.c.b16 %v2726, %v2724
    %v3865 = vpack.c.b16 %v2727, %v2725
    %v3866 = vpack.c.b16 %v2730, %v2728
    %v3867 = vpack.c.b16 %v2731, %v2729
    %v3868 = vpack.c.b16 %v2734, %v2732
    %v3869 = vpack.c.b16 %v2735, %v2733
    %v3870 = vpack.c.b16 %v2738, %v2736
    %v3871 = vpack.c.b16 %v2739, %v2737
    %v3872 = vpack.c.b16 %v2742, %v2740
    %v3873 = vpack.c.b16 %v2743, %v2741
    %v3874 = vpack.c.b16 %v2746, %v2744
    %v3875 = vpack.c.b16 %v2747, %v2745
    %v3876 = vpack.c.b16 %v2750, %v2748
    %v3877 = vpack.c.b16 %v2751, %v2749
    %v3878 = vpack.c.b16 %v2754, %v2752
    %v3879 = vpack.c.b16 %v2755, %v2753
    %v3880 = vpack.c.b16 %v2758, %v2756
    %v3881 = vpack.c.b16 %v2759, %v2757
    %v3882 = vpack.c.b16 %v2762, %v2760
    %v3883 = vpack.c.b16 %v2763, %v2761
    %v3884 = vpack.c.b16 %v2766, %v2764
    %v3885 = vpack.c.b16 %v2767, %v2765
    %v3886 = vpack.c.b16 %v2770, %v2768
    %v3887 = vpack.c.b16 %v2771, %v2769
    %v3888 = vpack.c.b16 %v2774, %v2772
    %v3889 = vpack.c.b16 %v2775, %v2773
    %v3890 = vpack.c.b16 %v2778, %v2776
    %v3891 = vpack.c.b16 %v2779, %v2777
    %v3892 = vpack.c.b16 %v2782, %v2780
    %v3893 = vpack.c.b16 %v2783, %v2781
    %v3894 = vpack.c.b16 %v2786, %v2784
    %v3895 = vpack.c.b16 %v2787, %v2785
    %v3896 = vpack.c.b16 %v2790, %v2788
    %v3897 = vpack.c.b16 %v2791, %v2789
    %v3898 = vpack.c.b16 %v2794, %v2792
    %v3899 = vpack.c.b16 %v2795, %v2793
    %v3900 = vpack.c.b16 %v2798, %v2796
    %v3901 = vpack.c.b16 %v2799, %v2797
    %v3902 = vpack.c.b16 %v2802, %v2800
    %v3903 = vpack.c.b16 %v2803, %v2801
    %v3904 = vpack.c.b16 %v2806, %v2804
    %v3905 = vpack.c.b16 %v2807, %v2805
    %v3906 = vpack.c.b16 %v2810, %v2808
    %v3907 = vpack.c.b16 %v2811, %v2809
    %v3908 = vpack.c.b16 %v2814, %v2812
    %v3909 = vpack.c.b16 %v2815, %v2813
    %v3910 = vpack.c.b16 %v2818, %v2816
    %v3911 = vpack.c.b16 %v2819, %v2817
    %v3912 = vpack.c.b16 %v2822, %v2820
    %v3913 = vpack.c.b16 %v2823, %v2821
    %v3914 = vpack.c.b16 %v2826, %v2824
    %v3915 = vpack.c.b16 %v2827, %v2825
    %v3916 = vpack.c.b16 %v2830, %v2828
    %v3917 = vpack.c.b16 %v2831, %v2829
    %v3918 = vpack.c.b16 %v2834, %v2832
    %v3919 = vpack.c.b16 %v2835, %v2833
    %v3920 = vpack.c.b16 %v2838, %v2836
    %v3921 = vpack.c.b16 %v2839, %v2837
    %v3922 = vpack.c.b16 %v2842, %v2840
    %v3923 = vpack.c.b16 %v2843, %v2841
    %v3924 = vpack.c.b16 %v2846, %v2844
    %v3925 = vpack.c.b16 %v2847, %v2845
    %v3926 = vpack.c.b16 %v2850, %v2848
    %v3927 = vpack.c.b16 %v2851, %v2849
    %v3928 = vpack.c.b16 %v2854, %v2852
    %v3929 = vpack.c.b16 %v2855, %v2853
    %v3930 = vpack.c.b16 %v2858, %v2856
    %v3931 = vpack.c.b16 %v2859, %v2857
    %v3932 = vpack.c.b16 %v2862, %v2860
    %v3933 = vpack.c.b16 %v2863, %v2861
    %v3934 = vpack.c.b16 %v2866, %v2864
    %v3935 = vpack.c.b16 %v2867, %v2865
    %v3936 = vpack.c.b16 %v2870, %v2868
    %v3937 = vpack.c.b16 %v2871, %v2869
    %v3938 = vpack.c.b16 %v2874, %v2872
    %v3939 = vpack.c.b16 %v2875, %v2873
    %v3940 = vpack.c.b16 %v2878, %v2876
    %v3941 = vpack.c.b16 %v2879, %v2877
    %v3942 = vpack.c.b16 %v2882, %v2880
    %v3943 = vpack.c.b16 %v2883, %v2881
    %v3944 = vpack.c.b16 %v2886, %v2884
    %v3945 = vpack.c.b16 %v2887, %v2885
    %v3946 = vpack.c.b16 %v2890, %v2888
    %v3947 = vpack.c.b16 %v2891, %v2889
    %v3948 = vpack.c.b16 %v2894, %v2892
    %v3949 = vpack.c.b16 %v2895, %v2893
    %v3950 = vpack.c.b16 %v2898, %v2896
    %v3951 = vpack.c.b16 %v2899, %v2897
    %v3952 = vpack.c.b16 %v2902, %v2900
    %v3953 = vpack.c.b16 %v2903, %v2901
    %v3954 = vpack.c.b16 %v2906, %v2904
    %v3955 = vpack.c.b16 %v2907, %v2905
    %v3956 = vpack.c.b16 %v2910, %v2908
    %v3957 = vpack.c.b16 %v2911, %v2909
    %v3958 = vpack.c.b16 %v2914, %v2912
    %v3959 = vpack.c.b16 %v2915, %v2913
    %v3960 = vpack.c.b16 %v2918, %v2916
    %v3961 = vpack.c.b16 %v2919, %v2917
    %v3962 = vpack.c.b16 %v2922, %v2920
    %v3963 = vpack.c.b16 %v2923, %v2921
    %v3964 = vpack.c.b16 %v2926, %v2924
    %v3965 = vpack.c.b16 %v2927, %v2925
    %v3966 = vpack.c.b16 %v2930, %v2928
    %v3967 = vpack.c.b16 %v2931, %v2929
    %v3968 = vpack.c.b16 %v2934, %v2932
    %v3969 = vpack.c.b16 %v2935, %v2933
    %v3970 = vpack.c.b16 %v2938, %v2936
    %v3971 = vpack.c.b16 %v2939, %v2937
    %v3972 = vpack.c.b16 %v2942, %v2940
    %v3973 = vpack.c.b16 %v2943, %v2941
    %v3974 = vpack.c.b16 %v2946, %v2944
    %v3975 = vpack.c.b16 %v2947, %v2945
    %v3976 = vpack.c.b16 %v2950, %v2948
    %v3977 = vpack.c.b16 %v2951, %v2949
    %v3978 = vpack.c.b16 %v2954, %v2952
    %v3979 = vpack.c.b16 %v2955, %v2953
    %v3980 = vpack.c.b16 %v2958, %v2956
    %v3981 = vpack.c.b16 %v2959, %v2957
    %v3982 = vpack.c.b16 %v2962, %v2960
    %v3983 = vpack.c.b16 %v2963, %v2961
    %v3984 = vpack.c.b16 %v2966, %v2964
    %v3985 = vpack.c.b16 %v2967, %v2965
    %v3986 = vpack.c.b16 %v2970, %v2968
    %v3987 = vpack.c.b16 %v2971, %v2969
    %v3988 = vpack.c.b16 %v2974, %v2972
    %v3989 = vpack.c.b16 %v2975, %v2973
    %v3990 = vpack.c.b16 %v2978, %v2976
    %v3991 = vpack.c.b16 %v2979, %v2977
    %v3992 = vpack.c.b16 %v2982, %v2980
    %v3993 = vpack.c.b16 %v2983, %v2981
    %v3994 = vpack.c.b16 %v2986, %v2984
    %v3995 = vpack.c.b16 %v2987, %v2985
    %v3996 = vpack.c.b16 %v2990, %v2988
    %v3997 = vpack.c.b16 %v2991, %v2989
    %v3998 = vpack.c.b16 %v2994, %v2992
    %v3999 = vpack.c.b16 %v2995, %v2993
    %v4000 = vpack.c.b16 %v2998, %v2996
    %v4001 = vpack.c.b16 %v2999, %v2997
    %v4002 = vpack.c.b16 %v3002, %v3000
    %v4003 = vpack.c.b16 %v3003, %v3001
    %v4004 = vpack.c.b16 %v3006, %v3004
    %v4005 = vpack.c.b16 %v3007, %v3005
    %v4006 = vpack.c.b16 %v3010, %v3008
    %v4007 = vpack.c.b16 %v3011, %v3009
    %v4008 = vpack.c.b16 %v3014, %v3012
    %v4009 = vpack.c.b16 %v3015, %v3013
    %v4010 = vpack.c.b16 %v3018, %v3016
    %v4011 = vpack.c.b16 %v3019, %v3017
    %v4012 = vpack.c.b16 %v3022, %v3020
    %v4013 = vpack.c.b16 %v3023, %v3021
    %v4014 = vpack.c.b16 %v3026, %v3024
    %v4015 = vpack.c.b16 %v3027, %v3025
    %v4016 = vpack.c.b16 %v3030, %v3028
    %v4017 = vpack.c.b16 %v3031, %v3029
    %v4018 = vpack.c.b16 %v3034, %v3032
    %v4019 = vpack.c.b16 %v3035, %v3033
    %v4020 = vpack.c.b16 %v3038, %v3036
    %v4021 = vpack.c.b16 %v3039, %v3037
    %v4022 = vpack.c.b16 %v3042, %v3040
    %v4023 = vpack.c.b16 %v3043, %v3041
    %v4024 = vpack.c.b16 %v3046, %v3044
    %v4025 = vpack.c.b16 %v3047, %v3045
    %v4026 = vpack.c.b16 %v3050, %v3048
    %v4027 = vpack.c.b16 %v3051, %v3049
    %v4028 = vpack.c.b16 %v3054, %v3052
    %v4029 = vpack.c.b16 %v3055, %v3053
    %v4030 = vpack.c.b16 %v3058, %v3056
    %v4031 = vpack.c.b16 %v3059, %v3057
    %v4032 = vpack.c.b16 %v3062, %v3060
    %v4033 = vpack.c.b16 %v3063, %v3061
    %v4034 = vpack.c.b16 %v3066, %v3064
    %v4035 = vpack.c.b16 %v3067, %v3065
    %v4036 = vpack.c.b16 %v3070, %v3068
    %v4037 = vpack.c.b16 %v3071, %v3069
    %v4038 = vpack.c.b16 %v3074, %v3072
    %v4039 = vpack.c.b16 %v3075, %v3073
    %v4040 = vpack.c.b16 %v3078, %v3076
    %v4041 = vpack.c.b16 %v3079, %v3077
    %v4042 = vpack.c.b16 %v3082, %v3080
    %v4043 = vpack.c.b16 %v3083, %v3081
    %v4044 = vpack.c.b16 %v3086, %v3084
    %v4045 = vpack.c.b16 %v3087, %v3085
    %v4046 = vpack.c.b16 %v3090, %v3088
    %v4047 = vpack.c.b16 %v3091, %v3089
    %v4048 = vpack.c.b16 %v3094, %v3092
    %v4049 = vpack.c.b16 %v3095, %v3093
    %v4050 = vpack.c.b16 %v3098, %v3096
    %v4051 = vpack.c.b16 %v3099, %v3097
    %v4052 = vpack.c.b16 %v3102, %v3100
    %v4053 = vpack.c.b16 %v3103, %v3101
    %v4054 = vpack.c.b16 %v3106, %v3104
    %v4055 = vpack.c.b16 %v3107, %v3105
    %v4056 = vpack.c.b16 %v3110, %v3108
    %v4057 = vpack.c.b16 %v3111, %v3109
    %v4058 = vpack.c.b16 %v3114, %v3112
    %v4059 = vpack.c.b16 %v3115, %v3113
    %v4060 = vpack.c.b16 %v3118, %v3116
    %v4061 = vpack.c.b16 %v3119, %v3117
    %v4062 = vpack.c.b16 %v3122, %v3120
    %v4063 = vpack.c.b16 %v3123, %v3121
    %v4064 = vpack.c.b16 %v3126, %v3124
    %v4065 = vpack.c.b16 %v3127, %v3125
    %v4066 = vpack.c.b16 %v3130, %v3128
    %v4067 = vpack.c.b16 %v3131, %v3129
    %v4068 = vpack.c.b16 %v3134, %v3132
    %v4069 = vpack.c.b16 %v3135, %v3133
    %v4070 = vpack.c.b16 %v3138, %v3136
    %v4071 = vpack.c.b16 %v3139, %v3137
    %v4072 = vpack.c.b16 %v3142, %v3140
    %v4073 = vpack.c.b16 %v3143, %v3141
    %v4074 = vpack.c.b16 %v3146, %v3144
    %v4075 = vpack.c.b16 %v3147, %v3145
    %v4076 = vpack.c.b16 %v3150, %v3148
    %v4077 = vpack.c.b16 %v3151, %v3149
    %v4078 = vpack.c.b16 %v3154, %v3152
    %v4079 = vpack.c.b16 %v3155, %v3153
    %v4080 = vpack.c.b16 %v3158, %v3156
    %v4081 = vpack.c.b16 %v3159, %v3157
    %v4082 = vpack.c.b16 %v3162, %v3160
    %v4083 = vpack.c.b16 %v3163, %v3161
    %v4084 = vpack.c.b16 %v3166, %v3164
    %v4085 = vpack.c.b16 %v3167, %v3165
    %v4086 = vpack.c.b16 %v3170, %v3168
    %v4087 = vpack.c.b16 %v3171, %v3169
    %v4088 = vpack.c.b16 %v3174, %v3172
    %v4089 = vpack.c.b16 %v3175, %v3173
    %v4090 = vpack.c.b16 %v3178, %v3176
    %v4091 = vpack.c.b16 %v3179, %v3177
    %v4092 = vpack.c.b16 %v3182, %v3180
    %v4093 = vpack.c.b16 %v3183, %v3181
    %v4094 = vpack.c.b16 %v3186, %v3184
    %v4095 = vpack.c.b16 %v3187, %v3185
    %v4096 = vpack.c.b16 %v3190, %v3188
    %v4097 = vpack.c.b16 %v3191, %v3189
    %v4098 = vpack.c.b16 %v3194, %v3192
    %v4099 = vpack.c.b16 %v3195, %v3193
    %v4100 = vpack.c.b16 %v3198, %v3196
    %v4101 = vpack.c.b16 %v3199, %v3197
    %v4102 = vpack.c.b16 %v3202, %v3200
    %v4103 = vpack.c.b16 %v3203, %v3201
    %v4104 = vpack.c.b16 %v3206, %v3204
    %v4105 = vpack.c.b16 %v3207, %v3205
    %v4106 = vpack.c.b16 %v3210, %v3208
    %v4107 = vpack.c.b16 %v3211, %v3209
    %v4108 = vpack.c.b16 %v3214, %v3212
    %v4109 = vpack.c.b16 %v3215, %v3213
    %v4110 = vpack.c.b16 %v3218, %v3216
    %v4111 = vpack.c.b16 %v3219, %v3217
    %v4112 = vpack.c.b16 %v3222, %v3220
    %v4113 = vpack.c.b16 %v3223, %v3221
    %v4114 = vpack.c.b16 %v3226, %v3224
    %v4115 = vpack.c.b16 %v3227, %v3225
    %v4116 = vpack.c.b16 %v3230, %v3228
    %v4117 = vpack.c.b16 %v3231, %v3229
    %v4118 = vpack.c.b16 %v3234, %v3232
    %v4119 = vpack.c.b16 %v3235, %v3233
    %v4120 = vpack.c.b16 %v3238, %v3236
    %v4121 = vpack.c.b16 %v3239, %v3237
    %v4122 = vpack.c.b16 %v3242, %v3240
    %v4123 = vpack.c.b16 %v3243, %v3241
    %v4124 = vpack.c.b16 %v3246, %v3244
    %v4125 = vpack.c.b16 %v3247, %v3245
    %v4126 = vpack.c.b16 %v3250, %v3248
    %v4127 = vpack.c.b16 %v3251, %v3249
    %v4128 = vpack.c.b16 %v3254, %v3252
    %v4129 = vpack.c.b16 %v3255, %v3253
    %v4130 = vpack.c.b16 %v3258, %v3256
    %v4131 = vpack.c.b16 %v3259, %v3257
    %v4132 = vpack.c.b16 %v3262, %v3260
    %v4133 = vpack.c.b16 %v3263, %v3261
    %v4134 = vpack.c.b16 %v3266, %v3264
    %v4135 = vpack.c.b16 %v3267, %v3265
    %v4136 = vpack.c.b16 %v3270, %v3268
    %v4137 = vpack.c.b16 %v3271, %v3269
    %v4138 = vpack.c.b16 %v3274, %v3272
    %v4139 = vpack.c.b16 %v3275, %v3273
    %v4140 = vpack.c.b16 %v3278, %v3276
    %v4141 = vpack.c.b16 %v3279, %v3277
    %v4142 = vpack.c.b16 %v3282, %v3280
    %v4143 = vpack.c.b16 %v3283, %v3281
    %v4144 = vpack.c.b16 %v3286, %v3284
    %v4145 = vpack.c.b16 %v3287, %v3285
    %v4146 = vpack.c.b16 %v3290, %v3288
    %v4147 = vpack.c.b16 %v3291, %v3289
    %v4148 = vpack.c.b16 %v3294, %v3292
    %v4149 = vpack.c.b16 %v3295, %v3293
    %v4150 = vpack.c.b16 %v3298, %v3296
    %v4151 = vpack.c.b16 %v3299, %v3297
    %v4152 = vpack.c.b16 %v3302, %v3300
    %v4153 = vpack.c.b16 %v3303, %v3301
    %v4154 = vpack.c.b16 %v3306, %v3304
    %v4155 = vpack.c.b16 %v3307, %v3305
    %v4156 = vpack.c.b16 %v3310, %v3308
    %v4157 = vpack.c.b16 %v3311, %v3309
    %v4158 = vpack.c.b16 %v3314, %v3312
    %v4159 = vpack.c.b16 %v3315, %v3313
    %v4160 = vpack.c.b16 %v3318, %v3316
    %v4161 = vpack.c.b16 %v3319, %v3317
    %v4162 = vpack.c.b16 %v3322, %v3320
    %v4163 = vpack.c.b16 %v3323, %v3321
    %v4164 = vpack.c.b16 %v3326, %v3324
    %v4165 = vpack.c.b16 %v3327, %v3325
    %v4166 = vpack.c.b16 %v3330, %v3328
    %v4167 = vpack.c.b16 %v3331, %v3329
    %v4168 = vpack.c.b16 %v3334, %v3332
    %v4169 = vpack.c.b16 %v3335, %v3333
    %v4170 = vpack.c.b16 %v3338, %v3336
    %v4171 = vpack.c.b16 %v3339, %v3337
    %v4172 = vpack.c.b16 %v3342, %v3340
    %v4173 = vpack.c.b16 %v3343, %v3341
    %v4174 = vpack.c.b16 %v3346, %v3344
    %v4175 = vpack.c.b16 %v3347, %v3345
    %v4176 = vpack.c.b16 %v3350, %v3348
    %v4177 = vpack.c.b16 %v3351, %v3349
    %v4178 = vpack.c.b16 %v3354, %v3352
    %v4179 = vpack.c.b16 %v3355, %v3353
    %v4180 = vpack.c.b16 %v3358, %v3356
    %v4181 = vpack.c.b16 %v3359, %v3357
    %v4182 = vpack.c.b16 %v3362, %v3360
    %v4183 = vpack.c.b16 %v3363, %v3361
    %v4184 = vpack.c.b16 %v3366, %v3364
    %v4185 = vpack.c.b16 %v3367, %v3365
    %v4186 = vpack.c.b16 %v3370, %v3368
    %v4187 = vpack.c.b16 %v3371, %v3369
    %v4188 = vpack.c.b16 %v3374, %v3372
    %v4189 = vpack.c.b16 %v3375, %v3373
    %v4190 = vpack.c.b16 %v3378, %v3376
    %v4191 = vpack.c.b16 %v3379, %v3377
    %v4192 = vpack.c.b16 %v3382, %v3380
    %v4193 = vpack.c.b16 %v3383, %v3381
    %v4194 = vpack.c.b16 %v3386, %v3384
    %v4195 = vpack.c.b16 %v3387, %v3385
    %v4196 = vpack.c.b16 %v3390, %v3388
    %v4197 = vpack.c.b16 %v3391, %v3389
    %v4198 = vpack.c.b16 %v3394, %v3392
    %v4199 = vpack.c.b16 %v3395, %v3393
    %v4200 = vpack.c.b16 %v3398, %v3396
    %v4201 = vpack.c.b16 %v3399, %v3397
    %v4202 = vpack.c.b16 %v3402, %v3400
    %v4203 = vpack.c.b16 %v3403, %v3401
    %v4204 = vpack.c.b16 %v3406, %v3404
    %v4205 = vpack.c.b16 %v3407, %v3405
    %v4206 = vpack.c.b16 %v3410, %v3408
    %v4207 = vpack.c.b16 %v3411, %v3409
    %v4208 = vpack.c.b16 %v3414, %v3412
    %v4209 = vpack.c.b16 %v3415, %v3413
    %v4210 = vpack.c.b16 %v3418, %v3416
    %v4211 = vpack.c.b16 %v3419, %v3417
    %v4212 = vpack.c.b16 %v3422, %v3420
    %v4213 = vpack.c.b16 %v3423, %v3421
    %v4214 = vpack.c.b16 %v3426, %v3424
    %v4215 = vpack.c.b16 %v3427, %v3425
    %v4216 = vpack.c.b16 %v3430, %v3428
    %v4217 = vpack.c.b16 %v3431, %v3429
    %v4218 = vpack.c.b16 %v3434, %v3432
    %v4219 = vpack.c.b16 %v3435, %v3433
    %5004 = vmatpush.bf16.msra.mxu0 %v3450
    %5005 = vmatpush.bf16.msra.mxu0 %v3448
    %5006 = vmatpush.bf16.msra.mxu0 %v3446
    %5007 = vmatpush.bf16.msra.mxu0 %v3444
    %5008 = vmatpush.bf16.msra.mxu0 %v3442
    %5009 = vmatpush.bf16.msra.mxu0 %v3440
    %5010 = vmatpush.bf16.msra.mxu0 %v3438
    %5011 = vmatpush.bf16.msra.mxu0 %v3436
    %5012 = vmatmul.bf16.gmra.mxu0 %v890
    %v5013 = vpop.f32.mrf.mxu0
    %v5014 = vadd.f32 %v863, %v5013
    %v5015 = vpop.f32.mrf.mxu0
    %v5016 = vadd.f32 %v863, %v5015
    %5017 = vdwg.mxu0
    %5018 = vmatpush.bf16.msra.mxu0 %v3466
    %5019 = vmatpush.bf16.msra.mxu0 %v3464
    %5020 = vmatpush.bf16.msra.mxu0 %v3462
    %5021 = vmatpush.bf16.msra.mxu0 %v3460
    %5022 = vmatpush.bf16.msra.mxu0 %v3458
    %5023 = vmatpush.bf16.msra.mxu0 %v3456
    %5024 = vmatpush.bf16.msra.mxu0 %v3454
    %5025 = vmatpush.bf16.msra.mxu0 %v3452
    %5026 = vmatmul.bf16.gmra.mxu0 %v891
    %v5027 = vpop.f32.mrf.mxu0
    %v5028 = vadd.f32 %v5014, %v5027
    %v5029 = vpop.f32.mrf.mxu0
    %v5030 = vadd.f32 %v5016, %v5029
    %5031 = vdwg.mxu0
    %5032 = vmatpush.bf16.msra.mxu0 %v3482
    %5033 = vmatpush.bf16.msra.mxu0 %v3480
    %5034 = vmatpush.bf16.msra.mxu0 %v3478
    %5035 = vmatpush.bf16.msra.mxu0 %v3476
    %5036 = vmatpush.bf16.msra.mxu0 %v3474
    %5037 = vmatpush.bf16.msra.mxu0 %v3472
    %5038 = vmatpush.bf16.msra.mxu0 %v3470
    %5039 = vmatpush.bf16.msra.mxu0 %v3468
    %5040 = vmatmul.bf16.gmra.mxu0 %v892
    %v5041 = vpop.f32.mrf.mxu0
    %v5042 = vadd.f32 %v5028, %v5041
    %v5043 = vpop.f32.mrf.mxu0
    %v5044 = vadd.f32 %v5030, %v5043
    %5045 = vdwg.mxu0
    %5046 = vmatpush.bf16.msra.mxu0 %v3498
    %5047 = vmatpush.bf16.msra.mxu0 %v3496
    %5048 = vmatpush.bf16.msra.mxu0 %v3494
    %5049 = vmatpush.bf16.msra.mxu0 %v3492
    %5050 = vmatpush.bf16.msra.mxu0 %v3490
    %5051 = vmatpush.bf16.msra.mxu0 %v3488
    %5052 = vmatpush.bf16.msra.mxu0 %v3486
    %5053 = vmatpush.bf16.msra.mxu0 %v3484
    %5054 = vmatmul.bf16.gmra.mxu0 %v893
    %v5055 = vpop.f32.mrf.mxu0
    %v5056 = vadd.f32 %v5042, %v5055
    %v5057 = vpop.f32.mrf.mxu0
    %v5058 = vadd.f32 %v5044, %v5057
    %5059 = vdwg.mxu0
    %5060 = vmatpush.bf16.msra.mxu0 %v3514
    %5061 = vmatpush.bf16.msra.mxu0 %v3512
    %5062 = vmatpush.bf16.msra.mxu0 %v3510
    %5063 = vmatpush.bf16.msra.mxu0 %v3508
    %5064 = vmatpush.bf16.msra.mxu0 %v3506
    %5065 = vmatpush.bf16.msra.mxu0 %v3504
    %5066 = vmatpush.bf16.msra.mxu0 %v3502
    %5067 = vmatpush.bf16.msra.mxu0 %v3500
    %5068 = vmatmul.bf16.gmra.mxu0 %v894
    %v5069 = vpop.f32.mrf.mxu0
    %v5070 = vadd.f32 %v5056, %v5069
    %v5071 = vpop.f32.mrf.mxu0
    %v5072 = vadd.f32 %v5058, %v5071
    %5073 = vdwg.mxu0
    %5074 = vmatpush.bf16.msra.mxu0 %v3530
    %5075 = vmatpush.bf16.msra.mxu0 %v3528
    %5076 = vmatpush.bf16.msra.mxu0 %v3526
    %5077 = vmatpush.bf16.msra.mxu0 %v3524
    %5078 = vmatpush.bf16.msra.mxu0 %v3522
    %5079 = vmatpush.bf16.msra.mxu0 %v3520
    %5080 = vmatpush.bf16.msra.mxu0 %v3518
    %5081 = vmatpush.bf16.msra.mxu0 %v3516
    %5082 = vmatmul.bf16.gmra.mxu0 %v895
    %v5083 = vpop.f32.mrf.mxu0
    %v5084 = vadd.f32 %v5070, %v5083
    %v5085 = vpop.f32.mrf.mxu0
    %v5086 = vadd.f32 %v5072, %v5085
    %5087 = vdwg.mxu0
    %5088 = vmatpush.bf16.msra.mxu0 %v3546
    %5089 = vmatpush.bf16.msra.mxu0 %v3544
    %5090 = vmatpush.bf16.msra.mxu0 %v3542
    %5091 = vmatpush.bf16.msra.mxu0 %v3540
    %5092 = vmatpush.bf16.msra.mxu0 %v3538
    %5093 = vmatpush.bf16.msra.mxu0 %v3536
    %5094 = vmatpush.bf16.msra.mxu0 %v3534
    %5095 = vmatpush.bf16.msra.mxu0 %v3532
    %5096 = vmatmul.bf16.gmra.mxu0 %v896
    %v5097 = vpop.f32.mrf.mxu0
    %v5098 = vadd.f32 %v5084, %v5097
    %v5099 = vpop.f32.mrf.mxu0
    %v5100 = vadd.f32 %v5086, %v5099
    %5101 = vdwg.mxu0
    %5102 = vmatpush.bf16.msra.mxu0 %v3562
    %5103 = vmatpush.bf16.msra.mxu0 %v3560
    %5104 = vmatpush.bf16.msra.mxu0 %v3558
    %5105 = vmatpush.bf16.msra.mxu0 %v3556
    %5106 = vmatpush.bf16.msra.mxu0 %v3554
    %5107 = vmatpush.bf16.msra.mxu0 %v3552
    %5108 = vmatpush.bf16.msra.mxu0 %v3550
    %5109 = vmatpush.bf16.msra.mxu0 %v3548
    %5110 = vmatmul.bf16.gmra.mxu0 %v897
    %v5111 = vpop.f32.mrf.mxu0
    %v5112 = vadd.f32 %v5098, %v5111
    %v5113 = vpop.f32.mrf.mxu0
    %v5114 = vadd.f32 %v5100, %v5113
    %5115 = vdwg.mxu0
    %5116 = vmatpush.bf16.msra.mxu0 %v3578
    %5117 = vmatpush.bf16.msra.mxu0 %v3576
    %5118 = vmatpush.bf16.msra.mxu0 %v3574
    %5119 = vmatpush.bf16.msra.mxu0 %v3572
    %5120 = vmatpush.bf16.msra.mxu0 %v3570
    %5121 = vmatpush.bf16.msra.mxu0 %v3568
    %5122 = vmatpush.bf16.msra.mxu0 %v3566
    %5123 = vmatpush.bf16.msra.mxu0 %v3564
    %5124 = vmatmul.bf16.gmra.mxu0 %v914
    %v5125 = vpop.f32.mrf.mxu0
    %v5126 = vadd.f32 %v5112, %v5125
    %v5127 = vpop.f32.mrf.mxu0
    %v5128 = vadd.f32 %v5114, %v5127
    %5129 = vdwg.mxu0
    %5130 = vmatpush.bf16.msra.mxu0 %v3594
    %5131 = vmatpush.bf16.msra.mxu0 %v3592
    %5132 = vmatpush.bf16.msra.mxu0 %v3590
    %5133 = vmatpush.bf16.msra.mxu0 %v3588
    %5134 = vmatpush.bf16.msra.mxu0 %v3586
    %5135 = vmatpush.bf16.msra.mxu0 %v3584
    %5136 = vmatpush.bf16.msra.mxu0 %v3582
    %5137 = vmatpush.bf16.msra.mxu0 %v3580
    %5138 = vmatmul.bf16.gmra.mxu0 %v915
    %v5139 = vpop.f32.mrf.mxu0
    %v5140 = vadd.f32 %v5126, %v5139
    %v5141 = vpop.f32.mrf.mxu0
    %v5142 = vadd.f32 %v5128, %v5141
    %5143 = vdwg.mxu0
    %5144 = vmatpush.bf16.msra.mxu0 %v3610
    %5145 = vmatpush.bf16.msra.mxu0 %v3608
    %5146 = vmatpush.bf16.msra.mxu0 %v3606
    %5147 = vmatpush.bf16.msra.mxu0 %v3604
    %5148 = vmatpush.bf16.msra.mxu0 %v3602
    %5149 = vmatpush.bf16.msra.mxu0 %v3600
    %5150 = vmatpush.bf16.msra.mxu0 %v3598
    %5151 = vmatpush.bf16.msra.mxu0 %v3596
    %5152 = vmatmul.bf16.gmra.mxu0 %v916
    %v5153 = vpop.f32.mrf.mxu0
    %v5154 = vadd.f32 %v5140, %v5153
    %v5155 = vpop.f32.mrf.mxu0
    %v5156 = vadd.f32 %v5142, %v5155
    %5157 = vdwg.mxu0
    %5158 = vmatpush.bf16.msra.mxu0 %v3626
    %5159 = vmatpush.bf16.msra.mxu0 %v3624
    %5160 = vmatpush.bf16.msra.mxu0 %v3622
    %5161 = vmatpush.bf16.msra.mxu0 %v3620
    %5162 = vmatpush.bf16.msra.mxu0 %v3618
    %5163 = vmatpush.bf16.msra.mxu0 %v3616
    %5164 = vmatpush.bf16.msra.mxu0 %v3614
    %5165 = vmatpush.bf16.msra.mxu0 %v3612
    %5166 = vmatmul.bf16.gmra.mxu0 %v917
    %v5167 = vpop.f32.mrf.mxu0
    %v5168 = vadd.f32 %v5154, %v5167
    %v5169 = vpop.f32.mrf.mxu0
    %v5170 = vadd.f32 %v5156, %v5169
    %5171 = vdwg.mxu0
    %5172 = vmatpush.bf16.msra.mxu0 %v3642
    %5173 = vmatpush.bf16.msra.mxu0 %v3640
    %5174 = vmatpush.bf16.msra.mxu0 %v3638
    %5175 = vmatpush.bf16.msra.mxu0 %v3636
    %5176 = vmatpush.bf16.msra.mxu0 %v3634
    %5177 = vmatpush.bf16.msra.mxu0 %v3632
    %5178 = vmatpush.bf16.msra.mxu0 %v3630
    %5179 = vmatpush.bf16.msra.mxu0 %v3628
    %5180 = vmatmul.bf16.gmra.mxu0 %v918
    %v5181 = vpop.f32.mrf.mxu0
    %v5182 = vadd.f32 %v5168, %v5181
    %v5183 = vpop.f32.mrf.mxu0
    %v5184 = vadd.f32 %v5170, %v5183
    %5185 = vdwg.mxu0
    %5186 = vmatpush.bf16.msra.mxu0 %v3658
    %5187 = vmatpush.bf16.msra.mxu0 %v3656
    %5188 = vmatpush.bf16.msra.mxu0 %v3654
    %5189 = vmatpush.bf16.msra.mxu0 %v3652
    %5190 = vmatpush.bf16.msra.mxu0 %v3650
    %5191 = vmatpush.bf16.msra.mxu0 %v3648
    %5192 = vmatpush.bf16.msra.mxu0 %v3646
    %5193 = vmatpush.bf16.msra.mxu0 %v3644
    %5194 = vmatmul.bf16.gmra.mxu0 %v919
    %v5195 = vpop.f32.mrf.mxu0
    %v5196 = vadd.f32 %v5182, %v5195
    %v5197 = vpop.f32.mrf.mxu0
    %v5198 = vadd.f32 %v5184, %v5197
    %5199 = vdwg.mxu0
    %5200 = vmatpush.bf16.msra.mxu0 %v3674
    %5201 = vmatpush.bf16.msra.mxu0 %v3672
    %5202 = vmatpush.bf16.msra.mxu0 %v3670
    %5203 = vmatpush.bf16.msra.mxu0 %v3668
    %5204 = vmatpush.bf16.msra.mxu0 %v3666
    %5205 = vmatpush.bf16.msra.mxu0 %v3664
    %5206 = vmatpush.bf16.msra.mxu0 %v3662
    %5207 = vmatpush.bf16.msra.mxu0 %v3660
    %5208 = vmatmul.bf16.gmra.mxu0 %v920
    %v5209 = vpop.f32.mrf.mxu0
    %v5210 = vadd.f32 %v5196, %v5209
    %v5211 = vpop.f32.mrf.mxu0
    %v5212 = vadd.f32 %v5198, %v5211
    %5213 = vdwg.mxu0
    %5214 = vmatpush.bf16.msra.mxu0 %v3690
    %5215 = vmatpush.bf16.msra.mxu0 %v3688
    %5216 = vmatpush.bf16.msra.mxu0 %v3686
    %5217 = vmatpush.bf16.msra.mxu0 %v3684
    %5218 = vmatpush.bf16.msra.mxu0 %v3682
    %5219 = vmatpush.bf16.msra.mxu0 %v3680
    %5220 = vmatpush.bf16.msra.mxu0 %v3678
    %5221 = vmatpush.bf16.msra.mxu0 %v3676
    %5222 = vmatmul.bf16.gmra.mxu0 %v921
    %v5223 = vpop.f32.mrf.mxu0
    %v5224 = vadd.f32 %v5210, %v5223
    %v5225 = vpop.f32.mrf.mxu0
    %v5226 = vadd.f32 %v5212, %v5225
    %5227 = vdwg.mxu0
    %5228 = vmatpush.bf16.msra.mxu0 %v3706
    %5229 = vmatpush.bf16.msra.mxu0 %v3704
    %5230 = vmatpush.bf16.msra.mxu0 %v3702
    %5231 = vmatpush.bf16.msra.mxu0 %v3700
    %5232 = vmatpush.bf16.msra.mxu0 %v3698
    %5233 = vmatpush.bf16.msra.mxu0 %v3696
    %5234 = vmatpush.bf16.msra.mxu0 %v3694
    %5235 = vmatpush.bf16.msra.mxu0 %v3692
    %5236 = vmatmul.bf16.gmra.mxu0 %v938
    %v5237 = vpop.f32.mrf.mxu0
    %v5238 = vadd.f32 %v5224, %v5237
    %v5239 = vpop.f32.mrf.mxu0
    %v5240 = vadd.f32 %v5226, %v5239
    %5241 = vdwg.mxu0
    %5242 = vmatpush.bf16.msra.mxu0 %v3722
    %5243 = vmatpush.bf16.msra.mxu0 %v3720
    %5244 = vmatpush.bf16.msra.mxu0 %v3718
    %5245 = vmatpush.bf16.msra.mxu0 %v3716
    %5246 = vmatpush.bf16.msra.mxu0 %v3714
    %5247 = vmatpush.bf16.msra.mxu0 %v3712
    %5248 = vmatpush.bf16.msra.mxu0 %v3710
    %5249 = vmatpush.bf16.msra.mxu0 %v3708
    %5250 = vmatmul.bf16.gmra.mxu0 %v939
    %v5251 = vpop.f32.mrf.mxu0
    %v5252 = vadd.f32 %v5238, %v5251
    %v5253 = vpop.f32.mrf.mxu0
    %v5254 = vadd.f32 %v5240, %v5253
    %5255 = vdwg.mxu0
    %5256 = vmatpush.bf16.msra.mxu0 %v3738
    %5257 = vmatpush.bf16.msra.mxu0 %v3736
    %5258 = vmatpush.bf16.msra.mxu0 %v3734
    %5259 = vmatpush.bf16.msra.mxu0 %v3732
    %5260 = vmatpush.bf16.msra.mxu0 %v3730
    %5261 = vmatpush.bf16.msra.mxu0 %v3728
    %5262 = vmatpush.bf16.msra.mxu0 %v3726
    %5263 = vmatpush.bf16.msra.mxu0 %v3724
    %5264 = vmatmul.bf16.gmra.mxu0 %v940
    %v5265 = vpop.f32.mrf.mxu0
    %v5266 = vadd.f32 %v5252, %v5265
    %v5267 = vpop.f32.mrf.mxu0
    %v5268 = vadd.f32 %v5254, %v5267
    %5269 = vdwg.mxu0
    %5270 = vmatpush.bf16.msra.mxu0 %v3754
    %5271 = vmatpush.bf16.msra.mxu0 %v3752
    %5272 = vmatpush.bf16.msra.mxu0 %v3750
    %5273 = vmatpush.bf16.msra.mxu0 %v3748
    %5274 = vmatpush.bf16.msra.mxu0 %v3746
    %5275 = vmatpush.bf16.msra.mxu0 %v3744
    %5276 = vmatpush.bf16.msra.mxu0 %v3742
    %5277 = vmatpush.bf16.msra.mxu0 %v3740
    %5278 = vmatmul.bf16.gmra.mxu0 %v941
    %v5279 = vpop.f32.mrf.mxu0
    %v5280 = vadd.f32 %v5266, %v5279
    %v5281 = vpop.f32.mrf.mxu0
    %v5282 = vadd.f32 %v5268, %v5281
    %5283 = vdwg.mxu0
    %5284 = vmatpush.bf16.msra.mxu0 %v3770
    %5285 = vmatpush.bf16.msra.mxu0 %v3768
    %5286 = vmatpush.bf16.msra.mxu0 %v3766
    %5287 = vmatpush.bf16.msra.mxu0 %v3764
    %5288 = vmatpush.bf16.msra.mxu0 %v3762
    %5289 = vmatpush.bf16.msra.mxu0 %v3760
    %5290 = vmatpush.bf16.msra.mxu0 %v3758
    %5291 = vmatpush.bf16.msra.mxu0 %v3756
    %5292 = vmatmul.bf16.gmra.mxu0 %v942
    %v5293 = vpop.f32.mrf.mxu0
    %v5294 = vadd.f32 %v5280, %v5293
    %v5295 = vpop.f32.mrf.mxu0
    %v5296 = vadd.f32 %v5282, %v5295
    %5297 = vdwg.mxu0
    %5298 = vmatpush.bf16.msra.mxu0 %v3786
    %5299 = vmatpush.bf16.msra.mxu0 %v3784
    %5300 = vmatpush.bf16.msra.mxu0 %v3782
    %5301 = vmatpush.bf16.msra.mxu0 %v3780
    %5302 = vmatpush.bf16.msra.mxu0 %v3778
    %5303 = vmatpush.bf16.msra.mxu0 %v3776
    %5304 = vmatpush.bf16.msra.mxu0 %v3774
    %5305 = vmatpush.bf16.msra.mxu0 %v3772
    %5306 = vmatmul.bf16.gmra.mxu0 %v943
    %v5307 = vpop.f32.mrf.mxu0
    %v5308 = vadd.f32 %v5294, %v5307
    %v5309 = vpop.f32.mrf.mxu0
    %v5310 = vadd.f32 %v5296, %v5309
    %5311 = vdwg.mxu0
    %5312 = vmatpush.bf16.msra.mxu0 %v3802
    %5313 = vmatpush.bf16.msra.mxu0 %v3800
    %5314 = vmatpush.bf16.msra.mxu0 %v3798
    %5315 = vmatpush.bf16.msra.mxu0 %v3796
    %5316 = vmatpush.bf16.msra.mxu0 %v3794
    %5317 = vmatpush.bf16.msra.mxu0 %v3792
    %5318 = vmatpush.bf16.msra.mxu0 %v3790
    %5319 = vmatpush.bf16.msra.mxu0 %v3788
    %5320 = vmatmul.bf16.gmra.mxu0 %v944
    %v5321 = vpop.f32.mrf.mxu0
    %v5322 = vadd.f32 %v5308, %v5321
    %v5323 = vpop.f32.mrf.mxu0
    %v5324 = vadd.f32 %v5310, %v5323
    %5325 = vdwg.mxu0
    %5326 = vmatpush.bf16.msra.mxu0 %v3818
    %5327 = vmatpush.bf16.msra.mxu0 %v3816
    %5328 = vmatpush.bf16.msra.mxu0 %v3814
    %5329 = vmatpush.bf16.msra.mxu0 %v3812
    %5330 = vmatpush.bf16.msra.mxu0 %v3810
    %5331 = vmatpush.bf16.msra.mxu0 %v3808
    %5332 = vmatpush.bf16.msra.mxu0 %v3806
    %5333 = vmatpush.bf16.msra.mxu0 %v3804
    %5334 = vmatmul.bf16.gmra.mxu0 %v945
    %v5335 = vpop.f32.mrf.mxu0
    %v5336 = vadd.f32 %v5322, %v5335
    %v5337 = vpop.f32.mrf.mxu0
    %v5338 = vadd.f32 %v5324, %v5337
    %5339 = vdwg.mxu0
    %5340 = vmatpush.bf16.msra.mxu0 %v3834
    %5341 = vmatpush.bf16.msra.mxu0 %v3832
    %5342 = vmatpush.bf16.msra.mxu0 %v3830
    %5343 = vmatpush.bf16.msra.mxu0 %v3828
    %5344 = vmatpush.bf16.msra.mxu0 %v3826
    %5345 = vmatpush.bf16.msra.mxu0 %v3824
    %5346 = vmatpush.bf16.msra.mxu0 %v3822
    %5347 = vmatpush.bf16.msra.mxu0 %v3820
    %5348 = vmatmul.bf16.gmra.mxu0 %v962
    %v5349 = vpop.f32.mrf.mxu0
    %v5350 = vadd.f32 %v5336, %v5349
    %v5351 = vpop.f32.mrf.mxu0
    %v5352 = vadd.f32 %v5338, %v5351
    %5353 = vdwg.mxu0
    %5354 = vmatpush.bf16.msra.mxu0 %v3850
    %5355 = vmatpush.bf16.msra.mxu0 %v3848
    %5356 = vmatpush.bf16.msra.mxu0 %v3846
    %5357 = vmatpush.bf16.msra.mxu0 %v3844
    %5358 = vmatpush.bf16.msra.mxu0 %v3842
    %5359 = vmatpush.bf16.msra.mxu0 %v3840
    %5360 = vmatpush.bf16.msra.mxu0 %v3838
    %5361 = vmatpush.bf16.msra.mxu0 %v3836
    %5362 = vmatmul.bf16.gmra.mxu0 %v963
    %v5363 = vpop.f32.mrf.mxu0
    %v5364 = vadd.f32 %v5350, %v5363
    %v5365 = vpop.f32.mrf.mxu0
    %v5366 = vadd.f32 %v5352, %v5365
    %5367 = vdwg.mxu0
    %5368 = vmatpush.bf16.msra.mxu0 %v3866
    %5369 = vmatpush.bf16.msra.mxu0 %v3864
    %5370 = vmatpush.bf16.msra.mxu0 %v3862
    %5371 = vmatpush.bf16.msra.mxu0 %v3860
    %5372 = vmatpush.bf16.msra.mxu0 %v3858
    %5373 = vmatpush.bf16.msra.mxu0 %v3856
    %5374 = vmatpush.bf16.msra.mxu0 %v3854
    %5375 = vmatpush.bf16.msra.mxu0 %v3852
    %5376 = vmatmul.bf16.gmra.mxu0 %v964
    %v5377 = vpop.f32.mrf.mxu0
    %v5378 = vadd.f32 %v5364, %v5377
    %v5379 = vpop.f32.mrf.mxu0
    %v5380 = vadd.f32 %v5366, %v5379
    %5381 = vdwg.mxu0
    %5382 = vmatpush.bf16.msra.mxu0 %v3882
    %5383 = vmatpush.bf16.msra.mxu0 %v3880
    %5384 = vmatpush.bf16.msra.mxu0 %v3878
    %5385 = vmatpush.bf16.msra.mxu0 %v3876
    %5386 = vmatpush.bf16.msra.mxu0 %v3874
    %5387 = vmatpush.bf16.msra.mxu0 %v3872
    %5388 = vmatpush.bf16.msra.mxu0 %v3870
    %5389 = vmatpush.bf16.msra.mxu0 %v3868
    %5390 = vmatmul.bf16.gmra.mxu0 %v965
    %v5391 = vpop.f32.mrf.mxu0
    %v5392 = vadd.f32 %v5378, %v5391
    %v5393 = vpop.f32.mrf.mxu0
    %v5394 = vadd.f32 %v5380, %v5393
    %5395 = vdwg.mxu0
    %5396 = vmatpush.bf16.msra.mxu0 %v3898
    %5397 = vmatpush.bf16.msra.mxu0 %v3896
    %5398 = vmatpush.bf16.msra.mxu0 %v3894
    %5399 = vmatpush.bf16.msra.mxu0 %v3892
    %5400 = vmatpush.bf16.msra.mxu0 %v3890
    %5401 = vmatpush.bf16.msra.mxu0 %v3888
    %5402 = vmatpush.bf16.msra.mxu0 %v3886
    %5403 = vmatpush.bf16.msra.mxu0 %v3884
    %5404 = vmatmul.bf16.gmra.mxu0 %v966
    %v5405 = vpop.f32.mrf.mxu0
    %v5406 = vadd.f32 %v5392, %v5405
    %v5407 = vpop.f32.mrf.mxu0
    %v5408 = vadd.f32 %v5394, %v5407
    %5409 = vdwg.mxu0
    %5410 = vmatpush.bf16.msra.mxu0 %v3914
    %5411 = vmatpush.bf16.msra.mxu0 %v3912
    %5412 = vmatpush.bf16.msra.mxu0 %v3910
    %5413 = vmatpush.bf16.msra.mxu0 %v3908
    %5414 = vmatpush.bf16.msra.mxu0 %v3906
    %5415 = vmatpush.bf16.msra.mxu0 %v3904
    %5416 = vmatpush.bf16.msra.mxu0 %v3902
    %5417 = vmatpush.bf16.msra.mxu0 %v3900
    %5418 = vmatmul.bf16.gmra.mxu0 %v967
    %v5419 = vpop.f32.mrf.mxu0
    %v5420 = vadd.f32 %v5406, %v5419
    %v5421 = vpop.f32.mrf.mxu0
    %v5422 = vadd.f32 %v5408, %v5421
    %5423 = vdwg.mxu0
    %5424 = vmatpush.bf16.msra.mxu0 %v3930
    %5425 = vmatpush.bf16.msra.mxu0 %v3928
    %5426 = vmatpush.bf16.msra.mxu0 %v3926
    %5427 = vmatpush.bf16.msra.mxu0 %v3924
    %5428 = vmatpush.bf16.msra.mxu0 %v3922
    %5429 = vmatpush.bf16.msra.mxu0 %v3920
    %5430 = vmatpush.bf16.msra.mxu0 %v3918
    %5431 = vmatpush.bf16.msra.mxu0 %v3916
    %5432 = vmatmul.bf16.gmra.mxu0 %v968
    %v5433 = vpop.f32.mrf.mxu0
    %v5434 = vadd.f32 %v5420, %v5433
    %v5435 = vpop.f32.mrf.mxu0
    %v5436 = vadd.f32 %v5422, %v5435
    %5437 = vdwg.mxu0
    %5438 = vmatpush.bf16.msra.mxu0 %v3946
    %5439 = vmatpush.bf16.msra.mxu0 %v3944
    %5440 = vmatpush.bf16.msra.mxu0 %v3942
    %5441 = vmatpush.bf16.msra.mxu0 %v3940
    %5442 = vmatpush.bf16.msra.mxu0 %v3938
    %5443 = vmatpush.bf16.msra.mxu0 %v3936
    %5444 = vmatpush.bf16.msra.mxu0 %v3934
    %5445 = vmatpush.bf16.msra.mxu0 %v3932
    %5446 = vmatmul.bf16.gmra.mxu0 %v969
    %v5447 = vpop.f32.mrf.mxu0
    %v5448 = vadd.f32 %v5434, %v5447
    %v5449 = vpop.f32.mrf.mxu0
    %v5450 = vadd.f32 %v5436, %v5449
    %5451 = vdwg.mxu0
    %5452 = vmatpush.bf16.msra.mxu0 %v3962
    %5453 = vmatpush.bf16.msra.mxu0 %v3960
    %5454 = vmatpush.bf16.msra.mxu0 %v3958
    %5455 = vmatpush.bf16.msra.mxu0 %v3956
    %5456 = vmatpush.bf16.msra.mxu0 %v3954
    %5457 = vmatpush.bf16.msra.mxu0 %v3952
    %5458 = vmatpush.bf16.msra.mxu0 %v3950
    %5459 = vmatpush.bf16.msra.mxu0 %v3948
    %5460 = vmatmul.bf16.gmra.mxu0 %v986
    %v5461 = vpop.f32.mrf.mxu0
    %v5462 = vadd.f32 %v5448, %v5461
    %v5463 = vpop.f32.mrf.mxu0
    %v5464 = vadd.f32 %v5450, %v5463
    %5465 = vdwg.mxu0
    %5466 = vmatpush.bf16.msra.mxu0 %v3978
    %5467 = vmatpush.bf16.msra.mxu0 %v3976
    %5468 = vmatpush.bf16.msra.mxu0 %v3974
    %5469 = vmatpush.bf16.msra.mxu0 %v3972
    %5470 = vmatpush.bf16.msra.mxu0 %v3970
    %5471 = vmatpush.bf16.msra.mxu0 %v3968
    %5472 = vmatpush.bf16.msra.mxu0 %v3966
    %5473 = vmatpush.bf16.msra.mxu0 %v3964
    %5474 = vmatmul.bf16.gmra.mxu0 %v987
    %v5475 = vpop.f32.mrf.mxu0
    %v5476 = vadd.f32 %v5462, %v5475
    %v5477 = vpop.f32.mrf.mxu0
    %v5478 = vadd.f32 %v5464, %v5477
    %5479 = vdwg.mxu0
    %5480 = vmatpush.bf16.msra.mxu0 %v3994
    %5481 = vmatpush.bf16.msra.mxu0 %v3992
    %5482 = vmatpush.bf16.msra.mxu0 %v3990
    %5483 = vmatpush.bf16.msra.mxu0 %v3988
    %5484 = vmatpush.bf16.msra.mxu0 %v3986
    %5485 = vmatpush.bf16.msra.mxu0 %v3984
    %5486 = vmatpush.bf16.msra.mxu0 %v3982
    %5487 = vmatpush.bf16.msra.mxu0 %v3980
    %5488 = vmatmul.bf16.gmra.mxu0 %v988
    %v5489 = vpop.f32.mrf.mxu0
    %v5490 = vadd.f32 %v5476, %v5489
    %v5491 = vpop.f32.mrf.mxu0
    %v5492 = vadd.f32 %v5478, %v5491
    %5493 = vdwg.mxu0
    %5494 = vmatpush.bf16.msra.mxu0 %v4010
    %5495 = vmatpush.bf16.msra.mxu0 %v4008
    %5496 = vmatpush.bf16.msra.mxu0 %v4006
    %5497 = vmatpush.bf16.msra.mxu0 %v4004
    %5498 = vmatpush.bf16.msra.mxu0 %v4002
    %5499 = vmatpush.bf16.msra.mxu0 %v4000
    %5500 = vmatpush.bf16.msra.mxu0 %v3998
    %5501 = vmatpush.bf16.msra.mxu0 %v3996
    %5502 = vmatmul.bf16.gmra.mxu0 %v989
    %v5503 = vpop.f32.mrf.mxu0
    %v5504 = vadd.f32 %v5490, %v5503
    %v5505 = vpop.f32.mrf.mxu0
    %v5506 = vadd.f32 %v5492, %v5505
    %5507 = vdwg.mxu0
    %5508 = vmatpush.bf16.msra.mxu0 %v4026
    %5509 = vmatpush.bf16.msra.mxu0 %v4024
    %5510 = vmatpush.bf16.msra.mxu0 %v4022
    %5511 = vmatpush.bf16.msra.mxu0 %v4020
    %5512 = vmatpush.bf16.msra.mxu0 %v4018
    %5513 = vmatpush.bf16.msra.mxu0 %v4016
    %5514 = vmatpush.bf16.msra.mxu0 %v4014
    %5515 = vmatpush.bf16.msra.mxu0 %v4012
    %5516 = vmatmul.bf16.gmra.mxu0 %v990
    %v5517 = vpop.f32.mrf.mxu0
    %v5518 = vadd.f32 %v5504, %v5517
    %v5519 = vpop.f32.mrf.mxu0
    %v5520 = vadd.f32 %v5506, %v5519
    %5521 = vdwg.mxu0
    %5522 = vmatpush.bf16.msra.mxu0 %v4042
    %5523 = vmatpush.bf16.msra.mxu0 %v4040
    %5524 = vmatpush.bf16.msra.mxu0 %v4038
    %5525 = vmatpush.bf16.msra.mxu0 %v4036
    %5526 = vmatpush.bf16.msra.mxu0 %v4034
    %5527 = vmatpush.bf16.msra.mxu0 %v4032
    %5528 = vmatpush.bf16.msra.mxu0 %v4030
    %5529 = vmatpush.bf16.msra.mxu0 %v4028
    %5530 = vmatmul.bf16.gmra.mxu0 %v991
    %v5531 = vpop.f32.mrf.mxu0
    %v5532 = vadd.f32 %v5518, %v5531
    %v5533 = vpop.f32.mrf.mxu0
    %v5534 = vadd.f32 %v5520, %v5533
    %5535 = vdwg.mxu0
    %5536 = vmatpush.bf16.msra.mxu0 %v4058
    %5537 = vmatpush.bf16.msra.mxu0 %v4056
    %5538 = vmatpush.bf16.msra.mxu0 %v4054
    %5539 = vmatpush.bf16.msra.mxu0 %v4052
    %5540 = vmatpush.bf16.msra.mxu0 %v4050
    %5541 = vmatpush.bf16.msra.mxu0 %v4048
    %5542 = vmatpush.bf16.msra.mxu0 %v4046
    %5543 = vmatpush.bf16.msra.mxu0 %v4044
    %5544 = vmatmul.bf16.gmra.mxu0 %v992
    %v5545 = vpop.f32.mrf.mxu0
    %v5546 = vadd.f32 %v5532, %v5545
    %v5547 = vpop.f32.mrf.mxu0
    %v5548 = vadd.f32 %v5534, %v5547
    %5549 = vdwg.mxu0
    %5550 = vmatpush.bf16.msra.mxu0 %v4074
    %5551 = vmatpush.bf16.msra.mxu0 %v4072
    %5552 = vmatpush.bf16.msra.mxu0 %v4070
    %5553 = vmatpush.bf16.msra.mxu0 %v4068
    %5554 = vmatpush.bf16.msra.mxu0 %v4066
    %5555 = vmatpush.bf16.msra.mxu0 %v4064
    %5556 = vmatpush.bf16.msra.mxu0 %v4062
    %5557 = vmatpush.bf16.msra.mxu0 %v4060
    %5558 = vmatmul.bf16.gmra.mxu0 %v993
    %v5559 = vpop.f32.mrf.mxu0
    %v5560 = vadd.f32 %v5546, %v5559
    %v5561 = vpop.f32.mrf.mxu0
    %v5562 = vadd.f32 %v5548, %v5561
    %5563 = vdwg.mxu0
    %5564 = vmatpush.bf16.msra.mxu0 %v4090
    %5565 = vmatpush.bf16.msra.mxu0 %v4088
    %5566 = vmatpush.bf16.msra.mxu0 %v4086
    %5567 = vmatpush.bf16.msra.mxu0 %v4084
    %5568 = vmatpush.bf16.msra.mxu0 %v4082
    %5569 = vmatpush.bf16.msra.mxu0 %v4080
    %5570 = vmatpush.bf16.msra.mxu0 %v4078
    %5571 = vmatpush.bf16.msra.mxu0 %v4076
    %5572 = vmatmul.bf16.gmra.mxu0 %v1010
    %v5573 = vpop.f32.mrf.mxu0
    %v5574 = vadd.f32 %v5560, %v5573
    %v5575 = vpop.f32.mrf.mxu0
    %v5576 = vadd.f32 %v5562, %v5575
    %5577 = vdwg.mxu0
    %5578 = vmatpush.bf16.msra.mxu0 %v4106
    %5579 = vmatpush.bf16.msra.mxu0 %v4104
    %5580 = vmatpush.bf16.msra.mxu0 %v4102
    %5581 = vmatpush.bf16.msra.mxu0 %v4100
    %5582 = vmatpush.bf16.msra.mxu0 %v4098
    %5583 = vmatpush.bf16.msra.mxu0 %v4096
    %5584 = vmatpush.bf16.msra.mxu0 %v4094
    %5585 = vmatpush.bf16.msra.mxu0 %v4092
    %5586 = vmatmul.bf16.gmra.mxu0 %v1011
    %v5587 = vpop.f32.mrf.mxu0
    %v5588 = vadd.f32 %v5574, %v5587
    %v5589 = vpop.f32.mrf.mxu0
    %v5590 = vadd.f32 %v5576, %v5589
    %5591 = vdwg.mxu0
    %5592 = vmatpush.bf16.msra.mxu0 %v4122
    %5593 = vmatpush.bf16.msra.mxu0 %v4120
    %5594 = vmatpush.bf16.msra.mxu0 %v4118
    %5595 = vmatpush.bf16.msra.mxu0 %v4116
    %5596 = vmatpush.bf16.msra.mxu0 %v4114
    %5597 = vmatpush.bf16.msra.mxu0 %v4112
    %5598 = vmatpush.bf16.msra.mxu0 %v4110
    %5599 = vmatpush.bf16.msra.mxu0 %v4108
    %5600 = vmatmul.bf16.gmra.mxu0 %v1012
    %v5601 = vpop.f32.mrf.mxu0
    %v5602 = vadd.f32 %v5588, %v5601
    %v5603 = vpop.f32.mrf.mxu0
    %v5604 = vadd.f32 %v5590, %v5603
    %5605 = vdwg.mxu0
    %5606 = vmatpush.bf16.msra.mxu0 %v4138
    %5607 = vmatpush.bf16.msra.mxu0 %v4136
    %5608 = vmatpush.bf16.msra.mxu0 %v4134
    %5609 = vmatpush.bf16.msra.mxu0 %v4132
    %5610 = vmatpush.bf16.msra.mxu0 %v4130
    %5611 = vmatpush.bf16.msra.mxu0 %v4128
    %5612 = vmatpush.bf16.msra.mxu0 %v4126
    %5613 = vmatpush.bf16.msra.mxu0 %v4124
    %5614 = vmatmul.bf16.gmra.mxu0 %v1013
    %v5615 = vpop.f32.mrf.mxu0
    %v5616 = vadd.f32 %v5602, %v5615
    %v5617 = vpop.f32.mrf.mxu0
    %v5618 = vadd.f32 %v5604, %v5617
    %5619 = vdwg.mxu0
    %5620 = vmatpush.bf16.msra.mxu0 %v4154
    %5621 = vmatpush.bf16.msra.mxu0 %v4152
    %5622 = vmatpush.bf16.msra.mxu0 %v4150
    %5623 = vmatpush.bf16.msra.mxu0 %v4148
    %5624 = vmatpush.bf16.msra.mxu0 %v4146
    %5625 = vmatpush.bf16.msra.mxu0 %v4144
    %5626 = vmatpush.bf16.msra.mxu0 %v4142
    %5627 = vmatpush.bf16.msra.mxu0 %v4140
    %5628 = vmatmul.bf16.gmra.mxu0 %v1014
    %v5629 = vpop.f32.mrf.mxu0
    %v5630 = vadd.f32 %v5616, %v5629
    %v5631 = vpop.f32.mrf.mxu0
    %v5632 = vadd.f32 %v5618, %v5631
    %5633 = vdwg.mxu0
    %5634 = vmatpush.bf16.msra.mxu0 %v4170
    %5635 = vmatpush.bf16.msra.mxu0 %v4168
    %5636 = vmatpush.bf16.msra.mxu0 %v4166
    %5637 = vmatpush.bf16.msra.mxu0 %v4164
    %5638 = vmatpush.bf16.msra.mxu0 %v4162
    %5639 = vmatpush.bf16.msra.mxu0 %v4160
    %5640 = vmatpush.bf16.msra.mxu0 %v4158
    %5641 = vmatpush.bf16.msra.mxu0 %v4156
    %5642 = vmatmul.bf16.gmra.mxu0 %v1015
    %v5643 = vpop.f32.mrf.mxu0
    %v5644 = vadd.f32 %v5630, %v5643
    %v5645 = vpop.f32.mrf.mxu0
    %v5646 = vadd.f32 %v5632, %v5645
    %5647 = vdwg.mxu0
    %5648 = vmatpush.bf16.msra.mxu0 %v4186
    %5649 = vmatpush.bf16.msra.mxu0 %v4184
    %5650 = vmatpush.bf16.msra.mxu0 %v4182
    %5651 = vmatpush.bf16.msra.mxu0 %v4180
    %5652 = vmatpush.bf16.msra.mxu0 %v4178
    %5653 = vmatpush.bf16.msra.mxu0 %v4176
    %5654 = vmatpush.bf16.msra.mxu0 %v4174
    %5655 = vmatpush.bf16.msra.mxu0 %v4172
    %5656 = vmatmul.bf16.gmra.mxu0 %v1016
    %v5657 = vpop.f32.mrf.mxu0
    %v5658 = vadd.f32 %v5644, %v5657
    %v5659 = vpop.f32.mrf.mxu0
    %v5660 = vadd.f32 %v5646, %v5659
    %5661 = vdwg.mxu0
    %5662 = vmatpush.bf16.msra.mxu0 %v4202
    %5663 = vmatpush.bf16.msra.mxu0 %v4200
    %5664 = vmatpush.bf16.msra.mxu0 %v4198
    %5665 = vmatpush.bf16.msra.mxu0 %v4196
    %5666 = vmatpush.bf16.msra.mxu0 %v4194
    %5667 = vmatpush.bf16.msra.mxu0 %v4192
    %5668 = vmatpush.bf16.msra.mxu0 %v4190
    %5669 = vmatpush.bf16.msra.mxu0 %v4188
    %5670 = vmatmul.bf16.gmra.mxu0 %v1017
    %v5671 = vpop.f32.mrf.mxu0
    %v5672 = vadd.f32 %v5658, %v5671
    %v5673 = vpop.f32.mrf.mxu0
    %v5674 = vadd.f32 %v5660, %v5673
    %5675 = vdwg.mxu0
    %5676 = vmatpush.bf16.msra.mxu0 %v4218
    %5677 = vmatpush.bf16.msra.mxu0 %v4216
    %5678 = vmatpush.bf16.msra.mxu0 %v4214
    %5679 = vmatpush.bf16.msra.mxu0 %v4212
    %5680 = vmatpush.bf16.msra.mxu0 %v4210
    %5681 = vmatpush.bf16.msra.mxu0 %v4208
    %5682 = vmatpush.bf16.msra.mxu0 %v4206
    %5683 = vmatpush.bf16.msra.mxu0 %v4204
    %5684 = vmatmul.bf16.gmra.mxu0 %v1034
    %v5685 = vpop.f32.mrf.mxu0
    %v5686 = vadd.f32 %v5672, %v5685
    %v5687 = vpop.f32.mrf.mxu0
    %v5688 = vadd.f32 %v5674, %v5687
    %5689 = vdwg.mxu0
    %5690 = vmatpush.bf16.msra.mxu0 %v3451
    %5691 = vmatpush.bf16.msra.mxu0 %v3449
    %5692 = vmatpush.bf16.msra.mxu0 %v3447
    %5693 = vmatpush.bf16.msra.mxu0 %v3445
    %5694 = vmatpush.bf16.msra.mxu0 %v3443
    %5695 = vmatpush.bf16.msra.mxu0 %v3441
    %5696 = vmatpush.bf16.msra.mxu0 %v3439
    %5697 = vmatpush.bf16.msra.mxu0 %v3437
    %5698 = vmatmul.bf16.gmra.mxu0 %v890
    %v5699 = vpop.f32.mrf.mxu0
    %v5700 = vadd.f32 %v864, %v5699
    %v5701 = vpop.f32.mrf.mxu0
    %v5702 = vadd.f32 %v864, %v5701
    %5703 = vdwg.mxu0
    %5704 = vmatpush.bf16.msra.mxu0 %v3467
    %5705 = vmatpush.bf16.msra.mxu0 %v3465
    %5706 = vmatpush.bf16.msra.mxu0 %v3463
    %5707 = vmatpush.bf16.msra.mxu0 %v3461
    %5708 = vmatpush.bf16.msra.mxu0 %v3459
    %5709 = vmatpush.bf16.msra.mxu0 %v3457
    %5710 = vmatpush.bf16.msra.mxu0 %v3455
    %5711 = vmatpush.bf16.msra.mxu0 %v3453
    %5712 = vmatmul.bf16.gmra.mxu0 %v891
    %v5713 = vpop.f32.mrf.mxu0
    %v5714 = vadd.f32 %v5700, %v5713
    %v5715 = vpop.f32.mrf.mxu0
    %v5716 = vadd.f32 %v5702, %v5715
    %5717 = vdwg.mxu0
    %5718 = vmatpush.bf16.msra.mxu0 %v3483
    %5719 = vmatpush.bf16.msra.mxu0 %v3481
    %5720 = vmatpush.bf16.msra.mxu0 %v3479
    %5721 = vmatpush.bf16.msra.mxu0 %v3477
    %5722 = vmatpush.bf16.msra.mxu0 %v3475
    %5723 = vmatpush.bf16.msra.mxu0 %v3473
    %5724 = vmatpush.bf16.msra.mxu0 %v3471
    %5725 = vmatpush.bf16.msra.mxu0 %v3469
    %5726 = vmatmul.bf16.gmra.mxu0 %v892
    %v5727 = vpop.f32.mrf.mxu0
    %v5728 = vadd.f32 %v5714, %v5727
    %v5729 = vpop.f32.mrf.mxu0
    %v5730 = vadd.f32 %v5716, %v5729
    %5731 = vdwg.mxu0
    %5732 = vmatpush.bf16.msra.mxu0 %v3499
    %5733 = vmatpush.bf16.msra.mxu0 %v3497
    %5734 = vmatpush.bf16.msra.mxu0 %v3495
    %5735 = vmatpush.bf16.msra.mxu0 %v3493
    %5736 = vmatpush.bf16.msra.mxu0 %v3491
    %5737 = vmatpush.bf16.msra.mxu0 %v3489
    %5738 = vmatpush.bf16.msra.mxu0 %v3487
    %5739 = vmatpush.bf16.msra.mxu0 %v3485
    %5740 = vmatmul.bf16.gmra.mxu0 %v893
    %v5741 = vpop.f32.mrf.mxu0
    %v5742 = vadd.f32 %v5728, %v5741
    %v5743 = vpop.f32.mrf.mxu0
    %v5744 = vadd.f32 %v5730, %v5743
    %5745 = vdwg.mxu0
    %5746 = vmatpush.bf16.msra.mxu0 %v3515
    %5747 = vmatpush.bf16.msra.mxu0 %v3513
    %5748 = vmatpush.bf16.msra.mxu0 %v3511
    %5749 = vmatpush.bf16.msra.mxu0 %v3509
    %5750 = vmatpush.bf16.msra.mxu0 %v3507
    %5751 = vmatpush.bf16.msra.mxu0 %v3505
    %5752 = vmatpush.bf16.msra.mxu0 %v3503
    %5753 = vmatpush.bf16.msra.mxu0 %v3501
    %5754 = vmatmul.bf16.gmra.mxu0 %v894
    %v5755 = vpop.f32.mrf.mxu0
    %v5756 = vadd.f32 %v5742, %v5755
    %v5757 = vpop.f32.mrf.mxu0
    %v5758 = vadd.f32 %v5744, %v5757
    %5759 = vdwg.mxu0
    %5760 = vmatpush.bf16.msra.mxu0 %v3531
    %5761 = vmatpush.bf16.msra.mxu0 %v3529
    %5762 = vmatpush.bf16.msra.mxu0 %v3527
    %5763 = vmatpush.bf16.msra.mxu0 %v3525
    %5764 = vmatpush.bf16.msra.mxu0 %v3523
    %5765 = vmatpush.bf16.msra.mxu0 %v3521
    %5766 = vmatpush.bf16.msra.mxu0 %v3519
    %5767 = vmatpush.bf16.msra.mxu0 %v3517
    %5768 = vmatmul.bf16.gmra.mxu0 %v895
    %v5769 = vpop.f32.mrf.mxu0
    %v5770 = vadd.f32 %v5756, %v5769
    %v5771 = vpop.f32.mrf.mxu0
    %v5772 = vadd.f32 %v5758, %v5771
    %5773 = vdwg.mxu0
    %5774 = vmatpush.bf16.msra.mxu0 %v3547
    %5775 = vmatpush.bf16.msra.mxu0 %v3545
    %5776 = vmatpush.bf16.msra.mxu0 %v3543
    %5777 = vmatpush.bf16.msra.mxu0 %v3541
    %5778 = vmatpush.bf16.msra.mxu0 %v3539
    %5779 = vmatpush.bf16.msra.mxu0 %v3537
    %5780 = vmatpush.bf16.msra.mxu0 %v3535
    %5781 = vmatpush.bf16.msra.mxu0 %v3533
    %5782 = vmatmul.bf16.gmra.mxu0 %v896
    %v5783 = vpop.f32.mrf.mxu0
    %v5784 = vadd.f32 %v5770, %v5783
    %v5785 = vpop.f32.mrf.mxu0
    %v5786 = vadd.f32 %v5772, %v5785
    %5787 = vdwg.mxu0
    %5788 = vmatpush.bf16.msra.mxu0 %v3563
    %5789 = vmatpush.bf16.msra.mxu0 %v3561
    %5790 = vmatpush.bf16.msra.mxu0 %v3559
    %5791 = vmatpush.bf16.msra.mxu0 %v3557
    %5792 = vmatpush.bf16.msra.mxu0 %v3555
    %5793 = vmatpush.bf16.msra.mxu0 %v3553
    %5794 = vmatpush.bf16.msra.mxu0 %v3551
    %5795 = vmatpush.bf16.msra.mxu0 %v3549
    %5796 = vmatmul.bf16.gmra.mxu0 %v897
    %v5797 = vpop.f32.mrf.mxu0
    %v5798 = vadd.f32 %v5784, %v5797
    %v5799 = vpop.f32.mrf.mxu0
    %v5800 = vadd.f32 %v5786, %v5799
    %5801 = vdwg.mxu0
    %5802 = vmatpush.bf16.msra.mxu0 %v3579
    %5803 = vmatpush.bf16.msra.mxu0 %v3577
    %5804 = vmatpush.bf16.msra.mxu0 %v3575
    %5805 = vmatpush.bf16.msra.mxu0 %v3573
    %5806 = vmatpush.bf16.msra.mxu0 %v3571
    %5807 = vmatpush.bf16.msra.mxu0 %v3569
    %5808 = vmatpush.bf16.msra.mxu0 %v3567
    %5809 = vmatpush.bf16.msra.mxu0 %v3565
    %5810 = vmatmul.bf16.gmra.mxu0 %v914
    %v5811 = vpop.f32.mrf.mxu0
    %v5812 = vadd.f32 %v5798, %v5811
    %v5813 = vpop.f32.mrf.mxu0
    %v5814 = vadd.f32 %v5800, %v5813
    %5815 = vdwg.mxu0
    %5816 = vmatpush.bf16.msra.mxu0 %v3595
    %5817 = vmatpush.bf16.msra.mxu0 %v3593
    %5818 = vmatpush.bf16.msra.mxu0 %v3591
    %5819 = vmatpush.bf16.msra.mxu0 %v3589
    %5820 = vmatpush.bf16.msra.mxu0 %v3587
    %5821 = vmatpush.bf16.msra.mxu0 %v3585
    %5822 = vmatpush.bf16.msra.mxu0 %v3583
    %5823 = vmatpush.bf16.msra.mxu0 %v3581
    %5824 = vmatmul.bf16.gmra.mxu0 %v915
    %v5825 = vpop.f32.mrf.mxu0
    %v5826 = vadd.f32 %v5812, %v5825
    %v5827 = vpop.f32.mrf.mxu0
    %v5828 = vadd.f32 %v5814, %v5827
    %5829 = vdwg.mxu0
    %5830 = vmatpush.bf16.msra.mxu0 %v3611
    %5831 = vmatpush.bf16.msra.mxu0 %v3609
    %5832 = vmatpush.bf16.msra.mxu0 %v3607
    %5833 = vmatpush.bf16.msra.mxu0 %v3605
    %5834 = vmatpush.bf16.msra.mxu0 %v3603
    %5835 = vmatpush.bf16.msra.mxu0 %v3601
    %5836 = vmatpush.bf16.msra.mxu0 %v3599
    %5837 = vmatpush.bf16.msra.mxu0 %v3597
    %5838 = vmatmul.bf16.gmra.mxu0 %v916
    %v5839 = vpop.f32.mrf.mxu0
    %v5840 = vadd.f32 %v5826, %v5839
    %v5841 = vpop.f32.mrf.mxu0
    %v5842 = vadd.f32 %v5828, %v5841
    %5843 = vdwg.mxu0
    %5844 = vmatpush.bf16.msra.mxu0 %v3627
    %5845 = vmatpush.bf16.msra.mxu0 %v3625
    %5846 = vmatpush.bf16.msra.mxu0 %v3623
    %5847 = vmatpush.bf16.msra.mxu0 %v3621
    %5848 = vmatpush.bf16.msra.mxu0 %v3619
    %5849 = vmatpush.bf16.msra.mxu0 %v3617
    %5850 = vmatpush.bf16.msra.mxu0 %v3615
    %5851 = vmatpush.bf16.msra.mxu0 %v3613
    %5852 = vmatmul.bf16.gmra.mxu0 %v917
    %v5853 = vpop.f32.mrf.mxu0
    %v5854 = vadd.f32 %v5840, %v5853
    %v5855 = vpop.f32.mrf.mxu0
    %v5856 = vadd.f32 %v5842, %v5855
    %5857 = vdwg.mxu0
    %5858 = vmatpush.bf16.msra.mxu0 %v3643
    %5859 = vmatpush.bf16.msra.mxu0 %v3641
    %5860 = vmatpush.bf16.msra.mxu0 %v3639
    %5861 = vmatpush.bf16.msra.mxu0 %v3637
    %5862 = vmatpush.bf16.msra.mxu0 %v3635
    %5863 = vmatpush.bf16.msra.mxu0 %v3633
    %5864 = vmatpush.bf16.msra.mxu0 %v3631
    %5865 = vmatpush.bf16.msra.mxu0 %v3629
    %5866 = vmatmul.bf16.gmra.mxu0 %v918
    %v5867 = vpop.f32.mrf.mxu0
    %v5868 = vadd.f32 %v5854, %v5867
    %v5869 = vpop.f32.mrf.mxu0
    %v5870 = vadd.f32 %v5856, %v5869
    %5871 = vdwg.mxu0
    %5872 = vmatpush.bf16.msra.mxu0 %v3659
    %5873 = vmatpush.bf16.msra.mxu0 %v3657
    %5874 = vmatpush.bf16.msra.mxu0 %v3655
    %5875 = vmatpush.bf16.msra.mxu0 %v3653
    %5876 = vmatpush.bf16.msra.mxu0 %v3651
    %5877 = vmatpush.bf16.msra.mxu0 %v3649
    %5878 = vmatpush.bf16.msra.mxu0 %v3647
    %5879 = vmatpush.bf16.msra.mxu0 %v3645
    %5880 = vmatmul.bf16.gmra.mxu0 %v919
    %v5881 = vpop.f32.mrf.mxu0
    %v5882 = vadd.f32 %v5868, %v5881
    %v5883 = vpop.f32.mrf.mxu0
    %v5884 = vadd.f32 %v5870, %v5883
    %5885 = vdwg.mxu0
    %5886 = vmatpush.bf16.msra.mxu0 %v3675
    %5887 = vmatpush.bf16.msra.mxu0 %v3673
    %5888 = vmatpush.bf16.msra.mxu0 %v3671
    %5889 = vmatpush.bf16.msra.mxu0 %v3669
    %5890 = vmatpush.bf16.msra.mxu0 %v3667
    %5891 = vmatpush.bf16.msra.mxu0 %v3665
    %5892 = vmatpush.bf16.msra.mxu0 %v3663
    %5893 = vmatpush.bf16.msra.mxu0 %v3661
    %5894 = vmatmul.bf16.gmra.mxu0 %v920
    %v5895 = vpop.f32.mrf.mxu0
    %v5896 = vadd.f32 %v5882, %v5895
    %v5897 = vpop.f32.mrf.mxu0
    %v5898 = vadd.f32 %v5884, %v5897
    %5899 = vdwg.mxu0
    %5900 = vmatpush.bf16.msra.mxu0 %v3691
    %5901 = vmatpush.bf16.msra.mxu0 %v3689
    %5902 = vmatpush.bf16.msra.mxu0 %v3687
    %5903 = vmatpush.bf16.msra.mxu0 %v3685
    %5904 = vmatpush.bf16.msra.mxu0 %v3683
    %5905 = vmatpush.bf16.msra.mxu0 %v3681
    %5906 = vmatpush.bf16.msra.mxu0 %v3679
    %5907 = vmatpush.bf16.msra.mxu0 %v3677
    %5908 = vmatmul.bf16.gmra.mxu0 %v921
    %v5909 = vpop.f32.mrf.mxu0
    %v5910 = vadd.f32 %v5896, %v5909
    %v5911 = vpop.f32.mrf.mxu0
    %v5912 = vadd.f32 %v5898, %v5911
    %5913 = vdwg.mxu0
    %5914 = vmatpush.bf16.msra.mxu0 %v3707
    %5915 = vmatpush.bf16.msra.mxu0 %v3705
    %5916 = vmatpush.bf16.msra.mxu0 %v3703
    %5917 = vmatpush.bf16.msra.mxu0 %v3701
    %5918 = vmatpush.bf16.msra.mxu0 %v3699
    %5919 = vmatpush.bf16.msra.mxu0 %v3697
    %5920 = vmatpush.bf16.msra.mxu0 %v3695
    %5921 = vmatpush.bf16.msra.mxu0 %v3693
    %5922 = vmatmul.bf16.gmra.mxu0 %v938
    %v5923 = vpop.f32.mrf.mxu0
    %v5924 = vadd.f32 %v5910, %v5923
    %v5925 = vpop.f32.mrf.mxu0
    %v5926 = vadd.f32 %v5912, %v5925
    %5927 = vdwg.mxu0
    %5928 = vmatpush.bf16.msra.mxu0 %v3723
    %5929 = vmatpush.bf16.msra.mxu0 %v3721
    %5930 = vmatpush.bf16.msra.mxu0 %v3719
    %5931 = vmatpush.bf16.msra.mxu0 %v3717
    %5932 = vmatpush.bf16.msra.mxu0 %v3715
    %5933 = vmatpush.bf16.msra.mxu0 %v3713
    %5934 = vmatpush.bf16.msra.mxu0 %v3711
    %5935 = vmatpush.bf16.msra.mxu0 %v3709
    %5936 = vmatmul.bf16.gmra.mxu0 %v939
    %v5937 = vpop.f32.mrf.mxu0
    %v5938 = vadd.f32 %v5924, %v5937
    %v5939 = vpop.f32.mrf.mxu0
    %v5940 = vadd.f32 %v5926, %v5939
    %5941 = vdwg.mxu0
    %5942 = vmatpush.bf16.msra.mxu0 %v3739
    %5943 = vmatpush.bf16.msra.mxu0 %v3737
    %5944 = vmatpush.bf16.msra.mxu0 %v3735
    %5945 = vmatpush.bf16.msra.mxu0 %v3733
    %5946 = vmatpush.bf16.msra.mxu0 %v3731
    %5947 = vmatpush.bf16.msra.mxu0 %v3729
    %5948 = vmatpush.bf16.msra.mxu0 %v3727
    %5949 = vmatpush.bf16.msra.mxu0 %v3725
    %5950 = vmatmul.bf16.gmra.mxu0 %v940
    %v5951 = vpop.f32.mrf.mxu0
    %v5952 = vadd.f32 %v5938, %v5951
    %v5953 = vpop.f32.mrf.mxu0
    %v5954 = vadd.f32 %v5940, %v5953
    %5955 = vdwg.mxu0
    %5956 = vmatpush.bf16.msra.mxu0 %v3755
    %5957 = vmatpush.bf16.msra.mxu0 %v3753
    %5958 = vmatpush.bf16.msra.mxu0 %v3751
    %5959 = vmatpush.bf16.msra.mxu0 %v3749
    %5960 = vmatpush.bf16.msra.mxu0 %v3747
    %5961 = vmatpush.bf16.msra.mxu0 %v3745
    %5962 = vmatpush.bf16.msra.mxu0 %v3743
    %5963 = vmatpush.bf16.msra.mxu0 %v3741
    %5964 = vmatmul.bf16.gmra.mxu0 %v941
    %v5965 = vpop.f32.mrf.mxu0
    %v5966 = vadd.f32 %v5952, %v5965
    %v5967 = vpop.f32.mrf.mxu0
    %v5968 = vadd.f32 %v5954, %v5967
    %5969 = vdwg.mxu0
    %5970 = vmatpush.bf16.msra.mxu0 %v3771
    %5971 = vmatpush.bf16.msra.mxu0 %v3769
    %5972 = vmatpush.bf16.msra.mxu0 %v3767
    %5973 = vmatpush.bf16.msra.mxu0 %v3765
    %5974 = vmatpush.bf16.msra.mxu0 %v3763
    %5975 = vmatpush.bf16.msra.mxu0 %v3761
    %5976 = vmatpush.bf16.msra.mxu0 %v3759
    %5977 = vmatpush.bf16.msra.mxu0 %v3757
    %5978 = vmatmul.bf16.gmra.mxu0 %v942
    %v5979 = vpop.f32.mrf.mxu0
    %v5980 = vadd.f32 %v5966, %v5979
    %v5981 = vpop.f32.mrf.mxu0
    %v5982 = vadd.f32 %v5968, %v5981
    %5983 = vdwg.mxu0
    %5984 = vmatpush.bf16.msra.mxu0 %v3787
    %5985 = vmatpush.bf16.msra.mxu0 %v3785
    %5986 = vmatpush.bf16.msra.mxu0 %v3783
    %5987 = vmatpush.bf16.msra.mxu0 %v3781
    %5988 = vmatpush.bf16.msra.mxu0 %v3779
    %5989 = vmatpush.bf16.msra.mxu0 %v3777
    %5990 = vmatpush.bf16.msra.mxu0 %v3775
    %5991 = vmatpush.bf16.msra.mxu0 %v3773
    %5992 = vmatmul.bf16.gmra.mxu0 %v943
    %v5993 = vpop.f32.mrf.mxu0
    %v5994 = vadd.f32 %v5980, %v5993
    %v5995 = vpop.f32.mrf.mxu0
    %v5996 = vadd.f32 %v5982, %v5995
    %5997 = vdwg.mxu0
    %5998 = vmatpush.bf16.msra.mxu0 %v3803
    %5999 = vmatpush.bf16.msra.mxu0 %v3801
    %6000 = vmatpush.bf16.msra.mxu0 %v3799
    %6001 = vmatpush.bf16.msra.mxu0 %v3797
    %6002 = vmatpush.bf16.msra.mxu0 %v3795
    %6003 = vmatpush.bf16.msra.mxu0 %v3793
    %6004 = vmatpush.bf16.msra.mxu0 %v3791
    %6005 = vmatpush.bf16.msra.mxu0 %v3789
    %6006 = vmatmul.bf16.gmra.mxu0 %v944
    %v6007 = vpop.f32.mrf.mxu0
    %v6008 = vadd.f32 %v5994, %v6007
    %v6009 = vpop.f32.mrf.mxu0
    %v6010 = vadd.f32 %v5996, %v6009
    %6011 = vdwg.mxu0
    %6012 = vmatpush.bf16.msra.mxu0 %v3819
    %6013 = vmatpush.bf16.msra.mxu0 %v3817
    %6014 = vmatpush.bf16.msra.mxu0 %v3815
    %6015 = vmatpush.bf16.msra.mxu0 %v3813
    %6016 = vmatpush.bf16.msra.mxu0 %v3811
    %6017 = vmatpush.bf16.msra.mxu0 %v3809
    %6018 = vmatpush.bf16.msra.mxu0 %v3807
    %6019 = vmatpush.bf16.msra.mxu0 %v3805
    %6020 = vmatmul.bf16.gmra.mxu0 %v945
    %v6021 = vpop.f32.mrf.mxu0
    %v6022 = vadd.f32 %v6008, %v6021
    %v6023 = vpop.f32.mrf.mxu0
    %v6024 = vadd.f32 %v6010, %v6023
    %6025 = vdwg.mxu0
    %6026 = vmatpush.bf16.msra.mxu0 %v3835
    %6027 = vmatpush.bf16.msra.mxu0 %v3833
    %6028 = vmatpush.bf16.msra.mxu0 %v3831
    %6029 = vmatpush.bf16.msra.mxu0 %v3829
    %6030 = vmatpush.bf16.msra.mxu0 %v3827
    %6031 = vmatpush.bf16.msra.mxu0 %v3825
    %6032 = vmatpush.bf16.msra.mxu0 %v3823
    %6033 = vmatpush.bf16.msra.mxu0 %v3821
    %6034 = vmatmul.bf16.gmra.mxu0 %v962
    %v6035 = vpop.f32.mrf.mxu0
    %v6036 = vadd.f32 %v6022, %v6035
    %v6037 = vpop.f32.mrf.mxu0
    %v6038 = vadd.f32 %v6024, %v6037
    %6039 = vdwg.mxu0
    %6040 = vmatpush.bf16.msra.mxu0 %v3851
    %6041 = vmatpush.bf16.msra.mxu0 %v3849
    %6042 = vmatpush.bf16.msra.mxu0 %v3847
    %6043 = vmatpush.bf16.msra.mxu0 %v3845
    %6044 = vmatpush.bf16.msra.mxu0 %v3843
    %6045 = vmatpush.bf16.msra.mxu0 %v3841
    %6046 = vmatpush.bf16.msra.mxu0 %v3839
    %6047 = vmatpush.bf16.msra.mxu0 %v3837
    %6048 = vmatmul.bf16.gmra.mxu0 %v963
    %v6049 = vpop.f32.mrf.mxu0
    %v6050 = vadd.f32 %v6036, %v6049
    %v6051 = vpop.f32.mrf.mxu0
    %v6052 = vadd.f32 %v6038, %v6051
    %6053 = vdwg.mxu0
    %6054 = vmatpush.bf16.msra.mxu0 %v3867
    %6055 = vmatpush.bf16.msra.mxu0 %v3865
    %6056 = vmatpush.bf16.msra.mxu0 %v3863
    %6057 = vmatpush.bf16.msra.mxu0 %v3861
    %6058 = vmatpush.bf16.msra.mxu0 %v3859
    %6059 = vmatpush.bf16.msra.mxu0 %v3857
    %6060 = vmatpush.bf16.msra.mxu0 %v3855
    %6061 = vmatpush.bf16.msra.mxu0 %v3853
    %6062 = vmatmul.bf16.gmra.mxu0 %v964
    %v6063 = vpop.f32.mrf.mxu0
    %v6064 = vadd.f32 %v6050, %v6063
    %v6065 = vpop.f32.mrf.mxu0
    %v6066 = vadd.f32 %v6052, %v6065
    %6067 = vdwg.mxu0
    %6068 = vmatpush.bf16.msra.mxu0 %v3883
    %6069 = vmatpush.bf16.msra.mxu0 %v3881
    %6070 = vmatpush.bf16.msra.mxu0 %v3879
    %6071 = vmatpush.bf16.msra.mxu0 %v3877
    %6072 = vmatpush.bf16.msra.mxu0 %v3875
    %6073 = vmatpush.bf16.msra.mxu0 %v3873
    %6074 = vmatpush.bf16.msra.mxu0 %v3871
    %6075 = vmatpush.bf16.msra.mxu0 %v3869
    %6076 = vmatmul.bf16.gmra.mxu0 %v965
    %v6077 = vpop.f32.mrf.mxu0
    %v6078 = vadd.f32 %v6064, %v6077
    %v6079 = vpop.f32.mrf.mxu0
    %v6080 = vadd.f32 %v6066, %v6079
    %6081 = vdwg.mxu0
    %6082 = vmatpush.bf16.msra.mxu0 %v3899
    %6083 = vmatpush.bf16.msra.mxu0 %v3897
    %6084 = vmatpush.bf16.msra.mxu0 %v3895
    %6085 = vmatpush.bf16.msra.mxu0 %v3893
    %6086 = vmatpush.bf16.msra.mxu0 %v3891
    %6087 = vmatpush.bf16.msra.mxu0 %v3889
    %6088 = vmatpush.bf16.msra.mxu0 %v3887
    %6089 = vmatpush.bf16.msra.mxu0 %v3885
    %6090 = vmatmul.bf16.gmra.mxu0 %v966
    %v6091 = vpop.f32.mrf.mxu0
    %v6092 = vadd.f32 %v6078, %v6091
    %v6093 = vpop.f32.mrf.mxu0
    %v6094 = vadd.f32 %v6080, %v6093
    %6095 = vdwg.mxu0
    %6096 = vmatpush.bf16.msra.mxu0 %v3915
    %6097 = vmatpush.bf16.msra.mxu0 %v3913
    %6098 = vmatpush.bf16.msra.mxu0 %v3911
    %6099 = vmatpush.bf16.msra.mxu0 %v3909
    %6100 = vmatpush.bf16.msra.mxu0 %v3907
    %6101 = vmatpush.bf16.msra.mxu0 %v3905
    %6102 = vmatpush.bf16.msra.mxu0 %v3903
    %6103 = vmatpush.bf16.msra.mxu0 %v3901
    %6104 = vmatmul.bf16.gmra.mxu0 %v967
    %v6105 = vpop.f32.mrf.mxu0
    %v6106 = vadd.f32 %v6092, %v6105
    %v6107 = vpop.f32.mrf.mxu0
    %v6108 = vadd.f32 %v6094, %v6107
    %6109 = vdwg.mxu0
    %6110 = vmatpush.bf16.msra.mxu0 %v3931
    %6111 = vmatpush.bf16.msra.mxu0 %v3929
    %6112 = vmatpush.bf16.msra.mxu0 %v3927
    %6113 = vmatpush.bf16.msra.mxu0 %v3925
    %6114 = vmatpush.bf16.msra.mxu0 %v3923
    %6115 = vmatpush.bf16.msra.mxu0 %v3921
    %6116 = vmatpush.bf16.msra.mxu0 %v3919
    %6117 = vmatpush.bf16.msra.mxu0 %v3917
    %6118 = vmatmul.bf16.gmra.mxu0 %v968
    %v6119 = vpop.f32.mrf.mxu0
    %v6120 = vadd.f32 %v6106, %v6119
    %v6121 = vpop.f32.mrf.mxu0
    %v6122 = vadd.f32 %v6108, %v6121
    %6123 = vdwg.mxu0
    %6124 = vmatpush.bf16.msra.mxu0 %v3947
    %6125 = vmatpush.bf16.msra.mxu0 %v3945
    %6126 = vmatpush.bf16.msra.mxu0 %v3943
    %6127 = vmatpush.bf16.msra.mxu0 %v3941
    %6128 = vmatpush.bf16.msra.mxu0 %v3939
    %6129 = vmatpush.bf16.msra.mxu0 %v3937
    %6130 = vmatpush.bf16.msra.mxu0 %v3935
    %6131 = vmatpush.bf16.msra.mxu0 %v3933
    %6132 = vmatmul.bf16.gmra.mxu0 %v969
    %v6133 = vpop.f32.mrf.mxu0
    %v6134 = vadd.f32 %v6120, %v6133
    %v6135 = vpop.f32.mrf.mxu0
    %v6136 = vadd.f32 %v6122, %v6135
    %6137 = vdwg.mxu0
    %6138 = vmatpush.bf16.msra.mxu0 %v3963
    %6139 = vmatpush.bf16.msra.mxu0 %v3961
    %6140 = vmatpush.bf16.msra.mxu0 %v3959
    %6141 = vmatpush.bf16.msra.mxu0 %v3957
    %6142 = vmatpush.bf16.msra.mxu0 %v3955
    %6143 = vmatpush.bf16.msra.mxu0 %v3953
    %6144 = vmatpush.bf16.msra.mxu0 %v3951
    %6145 = vmatpush.bf16.msra.mxu0 %v3949
    %6146 = vmatmul.bf16.gmra.mxu0 %v986
    %v6147 = vpop.f32.mrf.mxu0
    %v6148 = vadd.f32 %v6134, %v6147
    %v6149 = vpop.f32.mrf.mxu0
    %v6150 = vadd.f32 %v6136, %v6149
    %6151 = vdwg.mxu0
    %6152 = vmatpush.bf16.msra.mxu0 %v3979
    %6153 = vmatpush.bf16.msra.mxu0 %v3977
    %6154 = vmatpush.bf16.msra.mxu0 %v3975
    %6155 = vmatpush.bf16.msra.mxu0 %v3973
    %6156 = vmatpush.bf16.msra.mxu0 %v3971
    %6157 = vmatpush.bf16.msra.mxu0 %v3969
    %6158 = vmatpush.bf16.msra.mxu0 %v3967
    %6159 = vmatpush.bf16.msra.mxu0 %v3965
    %6160 = vmatmul.bf16.gmra.mxu0 %v987
    %v6161 = vpop.f32.mrf.mxu0
    %v6162 = vadd.f32 %v6148, %v6161
    %v6163 = vpop.f32.mrf.mxu0
    %v6164 = vadd.f32 %v6150, %v6163
    %6165 = vdwg.mxu0
    %6166 = vmatpush.bf16.msra.mxu0 %v3995
    %6167 = vmatpush.bf16.msra.mxu0 %v3993
    %6168 = vmatpush.bf16.msra.mxu0 %v3991
    %6169 = vmatpush.bf16.msra.mxu0 %v3989
    %6170 = vmatpush.bf16.msra.mxu0 %v3987
    %6171 = vmatpush.bf16.msra.mxu0 %v3985
    %6172 = vmatpush.bf16.msra.mxu0 %v3983
    %6173 = vmatpush.bf16.msra.mxu0 %v3981
    %6174 = vmatmul.bf16.gmra.mxu0 %v988
    %v6175 = vpop.f32.mrf.mxu0
    %v6176 = vadd.f32 %v6162, %v6175
    %v6177 = vpop.f32.mrf.mxu0
    %v6178 = vadd.f32 %v6164, %v6177
    %6179 = vdwg.mxu0
    %6180 = vmatpush.bf16.msra.mxu0 %v4011
    %6181 = vmatpush.bf16.msra.mxu0 %v4009
    %6182 = vmatpush.bf16.msra.mxu0 %v4007
    %6183 = vmatpush.bf16.msra.mxu0 %v4005
    %6184 = vmatpush.bf16.msra.mxu0 %v4003
    %6185 = vmatpush.bf16.msra.mxu0 %v4001
    %6186 = vmatpush.bf16.msra.mxu0 %v3999
    %6187 = vmatpush.bf16.msra.mxu0 %v3997
    %6188 = vmatmul.bf16.gmra.mxu0 %v989
    %v6189 = vpop.f32.mrf.mxu0
    %v6190 = vadd.f32 %v6176, %v6189
    %v6191 = vpop.f32.mrf.mxu0
    %v6192 = vadd.f32 %v6178, %v6191
    %6193 = vdwg.mxu0
    %6194 = vmatpush.bf16.msra.mxu0 %v4027
    %6195 = vmatpush.bf16.msra.mxu0 %v4025
    %6196 = vmatpush.bf16.msra.mxu0 %v4023
    %6197 = vmatpush.bf16.msra.mxu0 %v4021
    %6198 = vmatpush.bf16.msra.mxu0 %v4019
    %6199 = vmatpush.bf16.msra.mxu0 %v4017
    %6200 = vmatpush.bf16.msra.mxu0 %v4015
    %6201 = vmatpush.bf16.msra.mxu0 %v4013
    %6202 = vmatmul.bf16.gmra.mxu0 %v990
    %v6203 = vpop.f32.mrf.mxu0
    %v6204 = vadd.f32 %v6190, %v6203
    %v6205 = vpop.f32.mrf.mxu0
    %v6206 = vadd.f32 %v6192, %v6205
    %6207 = vdwg.mxu0
    %6208 = vmatpush.bf16.msra.mxu0 %v4043
    %6209 = vmatpush.bf16.msra.mxu0 %v4041
    %6210 = vmatpush.bf16.msra.mxu0 %v4039
    %6211 = vmatpush.bf16.msra.mxu0 %v4037
    %6212 = vmatpush.bf16.msra.mxu0 %v4035
    %6213 = vmatpush.bf16.msra.mxu0 %v4033
    %6214 = vmatpush.bf16.msra.mxu0 %v4031
    %6215 = vmatpush.bf16.msra.mxu0 %v4029
    %6216 = vmatmul.bf16.gmra.mxu0 %v991
    %v6217 = vpop.f32.mrf.mxu0
    %v6218 = vadd.f32 %v6204, %v6217
    %v6219 = vpop.f32.mrf.mxu0
    %v6220 = vadd.f32 %v6206, %v6219
    %6221 = vdwg.mxu0
    %6222 = vmatpush.bf16.msra.mxu0 %v4059
    %6223 = vmatpush.bf16.msra.mxu0 %v4057
    %6224 = vmatpush.bf16.msra.mxu0 %v4055
    %6225 = vmatpush.bf16.msra.mxu0 %v4053
    %6226 = vmatpush.bf16.msra.mxu0 %v4051
    %6227 = vmatpush.bf16.msra.mxu0 %v4049
    %6228 = vmatpush.bf16.msra.mxu0 %v4047
    %6229 = vmatpush.bf16.msra.mxu0 %v4045
    %6230 = vmatmul.bf16.gmra.mxu0 %v992
    %v6231 = vpop.f32.mrf.mxu0
    %v6232 = vadd.f32 %v6218, %v6231
    %v6233 = vpop.f32.mrf.mxu0
    %v6234 = vadd.f32 %v6220, %v6233
    %6235 = vdwg.mxu0
    %6236 = vmatpush.bf16.msra.mxu0 %v4075
    %6237 = vmatpush.bf16.msra.mxu0 %v4073
    %6238 = vmatpush.bf16.msra.mxu0 %v4071
    %6239 = vmatpush.bf16.msra.mxu0 %v4069
    %6240 = vmatpush.bf16.msra.mxu0 %v4067
    %6241 = vmatpush.bf16.msra.mxu0 %v4065
    %6242 = vmatpush.bf16.msra.mxu0 %v4063
    %6243 = vmatpush.bf16.msra.mxu0 %v4061
    %6244 = vmatmul.bf16.gmra.mxu0 %v993
    %v6245 = vpop.f32.mrf.mxu0
    %v6246 = vadd.f32 %v6232, %v6245
    %v6247 = vpop.f32.mrf.mxu0
    %v6248 = vadd.f32 %v6234, %v6247
    %6249 = vdwg.mxu0
    %6250 = vmatpush.bf16.msra.mxu0 %v4091
    %6251 = vmatpush.bf16.msra.mxu0 %v4089
    %6252 = vmatpush.bf16.msra.mxu0 %v4087
    %6253 = vmatpush.bf16.msra.mxu0 %v4085
    %6254 = vmatpush.bf16.msra.mxu0 %v4083
    %6255 = vmatpush.bf16.msra.mxu0 %v4081
    %6256 = vmatpush.bf16.msra.mxu0 %v4079
    %6257 = vmatpush.bf16.msra.mxu0 %v4077
    %6258 = vmatmul.bf16.gmra.mxu0 %v1010
    %v6259 = vpop.f32.mrf.mxu0
    %v6260 = vadd.f32 %v6246, %v6259
    %v6261 = vpop.f32.mrf.mxu0
    %v6262 = vadd.f32 %v6248, %v6261
    %6263 = vdwg.mxu0
    %6264 = vmatpush.bf16.msra.mxu0 %v4107
    %6265 = vmatpush.bf16.msra.mxu0 %v4105
    %6266 = vmatpush.bf16.msra.mxu0 %v4103
    %6267 = vmatpush.bf16.msra.mxu0 %v4101
    %6268 = vmatpush.bf16.msra.mxu0 %v4099
    %6269 = vmatpush.bf16.msra.mxu0 %v4097
    %6270 = vmatpush.bf16.msra.mxu0 %v4095
    %6271 = vmatpush.bf16.msra.mxu0 %v4093
    %6272 = vmatmul.bf16.gmra.mxu0 %v1011
    %v6273 = vpop.f32.mrf.mxu0
    %v6274 = vadd.f32 %v6260, %v6273
    %v6275 = vpop.f32.mrf.mxu0
    %v6276 = vadd.f32 %v6262, %v6275
    %6277 = vdwg.mxu0
    %6278 = vmatpush.bf16.msra.mxu0 %v4123
    %6279 = vmatpush.bf16.msra.mxu0 %v4121
    %6280 = vmatpush.bf16.msra.mxu0 %v4119
    %6281 = vmatpush.bf16.msra.mxu0 %v4117
    %6282 = vmatpush.bf16.msra.mxu0 %v4115
    %6283 = vmatpush.bf16.msra.mxu0 %v4113
    %6284 = vmatpush.bf16.msra.mxu0 %v4111
    %6285 = vmatpush.bf16.msra.mxu0 %v4109
    %6286 = vmatmul.bf16.gmra.mxu0 %v1012
    %v6287 = vpop.f32.mrf.mxu0
    %v6288 = vadd.f32 %v6274, %v6287
    %v6289 = vpop.f32.mrf.mxu0
    %v6290 = vadd.f32 %v6276, %v6289
    %6291 = vdwg.mxu0
    %6292 = vmatpush.bf16.msra.mxu0 %v4139
    %6293 = vmatpush.bf16.msra.mxu0 %v4137
    %6294 = vmatpush.bf16.msra.mxu0 %v4135
    %6295 = vmatpush.bf16.msra.mxu0 %v4133
    %6296 = vmatpush.bf16.msra.mxu0 %v4131
    %6297 = vmatpush.bf16.msra.mxu0 %v4129
    %6298 = vmatpush.bf16.msra.mxu0 %v4127
    %6299 = vmatpush.bf16.msra.mxu0 %v4125
    %6300 = vmatmul.bf16.gmra.mxu0 %v1013
    %v6301 = vpop.f32.mrf.mxu0
    %v6302 = vadd.f32 %v6288, %v6301
    %v6303 = vpop.f32.mrf.mxu0
    %v6304 = vadd.f32 %v6290, %v6303
    %6305 = vdwg.mxu0
    %6306 = vmatpush.bf16.msra.mxu0 %v4155
    %6307 = vmatpush.bf16.msra.mxu0 %v4153
    %6308 = vmatpush.bf16.msra.mxu0 %v4151
    %6309 = vmatpush.bf16.msra.mxu0 %v4149
    %6310 = vmatpush.bf16.msra.mxu0 %v4147
    %6311 = vmatpush.bf16.msra.mxu0 %v4145
    %6312 = vmatpush.bf16.msra.mxu0 %v4143
    %6313 = vmatpush.bf16.msra.mxu0 %v4141
    %6314 = vmatmul.bf16.gmra.mxu0 %v1014
    %v6315 = vpop.f32.mrf.mxu0
    %v6316 = vadd.f32 %v6302, %v6315
    %v6317 = vpop.f32.mrf.mxu0
    %v6318 = vadd.f32 %v6304, %v6317
    %6319 = vdwg.mxu0
    %6320 = vmatpush.bf16.msra.mxu0 %v4171
    %6321 = vmatpush.bf16.msra.mxu0 %v4169
    %6322 = vmatpush.bf16.msra.mxu0 %v4167
    %6323 = vmatpush.bf16.msra.mxu0 %v4165
    %6324 = vmatpush.bf16.msra.mxu0 %v4163
    %6325 = vmatpush.bf16.msra.mxu0 %v4161
    %6326 = vmatpush.bf16.msra.mxu0 %v4159
    %6327 = vmatpush.bf16.msra.mxu0 %v4157
    %6328 = vmatmul.bf16.gmra.mxu0 %v1015
    %v6329 = vpop.f32.mrf.mxu0
    %v6330 = vadd.f32 %v6316, %v6329
    %v6331 = vpop.f32.mrf.mxu0
    %v6332 = vadd.f32 %v6318, %v6331
    %6333 = vdwg.mxu0
    %6334 = vmatpush.bf16.msra.mxu0 %v4187
    %6335 = vmatpush.bf16.msra.mxu0 %v4185
    %6336 = vmatpush.bf16.msra.mxu0 %v4183
    %6337 = vmatpush.bf16.msra.mxu0 %v4181
    %6338 = vmatpush.bf16.msra.mxu0 %v4179
    %6339 = vmatpush.bf16.msra.mxu0 %v4177
    %6340 = vmatpush.bf16.msra.mxu0 %v4175
    %6341 = vmatpush.bf16.msra.mxu0 %v4173
    %6342 = vmatmul.bf16.gmra.mxu0 %v1016
    %v6343 = vpop.f32.mrf.mxu0
    %v6344 = vadd.f32 %v6330, %v6343
    %v6345 = vpop.f32.mrf.mxu0
    %v6346 = vadd.f32 %v6332, %v6345
    %6347 = vdwg.mxu0
    %6348 = vmatpush.bf16.msra.mxu0 %v4203
    %6349 = vmatpush.bf16.msra.mxu0 %v4201
    %6350 = vmatpush.bf16.msra.mxu0 %v4199
    %6351 = vmatpush.bf16.msra.mxu0 %v4197
    %6352 = vmatpush.bf16.msra.mxu0 %v4195
    %6353 = vmatpush.bf16.msra.mxu0 %v4193
    %6354 = vmatpush.bf16.msra.mxu0 %v4191
    %6355 = vmatpush.bf16.msra.mxu0 %v4189
    %6356 = vmatmul.bf16.gmra.mxu0 %v1017
    %v6357 = vpop.f32.mrf.mxu0
    %v6358 = vadd.f32 %v6344, %v6357
    %v6359 = vpop.f32.mrf.mxu0
    %v6360 = vadd.f32 %v6346, %v6359
    %6361 = vdwg.mxu0
    %6362 = vmatpush.bf16.msra.mxu0 %v4219
    %6363 = vmatpush.bf16.msra.mxu0 %v4217
    %6364 = vmatpush.bf16.msra.mxu0 %v4215
    %6365 = vmatpush.bf16.msra.mxu0 %v4213
    %6366 = vmatpush.bf16.msra.mxu0 %v4211
    %6367 = vmatpush.bf16.msra.mxu0 %v4209
    %6368 = vmatpush.bf16.msra.mxu0 %v4207
    %6369 = vmatpush.bf16.msra.mxu0 %v4205
    %6370 = vmatmul.bf16.gmra.mxu0 %v1034
    %v6371 = vpop.f32.mrf.mxu0
    %v6372 = vadd.f32 %v6358, %v6371
    %v6373 = vpop.f32.mrf.mxu0
    %v6374 = vadd.f32 %v6360, %v6373
    %6375 = vdwg.mxu0
    %v6376 = vmax.f32 %v5686, 0.0
    %v6377 = vmax.f32 %v6372, 0.0
    %v6378 = vmax.f32 %v5688, 0.0
    %v6379 = vmax.f32 %v6374, 0.0
    %v6380 = vpack.c.bf16 %v6378, %v6376
    %v6381 = vpack.c.bf16 %v6379, %v6377
    %v6382 = vld [vmem:[%s3] sm:$0xf]
    %v6383 = vld [vmem:[%s3 + $0x4] sm:$0xf]
    %v6384 = vld [vmem:[%s3 + $0x8] sm:$0xf]
    %v6385 = vld [vmem:[%s3 + $0xc] sm:$0xf]
    %v6386 = vld [vmem:[%s3 + $0x10] sm:$0xf]
    %v6387 = vld [vmem:[%s3 + $0x14] sm:$0xf]
    %v6388 = vld [vmem:[%s3 + $0x18] sm:$0xf]
    %v6389 = vld [vmem:[%s3 + $0x1c] sm:$0xf]
    %v6390 = vld [vmem:[%s3 + $0x20] sm:$0xf]
    %v6391 = vld [vmem:[%s3 + $0x24] sm:$0xf]
    %v6392 = vld [vmem:[%s3 + $0x28] sm:$0xf]
    %v6393 = vld [vmem:[%s3 + $0x2c] sm:$0xf]
    %v6394 = vld [vmem:[%s3 + $0x30] sm:$0xf]
    %v6395 = vld [vmem:[%s3 + $0x34] sm:$0xf]
    %v6396 = vld [vmem:[%s3 + $0x38] sm:$0xf]
    %v6397 = vld [vmem:[%s3 + $0x3c] sm:$0xf]
    %v6398 = vld [vmem:[%s3 + $0x40] sm:$0xf]
    %v6399 = vld [vmem:[%s3 + $0x44] sm:$0xf]
    %v6400 = vld [vmem:[%s3 + $0x48] sm:$0xf]
    %v6401 = vld [vmem:[%s3 + $0x4c] sm:$0xf]
    %v6402 = vld [vmem:[%s3 + $0x50] sm:$0xf]
    %v6403 = vld [vmem:[%s3 + $0x54] sm:$0xf]
    %v6404 = vld [vmem:[%s3 + $0x58] sm:$0xf]
    %v6405 = vld [vmem:[%s3 + $0x5c] sm:$0xf]
    %v6406 = vld [vmem:[%s3 + $0x60] sm:$0xf]
    %v6407 = vld [vmem:[%s3 + $0x64] sm:$0xf]
    %v6408 = vld [vmem:[%s3 + $0x68] sm:$0xf]
    %v6409 = vld [vmem:[%s3 + $0x6c] sm:$0xf]
    %v6410 = vld [vmem:[%s3 + $0x70] sm:$0xf]
    %v6411 = vld [vmem:[%s3 + $0x74] sm:$0xf]
    %v6412 = vld [vmem:[%s3 + $0x78] sm:$0xf]
    %v6413 = vld [vmem:[%s3 + $0x7c] sm:$0xf]
    %v6414 = vld [vmem:[%s4] sm:$0x1]
    %v6416 = vperm.slane %v6414, 0
    %v6450 = vunpack.c.l.b16 %v6382
    %v6451 = vunpack.c.l.b16 %v6383
    %v6452 = vunpack.c.l.b16 %v6384
    %v6453 = vunpack.c.l.b16 %v6385
    %v6454 = vunpack.c.l.b16 %v6386
    %v6455 = vunpack.c.l.b16 %v6387
    %v6456 = vunpack.c.l.b16 %v6388
    %v6457 = vunpack.c.l.b16 %v6389
    %v6458 = vunpack.c.l.b16 %v6390
    %v6459 = vunpack.c.l.b16 %v6391
    %v6460 = vunpack.c.l.b16 %v6392
    %v6461 = vunpack.c.l.b16 %v6393
    %v6462 = vunpack.c.l.b16 %v6394
    %v6463 = vunpack.c.l.b16 %v6395
    %v6464 = vunpack.c.l.b16 %v6396
    %v6465 = vunpack.c.l.b16 %v6397
    %v6466 = vunpack.c.l.b16 %v6398
    %v6467 = vunpack.c.l.b16 %v6399
    %v6468 = vunpack.c.l.b16 %v6400
    %v6469 = vunpack.c.l.b16 %v6401
    %v6470 = vunpack.c.l.b16 %v6402
    %v6471 = vunpack.c.l.b16 %v6403
    %v6472 = vunpack.c.l.b16 %v6404
    %v6473 = vunpack.c.l.b16 %v6405
    %v6474 = vunpack.c.l.b16 %v6406
    %v6475 = vunpack.c.l.b16 %v6407
    %v6476 = vunpack.c.l.b16 %v6408
    %v6477 = vunpack.c.l.b16 %v6409
    %v6478 = vunpack.c.l.b16 %v6410
    %v6479 = vunpack.c.l.b16 %v6411
    %v6480 = vunpack.c.l.b16 %v6412
    %v6481 = vunpack.c.l.b16 %v6413
    %v6482 = vpack.c.b16 %v6451, %v6450
    %v6483 = vpack.c.b16 %v6453, %v6452
    %v6484 = vpack.c.b16 %v6455, %v6454
    %v6485 = vpack.c.b16 %v6457, %v6456
    %v6486 = vpack.c.b16 %v6459, %v6458
    %v6487 = vpack.c.b16 %v6461, %v6460
    %v6488 = vpack.c.b16 %v6463, %v6462
    %v6489 = vpack.c.b16 %v6465, %v6464
    %v6490 = vpack.c.b16 %v6467, %v6466
    %v6491 = vpack.c.b16 %v6469, %v6468
    %v6492 = vpack.c.b16 %v6471, %v6470
    %v6493 = vpack.c.b16 %v6473, %v6472
    %v6494 = vpack.c.b16 %v6475, %v6474
    %v6495 = vpack.c.b16 %v6477, %v6476
    %v6496 = vpack.c.b16 %v6479, %v6478
    %v6497 = vpack.c.b16 %v6481, %v6480
    %6514 = vmatpush.bf16.msra.mxu0 %v6489
    %6515 = vmatpush.bf16.msra.mxu0 %v6488
    %6516 = vmatpush.bf16.msra.mxu0 %v6487
    %6517 = vmatpush.bf16.msra.mxu0 %v6486
    %6518 = vmatpush.bf16.msra.mxu0 %v6485
    %6519 = vmatpush.bf16.msra.mxu0 %v6484
    %6520 = vmatpush.bf16.msra.mxu0 %v6483
    %6521 = vmatpush.bf16.msra.mxu0 %v6482
    %6522 = vmatmul.bf16.gmra.mxu0 %v6380
    %v6523 = vpop.f32.mrf.mxu0
    %v6524 = vadd.f32 %v6416, %v6523
    %v6525 = vpop.f32.mrf.mxu0
    %v6526 = vadd.f32 %v6416, %v6525
    %6527 = vdwg.mxu0
    %6528 = vmatpush.bf16.msra.mxu0 %v6497
    %6529 = vmatpush.bf16.msra.mxu0 %v6496
    %6530 = vmatpush.bf16.msra.mxu0 %v6495
    %6531 = vmatpush.bf16.msra.mxu0 %v6494
    %6532 = vmatpush.bf16.msra.mxu0 %v6493
    %6533 = vmatpush.bf16.msra.mxu0 %v6492
    %6534 = vmatpush.bf16.msra.mxu0 %v6491
    %6535 = vmatpush.bf16.msra.mxu0 %v6490
    %6536 = vmatmul.bf16.gmra.mxu0 %v6381
    %v6537 = vpop.f32.mrf.mxu0
    %v6538 = vadd.f32 %v6524, %v6537
    %v6539 = vpop.f32.mrf.mxu0
    %v6540 = vadd.f32 %v6526, %v6539
    %6541 = vdwg.mxu0
    %6542 = vst [vmem:[#allocation2] sm:$0xff] %v6538
    %6543 = vst [vmem:[#allocation2 + $0x8] sm:$0xff] %v6540
    // Predicated region
    $region22: #{qcnn_forward_pallas.7} parent=1 // pred_check
      _
    $region23: #{qcnn_forward_pallas.7} parent=1 // pred_check_branch
      %6545 = sbr.rel (0) target = $region25
    $region24: #{qcnn_forward_pallas.7} parent=1 // pred_region
      %6547 = vsyncadd [#allocation3], 224
      %s6548 = sshll.u32 [#allocation2], 4
      %s6549 = int_to_ptr.vmem [resolvable:$true] %s6548
      %s6550 = sshll.u32 %s5, 4
      %s6551 = int_to_ptr.hbm [resolvable:$true] %s6550
      %6556 = dma.vmem_to_hbm [thread:$0]  %s6549, 32, %s6551, [#allocation3], 32, 32, 2
    $region25: #{qcnn_forward_pallas.7} parent=1 // pred_fallthru
      _
    // Predicated region
    $region26: #{qcnn_forward_pallas.7} parent=1 // pred_check
      _
    $region27: #{qcnn_forward_pallas.7} parent=1 // pred_check_branch
      %6558 = sbr.rel (0) target = $region29
    $region28: #{qcnn_forward_pallas.7} parent=1 // pred_region
      %6560 = dma.done [#allocation3], 256
    $region29: #{qcnn_forward_pallas.7} parent=1 // pred_fallthru
      _
    %6561 = vsyncpa [#allocation3], 1

</llo_original>
